<compile_context>
chip_gen: v6e
topology: v6e:2x2x1
jax: 0.10.0
libtpu: 0.0.40
codegen_flags: <defaults>
</compile_context>

<pallas_src>
import functools

import jax
import jax.numpy as jnp
import numpy as np
from jax.experimental import pallas as pl
from jax.experimental.pallas import tpu as pltpu

_HIGHEST = jax.lax.Precision.HIGHEST


def _make_kernel(n_h, t_c):
    """Build the kernel closure over the static number of H tiles / wr column width."""

    def kernel(x_ref, xs_ref, mix_ref, wk_ref, wv_ref, wr_ref, o_ref,
               kv_acc, r_scr, xk_scr, xr_scr):
        """One (row-tile, H-tile) grid step.

        x_ref  : (tT, C)      activation rows (B folded into the row axis)
        xs_ref : (tT, C)      time-shifted rows (zeros at every sequence start)
        mix_ref: (4, C)       [time_mix_k, 1-time_mix_k, time_mix_r, 1-time_mix_r]
        wk_ref : (C, tH)      key-weight column tile (h-th)
        wv_ref : (tH, C)      value-weight row tile (h-th)
        wr_ref : (C, tC)      receptance-weight column tile (h-th)
        o_ref  : (tT, C)      output rows (written on the last h step)
        kv_acc : (tT, C) f32  accumulator for value(square(relu(key(xk))))
        r_scr  : (nH, tT, tC) f32 sigmoid(receptance) column blocks
        xk_scr / xr_scr : (tT, C) mixed activations in the matmul dtype
        """
        # program_id is read ONCE, at top level (interpret-mode safe).
        h = pl.program_id(1)                    # H / weight-streaming axis

        @pl.when(h == 0)
        def _():
            # Per row tile: build the mixed activations once, in f32.
            x = x_ref[...].astype(jnp.float32)
            xs = xs_ref[...].astype(jnp.float32)
            tmk = mix_ref[0:1, :].astype(jnp.float32)
            omk = mix_ref[1:2, :].astype(jnp.float32)
            tmr = mix_ref[2:3, :].astype(jnp.float32)
            omr = mix_ref[3:4, :].astype(jnp.float32)
            xk_scr[...] = (x * tmk + xs * omk).astype(xk_scr.dtype)
            xr_scr[...] = (x * tmr + xs * omr).astype(xr_scr.dtype)

        # k = square(relu(xk @ wk[:, h])); accumulate value(k) in f32.
        k = jnp.dot(xk_scr[...], wk_ref[...],
                    preferred_element_type=jnp.float32, precision=_HIGHEST)
        k = jnp.square(jnp.maximum(k, 0.0)).astype(wv_ref.dtype)
        kv_part = jnp.dot(k, wv_ref[...],
                          preferred_element_type=jnp.float32, precision=_HIGHEST)

        @pl.when(h == 0)
        def _():
            kv_acc[...] = kv_part               # direct write: no zero-init pass

        @pl.when(h > 0)
        def _():
            kv_acc[...] += kv_part

        # Column-streamed receptance: sigmoid(xr @ wr[:, h]) for this h step,
        # stored into the h-th slot of the r scratch (no resident (C, C) wr).
        r_scr[h] = jax.nn.sigmoid(
            jnp.dot(xr_scr[...], wr_ref[...],
                    preferred_element_type=jnp.float32, precision=_HIGHEST))

        @pl.when(h == n_h - 1)
        def _():
            # Static unroll over lane-aligned column blocks: o = r * kv.
            for i in range(n_h):
                lo = i * t_c
                o_ref[:, lo:lo + t_c] = (
                    r_scr[i] * kv_acc[:, lo:lo + t_c]).astype(o_ref.dtype)

    return kernel


def _pick_tile(total, preferred):
    for t in preferred:
        if total % t == 0:
            return t
    return total


def _pick_th(C, H):
    # Largest preferred H tile such that the receptance column tile
    # tC = C // (H // tH) stays a lane-aligned multiple of 128.
    for cand in (1024, 512, 256, 128):
        if H % cand:
            continue
        n_h = H // cand
        if C % n_h == 0 and (C // n_h) % 128 == 0:
            return cand
    return H            # nH == 1 always satisfies the constraint (C % 128 == 0)


@functools.partial(jax.jit, static_argnames=("tT", "tH"))
def rwkv_channel_mix(x, time_mix_k, time_mix_r, wk, wv, wr, *, tT=None, tH=None):
    """RWKV ChannelMix forward.

    x: (B, T, C); time_mix_*: (1, C); wk: (C, H); wv: (H, C); wr: (C, C)
    (PyTorch Linear weights stored transposed, i.e. (in, out)).
    """
    B, T, C = x.shape
    Ck, H = wk.shape
    if Ck != C or wv.shape != (H, C) or wr.shape != (C, C):
        raise ValueError("inconsistent weight shapes")
    if C % 128 != 0 or H % 128 != 0:
        raise ValueError(f"C ({C}) and H ({H}) must be multiples of 128; "
                         "pad the embedding / FFN dims at the caller.")

    R = B * T                                   # B folded into the row axis

    # ---- tile selection ----------------------------------------------------
    if tT is None:
        # Larger row tiles amortise the per-row-tile weight streaming; 512 is
        # past the v6e / v7x weight-bandwidth ridge.  256 already suffices on
        # v5e (deeper weight buffering is the better lever there).
        tT = _pick_tile(R, (512, 256, 128, 64, 32, 16, 8))
    if R % tT:
        raise ValueError(f"tT ({tT}) must divide B*T ({R})")
    if tT % 8 and tT != R:
        raise ValueError(f"tT ({tT}) must be a multiple of 8")
    if tH is None:
        tH = _pick_th(C, H)
    if H % tH:
        raise ValueError(f"tH ({tH}) must divide H ({H})")
    nR, nH = R // tT, H // tH
    if C % nH or (C // nH) % 128:
        raise ValueError(
            f"H//tH ({nH}) must split C ({C}) into lane-aligned receptance "
            "column tiles (C // (H//tH) must be a multiple of 128).")
    tC = C // nH

    compute_dtype = wk.dtype                    # bf16 weights -> bf16 MXU operands
    act = x.dtype

    # Pre-shifted activation stream: xs[b, t] = x[b, t-1], zeros at t == 0.
    # Built per sequence BEFORE folding B, so row tiles may span batch
    # boundaries without any in-kernel halo / masking.
    # TODO(synk): for chunked/streaming inference, splice the previous chunk's
    # last row into xs[:, 0] instead of zeros.
    xs = jnp.concatenate([jnp.zeros((B, 1, C), act), x[:, :-1, :]], axis=1)
    x2 = x.reshape(R, C)
    xs2 = xs.reshape(R, C)

    # Packed mix operand: rows = [tm_k, 1-tm_k, tm_r, 1-tm_r].
    tmk = time_mix_k.reshape(1, C).astype(jnp.float32)
    tmr = time_mix_r.reshape(1, C).astype(jnp.float32)
    mix = jnp.concatenate([tmk, 1.0 - tmk, tmr, 1.0 - tmr], axis=0)

    # ---- VMEM budget (double-buffered pipeline tiles + scratch) ------------
    ab = jnp.dtype(act).itemsize
    wb = jnp.dtype(compute_dtype).itemsize
    est = (2 * tT * C * ab              # x rows
           + 2 * tT * C * ab            # shifted rows
           + 2 * tT * C * ab            # output rows
           + 2 * 8 * C * 4              # packed mix (padded to 8 sublanes)
           + 2 * C * tH * wb            # key-weight tile
           + 2 * tH * C * wb            # value-weight tile
           + 2 * C * tC * wb            # receptance column tile
           + tT * C * 4                 # kv accumulator
           + nH * tT * tC * 4           # sigmoid(receptance) scratch
           + 2 * tT * C * wb)           # xk / xr scratch
    try:
        vmem_cap = int(pltpu.get_tpu_info().vmem_capacity_bytes)
    except Exception:                   # not a TPU / interpret mode / old API
        vmem_cap = 64 << 20             # conservative: v7x per-TensorCore VMEM
    vmem_limit = int(min(max(1.25 * est + (2 << 20), 16 << 20),
                         vmem_cap - (6 << 20)))

    kernel = _make_kernel(nH, tC)
    # TODO(synk): mark the constant-index mix operand pipeline_mode=pl.Buffered(1)
    # (and wk/wv Buffered(3) on v5e) once the deployed jax exposes it everywhere;
    # the big VMEM win (no resident double-buffered wr) is already structural.
    out2 = pl.pallas_call(
        kernel,
        out_shape=jax.ShapeDtypeStruct((R, C), act),
        grid=(nR, nH),
        in_specs=[
            pl.BlockSpec((tT, C), lambda i, h: (i, 0)),    # x rows
            pl.BlockSpec((tT, C), lambda i, h: (i, 0)),    # shifted rows
            pl.BlockSpec((4, C), lambda i, h: (0, 0)),     # packed mix vectors
            pl.BlockSpec((C, tH), lambda i, h: (0, h)),    # key weight tile
            pl.BlockSpec((tH, C), lambda i, h: (h, 0)),    # value weight tile
            pl.BlockSpec((C, tC), lambda i, h: (0, h)),    # receptance columns
        ],
        out_specs=pl.BlockSpec((tT, C), lambda i, h: (i, 0)),
        scratch_shapes=[
            pltpu.VMEM((tT, C), jnp.float32),              # kv accumulator
            pltpu.VMEM((nH, tT, tC), jnp.float32),         # sigmoid(receptance)
            pltpu.VMEM((tT, C), compute_dtype),            # xk
            pltpu.VMEM((tT, C), compute_dtype),            # xr
        ],
        compiler_params=pltpu.CompilerParams(
            dimension_semantics=("parallel", "arbitrary"),
            vmem_limit_bytes=vmem_limit),
    )(x2, xs2, mix, wk, wv, wr)
    return out2.reshape(B, T, C)


def reference(x, time_mix_k, time_mix_r, wk, wv, wr):
    """Pure-JAX reference matching the PyTorch module exactly."""
    B, T, C = x.shape
    tmk = time_mix_k.reshape(1, 1, C)
    tmr = time_mix_r.reshape(1, 1, C)
    xx = jnp.concatenate([jnp.zeros((B, 1, C), x.dtype), x[:, :-1, :]], axis=1)
    xk = x * tmk + xx * (1.0 - tmk)
    xr = x * tmr + xx * (1.0 - tmr)
    k = jnp.square(jnp.maximum(jnp.dot(xk, wk, precision=_HIGHEST), 0.0))
    kv = jnp.dot(k, wv, precision=_HIGHEST)
    return jax.nn.sigmoid(jnp.dot(xr, wr, precision=_HIGHEST)) * kv


if __name__ == "__main__":
    # Small config that still exercises the interesting paths: 2 row tiles,
    # each spanning 2 sequences (time_shift across interior batch boundaries),
    # and 2 H tiles (kv accumulation + column-streamed receptance).
    B, T = 4, 8
    n_embd = 256
    n_layer, layer_id = 4, 1
    hidden_sz = 4 * n_embd              # dim_ffn == 0 -> 4 * n_embd
    dtype = jnp.float32                 # use bf16 weights in production

    ratio_1_to_almost0 = 1.0 - layer_id / n_layer
    xramp = np.arange(n_embd, dtype=np.float32) / n_embd
    time_mix_k = jnp.asarray(np.power(xramp, ratio_1_to_almost0)).reshape(1, n_embd)
    time_mix_r = jnp.asarray(np.power(xramp, ratio_1_to_almost0)).reshape(1, n_embd)

    key0 = jax.random.PRNGKey(0)
    k_x, k_wk, k_wr, k_wv = jax.random.split(key0, 4)
    # PyTorch Linear weights are (out, in); stored transposed here as (in, out).
    wk = jax.random.normal(k_wk, (n_embd, hidden_sz), dtype) * 0.02   # key
    wr = jax.random.normal(k_wr, (n_embd, n_embd), dtype) * 0.02      # receptance
    wv = jax.random.normal(k_wv, (hidden_sz, n_embd), dtype) * 0.02   # value

    x = jax.random.normal(k_x, (B, T, n_embd), dtype)

    out = rwkv_channel_mix(x, time_mix_k, time_mix_r, wk, wv, wr, tT=16, tH=512)
    out = jax.block_until_ready(out)

    ref = reference(x, time_mix_k, time_mix_r, wk, wv, wr)
    np.testing.assert_allclose(np.asarray(out), np.asarray(ref),
                               rtol=5e-3, atol=5e-4)

    print("KERNEL_OK")
</pallas_src>

<mosaic_0001>
module attributes {stable_mosaic.version = 11 : i64} {
  func.func @kernel(%arg0: i32, %arg1: i32, %arg2: memref<16x256xf32, #tpu.memory_space<vmem>>, %arg3: memref<16x256xf32, #tpu.memory_space<vmem>>, %arg4: memref<4x256xf32, #tpu.memory_space<vmem>>, %arg5: memref<256x512xf32, #tpu.memory_space<vmem>>, %arg6: memref<512x256xf32, #tpu.memory_space<vmem>>, %arg7: memref<256x128xf32, #tpu.memory_space<vmem>>, %arg8: memref<16x256xf32, #tpu.memory_space<vmem>>, %arg9: memref<16x256xf32, #tpu.memory_space<vmem>>, %arg10: memref<2x16x128xf32, #tpu.memory_space<vmem>>, %arg11: memref<16x256xf32, #tpu.memory_space<vmem>>, %arg12: memref<16x256xf32, #tpu.memory_space<vmem>>) attributes {dimension_semantics = [#tpu.dimension_semantics<parallel>, #tpu.dimension_semantics<arbitrary>], iteration_bounds = array<i64: 2, 2>, scalar_prefetch = 0 : i64, scratch_operands = 4 : i64, tpu.core_type = #tpu.core_type<tc>, window_params = [{transform_indices = @transform_0, window_bounds = array<i64: 16, 256>}, {transform_indices = @transform_1, window_bounds = array<i64: 16, 256>}, {pipeline_mode = #tpu.pipeline_mode<synchronous>, transform_indices = @transform_2, window_bounds = array<i64: 4, 256>}, {transform_indices = @transform_3, window_bounds = array<i64: 256, 512>}, {transform_indices = @transform_4, window_bounds = array<i64: 512, 256>}, {transform_indices = @transform_5, window_bounds = array<i64: 256, 128>}, {transform_indices = @transform_6, window_bounds = array<i64: 16, 256>}]} {
    %c0_i32 = arith.constant 0 : i32
    %0 = arith.cmpi eq, %arg1, %c0_i32 : i32
    %1 = arith.extui %0 : i1 to i32
    %c0_i32_0 = arith.constant 0 : i32
    %2 = arith.cmpi ne, %1, %c0_i32_0 : i32
    scf.if %2 {
      %c0_21 = arith.constant 0 : index
      %c0_22 = arith.constant 0 : index
      %32 = vector.load %arg2[%c0_21, %c0_22] : memref<16x256xf32, #tpu.memory_space<vmem>>, vector<16x256xf32>
      %c0_23 = arith.constant 0 : index
      %c0_24 = arith.constant 0 : index
      %33 = vector.load %arg3[%c0_23, %c0_24] : memref<16x256xf32, #tpu.memory_space<vmem>>, vector<16x256xf32>
      %c0_25 = arith.constant 0 : index
      %c0_26 = arith.constant 0 : index
      %34 = vector.load %arg4[%c0_25, %c0_26] : memref<4x256xf32, #tpu.memory_space<vmem>>, vector<1x256xf32>
      %c1 = arith.constant 1 : index
      %c0_27 = arith.constant 0 : index
      %35 = vector.load %arg4[%c1, %c0_27] : memref<4x256xf32, #tpu.memory_space<vmem>>, vector<1x256xf32>
      %c2 = arith.constant 2 : index
      %c0_28 = arith.constant 0 : index
      %36 = vector.load %arg4[%c2, %c0_28] : memref<4x256xf32, #tpu.memory_space<vmem>>, vector<1x256xf32>
      %c3 = arith.constant 3 : index
      %c0_29 = arith.constant 0 : index
      %37 = vector.load %arg4[%c3, %c0_29] : memref<4x256xf32, #tpu.memory_space<vmem>>, vector<1x256xf32>
      %38 = vector.broadcast %34 : vector<1x256xf32> to vector<16x256xf32>
      %39 = arith.mulf %32, %38 : vector<16x256xf32>
      %40 = vector.broadcast %35 : vector<1x256xf32> to vector<16x256xf32>
      %41 = arith.mulf %33, %40 : vector<16x256xf32>
      %42 = arith.addf %39, %41 : vector<16x256xf32>
      %c0_30 = arith.constant 0 : index
      %c0_31 = arith.constant 0 : index
      %43 = vector.load %arg11[%c0_30, %c0_31] : memref<16x256xf32, #tpu.memory_space<vmem>>, vector<16x256xf32>
      tpu.vector_store %arg11[%c0_30, %c0_31], %42 {strides = array<i32>} : memref<16x256xf32, #tpu.memory_space<vmem>>, vector<16x256xf32>,
      %44 = vector.broadcast %36 : vector<1x256xf32> to vector<16x256xf32>
      %45 = arith.mulf %32, %44 : vector<16x256xf32>
      %46 = vector.broadcast %37 : vector<1x256xf32> to vector<16x256xf32>
      %47 = arith.mulf %33, %46 : vector<16x256xf32>
      %48 = arith.addf %45, %47 : vector<16x256xf32>
      %c0_32 = arith.constant 0 : index
      %c0_33 = arith.constant 0 : index
      %49 = vector.load %arg12[%c0_32, %c0_33] : memref<16x256xf32, #tpu.memory_space<vmem>>, vector<16x256xf32>
      tpu.vector_store %arg12[%c0_32, %c0_33], %48 {strides = array<i32>} : memref<16x256xf32, #tpu.memory_space<vmem>>, vector<16x256xf32>,
    } else {
    }
    %c0 = arith.constant 0 : index
    %c0_1 = arith.constant 0 : index
    %3 = vector.load %arg11[%c0, %c0_1] : memref<16x256xf32, #tpu.memory_space<vmem>>, vector<16x256xf32>
    %c0_2 = arith.constant 0 : index
    %c0_3 = arith.constant 0 : index
    %4 = vector.load %arg5[%c0_2, %c0_3] : memref<256x512xf32, #tpu.memory_space<vmem>>, vector<256x512xf32>
    %cst = arith.constant dense<0.000000e+00> : vector<16x512xf32>
    %5 = tpu.matmul %3, %4, %cst {dimension_numbers = #tpu.dot_dimension_numbers<[1], [0], [0], [1], [0, 0, 1, 1], [], []>, precision = #tpu.contract_precision<fp32>} : vector<16x256xf32>, vector<256x512xf32>, vector<16x512xf32> -> vector<16x512xf32>
    %cst_4 = arith.constant 0.000000e+00 : f32
    %6 = vector.broadcast %cst_4 : f32 to vector<16x512xf32>
    %7 = arith.maximumf %5, %6 : vector<16x512xf32>
    %8 = arith.mulf %7, %7 : vector<16x512xf32>
    %c0_5 = arith.constant 0 : index
    %c0_6 = arith.constant 0 : index
    %9 = vector.load %arg6[%c0_5, %c0_6] : memref<512x256xf32, #tpu.memory_space<vmem>>, vector<512x256xf32>
    %cst_7 = arith.constant dense<0.000000e+00> : vector<16x256xf32>
    %10 = tpu.matmul %8, %9, %cst_7 {dimension_numbers = #tpu.dot_dimension_numbers<[1], [0], [0], [1], [0, 0, 1, 1], [], []>, precision = #tpu.contract_precision<fp32>} : vector<16x512xf32>, vector<512x256xf32>, vector<16x256xf32> -> vector<16x256xf32>
    %c0_i32_8 = arith.constant 0 : i32
    %11 = arith.cmpi eq, %arg1, %c0_i32_8 : i32
    %12 = arith.extui %11 : i1 to i32
    %c0_i32_9 = arith.constant 0 : i32
    %13 = arith.cmpi ne, %12, %c0_i32_9 : i32
    scf.if %13 {
      %c0_21 = arith.constant 0 : index
      %c0_22 = arith.constant 0 : index
      %32 = vector.load %arg9[%c0_21, %c0_22] : memref<16x256xf32, #tpu.memory_space<vmem>>, vector<16x256xf32>
      tpu.vector_store %arg9[%c0_21, %c0_22], %10 {strides = array<i32>} : memref<16x256xf32, #tpu.memory_space<vmem>>, vector<16x256xf32>,
    } else {
    }
    %c0_i32_10 = arith.constant 0 : i32
    %14 = arith.cmpi sgt, %arg1, %c0_i32_10 : i32
    %15 = arith.extui %14 : i1 to i32
    %c0_i32_11 = arith.constant 0 : i32
    %16 = arith.cmpi ne, %15, %c0_i32_11 : i32
    scf.if %16 {
      %c0_21 = arith.constant 0 : index
      %c0_22 = arith.constant 0 : index
      %32 = vector.load %arg9[%c0_21, %c0_22] : memref<16x256xf32, #tpu.memory_space<vmem>>, vector<16x256xf32>
      %33 = arith.addf %32, %10 : vector<16x256xf32>
      %c0_23 = arith.constant 0 : index
      %c0_24 = arith.constant 0 : index
      %34 = vector.load %arg9[%c0_23, %c0_24] : memref<16x256xf32, #tpu.memory_space<vmem>>, vector<16x256xf32>
      tpu.vector_store %arg9[%c0_23, %c0_24], %33 {strides = array<i32>} : memref<16x256xf32, #tpu.memory_space<vmem>>, vector<16x256xf32>,
    } else {
    }
    %c0_12 = arith.constant 0 : index
    %c0_13 = arith.constant 0 : index
    %17 = vector.load %arg12[%c0_12, %c0_13] : memref<16x256xf32, #tpu.memory_space<vmem>>, vector<16x256xf32>
    %c0_14 = arith.constant 0 : index
    %c0_15 = arith.constant 0 : index
    %18 = vector.load %arg7[%c0_14, %c0_15] : memref<256x128xf32, #tpu.memory_space<vmem>>, vector<256x128xf32>
    %cst_16 = arith.constant dense<0.000000e+00> : vector<16x128xf32>
    %19 = tpu.matmul %17, %18, %cst_16 {dimension_numbers = #tpu.dot_dimension_numbers<[1], [0], [0], [1], [0, 0, 1, 1], [], []>, precision = #tpu.contract_precision<fp32>} : vector<16x256xf32>, vector<256x128xf32>, vector<16x128xf32> -> vector<16x128xf32>
    %20 = arith.negf %19 : vector<16x128xf32>
    %21 = math.exp %20 : vector<16x128xf32>
    %cst_17 = arith.constant 1.000000e+00 : f32
    %22 = vector.broadcast %cst_17 : f32 to vector<16x128xf32>
    %23 = arith.addf %22, %21 : vector<16x128xf32>
    %24 = arith.divf %22, %23 : vector<16x128xf32>
    %25 = arith.index_cast %arg1 : i32 to index
    %c0_18 = arith.constant 0 : index
    %c0_19 = arith.constant 0 : index
    %26 = vector.load %arg10[%25, %c0_18, %c0_19] : memref<2x16x128xf32, #tpu.memory_space<vmem>>, vector<1x16x128xf32>
    %27 = vector.shape_cast %26 : vector<1x16x128xf32> to vector<16x128xf32>
    %28 = vector.shape_cast %24 : vector<16x128xf32> to vector<1x16x128xf32>
    tpu.vector_store %arg10[%25, %c0_18, %c0_19], %28 {strides = array<i32>} : memref<2x16x128xf32, #tpu.memory_space<vmem>>, vector<1x16x128xf32>,
    %c1_i32 = arith.constant 1 : i32
    %29 = arith.cmpi eq, %arg1, %c1_i32 : i32
    %30 = arith.extui %29 : i1 to i32
    %c0_i32_20 = arith.constant 0 : i32
    %31 = arith.cmpi ne, %30, %c0_i32_20 : i32
    scf.if %31 {
      %c0_21 = arith.constant 0 : index
      %c0_22 = arith.constant 0 : index
      %c0_23 = arith.constant 0 : index
      %32 = vector.load %arg10[%c0_21, %c0_22, %c0_23] : memref<2x16x128xf32, #tpu.memory_space<vmem>>, vector<1x16x128xf32>
      %33 = vector.shape_cast %32 : vector<1x16x128xf32> to vector<16x128xf32>
      %c0_24 = arith.constant 0 : index
      %c0_25 = arith.constant 0 : index
      %34 = vector.load %arg9[%c0_24, %c0_25] : memref<16x256xf32, #tpu.memory_space<vmem>>, vector<16x128xf32>
      %35 = arith.mulf %33, %34 : vector<16x128xf32>
      %c0_26 = arith.constant 0 : index
      %c0_27 = arith.constant 0 : index
      %36 = vector.load %arg8[%c0_26, %c0_27] : memref<16x256xf32, #tpu.memory_space<vmem>>, vector<16x128xf32>
      tpu.vector_store %arg8[%c0_26, %c0_27], %35 {strides = array<i32>} : memref<16x256xf32, #tpu.memory_space<vmem>>, vector<16x128xf32>,
      %c1 = arith.constant 1 : index
      %c0_28 = arith.constant 0 : index
      %c0_29 = arith.constant 0 : index
      %37 = vector.load %arg10[%c1, %c0_28, %c0_29] : memref<2x16x128xf32, #tpu.memory_space<vmem>>, vector<1x16x128xf32>
      %38 = vector.shape_cast %37 : vector<1x16x128xf32> to vector<16x128xf32>
      %c0_30 = arith.constant 0 : index
      %c128 = arith.constant 128 : index
      %39 = vector.load %arg9[%c0_30, %c128] : memref<16x256xf32, #tpu.memory_space<vmem>>, vector<16x128xf32>
      %40 = arith.mulf %38, %39 : vector<16x128xf32>
      %c0_31 = arith.constant 0 : index
      %c128_32 = arith.constant 128 : index
      %41 = vector.load %arg8[%c0_31, %c128_32] : memref<16x256xf32, #tpu.memory_space<vmem>>, vector<16x128xf32>
      tpu.vector_store %arg8[%c0_31, %c128_32], %40 {strides = array<i32>} : memref<16x256xf32, #tpu.memory_space<vmem>>, vector<16x128xf32>,
    } else {
    }
    return
  }
  func.func @transform_0(%arg0: i32, %arg1: i32) -> (i32, i32) {
    %c0_i32 = arith.constant 0 : i32
    %c0_i32_0 = arith.constant 0 : i32
    return %arg0, %c0_i32 : i32, i32
  }
  func.func @transform_1(%arg0: i32, %arg1: i32) -> (i32, i32) {
    %c0_i32 = arith.constant 0 : i32
    %c0_i32_0 = arith.constant 0 : i32
    return %arg0, %c0_i32 : i32, i32
  }
  func.func @transform_2(%arg0: i32, %arg1: i32) -> (i32, i32) {
    %c0_i32 = arith.constant 0 : i32
    %c0_i32_0 = arith.constant 0 : i32
    %c0_i32_1 = arith.constant 0 : i32
    return %c0_i32, %c0_i32_0 : i32, i32
  }
  func.func @transform_3(%arg0: i32, %arg1: i32) -> (i32, i32) {
    %c0_i32 = arith.constant 0 : i32
    %c0_i32_0 = arith.constant 0 : i32
    return %c0_i32, %arg1 : i32, i32
  }
  func.func @transform_4(%arg0: i32, %arg1: i32) -> (i32, i32) {
    %c0_i32 = arith.constant 0 : i32
    %c0_i32_0 = arith.constant 0 : i32
    return %arg1, %c0_i32 : i32, i32
  }
  func.func @transform_5(%arg0: i32, %arg1: i32) -> (i32, i32) {
    %c0_i32 = arith.constant 0 : i32
    %c0_i32_0 = arith.constant 0 : i32
    return %c0_i32, %arg1 : i32, i32
  }
  func.func @transform_6(%arg0: i32, %arg1: i32) -> (i32, i32) {
    %c0_i32 = arith.constant 0 : i32
    %c0_i32_0 = arith.constant 0 : i32
    return %arg0, %c0_i32 : i32, i32
  }
}

</mosaic_0001>

<llo_original>
// kernel: rwkv_channel_mix.1
$region0: #{rwkv_channel_mix.1}
  #allocation0 [shape = 'u32[]', space=smem, size = 0x4, offset = 0x4, fixed_abs, tag = 'smem constant byte address 0x4 - core index']
  #allocation1 [shape = 'u32[144,128]{1,0:T(1,128)}', space=vmem, size = 0x12000, scoped, tag = 'internal scratch']
  #allocation2 [shape = 'f32[16,256]{1,0:T(8,128)}', space=vmem, size = 0x4000, scoped, tag = 'scratch operand']
  #allocation3 [shape = 'f32[2,16,128]{2,1,0:T(8,128)}', space=vmem, size = 0x4000, scoped, tag = 'scratch operand']
  #allocation4 [shape = 'f32[16,256]{1,0:T(8,128)}', space=vmem, size = 0x4000, scoped, tag = 'scratch operand']
  #allocation5 [shape = 'f32[16,256]{1,0:T(8,128)}', space=vmem, size = 0x4000, scoped, tag = 'scratch operand']
  %s0 = inlined_call_operand.vmem [shape: f32[32,256], index: 0, kind: input, shape index: {}]
  %s1 = inlined_call_operand.vmem [shape: f32[32,256], index: 1, kind: input, shape index: {}]
  %s2 = inlined_call_operand.vmem [shape: f32[4,256], index: 2, kind: input, shape index: {}]
  %s3 = inlined_call_operand.hbm [shape: f32[256,1024], index: 3, kind: input, shape index: {}]
  %s4 = inlined_call_operand.hbm [shape: f32[1024,256], index: 4, kind: input, shape index: {}]
  %s5 = inlined_call_operand.hbm [shape: f32[256,256], index: 5, kind: input, shape index: {}]
  %s6 = inlined_call_operand.hbm [shape: f32[32,256], index: 6, kind: output, shape index: {}]
  %s7 = sld [smem:[#allocation0]]
  $region85: #{rwkv_channel_mix.1} parent=0
    _
  %s9 = ssub.s32 1, %s7
  %s10 = scalar_select 0, %s9, %s7
  $region1: #{rwkv_channel_mix.1} parent=0
    #allocation6 [shape = 'u8[1048576]{0}', space=vmem, size = 0x100000, scoped, tag = 'input window, operand 3']
    #allocation7 [shape = 's32[2]{0}', space=sflag, size = 0x8, scoped, tag = 'scoped memory for rwkv_channel_mix.1']
    #allocation8 [shape = 's32[2]{0}', space=sflag, size = 0x8, scoped, tag = 'scoped memory for rwkv_channel_mix.1']
    #allocation9 [shape = 'u8[1048576]{0}', space=vmem, size = 0x100000, scoped, tag = 'input window, operand 4']
    #allocation10 [shape = 's32[2]{0}', space=sflag, size = 0x8, scoped, tag = 'scoped memory for rwkv_channel_mix.1']
    #allocation11 [shape = 'u8[262144]{0}', space=vmem, size = 0x40000, scoped, tag = 'input window, operand 5']
    #allocation12 [shape = 'u8[32768]{0}', space=vmem, size = 0x8000, scoped, tag = 'output window, operand 0']
    %11 = vsyncpa [#allocation7], 0
    %s12 = scalar_lea.sflag [#allocation7], 1
    %13 = vsyncpa %s12, 0
    %14 = vsyncpa [#allocation10], 0
    %s15 = scalar_lea.sflag [#allocation10], 1
    %16 = vsyncpa %s15, 0
    %17 = vsyncpa [#allocation8], 0
    %s18 = scalar_lea.sflag [#allocation8], 1
    %19 = vsyncpa %s18, 0
    loop: start=0, step=1, limit=6
    $region2: #{rwkv_channel_mix.1} parent=1 // loop_pre_header
      _
    $region3: #{rwkv_channel_mix.1} parent=1 // loop_header
      %s21 = sphi 0, %s25
      %p22 = scmp.ge.s32.totalorder %s21, 6
      %s28 = sphi 0, %s40
      %s29 = sphi 0, %s36
      %s30 = sphi 0, %s28
      %s31 = sphi 0, %s29
      %s32 = sphi 0, %s30
      %s33 = sphi 0, %s31
      %s43 = sphi 0, %s45
      %s46 = sphi 0, %s43
      %s47 = sphi 0, %s46
      %s63 = sphi 0, %s47
      %s69 = sphi 0, %s71
      %s72 = sphi 0, %s69
      %s73 = sphi 0, %s72
      %s89 = sphi 0, %s73
      %s93 = sphi 0, %s93
      %s95 = sphi 0, %s93
      %s96 = sphi 0, %s95
      %s110 = sphi 0, %s96
      %s116 = sphi 0, %s118
      %s119 = sphi 0, %s116
      %s120 = sphi 0, %s119
      %s136 = sphi 0, %s120
      %s142 = sphi 0, %s144
      %s145 = sphi 0, %s142
      %s146 = sphi 0, %s145
      %s162 = sphi 0, %s146
      %s168 = sphi 0, %s170
      %s171 = sphi 0, %s168
      %s172 = sphi 0, %s171
      %s188 = sphi 0, %s172
      %s194 = sphi 0, %s196
      %s197 = sphi 0, %s194
      %s198 = sphi 0, %s197
      %s214 = sphi 0, %s198
    $region4: #{rwkv_channel_mix.1} parent=1 // loop_header_branch
      %24 = sbr.rel (%p22) target = $region8
    $region5: #{rwkv_channel_mix.1} parent=1 // loop_body
      %s26 = ssub.s32 %s21, 1
      %s27 = ssub.s32 %s21, 2
      %s34 = sadd.s32 1, %s29
      %p35 = scmp.ge.s32.totalorder %s34, 2
      %s36 = scalar_select %p35, 0, %s34
      %s37 = sadd.s32 1, %s28
      %s38 = scalar_select %p35, %s37, %s28
      %p39 = scmp.ge.s32.totalorder %s38, 2
      %s40 = scalar_select %p39, 0, %s38
      %s41 = ssub.s32 %s28, %s40
      %p42 = scmp.eq.s32.totalorder %s41, 0
      %s44 = sadd.s32 %s43, 1
      %s45 = scalar_select %p42, %s43, %s44
      %p48 = pneg %p42
      %p49 = scmp.eq.s32.totalorder %s21, 3
      %p50 = por %p48, %p49
      %p51 = scmp.ne.s32.totalorder %s43, %s46
      %p52 = scmp.eq.s32.totalorder %s21, 0
      %p53 = por %p51, %p52
      %p54 = scmp.ne.s32.totalorder %s43, %s46
      %p55 = scmp.eq.s32.totalorder %s26, 3
      %p56 = por %p54, %p55
      %p57 = scmp.ne.s32.totalorder %s46, %s47
      %p58 = scmp.eq.s32.totalorder %s26, 0
      %p59 = por %p57, %p58
      %p60 = scmp.ne.s32.totalorder %s46, %s47
      %p61 = scmp.eq.s32.totalorder %s27, 3
      %p62 = por %p60, %p61
      %p64 = scmp.ne.s32.totalorder %s47, %s63
      %p65 = scmp.eq.s32.totalorder %s27, 0
      %p66 = por %p64, %p65
      %s67 = ssub.s32 %s28, %s40
      %p68 = scmp.eq.s32.totalorder %s67, 0
      %s70 = sadd.s32 %s69, 1
      %s71 = scalar_select %p68, %s69, %s70
      %p74 = pneg %p68
      %p75 = scmp.eq.s32.totalorder %s21, 3
      %p76 = por %p74, %p75
      %p77 = scmp.ne.s32.totalorder %s69, %s72
      %p78 = scmp.eq.s32.totalorder %s21, 0
      %p79 = por %p77, %p78
      %p80 = scmp.ne.s32.totalorder %s69, %s72
      %p81 = scmp.eq.s32.totalorder %s26, 3
      %p82 = por %p80, %p81
      %p83 = scmp.ne.s32.totalorder %s72, %s73
      %p84 = scmp.eq.s32.totalorder %s26, 0
      %p85 = por %p83, %p84
      %p86 = scmp.ne.s32.totalorder %s72, %s73
      %p87 = scmp.eq.s32.totalorder %s27, 3
      %p88 = por %p86, %p87
      %p90 = scmp.ne.s32.totalorder %s73, %s89
      %p91 = scmp.eq.s32.totalorder %s27, 0
      %p92 = por %p90, %p91
      %s94 = sadd.s32 %s93, 1
      %p97 = scmp.eq.s32.totalorder %s21, 3
      %p98 = scmp.ne.s32.totalorder %s93, %s95
      %p99 = scmp.eq.s32.totalorder %s21, 0
      %p100 = por %p98, %p99
      %p101 = scmp.ne.s32.totalorder %s93, %s95
      %p102 = scmp.eq.s32.totalorder %s26, 3
      %p103 = por %p101, %p102
      %p104 = scmp.ne.s32.totalorder %s95, %s96
      %p105 = scmp.eq.s32.totalorder %s26, 0
      %p106 = por %p104, %p105
      %p107 = scmp.ne.s32.totalorder %s95, %s96
      %p108 = scmp.eq.s32.totalorder %s27, 3
      %p109 = por %p107, %p108
      %p111 = scmp.ne.s32.totalorder %s96, %s110
      %p112 = scmp.eq.s32.totalorder %s27, 0
      %p113 = por %p111, %p112
      %s114 = ssub.s32 %s29, %s36
      %p115 = scmp.eq.s32.totalorder %s114, 0
      %s117 = sadd.s32 %s116, 1
      %s118 = scalar_select %p115, %s116, %s117
      %p121 = pneg %p115
      %p122 = scmp.eq.s32.totalorder %s21, 3
      %p123 = por %p121, %p122
      %p124 = scmp.ne.s32.totalorder %s116, %s119
      %p125 = scmp.eq.s32.totalorder %s21, 0
      %p126 = por %p124, %p125
      %p127 = scmp.ne.s32.totalorder %s116, %s119
      %p128 = scmp.eq.s32.totalorder %s26, 3
      %p129 = por %p127, %p128
      %p130 = scmp.ne.s32.totalorder %s119, %s120
      %p131 = scmp.eq.s32.totalorder %s26, 0
      %p132 = por %p130, %p131
      %p133 = scmp.ne.s32.totalorder %s119, %s120
      %p134 = scmp.eq.s32.totalorder %s27, 3
      %p135 = por %p133, %p134
      %p137 = scmp.ne.s32.totalorder %s120, %s136
      %p138 = scmp.eq.s32.totalorder %s27, 0
      %p139 = por %p137, %p138
      %s140 = ssub.s32 %s29, %s36
      %p141 = scmp.eq.s32.totalorder %s140, 0
      %s143 = sadd.s32 %s142, 1
      %s144 = scalar_select %p141, %s142, %s143
      %p147 = pneg %p141
      %p148 = scmp.eq.s32.totalorder %s21, 3
      %p149 = por %p147, %p148
      %p150 = scmp.ne.s32.totalorder %s142, %s145
      %p151 = scmp.eq.s32.totalorder %s21, 0
      %p152 = por %p150, %p151
      %p153 = scmp.ne.s32.totalorder %s142, %s145
      %p154 = scmp.eq.s32.totalorder %s26, 3
      %p155 = por %p153, %p154
      %p156 = scmp.ne.s32.totalorder %s145, %s146
      %p157 = scmp.eq.s32.totalorder %s26, 0
      %p158 = por %p156, %p157
      %p159 = scmp.ne.s32.totalorder %s145, %s146
      %p160 = scmp.eq.s32.totalorder %s27, 3
      %p161 = por %p159, %p160
      %p163 = scmp.ne.s32.totalorder %s146, %s162
      %p164 = scmp.eq.s32.totalorder %s27, 0
      %p165 = por %p163, %p164
      %s166 = ssub.s32 %s29, %s36
      %p167 = scmp.eq.s32.totalorder %s166, 0
      %s169 = sadd.s32 %s168, 1
      %s170 = scalar_select %p167, %s168, %s169
      %p173 = pneg %p167
      %p174 = scmp.eq.s32.totalorder %s21, 3
      %p175 = por %p173, %p174
      %p176 = scmp.ne.s32.totalorder %s168, %s171
      %p177 = scmp.eq.s32.totalorder %s21, 0
      %p178 = por %p176, %p177
      %p179 = scmp.ne.s32.totalorder %s168, %s171
      %p180 = scmp.eq.s32.totalorder %s26, 3
      %p181 = por %p179, %p180
      %p182 = scmp.ne.s32.totalorder %s171, %s172
      %p183 = scmp.eq.s32.totalorder %s26, 0
      %p184 = por %p182, %p183
      %p185 = scmp.ne.s32.totalorder %s171, %s172
      %p186 = scmp.eq.s32.totalorder %s27, 3
      %p187 = por %p185, %p186
      %p189 = scmp.ne.s32.totalorder %s172, %s188
      %p190 = scmp.eq.s32.totalorder %s27, 0
      %p191 = por %p189, %p190
      %s192 = ssub.s32 %s28, %s40
      %p193 = scmp.eq.s32.totalorder %s192, 0
      %s195 = sadd.s32 %s194, 1
      %s196 = scalar_select %p193, %s194, %s195
      %p199 = pneg %p193
      %p200 = scmp.eq.s32.totalorder %s21, 3
      %p201 = por %p199, %p200
      %p202 = scmp.ne.s32.totalorder %s194, %s197
      %p203 = scmp.eq.s32.totalorder %s21, 0
      %p204 = por %p202, %p203
      %p205 = scmp.ne.s32.totalorder %s194, %s197
      %p206 = scmp.eq.s32.totalorder %s26, 3
      %p207 = por %p205, %p206
      %p208 = scmp.ne.s32.totalorder %s197, %s198
      %p209 = scmp.eq.s32.totalorder %s26, 0
      %p210 = por %p208, %p209
      %p211 = scmp.ne.s32.totalorder %s197, %s198
      %p212 = scmp.eq.s32.totalorder %s27, 3
      %p213 = por %p211, %p212
      %p215 = scmp.ne.s32.totalorder %s198, %s214
      %p216 = scmp.eq.s32.totalorder %s27, 0
      %p217 = por %p215, %p216
      %p218 = scmp.le.s32.totalorder 1, %s21
      %p219 = scmp.lt.s32.totalorder %s21, 5
      %p220 = pnand %p218, %p219
      %p221 = pneg %p220
      // Predicated region
      $region9: #{rwkv_channel_mix.1} parent=5 // pred_check
        _
      $region10: #{rwkv_channel_mix.1} parent=5 // pred_check_branch
        %223 = sbr.rel (%p220) target = $region12
      $region11: #{rwkv_channel_mix.1} parent=5 // pred_region
        %s224 = ssub.s32 %s21, 1
        // Predicated region
        $region13: #{rwkv_channel_mix.1} parent=11 // pred_check
          %p225 = pneg %p106
        $region14: #{rwkv_channel_mix.1} parent=11 // pred_check_branch
          %227 = sbr.rel (%p225) target = $region16
        $region15: #{rwkv_channel_mix.1} parent=11 // pred_region
          _
        $region16: #{rwkv_channel_mix.1} parent=11 // pred_fallthru
          _
      $region12: #{rwkv_channel_mix.1} parent=5 // pred_fallthru
        _
      %p228 = scmp.lt.s32.totalorder %s21, 4
      // Predicated region
      $region17: #{rwkv_channel_mix.1} parent=5 // pred_check
        %p229 = pneg %p228
      $region18: #{rwkv_channel_mix.1} parent=5 // pred_check_branch
        %231 = sbr.rel (%p229) target = $region20
      $region19: #{rwkv_channel_mix.1} parent=5 // pred_region
        // Predicated region
        $region21: #{rwkv_channel_mix.1} parent=19 // pred_check
          %p232 = pneg %p53
        $region22: #{rwkv_channel_mix.1} parent=19 // pred_check_branch
          %234 = sbr.rel (%p232) target = $region24
        $region23: #{rwkv_channel_mix.1} parent=19 // pred_region
          %s235 = smul.u32 2, %s28
          %p236 = scmp.lt.s32.totalorder %s235, 3
          %s237 = scalar_select %p236, %s235, 3
          %s238 = smul.addr %s237, 2
          %s239 = smul.addr %s238, 8
          %s240 = scalar_lea.vmem %s0, %s239
          %s241 = smul.u32 2, %s28
        $region24: #{rwkv_channel_mix.1} parent=19 // pred_fallthru
          _
        // Predicated region
        $region25: #{rwkv_channel_mix.1} parent=19 // pred_check
          %p242 = pneg %p79
        $region26: #{rwkv_channel_mix.1} parent=19 // pred_check_branch
          %244 = sbr.rel (%p242) target = $region28
        $region27: #{rwkv_channel_mix.1} parent=19 // pred_region
          %s245 = smul.u32 2, %s28
          %p246 = scmp.lt.s32.totalorder %s245, 3
          %s247 = scalar_select %p246, %s245, 3
          %s248 = smul.addr %s247, 2
          %s249 = smul.addr %s248, 8
          %s250 = scalar_lea.vmem %s1, %s249
          %s251 = smul.u32 2, %s28
        $region28: #{rwkv_channel_mix.1} parent=19 // pred_fallthru
          _
        // Predicated region
        $region29: #{rwkv_channel_mix.1} parent=19 // pred_check
          %p252 = pneg %p126
        $region30: #{rwkv_channel_mix.1} parent=19 // pred_check_branch
          %254 = sbr.rel (%p252) target = $region32
        $region31: #{rwkv_channel_mix.1} parent=19 // pred_region
          %s255 = sand.u32 %s116, 1
          %s256 = scalar_lea.sflag [#allocation7], %s255
          %s257 = sand.u32 %s116, 1
          %s258 = smul.addr %s257, 1024
          %s259 = scalar_lea.vmem [#allocation6], %s258
          %s260 = smul.u32 4, %s29
          %s262 = ssub.s32 16384, 16384
          %263 = vsyncadd %s256, %s262
          %s264 = smul.addr %s260, 128
          %s265 = scalar_lea.hbm %s3, %s264
          %s266 = sshll.u32 %s259, 4
          %s267 = int_to_ptr.vmem [resolvable:$true] %s266
          %272 = dma.hbm_to_vmem [thread:$0]  %s265, 16384, %s267, %s256, 1024, 512, 32
        $region32: #{rwkv_channel_mix.1} parent=19 // pred_fallthru
          _
        // Predicated region
        $region33: #{rwkv_channel_mix.1} parent=19 // pred_check
          %p273 = pneg %p152
        $region34: #{rwkv_channel_mix.1} parent=19 // pred_check_branch
          %275 = sbr.rel (%p273) target = $region36
        $region35: #{rwkv_channel_mix.1} parent=19 // pred_region
          %s276 = sand.u32 %s21, 1
          %s277 = scalar_lea.sflag [#allocation10], %s276
          %s278 = sand.u32 %s142, 1
          %s279 = smul.addr %s278, 1024
          %s280 = scalar_lea.vmem [#allocation9], %s279
          %s281 = smul.u32 64, %s29
          %s283 = ssub.s32 16384, 16384
          %284 = vsyncadd %s277, %s283
          %s285 = smul.addr %s281, 2
          %s286 = smul.addr %s285, 128
          %s287 = scalar_lea.hbm %s4, %s286
          %s288 = sshll.u32 %s280, 4
          %s289 = int_to_ptr.vmem [resolvable:$true] %s288
          %294 = dma.hbm_to_vmem [thread:$0]  %s287, 16384, %s289, %s277, 256, 256, 16
        $region36: #{rwkv_channel_mix.1} parent=19 // pred_fallthru
          _
        // Predicated region
        $region37: #{rwkv_channel_mix.1} parent=19 // pred_check
          %p295 = pneg %p178
        $region38: #{rwkv_channel_mix.1} parent=19 // pred_check_branch
          %297 = sbr.rel (%p295) target = $region40
        $region39: #{rwkv_channel_mix.1} parent=19 // pred_region
          %s298 = sand.u32 %s21, 1
          %s299 = scalar_lea.sflag [#allocation10], %s298
          %s300 = sand.u32 %s168, 1
          %s301 = smul.addr %s300, 256
          %s302 = scalar_lea.vmem [#allocation11], %s301
          %s304 = ssub.s32 4096, 4096
          %305 = vsyncadd %s299, %s304
          %s306 = smul.addr %s29, 128
          %s307 = scalar_lea.hbm %s5, %s306
          %s308 = sshll.u32 %s302, 4
          %s309 = int_to_ptr.vmem [resolvable:$true] %s308
          %314 = dma.hbm_to_vmem [thread:$0]  %s307, 4096, %s309, %s299, 256, 128, 8
        $region40: #{rwkv_channel_mix.1} parent=19 // pred_fallthru
          _
      $region20: #{rwkv_channel_mix.1} parent=5 // pred_fallthru
        _
      %p315 = scmp.le.s32.totalorder 1, %s21
      %p316 = scmp.lt.s32.totalorder %s21, 5
      %p317 = pnand %p315, %p316
      %p318 = pneg %p317
      // Predicated region
      $region41: #{rwkv_channel_mix.1} parent=5 // pred_check
        _
      $region42: #{rwkv_channel_mix.1} parent=5 // pred_check_branch
        %320 = sbr.rel (%p317) target = $region44
      $region43: #{rwkv_channel_mix.1} parent=5 // pred_region
        %s321 = ssub.s32 %s21, 1
        %s322 = sand.u32 %s119, 1
        %s323 = scalar_lea.sflag [#allocation7], %s322
        %s324 = sand.u32 %s119, 1
        %s325 = smul.addr %s324, 1024
        %s326 = scalar_lea.vmem [#allocation6], %s325
        // Predicated region
        $region45: #{rwkv_channel_mix.1} parent=43 // pred_check
          %p327 = pneg %p132
        $region46: #{rwkv_channel_mix.1} parent=43 // pred_check_branch
          %329 = sbr.rel (%p327) target = $region48
        $region47: #{rwkv_channel_mix.1} parent=43 // pred_region
          %330 = dma.done %s323, 16384
        $region48: #{rwkv_channel_mix.1} parent=43 // pred_fallthru
          _
        %s331 = sand.u32 %s26, 1
        %s332 = scalar_lea.sflag [#allocation10], %s331
        %s333 = sand.u32 %s145, 1
        %s334 = smul.addr %s333, 1024
        %s335 = scalar_lea.vmem [#allocation9], %s334
        // Predicated region
        $region49: #{rwkv_channel_mix.1} parent=43 // pred_check
          %p336 = pneg %p158
        $region50: #{rwkv_channel_mix.1} parent=43 // pred_check_branch
          %338 = sbr.rel (%p336) target = $region52
        $region51: #{rwkv_channel_mix.1} parent=43 // pred_region
          %339 = dma.done %s332, 16384
        $region52: #{rwkv_channel_mix.1} parent=43 // pred_fallthru
          _
        %s340 = sand.u32 %s26, 1
        %s341 = scalar_lea.sflag [#allocation10], %s340
        %s342 = sand.u32 %s171, 1
        %s343 = smul.addr %s342, 256
        %s344 = scalar_lea.vmem [#allocation11], %s343
        // Predicated region
        $region53: #{rwkv_channel_mix.1} parent=43 // pred_check
          %p345 = pneg %p184
        $region54: #{rwkv_channel_mix.1} parent=43 // pred_check_branch
          %347 = sbr.rel (%p345) target = $region56
        $region55: #{rwkv_channel_mix.1} parent=43 // pred_region
          %348 = dma.done %s341, 4096
        $region56: #{rwkv_channel_mix.1} parent=43 // pred_fallthru
          _
        %s349 = smul.u32 2, %s30
        %p350 = scmp.lt.s32.totalorder %s349, 3
        %s351 = scalar_select %p350, %s349, 3
        %s352 = smul.addr %s351, 2
        %s353 = smul.addr %s352, 8
        %s354 = scalar_lea.vmem %s0, %s353
        %p355 = pneg %p59
        %p356 = pneg %p56
        %s357 = smul.u32 2, %s30
        %p358 = scmp.lt.s32.totalorder %s357, 3
        %s359 = scalar_select %p358, %s357, 3
        %s360 = smul.addr %s359, 2
        %s361 = smul.addr %s360, 8
        %s362 = scalar_lea.vmem %s1, %s361
        %p363 = pneg %p85
        %p364 = pneg %p82
        %p365 = pneg %p106
        %p366 = pneg %p103
        %s367 = sand.u32 %s119, 1
        %s368 = scalar_lea.sflag [#allocation7], %s367
        %s369 = sand.u32 %s119, 1
        %s370 = smul.addr %s369, 1024
        %s371 = scalar_lea.vmem [#allocation6], %s370
        %p372 = pneg %p132
        %p373 = pneg %p129
        %s374 = sand.u32 %s26, 1
        %s375 = scalar_lea.sflag [#allocation10], %s374
        %s376 = sand.u32 %s145, 1
        %s377 = smul.addr %s376, 1024
        %s378 = scalar_lea.vmem [#allocation9], %s377
        %p379 = pneg %p158
        %p380 = pneg %p155
        %s381 = sand.u32 %s26, 1
        %s382 = scalar_lea.sflag [#allocation10], %s381
        %s383 = sand.u32 %s171, 1
        %s384 = smul.addr %s383, 256
        %s385 = scalar_lea.vmem [#allocation11], %s384
        %p386 = pneg %p184
        %p387 = pneg %p181
        %p388 = pneg %p210
        %p389 = pneg %p207
        %s390 = sand.u32 %s197, 1
        %s391 = scalar_lea.sflag [#allocation8], %s390
        %s392 = sand.u32 %s197, 1
        %s393 = smul.addr %s392, 32
        %s394 = scalar_lea.vmem [#allocation12], %s393
        %s395 = smul.u32 2, %s30
        %p396 = scmp.lt.s32.totalorder %s395, 3
        %s397 = scalar_select %p396, %s395, 3
        %s398 = smul.addr %s397, 2
        %s399 = smul.addr %s398, 8
        %s400 = scalar_lea.vmem %s0, %s399
        %s401 = smul.u32 2, %s30
        %s402 = smul.u32 2, %s30
        %p403 = scmp.lt.s32.totalorder %s402, 3
        %s404 = scalar_select %p403, %s402, 3
        %s405 = smul.addr %s404, 2
        %s406 = smul.addr %s405, 8
        %s407 = scalar_lea.vmem %s1, %s406
        %s408 = smul.u32 2, %s30
        %s409 = smul.u32 4, %s31
        %s410 = smul.u32 64, %s31
        %s411 = smul.u32 2, %s30
        %p412 = scmp.eq.s32.totalorder %s31, 0
        // Predicated region
        $region57: #{rwkv_channel_mix.1} parent=43 // pred_check
          %p413 = pneg %p412
        $region58: #{rwkv_channel_mix.1} parent=43 // pred_check_branch
          %415 = sbr.rel (%p413) target = $region60
        $region59: #{rwkv_channel_mix.1} parent=43 // pred_region
          %v416 = vld [vmem:[%s400] sm:$0xff]
          %v417 = vld [vmem:[%s400 + $0x8] sm:$0xff]
          %v418 = vld [vmem:[%s400 + $0x10] sm:$0xff]
          %v419 = vld [vmem:[%s400 + $0x18] sm:$0xff]
          %v420 = vld [vmem:[%s407] sm:$0xff]
          %v421 = vld [vmem:[%s407 + $0x8] sm:$0xff]
          %v422 = vld [vmem:[%s407 + $0x10] sm:$0xff]
          %v423 = vld [vmem:[%s407 + $0x18] sm:$0xff]
          %v424 = vld [vmem:[%s2] ss:$4 sm:$0x3]
          %s425 = scalar_lea.vmem %s2, 1
          %v426 = vld [vmem:[%s425] ss:$4 sm:$0x3]
          %s427 = scalar_lea.vmem %s2, 2
          %v428 = vld [vmem:[%s427] ss:$4 sm:$0x3]
          %s429 = scalar_lea.vmem %s2, 3
          %v430 = vld [vmem:[%s429] ss:$4 sm:$0x3]
          %v432 = vlaneseq
          %v433 = vshrl.u32 %v432, 7
          %v434 = vsub.s32 0, %v433
          %v435 = vrot.slane %v424, %v434
          %v436 = vlaneseq
          %v437 = vshrl.u32 %v436, 7
          %v438 = vsub.s32 1, %v437
          %v439 = vrot.slane %v424, %v438
          %v442 = vmul.f32 %v416, %v435
          %v443 = vmul.f32 %v417, %v439
          %v444 = vmul.f32 %v418, %v435
          %v445 = vmul.f32 %v419, %v439
          %v447 = vlaneseq
          %v448 = vshrl.u32 %v447, 7
          %v449 = vsub.s32 0, %v448
          %v450 = vrot.slane %v426, %v449
          %v451 = vlaneseq
          %v452 = vshrl.u32 %v451, 7
          %v453 = vsub.s32 1, %v452
          %v454 = vrot.slane %v426, %v453
          %v457 = vmul.f32 %v420, %v450
          %v458 = vmul.f32 %v421, %v454
          %v459 = vmul.f32 %v422, %v450
          %v460 = vmul.f32 %v423, %v454
          %v461 = vadd.f32 %v442, %v457
          %v462 = vadd.f32 %v443, %v458
          %v463 = vadd.f32 %v444, %v459
          %v464 = vadd.f32 %v445, %v460
          %465 = vst [vmem:[#allocation4] sm:$0xff] %v461
          %466 = vst [vmem:[#allocation4 + $0x8] sm:$0xff] %v462
          %467 = vst [vmem:[#allocation4 + $0x10] sm:$0xff] %v463
          %468 = vst [vmem:[#allocation4 + $0x18] sm:$0xff] %v464
          %v470 = vlaneseq
          %v471 = vshrl.u32 %v470, 7
          %v472 = vsub.s32 0, %v471
          %v473 = vrot.slane %v428, %v472
          %v474 = vlaneseq
          %v475 = vshrl.u32 %v474, 7
          %v476 = vsub.s32 1, %v475
          %v477 = vrot.slane %v428, %v476
          %v480 = vmul.f32 %v416, %v473
          %v481 = vmul.f32 %v417, %v477
          %v482 = vmul.f32 %v418, %v473
          %v483 = vmul.f32 %v419, %v477
          %v485 = vlaneseq
          %v486 = vshrl.u32 %v485, 7
          %v487 = vsub.s32 0, %v486
          %v488 = vrot.slane %v430, %v487
          %v489 = vlaneseq
          %v490 = vshrl.u32 %v489, 7
          %v491 = vsub.s32 1, %v490
          %v492 = vrot.slane %v430, %v491
          %v495 = vmul.f32 %v420, %v488
          %v496 = vmul.f32 %v421, %v492
          %v497 = vmul.f32 %v422, %v488
          %v498 = vmul.f32 %v423, %v492
          %v499 = vadd.f32 %v480, %v495
          %v500 = vadd.f32 %v481, %v496
          %v501 = vadd.f32 %v482, %v497
          %v502 = vadd.f32 %v483, %v498
          %503 = vst [vmem:[#allocation5] sm:$0xff] %v499
          %504 = vst [vmem:[#allocation5 + $0x8] sm:$0xff] %v500
          %505 = vst [vmem:[#allocation5 + $0x10] sm:$0xff] %v501
          %506 = vst [vmem:[#allocation5 + $0x18] sm:$0xff] %v502
        $region60: #{rwkv_channel_mix.1} parent=43 // pred_fallthru
          _
        %v507 = vld [vmem:[#allocation4] sm:$0xff]
        %v508 = vld [vmem:[#allocation4 + $0x8] sm:$0xff]
        %v509 = vld [vmem:[#allocation4 + $0x10] sm:$0xff]
        %v510 = vld [vmem:[#allocation4 + $0x18] sm:$0xff]
        %v511 = vld [vmem:[%s326] sm:$0xff]
        %v512 = vld [vmem:[%s326 + $0x8] sm:$0xff]
        %v513 = vld [vmem:[%s326 + $0x10] sm:$0xff]
        %v514 = vld [vmem:[%s326 + $0x18] sm:$0xff]
        %v515 = vld [vmem:[%s326 + $0x20] sm:$0xff]
        %v516 = vld [vmem:[%s326 + $0x28] sm:$0xff]
        %v517 = vld [vmem:[%s326 + $0x30] sm:$0xff]
        %v518 = vld [vmem:[%s326 + $0x38] sm:$0xff]
        %v519 = vld [vmem:[%s326 + $0x40] sm:$0xff]
        %v520 = vld [vmem:[%s326 + $0x48] sm:$0xff]
        %v521 = vld [vmem:[%s326 + $0x50] sm:$0xff]
        %v522 = vld [vmem:[%s326 + $0x58] sm:$0xff]
        %v523 = vld [vmem:[%s326 + $0x60] sm:$0xff]
        %v524 = vld [vmem:[%s326 + $0x68] sm:$0xff]
        %v525 = vld [vmem:[%s326 + $0x70] sm:$0xff]
        %v526 = vld [vmem:[%s326 + $0x78] sm:$0xff]
        %v527 = vld [vmem:[%s326 + $0x80] sm:$0xff]
        %v528 = vld [vmem:[%s326 + $0x88] sm:$0xff]
        %v529 = vld [vmem:[%s326 + $0x90] sm:$0xff]
        %v530 = vld [vmem:[%s326 + $0x98] sm:$0xff]
        %v531 = vld [vmem:[%s326 + $0xa0] sm:$0xff]
        %v532 = vld [vmem:[%s326 + $0xa8] sm:$0xff]
        %v533 = vld [vmem:[%s326 + $0xb0] sm:$0xff]
        %v534 = vld [vmem:[%s326 + $0xb8] sm:$0xff]
        %v535 = vld [vmem:[%s326 + $0xc0] sm:$0xff]
        %v536 = vld [vmem:[%s326 + $0xc8] sm:$0xff]
        %v537 = vld [vmem:[%s326 + $0xd0] sm:$0xff]
        %v538 = vld [vmem:[%s326 + $0xd8] sm:$0xff]
        %v539 = vld [vmem:[%s326 + $0xe0] sm:$0xff]
        %v540 = vld [vmem:[%s326 + $0xe8] sm:$0xff]
        %v541 = vld [vmem:[%s326 + $0xf0] sm:$0xff]
        %v542 = vld [vmem:[%s326 + $0xf8] sm:$0xff]
        %v543 = vld [vmem:[%s326 + $0x100] sm:$0xff]
        %v544 = vld [vmem:[%s326 + $0x108] sm:$0xff]
        %v545 = vld [vmem:[%s326 + $0x110] sm:$0xff]
        %v546 = vld [vmem:[%s326 + $0x118] sm:$0xff]
        %v547 = vld [vmem:[%s326 + $0x120] sm:$0xff]
        %v548 = vld [vmem:[%s326 + $0x128] sm:$0xff]
        %v549 = vld [vmem:[%s326 + $0x130] sm:$0xff]
        %v550 = vld [vmem:[%s326 + $0x138] sm:$0xff]
        %v551 = vld [vmem:[%s326 + $0x140] sm:$0xff]
        %v552 = vld [vmem:[%s326 + $0x148] sm:$0xff]
        %v553 = vld [vmem:[%s326 + $0x150] sm:$0xff]
        %v554 = vld [vmem:[%s326 + $0x158] sm:$0xff]
        %v555 = vld [vmem:[%s326 + $0x160] sm:$0xff]
        %v556 = vld [vmem:[%s326 + $0x168] sm:$0xff]
        %v557 = vld [vmem:[%s326 + $0x170] sm:$0xff]
        %v558 = vld [vmem:[%s326 + $0x178] sm:$0xff]
        %v559 = vld [vmem:[%s326 + $0x180] sm:$0xff]
        %v560 = vld [vmem:[%s326 + $0x188] sm:$0xff]
        %v561 = vld [vmem:[%s326 + $0x190] sm:$0xff]
        %v562 = vld [vmem:[%s326 + $0x198] sm:$0xff]
        %v563 = vld [vmem:[%s326 + $0x1a0] sm:$0xff]
        %v564 = vld [vmem:[%s326 + $0x1a8] sm:$0xff]
        %v565 = vld [vmem:[%s326 + $0x1b0] sm:$0xff]
        %v566 = vld [vmem:[%s326 + $0x1b8] sm:$0xff]
        %v567 = vld [vmem:[%s326 + $0x1c0] sm:$0xff]
        %v568 = vld [vmem:[%s326 + $0x1c8] sm:$0xff]
        %v569 = vld [vmem:[%s326 + $0x1d0] sm:$0xff]
        %v570 = vld [vmem:[%s326 + $0x1d8] sm:$0xff]
        %v571 = vld [vmem:[%s326 + $0x1e0] sm:$0xff]
        %v572 = vld [vmem:[%s326 + $0x1e8] sm:$0xff]
        %v573 = vld [vmem:[%s326 + $0x1f0] sm:$0xff]
        %v574 = vld [vmem:[%s326 + $0x1f8] sm:$0xff]
        %v575 = vld [vmem:[%s326 + $0x200] sm:$0xff]
        %v576 = vld [vmem:[%s326 + $0x208] sm:$0xff]
        %v577 = vld [vmem:[%s326 + $0x210] sm:$0xff]
        %v578 = vld [vmem:[%s326 + $0x218] sm:$0xff]
        %v579 = vld [vmem:[%s326 + $0x220] sm:$0xff]
        %v580 = vld [vmem:[%s326 + $0x228] sm:$0xff]
        %v581 = vld [vmem:[%s326 + $0x230] sm:$0xff]
        %v582 = vld [vmem:[%s326 + $0x238] sm:$0xff]
        %v583 = vld [vmem:[%s326 + $0x240] sm:$0xff]
        %v584 = vld [vmem:[%s326 + $0x248] sm:$0xff]
        %v585 = vld [vmem:[%s326 + $0x250] sm:$0xff]
        %v586 = vld [vmem:[%s326 + $0x258] sm:$0xff]
        %v587 = vld [vmem:[%s326 + $0x260] sm:$0xff]
        %v588 = vld [vmem:[%s326 + $0x268] sm:$0xff]
        %v589 = vld [vmem:[%s326 + $0x270] sm:$0xff]
        %v590 = vld [vmem:[%s326 + $0x278] sm:$0xff]
        %v591 = vld [vmem:[%s326 + $0x280] sm:$0xff]
        %v592 = vld [vmem:[%s326 + $0x288] sm:$0xff]
        %v593 = vld [vmem:[%s326 + $0x290] sm:$0xff]
        %v594 = vld [vmem:[%s326 + $0x298] sm:$0xff]
        %v595 = vld [vmem:[%s326 + $0x2a0] sm:$0xff]
        %v596 = vld [vmem:[%s326 + $0x2a8] sm:$0xff]
        %v597 = vld [vmem:[%s326 + $0x2b0] sm:$0xff]
        %v598 = vld [vmem:[%s326 + $0x2b8] sm:$0xff]
        %v599 = vld [vmem:[%s326 + $0x2c0] sm:$0xff]
        %v600 = vld [vmem:[%s326 + $0x2c8] sm:$0xff]
        %v601 = vld [vmem:[%s326 + $0x2d0] sm:$0xff]
        %v602 = vld [vmem:[%s326 + $0x2d8] sm:$0xff]
        %v603 = vld [vmem:[%s326 + $0x2e0] sm:$0xff]
        %v604 = vld [vmem:[%s326 + $0x2e8] sm:$0xff]
        %v605 = vld [vmem:[%s326 + $0x2f0] sm:$0xff]
        %v606 = vld [vmem:[%s326 + $0x2f8] sm:$0xff]
        %v607 = vld [vmem:[%s326 + $0x300] sm:$0xff]
        %v608 = vld [vmem:[%s326 + $0x308] sm:$0xff]
        %v609 = vld [vmem:[%s326 + $0x310] sm:$0xff]
        %v610 = vld [vmem:[%s326 + $0x318] sm:$0xff]
        %v611 = vld [vmem:[%s326 + $0x320] sm:$0xff]
        %v612 = vld [vmem:[%s326 + $0x328] sm:$0xff]
        %v613 = vld [vmem:[%s326 + $0x330] sm:$0xff]
        %v614 = vld [vmem:[%s326 + $0x338] sm:$0xff]
        %v615 = vld [vmem:[%s326 + $0x340] sm:$0xff]
        %v616 = vld [vmem:[%s326 + $0x348] sm:$0xff]
        %v617 = vld [vmem:[%s326 + $0x350] sm:$0xff]
        %v618 = vld [vmem:[%s326 + $0x358] sm:$0xff]
        %v619 = vld [vmem:[%s326 + $0x360] sm:$0xff]
        %v620 = vld [vmem:[%s326 + $0x368] sm:$0xff]
        %v621 = vld [vmem:[%s326 + $0x370] sm:$0xff]
        %v622 = vld [vmem:[%s326 + $0x378] sm:$0xff]
        %v623 = vld [vmem:[%s326 + $0x380] sm:$0xff]
        %v624 = vld [vmem:[%s326 + $0x388] sm:$0xff]
        %v625 = vld [vmem:[%s326 + $0x390] sm:$0xff]
        %v626 = vld [vmem:[%s326 + $0x398] sm:$0xff]
        %v627 = vld [vmem:[%s326 + $0x3a0] sm:$0xff]
        %v628 = vld [vmem:[%s326 + $0x3a8] sm:$0xff]
        %v629 = vld [vmem:[%s326 + $0x3b0] sm:$0xff]
        %v630 = vld [vmem:[%s326 + $0x3b8] sm:$0xff]
        %v631 = vld [vmem:[%s326 + $0x3c0] sm:$0xff]
        %v632 = vld [vmem:[%s326 + $0x3c8] sm:$0xff]
        %v633 = vld [vmem:[%s326 + $0x3d0] sm:$0xff]
        %v634 = vld [vmem:[%s326 + $0x3d8] sm:$0xff]
        %v635 = vld [vmem:[%s326 + $0x3e0] sm:$0xff]
        %v636 = vld [vmem:[%s326 + $0x3e8] sm:$0xff]
        %v637 = vld [vmem:[%s326 + $0x3f0] sm:$0xff]
        %v638 = vld [vmem:[%s326 + $0x3f8] sm:$0xff]
        %v639 = vand.u32 %v572, 4294901760
        %640 = vmatprep.subr.mxu0 %v639
        %v641 = vand.u32 %v571, 4294901760
        %642 = vmatpush1.msra.mxu0 %v641
        %v643 = vand.u32 %v568, 4294901760
        %644 = vmatprep.subr.mxu0 %v643
        %v645 = vand.u32 %v567, 4294901760
        %646 = vmatpush1.msra.mxu0 %v645
        %v647 = vand.u32 %v564, 4294901760
        %648 = vmatprep.subr.mxu0 %v647
        %v649 = vand.u32 %v563, 4294901760
        %650 = vmatpush1.msra.mxu0 %v649
        %v651 = vand.u32 %v560, 4294901760
        %652 = vmatprep.subr.mxu0 %v651
        %v653 = vand.u32 %v559, 4294901760
        %654 = vmatpush1.msra.mxu0 %v653
        %v655 = vand.u32 %v556, 4294901760
        %656 = vmatprep.subr.mxu0 %v655
        %v657 = vand.u32 %v555, 4294901760
        %658 = vmatpush1.msra.mxu0 %v657
        %v659 = vand.u32 %v552, 4294901760
        %660 = vmatprep.subr.mxu0 %v659
        %v661 = vand.u32 %v551, 4294901760
        %662 = vmatpush1.msra.mxu0 %v661
        %v663 = vand.u32 %v548, 4294901760
        %664 = vmatprep.subr.mxu0 %v663
        %v665 = vand.u32 %v547, 4294901760
        %666 = vmatpush1.msra.mxu0 %v665
        %v667 = vand.u32 %v544, 4294901760
        %668 = vmatprep.subr.mxu0 %v667
        %v669 = vand.u32 %v543, 4294901760
        %670 = vmatpush1.msra.mxu0 %v669
        %v671 = vand.u32 %v540, 4294901760
        %672 = vmatprep.subr.mxu0 %v671
        %v673 = vand.u32 %v539, 4294901760
        %674 = vmatpush1.msra.mxu0 %v673
        %v675 = vand.u32 %v536, 4294901760
        %676 = vmatprep.subr.mxu0 %v675
        %v677 = vand.u32 %v535, 4294901760
        %678 = vmatpush1.msra.mxu0 %v677
        %v679 = vand.u32 %v532, 4294901760
        %680 = vmatprep.subr.mxu0 %v679
        %v681 = vand.u32 %v531, 4294901760
        %682 = vmatpush1.msra.mxu0 %v681
        %v683 = vand.u32 %v528, 4294901760
        %684 = vmatprep.subr.mxu0 %v683
        %v685 = vand.u32 %v527, 4294901760
        %686 = vmatpush1.msra.mxu0 %v685
        %v687 = vand.u32 %v524, 4294901760
        %688 = vmatprep.subr.mxu0 %v687
        %v689 = vand.u32 %v523, 4294901760
        %690 = vmatpush1.msra.mxu0 %v689
        %v691 = vand.u32 %v520, 4294901760
        %692 = vmatprep.subr.mxu0 %v691
        %v693 = vand.u32 %v519, 4294901760
        %694 = vmatpush1.msra.mxu0 %v693
        %v695 = vand.u32 %v516, 4294901760
        %696 = vmatprep.subr.mxu0 %v695
        %v697 = vand.u32 %v515, 4294901760
        %698 = vmatpush1.msra.mxu0 %v697
        %v699 = vand.u32 %v512, 4294901760
        %700 = vmatprep.subr.mxu0 %v699
        %v701 = vand.u32 %v511, 4294901760
        %702 = vmatpush1.msra.mxu0 %v701
        %v703 = vand.u32 %v636, 4294901760
        %704 = vmatprep.subr.mxu0 %v703
        %v705 = vand.u32 %v635, 4294901760
        %706 = vmatpush2.msra.mxu0 %v705
        %v707 = vand.u32 %v632, 4294901760
        %708 = vmatprep.subr.mxu0 %v707
        %v709 = vand.u32 %v631, 4294901760
        %710 = vmatpush2.msra.mxu0 %v709
        %v711 = vand.u32 %v628, 4294901760
        %712 = vmatprep.subr.mxu0 %v711
        %v713 = vand.u32 %v627, 4294901760
        %714 = vmatpush2.msra.mxu0 %v713
        %v715 = vand.u32 %v624, 4294901760
        %716 = vmatprep.subr.mxu0 %v715
        %v717 = vand.u32 %v623, 4294901760
        %718 = vmatpush2.msra.mxu0 %v717
        %v719 = vand.u32 %v620, 4294901760
        %720 = vmatprep.subr.mxu0 %v719
        %v721 = vand.u32 %v619, 4294901760
        %722 = vmatpush2.msra.mxu0 %v721
        %v723 = vand.u32 %v616, 4294901760
        %724 = vmatprep.subr.mxu0 %v723
        %v725 = vand.u32 %v615, 4294901760
        %726 = vmatpush2.msra.mxu0 %v725
        %v727 = vand.u32 %v612, 4294901760
        %728 = vmatprep.subr.mxu0 %v727
        %v729 = vand.u32 %v611, 4294901760
        %730 = vmatpush2.msra.mxu0 %v729
        %v731 = vand.u32 %v608, 4294901760
        %732 = vmatprep.subr.mxu0 %v731
        %v733 = vand.u32 %v607, 4294901760
        %734 = vmatpush2.msra.mxu0 %v733
        %v735 = vand.u32 %v604, 4294901760
        %736 = vmatprep.subr.mxu0 %v735
        %v737 = vand.u32 %v603, 4294901760
        %738 = vmatpush2.msra.mxu0 %v737
        %v739 = vand.u32 %v600, 4294901760
        %740 = vmatprep.subr.mxu0 %v739
        %v741 = vand.u32 %v599, 4294901760
        %742 = vmatpush2.msra.mxu0 %v741
        %v743 = vand.u32 %v596, 4294901760
        %744 = vmatprep.subr.mxu0 %v743
        %v745 = vand.u32 %v595, 4294901760
        %746 = vmatpush2.msra.mxu0 %v745
        %v747 = vand.u32 %v592, 4294901760
        %748 = vmatprep.subr.mxu0 %v747
        %v749 = vand.u32 %v591, 4294901760
        %750 = vmatpush2.msra.mxu0 %v749
        %v751 = vand.u32 %v588, 4294901760
        %752 = vmatprep.subr.mxu0 %v751
        %v753 = vand.u32 %v587, 4294901760
        %754 = vmatpush2.msra.mxu0 %v753
        %v755 = vand.u32 %v584, 4294901760
        %756 = vmatprep.subr.mxu0 %v755
        %v757 = vand.u32 %v583, 4294901760
        %758 = vmatpush2.msra.mxu0 %v757
        %v759 = vand.u32 %v580, 4294901760
        %760 = vmatprep.subr.mxu0 %v759
        %v761 = vand.u32 %v579, 4294901760
        %762 = vmatpush2.msra.mxu0 %v761
        %v763 = vand.u32 %v576, 4294901760
        %764 = vmatprep.subr.mxu0 %v763
        %v765 = vand.u32 %v575, 4294901760
        %766 = vmatpush2.msra.mxu0 %v765
        %v767 = vand.u32 %v508, 4294901760
        %v768 = vsub.f32 %v508, %v767
        %v769 = vand.u32 %v768, 4294901760
        %v770 = vsub.f32 %v768, %v769
        %v771 = vand.u32 %v770, 4294901760
        %772 = vmatprep.mubr.f32.mxu0 %v771
        %v773 = vand.u32 %v507, 4294901760
        %v774 = vsub.f32 %v507, %v773
        %v775 = vand.u32 %v774, 4294901760
        %v776 = vsub.f32 %v774, %v775
        %v777 = vand.u32 %v776, 4294901760
        %778 = vmatmul.mubr.f32.gmra.mxu0 %v777
        %v779 = vpop.f32.mrf.mxu0
        %v780 = vadd.f32 0.0, %v779
        %v781 = vpop.f32.mrf.mxu0
        %v782 = vadd.f32 0.0, %v781
        %v783 = vand.u32 %v510, 4294901760
        %v784 = vsub.f32 %v510, %v783
        %v785 = vand.u32 %v784, 4294901760
        %v786 = vsub.f32 %v784, %v785
        %v787 = vand.u32 %v786, 4294901760
        %788 = vmatprep.mubr.f32.mxu0 %v787
        %v789 = vand.u32 %v509, 4294901760
        %v790 = vsub.f32 %v509, %v789
        %v791 = vand.u32 %v790, 4294901760
        %v792 = vsub.f32 %v790, %v791
        %v793 = vand.u32 %v792, 4294901760
        %794 = vmatmul.mubr.f32.gmra.mxu0 %v793
        %v795 = vpop.f32.mrf.mxu0
        %v796 = vadd.f32 0.0, %v795
        %v797 = vpop.f32.mrf.mxu0
        %v798 = vadd.f32 0.0, %v797
        %799 = vdwg.mxu0
        %v800 = vand.u32 %v572, 4294901760
        %v801 = vsub.f32 %v572, %v800
        %v802 = vand.u32 %v801, 4294901760
        %v803 = vsub.f32 %v801, %v802
        %v804 = vand.u32 %v803, 4294901760
        %805 = vmatprep.subr.mxu0 %v804
        %v806 = vand.u32 %v571, 4294901760
        %v807 = vsub.f32 %v571, %v806
        %v808 = vand.u32 %v807, 4294901760
        %v809 = vsub.f32 %v807, %v808
        %v810 = vand.u32 %v809, 4294901760
        %811 = vmatpush1.msra.mxu0 %v810
        %v812 = vand.u32 %v568, 4294901760
        %v813 = vsub.f32 %v568, %v812
        %v814 = vand.u32 %v813, 4294901760
        %v815 = vsub.f32 %v813, %v814
        %v816 = vand.u32 %v815, 4294901760
        %817 = vmatprep.subr.mxu0 %v816
        %v818 = vand.u32 %v567, 4294901760
        %v819 = vsub.f32 %v567, %v818
        %v820 = vand.u32 %v819, 4294901760
        %v821 = vsub.f32 %v819, %v820
        %v822 = vand.u32 %v821, 4294901760
        %823 = vmatpush1.msra.mxu0 %v822
        %v824 = vand.u32 %v564, 4294901760
        %v825 = vsub.f32 %v564, %v824
        %v826 = vand.u32 %v825, 4294901760
        %v827 = vsub.f32 %v825, %v826
        %v828 = vand.u32 %v827, 4294901760
        %829 = vmatprep.subr.mxu0 %v828
        %v830 = vand.u32 %v563, 4294901760
        %v831 = vsub.f32 %v563, %v830
        %v832 = vand.u32 %v831, 4294901760
        %v833 = vsub.f32 %v831, %v832
        %v834 = vand.u32 %v833, 4294901760
        %835 = vmatpush1.msra.mxu0 %v834
        %v836 = vand.u32 %v560, 4294901760
        %v837 = vsub.f32 %v560, %v836
        %v838 = vand.u32 %v837, 4294901760
        %v839 = vsub.f32 %v837, %v838
        %v840 = vand.u32 %v839, 4294901760
        %841 = vmatprep.subr.mxu0 %v840
        %v842 = vand.u32 %v559, 4294901760
        %v843 = vsub.f32 %v559, %v842
        %v844 = vand.u32 %v843, 4294901760
        %v845 = vsub.f32 %v843, %v844
        %v846 = vand.u32 %v845, 4294901760
        %847 = vmatpush1.msra.mxu0 %v846
        %v848 = vand.u32 %v556, 4294901760
        %v849 = vsub.f32 %v556, %v848
        %v850 = vand.u32 %v849, 4294901760
        %v851 = vsub.f32 %v849, %v850
        %v852 = vand.u32 %v851, 4294901760
        %853 = vmatprep.subr.mxu0 %v852
        %v854 = vand.u32 %v555, 4294901760
        %v855 = vsub.f32 %v555, %v854
        %v856 = vand.u32 %v855, 4294901760
        %v857 = vsub.f32 %v855, %v856
        %v858 = vand.u32 %v857, 4294901760
        %859 = vmatpush1.msra.mxu0 %v858
        %v860 = vand.u32 %v552, 4294901760
        %v861 = vsub.f32 %v552, %v860
        %v862 = vand.u32 %v861, 4294901760
        %v863 = vsub.f32 %v861, %v862
        %v864 = vand.u32 %v863, 4294901760
        %865 = vmatprep.subr.mxu0 %v864
        %v866 = vand.u32 %v551, 4294901760
        %v867 = vsub.f32 %v551, %v866
        %v868 = vand.u32 %v867, 4294901760
        %v869 = vsub.f32 %v867, %v868
        %v870 = vand.u32 %v869, 4294901760
        %871 = vmatpush1.msra.mxu0 %v870
        %v872 = vand.u32 %v548, 4294901760
        %v873 = vsub.f32 %v548, %v872
        %v874 = vand.u32 %v873, 4294901760
        %v875 = vsub.f32 %v873, %v874
        %v876 = vand.u32 %v875, 4294901760
        %877 = vmatprep.subr.mxu0 %v876
        %v878 = vand.u32 %v547, 4294901760
        %v879 = vsub.f32 %v547, %v878
        %v880 = vand.u32 %v879, 4294901760
        %v881 = vsub.f32 %v879, %v880
        %v882 = vand.u32 %v881, 4294901760
        %883 = vmatpush1.msra.mxu0 %v882
        %v884 = vand.u32 %v544, 4294901760
        %v885 = vsub.f32 %v544, %v884
        %v886 = vand.u32 %v885, 4294901760
        %v887 = vsub.f32 %v885, %v886
        %v888 = vand.u32 %v887, 4294901760
        %889 = vmatprep.subr.mxu0 %v888
        %v890 = vand.u32 %v543, 4294901760
        %v891 = vsub.f32 %v543, %v890
        %v892 = vand.u32 %v891, 4294901760
        %v893 = vsub.f32 %v891, %v892
        %v894 = vand.u32 %v893, 4294901760
        %895 = vmatpush1.msra.mxu0 %v894
        %v896 = vand.u32 %v540, 4294901760
        %v897 = vsub.f32 %v540, %v896
        %v898 = vand.u32 %v897, 4294901760
        %v899 = vsub.f32 %v897, %v898
        %v900 = vand.u32 %v899, 4294901760
        %901 = vmatprep.subr.mxu0 %v900
        %v902 = vand.u32 %v539, 4294901760
        %v903 = vsub.f32 %v539, %v902
        %v904 = vand.u32 %v903, 4294901760
        %v905 = vsub.f32 %v903, %v904
        %v906 = vand.u32 %v905, 4294901760
        %907 = vmatpush1.msra.mxu0 %v906
        %v908 = vand.u32 %v536, 4294901760
        %v909 = vsub.f32 %v536, %v908
        %v910 = vand.u32 %v909, 4294901760
        %v911 = vsub.f32 %v909, %v910
        %v912 = vand.u32 %v911, 4294901760
        %913 = vmatprep.subr.mxu0 %v912
        %v914 = vand.u32 %v535, 4294901760
        %v915 = vsub.f32 %v535, %v914
        %v916 = vand.u32 %v915, 4294901760
        %v917 = vsub.f32 %v915, %v916
        %v918 = vand.u32 %v917, 4294901760
        %919 = vmatpush1.msra.mxu0 %v918
        %v920 = vand.u32 %v532, 4294901760
        %v921 = vsub.f32 %v532, %v920
        %v922 = vand.u32 %v921, 4294901760
        %v923 = vsub.f32 %v921, %v922
        %v924 = vand.u32 %v923, 4294901760
        %925 = vmatprep.subr.mxu0 %v924
        %v926 = vand.u32 %v531, 4294901760
        %v927 = vsub.f32 %v531, %v926
        %v928 = vand.u32 %v927, 4294901760
        %v929 = vsub.f32 %v927, %v928
        %v930 = vand.u32 %v929, 4294901760
        %931 = vmatpush1.msra.mxu0 %v930
        %v932 = vand.u32 %v528, 4294901760
        %v933 = vsub.f32 %v528, %v932
        %v934 = vand.u32 %v933, 4294901760
        %v935 = vsub.f32 %v933, %v934
        %v936 = vand.u32 %v935, 4294901760
        %937 = vmatprep.subr.mxu0 %v936
        %v938 = vand.u32 %v527, 4294901760
        %v939 = vsub.f32 %v527, %v938
        %v940 = vand.u32 %v939, 4294901760
        %v941 = vsub.f32 %v939, %v940
        %v942 = vand.u32 %v941, 4294901760
        %943 = vmatpush1.msra.mxu0 %v942
        %v944 = vand.u32 %v524, 4294901760
        %v945 = vsub.f32 %v524, %v944
        %v946 = vand.u32 %v945, 4294901760
        %v947 = vsub.f32 %v945, %v946
        %v948 = vand.u32 %v947, 4294901760
        %949 = vmatprep.subr.mxu0 %v948
        %v950 = vand.u32 %v523, 4294901760
        %v951 = vsub.f32 %v523, %v950
        %v952 = vand.u32 %v951, 4294901760
        %v953 = vsub.f32 %v951, %v952
        %v954 = vand.u32 %v953, 4294901760
        %955 = vmatpush1.msra.mxu0 %v954
        %v956 = vand.u32 %v520, 4294901760
        %v957 = vsub.f32 %v520, %v956
        %v958 = vand.u32 %v957, 4294901760
        %v959 = vsub.f32 %v957, %v958
        %v960 = vand.u32 %v959, 4294901760
        %961 = vmatprep.subr.mxu0 %v960
        %v962 = vand.u32 %v519, 4294901760
        %v963 = vsub.f32 %v519, %v962
        %v964 = vand.u32 %v963, 4294901760
        %v965 = vsub.f32 %v963, %v964
        %v966 = vand.u32 %v965, 4294901760
        %967 = vmatpush1.msra.mxu0 %v966
        %v968 = vand.u32 %v516, 4294901760
        %v969 = vsub.f32 %v516, %v968
        %v970 = vand.u32 %v969, 4294901760
        %v971 = vsub.f32 %v969, %v970
        %v972 = vand.u32 %v971, 4294901760
        %973 = vmatprep.subr.mxu0 %v972
        %v974 = vand.u32 %v515, 4294901760
        %v975 = vsub.f32 %v515, %v974
        %v976 = vand.u32 %v975, 4294901760
        %v977 = vsub.f32 %v975, %v976
        %v978 = vand.u32 %v977, 4294901760
        %979 = vmatpush1.msra.mxu0 %v978
        %v980 = vand.u32 %v512, 4294901760
        %v981 = vsub.f32 %v512, %v980
        %v982 = vand.u32 %v981, 4294901760
        %v983 = vsub.f32 %v981, %v982
        %v984 = vand.u32 %v983, 4294901760
        %985 = vmatprep.subr.mxu0 %v984
        %v986 = vand.u32 %v511, 4294901760
        %v987 = vsub.f32 %v511, %v986
        %v988 = vand.u32 %v987, 4294901760
        %v989 = vsub.f32 %v987, %v988
        %v990 = vand.u32 %v989, 4294901760
        %991 = vmatpush1.msra.mxu0 %v990
        %v992 = vand.u32 %v636, 4294901760
        %v993 = vsub.f32 %v636, %v992
        %v994 = vand.u32 %v993, 4294901760
        %v995 = vsub.f32 %v993, %v994
        %v996 = vand.u32 %v995, 4294901760
        %997 = vmatprep.subr.mxu0 %v996
        %v998 = vand.u32 %v635, 4294901760
        %v999 = vsub.f32 %v635, %v998
        %v1000 = vand.u32 %v999, 4294901760
        %v1001 = vsub.f32 %v999, %v1000
        %v1002 = vand.u32 %v1001, 4294901760
        %1003 = vmatpush2.msra.mxu0 %v1002
        %v1004 = vand.u32 %v632, 4294901760
        %v1005 = vsub.f32 %v632, %v1004
        %v1006 = vand.u32 %v1005, 4294901760
        %v1007 = vsub.f32 %v1005, %v1006
        %v1008 = vand.u32 %v1007, 4294901760
        %1009 = vmatprep.subr.mxu0 %v1008
        %v1010 = vand.u32 %v631, 4294901760
        %v1011 = vsub.f32 %v631, %v1010
        %v1012 = vand.u32 %v1011, 4294901760
        %v1013 = vsub.f32 %v1011, %v1012
        %v1014 = vand.u32 %v1013, 4294901760
        %1015 = vmatpush2.msra.mxu0 %v1014
        %v1016 = vand.u32 %v628, 4294901760
        %v1017 = vsub.f32 %v628, %v1016
        %v1018 = vand.u32 %v1017, 4294901760
        %v1019 = vsub.f32 %v1017, %v1018
        %v1020 = vand.u32 %v1019, 4294901760
        %1021 = vmatprep.subr.mxu0 %v1020
        %v1022 = vand.u32 %v627, 4294901760
        %v1023 = vsub.f32 %v627, %v1022
        %v1024 = vand.u32 %v1023, 4294901760
        %v1025 = vsub.f32 %v1023, %v1024
        %v1026 = vand.u32 %v1025, 4294901760
        %1027 = vmatpush2.msra.mxu0 %v1026
        %v1028 = vand.u32 %v624, 4294901760
        %v1029 = vsub.f32 %v624, %v1028
        %v1030 = vand.u32 %v1029, 4294901760
        %v1031 = vsub.f32 %v1029, %v1030
        %v1032 = vand.u32 %v1031, 4294901760
        %1033 = vmatprep.subr.mxu0 %v1032
        %v1034 = vand.u32 %v623, 4294901760
        %v1035 = vsub.f32 %v623, %v1034
        %v1036 = vand.u32 %v1035, 4294901760
        %v1037 = vsub.f32 %v1035, %v1036
        %v1038 = vand.u32 %v1037, 4294901760
        %1039 = vmatpush2.msra.mxu0 %v1038
        %v1040 = vand.u32 %v620, 4294901760
        %v1041 = vsub.f32 %v620, %v1040
        %v1042 = vand.u32 %v1041, 4294901760
        %v1043 = vsub.f32 %v1041, %v1042
        %v1044 = vand.u32 %v1043, 4294901760
        %1045 = vmatprep.subr.mxu0 %v1044
        %v1046 = vand.u32 %v619, 4294901760
        %v1047 = vsub.f32 %v619, %v1046
        %v1048 = vand.u32 %v1047, 4294901760
        %v1049 = vsub.f32 %v1047, %v1048
        %v1050 = vand.u32 %v1049, 4294901760
        %1051 = vmatpush2.msra.mxu0 %v1050
        %v1052 = vand.u32 %v616, 4294901760
        %v1053 = vsub.f32 %v616, %v1052
        %v1054 = vand.u32 %v1053, 4294901760
        %v1055 = vsub.f32 %v1053, %v1054
        %v1056 = vand.u32 %v1055, 4294901760
        %1057 = vmatprep.subr.mxu0 %v1056
        %v1058 = vand.u32 %v615, 4294901760
        %v1059 = vsub.f32 %v615, %v1058
        %v1060 = vand.u32 %v1059, 4294901760
        %v1061 = vsub.f32 %v1059, %v1060
        %v1062 = vand.u32 %v1061, 4294901760
        %1063 = vmatpush2.msra.mxu0 %v1062
        %v1064 = vand.u32 %v612, 4294901760
        %v1065 = vsub.f32 %v612, %v1064
        %v1066 = vand.u32 %v1065, 4294901760
        %v1067 = vsub.f32 %v1065, %v1066
        %v1068 = vand.u32 %v1067, 4294901760
        %1069 = vmatprep.subr.mxu0 %v1068
        %v1070 = vand.u32 %v611, 4294901760
        %v1071 = vsub.f32 %v611, %v1070
        %v1072 = vand.u32 %v1071, 4294901760
        %v1073 = vsub.f32 %v1071, %v1072
        %v1074 = vand.u32 %v1073, 4294901760
        %1075 = vmatpush2.msra.mxu0 %v1074
        %v1076 = vand.u32 %v608, 4294901760
        %v1077 = vsub.f32 %v608, %v1076
        %v1078 = vand.u32 %v1077, 4294901760
        %v1079 = vsub.f32 %v1077, %v1078
        %v1080 = vand.u32 %v1079, 4294901760
        %1081 = vmatprep.subr.mxu0 %v1080
        %v1082 = vand.u32 %v607, 4294901760
        %v1083 = vsub.f32 %v607, %v1082
        %v1084 = vand.u32 %v1083, 4294901760
        %v1085 = vsub.f32 %v1083, %v1084
        %v1086 = vand.u32 %v1085, 4294901760
        %1087 = vmatpush2.msra.mxu0 %v1086
        %v1088 = vand.u32 %v604, 4294901760
        %v1089 = vsub.f32 %v604, %v1088
        %v1090 = vand.u32 %v1089, 4294901760
        %v1091 = vsub.f32 %v1089, %v1090
        %v1092 = vand.u32 %v1091, 4294901760
        %1093 = vmatprep.subr.mxu0 %v1092
        %v1094 = vand.u32 %v603, 4294901760
        %v1095 = vsub.f32 %v603, %v1094
        %v1096 = vand.u32 %v1095, 4294901760
        %v1097 = vsub.f32 %v1095, %v1096
        %v1098 = vand.u32 %v1097, 4294901760
        %1099 = vmatpush2.msra.mxu0 %v1098
        %v1100 = vand.u32 %v600, 4294901760
        %v1101 = vsub.f32 %v600, %v1100
        %v1102 = vand.u32 %v1101, 4294901760
        %v1103 = vsub.f32 %v1101, %v1102
        %v1104 = vand.u32 %v1103, 4294901760
        %1105 = vmatprep.subr.mxu0 %v1104
        %v1106 = vand.u32 %v599, 4294901760
        %v1107 = vsub.f32 %v599, %v1106
        %v1108 = vand.u32 %v1107, 4294901760
        %v1109 = vsub.f32 %v1107, %v1108
        %v1110 = vand.u32 %v1109, 4294901760
        %1111 = vmatpush2.msra.mxu0 %v1110
        %v1112 = vand.u32 %v596, 4294901760
        %v1113 = vsub.f32 %v596, %v1112
        %v1114 = vand.u32 %v1113, 4294901760
        %v1115 = vsub.f32 %v1113, %v1114
        %v1116 = vand.u32 %v1115, 4294901760
        %1117 = vmatprep.subr.mxu0 %v1116
        %v1118 = vand.u32 %v595, 4294901760
        %v1119 = vsub.f32 %v595, %v1118
        %v1120 = vand.u32 %v1119, 4294901760
        %v1121 = vsub.f32 %v1119, %v1120
        %v1122 = vand.u32 %v1121, 4294901760
        %1123 = vmatpush2.msra.mxu0 %v1122
        %v1124 = vand.u32 %v592, 4294901760
        %v1125 = vsub.f32 %v592, %v1124
        %v1126 = vand.u32 %v1125, 4294901760
        %v1127 = vsub.f32 %v1125, %v1126
        %v1128 = vand.u32 %v1127, 4294901760
        %1129 = vmatprep.subr.mxu0 %v1128
        %v1130 = vand.u32 %v591, 4294901760
        %v1131 = vsub.f32 %v591, %v1130
        %v1132 = vand.u32 %v1131, 4294901760
        %v1133 = vsub.f32 %v1131, %v1132
        %v1134 = vand.u32 %v1133, 4294901760
        %1135 = vmatpush2.msra.mxu0 %v1134
        %v1136 = vand.u32 %v588, 4294901760
        %v1137 = vsub.f32 %v588, %v1136
        %v1138 = vand.u32 %v1137, 4294901760
        %v1139 = vsub.f32 %v1137, %v1138
        %v1140 = vand.u32 %v1139, 4294901760
        %1141 = vmatprep.subr.mxu0 %v1140
        %v1142 = vand.u32 %v587, 4294901760
        %v1143 = vsub.f32 %v587, %v1142
        %v1144 = vand.u32 %v1143, 4294901760
        %v1145 = vsub.f32 %v1143, %v1144
        %v1146 = vand.u32 %v1145, 4294901760
        %1147 = vmatpush2.msra.mxu0 %v1146
        %v1148 = vand.u32 %v584, 4294901760
        %v1149 = vsub.f32 %v584, %v1148
        %v1150 = vand.u32 %v1149, 4294901760
        %v1151 = vsub.f32 %v1149, %v1150
        %v1152 = vand.u32 %v1151, 4294901760
        %1153 = vmatprep.subr.mxu0 %v1152
        %v1154 = vand.u32 %v583, 4294901760
        %v1155 = vsub.f32 %v583, %v1154
        %v1156 = vand.u32 %v1155, 4294901760
        %v1157 = vsub.f32 %v1155, %v1156
        %v1158 = vand.u32 %v1157, 4294901760
        %1159 = vmatpush2.msra.mxu0 %v1158
        %v1160 = vand.u32 %v580, 4294901760
        %v1161 = vsub.f32 %v580, %v1160
        %v1162 = vand.u32 %v1161, 4294901760
        %v1163 = vsub.f32 %v1161, %v1162
        %v1164 = vand.u32 %v1163, 4294901760
        %1165 = vmatprep.subr.mxu0 %v1164
        %v1166 = vand.u32 %v579, 4294901760
        %v1167 = vsub.f32 %v579, %v1166
        %v1168 = vand.u32 %v1167, 4294901760
        %v1169 = vsub.f32 %v1167, %v1168
        %v1170 = vand.u32 %v1169, 4294901760
        %1171 = vmatpush2.msra.mxu0 %v1170
        %v1172 = vand.u32 %v576, 4294901760
        %v1173 = vsub.f32 %v576, %v1172
        %v1174 = vand.u32 %v1173, 4294901760
        %v1175 = vsub.f32 %v1173, %v1174
        %v1176 = vand.u32 %v1175, 4294901760
        %1177 = vmatprep.subr.mxu0 %v1176
        %v1178 = vand.u32 %v575, 4294901760
        %v1179 = vsub.f32 %v575, %v1178
        %v1180 = vand.u32 %v1179, 4294901760
        %v1181 = vsub.f32 %v1179, %v1180
        %v1182 = vand.u32 %v1181, 4294901760
        %1183 = vmatpush2.msra.mxu0 %v1182
        %v1184 = vand.u32 %v508, 4294901760
        %1185 = vmatprep.mubr.f32.mxu0 %v1184
        %v1186 = vand.u32 %v507, 4294901760
        %1187 = vmatmul.mubr.f32.gmra.mxu0 %v1186
        %v1188 = vpop.f32.mrf.mxu0
        %v1189 = vadd.f32 %v780, %v1188
        %v1190 = vpop.f32.mrf.mxu0
        %v1191 = vadd.f32 %v782, %v1190
        %v1192 = vand.u32 %v510, 4294901760
        %1193 = vmatprep.mubr.f32.mxu0 %v1192
        %v1194 = vand.u32 %v509, 4294901760
        %1195 = vmatmul.mubr.f32.gmra.mxu0 %v1194
        %v1196 = vpop.f32.mrf.mxu0
        %v1197 = vadd.f32 %v796, %v1196
        %v1198 = vpop.f32.mrf.mxu0
        %v1199 = vadd.f32 %v798, %v1198
        %1200 = vdwg.mxu0
        %v1201 = vand.u32 %v572, 4294901760
        %v1202 = vsub.f32 %v572, %v1201
        %1203 = vmatprep.subr.mxu0 %v1202
        %v1204 = vand.u32 %v571, 4294901760
        %v1205 = vsub.f32 %v571, %v1204
        %1206 = vmatpush1.msra.mxu0 %v1205
        %v1207 = vand.u32 %v568, 4294901760
        %v1208 = vsub.f32 %v568, %v1207
        %1209 = vmatprep.subr.mxu0 %v1208
        %v1210 = vand.u32 %v567, 4294901760
        %v1211 = vsub.f32 %v567, %v1210
        %1212 = vmatpush1.msra.mxu0 %v1211
        %v1213 = vand.u32 %v564, 4294901760
        %v1214 = vsub.f32 %v564, %v1213
        %1215 = vmatprep.subr.mxu0 %v1214
        %v1216 = vand.u32 %v563, 4294901760
        %v1217 = vsub.f32 %v563, %v1216
        %1218 = vmatpush1.msra.mxu0 %v1217
        %v1219 = vand.u32 %v560, 4294901760
        %v1220 = vsub.f32 %v560, %v1219
        %1221 = vmatprep.subr.mxu0 %v1220
        %v1222 = vand.u32 %v559, 4294901760
        %v1223 = vsub.f32 %v559, %v1222
        %1224 = vmatpush1.msra.mxu0 %v1223
        %v1225 = vand.u32 %v556, 4294901760
        %v1226 = vsub.f32 %v556, %v1225
        %1227 = vmatprep.subr.mxu0 %v1226
        %v1228 = vand.u32 %v555, 4294901760
        %v1229 = vsub.f32 %v555, %v1228
        %1230 = vmatpush1.msra.mxu0 %v1229
        %v1231 = vand.u32 %v552, 4294901760
        %v1232 = vsub.f32 %v552, %v1231
        %1233 = vmatprep.subr.mxu0 %v1232
        %v1234 = vand.u32 %v551, 4294901760
        %v1235 = vsub.f32 %v551, %v1234
        %1236 = vmatpush1.msra.mxu0 %v1235
        %v1237 = vand.u32 %v548, 4294901760
        %v1238 = vsub.f32 %v548, %v1237
        %1239 = vmatprep.subr.mxu0 %v1238
        %v1240 = vand.u32 %v547, 4294901760
        %v1241 = vsub.f32 %v547, %v1240
        %1242 = vmatpush1.msra.mxu0 %v1241
        %v1243 = vand.u32 %v544, 4294901760
        %v1244 = vsub.f32 %v544, %v1243
        %1245 = vmatprep.subr.mxu0 %v1244
        %v1246 = vand.u32 %v543, 4294901760
        %v1247 = vsub.f32 %v543, %v1246
        %1248 = vmatpush1.msra.mxu0 %v1247
        %v1249 = vand.u32 %v540, 4294901760
        %v1250 = vsub.f32 %v540, %v1249
        %1251 = vmatprep.subr.mxu0 %v1250
        %v1252 = vand.u32 %v539, 4294901760
        %v1253 = vsub.f32 %v539, %v1252
        %1254 = vmatpush1.msra.mxu0 %v1253
        %v1255 = vand.u32 %v536, 4294901760
        %v1256 = vsub.f32 %v536, %v1255
        %1257 = vmatprep.subr.mxu0 %v1256
        %v1258 = vand.u32 %v535, 4294901760
        %v1259 = vsub.f32 %v535, %v1258
        %1260 = vmatpush1.msra.mxu0 %v1259
        %v1261 = vand.u32 %v532, 4294901760
        %v1262 = vsub.f32 %v532, %v1261
        %1263 = vmatprep.subr.mxu0 %v1262
        %v1264 = vand.u32 %v531, 4294901760
        %v1265 = vsub.f32 %v531, %v1264
        %1266 = vmatpush1.msra.mxu0 %v1265
        %v1267 = vand.u32 %v528, 4294901760
        %v1268 = vsub.f32 %v528, %v1267
        %1269 = vmatprep.subr.mxu0 %v1268
        %v1270 = vand.u32 %v527, 4294901760
        %v1271 = vsub.f32 %v527, %v1270
        %1272 = vmatpush1.msra.mxu0 %v1271
        %v1273 = vand.u32 %v524, 4294901760
        %v1274 = vsub.f32 %v524, %v1273
        %1275 = vmatprep.subr.mxu0 %v1274
        %v1276 = vand.u32 %v523, 4294901760
        %v1277 = vsub.f32 %v523, %v1276
        %1278 = vmatpush1.msra.mxu0 %v1277
        %v1279 = vand.u32 %v520, 4294901760
        %v1280 = vsub.f32 %v520, %v1279
        %1281 = vmatprep.subr.mxu0 %v1280
        %v1282 = vand.u32 %v519, 4294901760
        %v1283 = vsub.f32 %v519, %v1282
        %1284 = vmatpush1.msra.mxu0 %v1283
        %v1285 = vand.u32 %v516, 4294901760
        %v1286 = vsub.f32 %v516, %v1285
        %1287 = vmatprep.subr.mxu0 %v1286
        %v1288 = vand.u32 %v515, 4294901760
        %v1289 = vsub.f32 %v515, %v1288
        %1290 = vmatpush1.msra.mxu0 %v1289
        %v1291 = vand.u32 %v512, 4294901760
        %v1292 = vsub.f32 %v512, %v1291
        %1293 = vmatprep.subr.mxu0 %v1292
        %v1294 = vand.u32 %v511, 4294901760
        %v1295 = vsub.f32 %v511, %v1294
        %1296 = vmatpush1.msra.mxu0 %v1295
        %v1297 = vand.u32 %v636, 4294901760
        %v1298 = vsub.f32 %v636, %v1297
        %1299 = vmatprep.subr.mxu0 %v1298
        %v1300 = vand.u32 %v635, 4294901760
        %v1301 = vsub.f32 %v635, %v1300
        %1302 = vmatpush2.msra.mxu0 %v1301
        %v1303 = vand.u32 %v632, 4294901760
        %v1304 = vsub.f32 %v632, %v1303
        %1305 = vmatprep.subr.mxu0 %v1304
        %v1306 = vand.u32 %v631, 4294901760
        %v1307 = vsub.f32 %v631, %v1306
        %1308 = vmatpush2.msra.mxu0 %v1307
        %v1309 = vand.u32 %v628, 4294901760
        %v1310 = vsub.f32 %v628, %v1309
        %1311 = vmatprep.subr.mxu0 %v1310
        %v1312 = vand.u32 %v627, 4294901760
        %v1313 = vsub.f32 %v627, %v1312
        %1314 = vmatpush2.msra.mxu0 %v1313
        %v1315 = vand.u32 %v624, 4294901760
        %v1316 = vsub.f32 %v624, %v1315
        %1317 = vmatprep.subr.mxu0 %v1316
        %v1318 = vand.u32 %v623, 4294901760
        %v1319 = vsub.f32 %v623, %v1318
        %1320 = vmatpush2.msra.mxu0 %v1319
        %v1321 = vand.u32 %v620, 4294901760
        %v1322 = vsub.f32 %v620, %v1321
        %1323 = vmatprep.subr.mxu0 %v1322
        %v1324 = vand.u32 %v619, 4294901760
        %v1325 = vsub.f32 %v619, %v1324
        %1326 = vmatpush2.msra.mxu0 %v1325
        %v1327 = vand.u32 %v616, 4294901760
        %v1328 = vsub.f32 %v616, %v1327
        %1329 = vmatprep.subr.mxu0 %v1328
        %v1330 = vand.u32 %v615, 4294901760
        %v1331 = vsub.f32 %v615, %v1330
        %1332 = vmatpush2.msra.mxu0 %v1331
        %v1333 = vand.u32 %v612, 4294901760
        %v1334 = vsub.f32 %v612, %v1333
        %1335 = vmatprep.subr.mxu0 %v1334
        %v1336 = vand.u32 %v611, 4294901760
        %v1337 = vsub.f32 %v611, %v1336
        %1338 = vmatpush2.msra.mxu0 %v1337
        %v1339 = vand.u32 %v608, 4294901760
        %v1340 = vsub.f32 %v608, %v1339
        %1341 = vmatprep.subr.mxu0 %v1340
        %v1342 = vand.u32 %v607, 4294901760
        %v1343 = vsub.f32 %v607, %v1342
        %1344 = vmatpush2.msra.mxu0 %v1343
        %v1345 = vand.u32 %v604, 4294901760
        %v1346 = vsub.f32 %v604, %v1345
        %1347 = vmatprep.subr.mxu0 %v1346
        %v1348 = vand.u32 %v603, 4294901760
        %v1349 = vsub.f32 %v603, %v1348
        %1350 = vmatpush2.msra.mxu0 %v1349
        %v1351 = vand.u32 %v600, 4294901760
        %v1352 = vsub.f32 %v600, %v1351
        %1353 = vmatprep.subr.mxu0 %v1352
        %v1354 = vand.u32 %v599, 4294901760
        %v1355 = vsub.f32 %v599, %v1354
        %1356 = vmatpush2.msra.mxu0 %v1355
        %v1357 = vand.u32 %v596, 4294901760
        %v1358 = vsub.f32 %v596, %v1357
        %1359 = vmatprep.subr.mxu0 %v1358
        %v1360 = vand.u32 %v595, 4294901760
        %v1361 = vsub.f32 %v595, %v1360
        %1362 = vmatpush2.msra.mxu0 %v1361
        %v1363 = vand.u32 %v592, 4294901760
        %v1364 = vsub.f32 %v592, %v1363
        %1365 = vmatprep.subr.mxu0 %v1364
        %v1366 = vand.u32 %v591, 4294901760
        %v1367 = vsub.f32 %v591, %v1366
        %1368 = vmatpush2.msra.mxu0 %v1367
        %v1369 = vand.u32 %v588, 4294901760
        %v1370 = vsub.f32 %v588, %v1369
        %1371 = vmatprep.subr.mxu0 %v1370
        %v1372 = vand.u32 %v587, 4294901760
        %v1373 = vsub.f32 %v587, %v1372
        %1374 = vmatpush2.msra.mxu0 %v1373
        %v1375 = vand.u32 %v584, 4294901760
        %v1376 = vsub.f32 %v584, %v1375
        %1377 = vmatprep.subr.mxu0 %v1376
        %v1378 = vand.u32 %v583, 4294901760
        %v1379 = vsub.f32 %v583, %v1378
        %1380 = vmatpush2.msra.mxu0 %v1379
        %v1381 = vand.u32 %v580, 4294901760
        %v1382 = vsub.f32 %v580, %v1381
        %1383 = vmatprep.subr.mxu0 %v1382
        %v1384 = vand.u32 %v579, 4294901760
        %v1385 = vsub.f32 %v579, %v1384
        %1386 = vmatpush2.msra.mxu0 %v1385
        %v1387 = vand.u32 %v576, 4294901760
        %v1388 = vsub.f32 %v576, %v1387
        %1389 = vmatprep.subr.mxu0 %v1388
        %v1390 = vand.u32 %v575, 4294901760
        %v1391 = vsub.f32 %v575, %v1390
        %1392 = vmatpush2.msra.mxu0 %v1391
        %v1393 = vand.u32 %v508, 4294901760
        %v1394 = vsub.f32 %v508, %v1393
        %1395 = vmatprep.mubr.f32.mxu0 %v1394
        %v1396 = vand.u32 %v507, 4294901760
        %v1397 = vsub.f32 %v507, %v1396
        %1398 = vmatmul.mubr.f32.gmra.mxu0 %v1397
        %v1399 = vpop.f32.mrf.mxu0
        %v1400 = vadd.f32 %v1189, %v1399
        %v1401 = vpop.f32.mrf.mxu0
        %v1402 = vadd.f32 %v1191, %v1401
        %v1403 = vand.u32 %v510, 4294901760
        %v1404 = vsub.f32 %v510, %v1403
        %1405 = vmatprep.mubr.f32.mxu0 %v1404
        %v1406 = vand.u32 %v509, 4294901760
        %v1407 = vsub.f32 %v509, %v1406
        %1408 = vmatmul.mubr.f32.gmra.mxu0 %v1407
        %v1409 = vpop.f32.mrf.mxu0
        %v1410 = vadd.f32 %v1197, %v1409
        %v1411 = vpop.f32.mrf.mxu0
        %v1412 = vadd.f32 %v1199, %v1411
        %1413 = vdwg.mxu0
        %v1414 = vand.u32 %v572, 4294901760
        %1415 = vmatprep.subr.mxu0 %v1414
        %v1416 = vand.u32 %v571, 4294901760
        %1417 = vmatpush1.msra.mxu0 %v1416
        %v1418 = vand.u32 %v568, 4294901760
        %1419 = vmatprep.subr.mxu0 %v1418
        %v1420 = vand.u32 %v567, 4294901760
        %1421 = vmatpush1.msra.mxu0 %v1420
        %v1422 = vand.u32 %v564, 4294901760
        %1423 = vmatprep.subr.mxu0 %v1422
        %v1424 = vand.u32 %v563, 4294901760
        %1425 = vmatpush1.msra.mxu0 %v1424
        %v1426 = vand.u32 %v560, 4294901760
        %1427 = vmatprep.subr.mxu0 %v1426
        %v1428 = vand.u32 %v559, 4294901760
        %1429 = vmatpush1.msra.mxu0 %v1428
        %v1430 = vand.u32 %v556, 4294901760
        %1431 = vmatprep.subr.mxu0 %v1430
        %v1432 = vand.u32 %v555, 4294901760
        %1433 = vmatpush1.msra.mxu0 %v1432
        %v1434 = vand.u32 %v552, 4294901760
        %1435 = vmatprep.subr.mxu0 %v1434
        %v1436 = vand.u32 %v551, 4294901760
        %1437 = vmatpush1.msra.mxu0 %v1436
        %v1438 = vand.u32 %v548, 4294901760
        %1439 = vmatprep.subr.mxu0 %v1438
        %v1440 = vand.u32 %v547, 4294901760
        %1441 = vmatpush1.msra.mxu0 %v1440
        %v1442 = vand.u32 %v544, 4294901760
        %1443 = vmatprep.subr.mxu0 %v1442
        %v1444 = vand.u32 %v543, 4294901760
        %1445 = vmatpush1.msra.mxu0 %v1444
        %v1446 = vand.u32 %v540, 4294901760
        %1447 = vmatprep.subr.mxu0 %v1446
        %v1448 = vand.u32 %v539, 4294901760
        %1449 = vmatpush1.msra.mxu0 %v1448
        %v1450 = vand.u32 %v536, 4294901760
        %1451 = vmatprep.subr.mxu0 %v1450
        %v1452 = vand.u32 %v535, 4294901760
        %1453 = vmatpush1.msra.mxu0 %v1452
        %v1454 = vand.u32 %v532, 4294901760
        %1455 = vmatprep.subr.mxu0 %v1454
        %v1456 = vand.u32 %v531, 4294901760
        %1457 = vmatpush1.msra.mxu0 %v1456
        %v1458 = vand.u32 %v528, 4294901760
        %1459 = vmatprep.subr.mxu0 %v1458
        %v1460 = vand.u32 %v527, 4294901760
        %1461 = vmatpush1.msra.mxu0 %v1460
        %v1462 = vand.u32 %v524, 4294901760
        %1463 = vmatprep.subr.mxu0 %v1462
        %v1464 = vand.u32 %v523, 4294901760
        %1465 = vmatpush1.msra.mxu0 %v1464
        %v1466 = vand.u32 %v520, 4294901760
        %1467 = vmatprep.subr.mxu0 %v1466
        %v1468 = vand.u32 %v519, 4294901760
        %1469 = vmatpush1.msra.mxu0 %v1468
        %v1470 = vand.u32 %v516, 4294901760
        %1471 = vmatprep.subr.mxu0 %v1470
        %v1472 = vand.u32 %v515, 4294901760
        %1473 = vmatpush1.msra.mxu0 %v1472
        %v1474 = vand.u32 %v512, 4294901760
        %1475 = vmatprep.subr.mxu0 %v1474
        %v1476 = vand.u32 %v511, 4294901760
        %1477 = vmatpush1.msra.mxu0 %v1476
        %v1478 = vand.u32 %v636, 4294901760
        %1479 = vmatprep.subr.mxu0 %v1478
        %v1480 = vand.u32 %v635, 4294901760
        %1481 = vmatpush2.msra.mxu0 %v1480
        %v1482 = vand.u32 %v632, 4294901760
        %1483 = vmatprep.subr.mxu0 %v1482
        %v1484 = vand.u32 %v631, 4294901760
        %1485 = vmatpush2.msra.mxu0 %v1484
        %v1486 = vand.u32 %v628, 4294901760
        %1487 = vmatprep.subr.mxu0 %v1486
        %v1488 = vand.u32 %v627, 4294901760
        %1489 = vmatpush2.msra.mxu0 %v1488
        %v1490 = vand.u32 %v624, 4294901760
        %1491 = vmatprep.subr.mxu0 %v1490
        %v1492 = vand.u32 %v623, 4294901760
        %1493 = vmatpush2.msra.mxu0 %v1492
        %v1494 = vand.u32 %v620, 4294901760
        %1495 = vmatprep.subr.mxu0 %v1494
        %v1496 = vand.u32 %v619, 4294901760
        %1497 = vmatpush2.msra.mxu0 %v1496
        %v1498 = vand.u32 %v616, 4294901760
        %1499 = vmatprep.subr.mxu0 %v1498
        %v1500 = vand.u32 %v615, 4294901760
        %1501 = vmatpush2.msra.mxu0 %v1500
        %v1502 = vand.u32 %v612, 4294901760
        %1503 = vmatprep.subr.mxu0 %v1502
        %v1504 = vand.u32 %v611, 4294901760
        %1505 = vmatpush2.msra.mxu0 %v1504
        %v1506 = vand.u32 %v608, 4294901760
        %1507 = vmatprep.subr.mxu0 %v1506
        %v1508 = vand.u32 %v607, 4294901760
        %1509 = vmatpush2.msra.mxu0 %v1508
        %v1510 = vand.u32 %v604, 4294901760
        %1511 = vmatprep.subr.mxu0 %v1510
        %v1512 = vand.u32 %v603, 4294901760
        %1513 = vmatpush2.msra.mxu0 %v1512
        %v1514 = vand.u32 %v600, 4294901760
        %1515 = vmatprep.subr.mxu0 %v1514
        %v1516 = vand.u32 %v599, 4294901760
        %1517 = vmatpush2.msra.mxu0 %v1516
        %v1518 = vand.u32 %v596, 4294901760
        %1519 = vmatprep.subr.mxu0 %v1518
        %v1520 = vand.u32 %v595, 4294901760
        %1521 = vmatpush2.msra.mxu0 %v1520
        %v1522 = vand.u32 %v592, 4294901760
        %1523 = vmatprep.subr.mxu0 %v1522
        %v1524 = vand.u32 %v591, 4294901760
        %1525 = vmatpush2.msra.mxu0 %v1524
        %v1526 = vand.u32 %v588, 4294901760
        %1527 = vmatprep.subr.mxu0 %v1526
        %v1528 = vand.u32 %v587, 4294901760
        %1529 = vmatpush2.msra.mxu0 %v1528
        %v1530 = vand.u32 %v584, 4294901760
        %1531 = vmatprep.subr.mxu0 %v1530
        %v1532 = vand.u32 %v583, 4294901760
        %1533 = vmatpush2.msra.mxu0 %v1532
        %v1534 = vand.u32 %v580, 4294901760
        %1535 = vmatprep.subr.mxu0 %v1534
        %v1536 = vand.u32 %v579, 4294901760
        %1537 = vmatpush2.msra.mxu0 %v1536
        %v1538 = vand.u32 %v576, 4294901760
        %1539 = vmatprep.subr.mxu0 %v1538
        %v1540 = vand.u32 %v575, 4294901760
        %1541 = vmatpush2.msra.mxu0 %v1540
        %v1542 = vand.u32 %v508, 4294901760
        %v1543 = vsub.f32 %v508, %v1542
        %v1544 = vand.u32 %v1543, 4294901760
        %1545 = vmatprep.mubr.f32.mxu0 %v1544
        %v1546 = vand.u32 %v507, 4294901760
        %v1547 = vsub.f32 %v507, %v1546
        %v1548 = vand.u32 %v1547, 4294901760
        %1549 = vmatmul.mubr.f32.gmra.mxu0 %v1548
        %v1550 = vpop.f32.mrf.mxu0
        %v1551 = vadd.f32 %v1400, %v1550
        %v1552 = vpop.f32.mrf.mxu0
        %v1553 = vadd.f32 %v1402, %v1552
        %v1554 = vand.u32 %v510, 4294901760
        %v1555 = vsub.f32 %v510, %v1554
        %v1556 = vand.u32 %v1555, 4294901760
        %1557 = vmatprep.mubr.f32.mxu0 %v1556
        %v1558 = vand.u32 %v509, 4294901760
        %v1559 = vsub.f32 %v509, %v1558
        %v1560 = vand.u32 %v1559, 4294901760
        %1561 = vmatmul.mubr.f32.gmra.mxu0 %v1560
        %v1562 = vpop.f32.mrf.mxu0
        %v1563 = vadd.f32 %v1410, %v1562
        %v1564 = vpop.f32.mrf.mxu0
        %v1565 = vadd.f32 %v1412, %v1564
        %1566 = vdwg.mxu0
        %v1567 = vand.u32 %v572, 4294901760
        %v1568 = vsub.f32 %v572, %v1567
        %v1569 = vand.u32 %v1568, 4294901760
        %1570 = vmatprep.subr.mxu0 %v1569
        %v1571 = vand.u32 %v571, 4294901760
        %v1572 = vsub.f32 %v571, %v1571
        %v1573 = vand.u32 %v1572, 4294901760
        %1574 = vmatpush1.msra.mxu0 %v1573
        %v1575 = vand.u32 %v568, 4294901760
        %v1576 = vsub.f32 %v568, %v1575
        %v1577 = vand.u32 %v1576, 4294901760
        %1578 = vmatprep.subr.mxu0 %v1577
        %v1579 = vand.u32 %v567, 4294901760
        %v1580 = vsub.f32 %v567, %v1579
        %v1581 = vand.u32 %v1580, 4294901760
        %1582 = vmatpush1.msra.mxu0 %v1581
        %v1583 = vand.u32 %v564, 4294901760
        %v1584 = vsub.f32 %v564, %v1583
        %v1585 = vand.u32 %v1584, 4294901760
        %1586 = vmatprep.subr.mxu0 %v1585
        %v1587 = vand.u32 %v563, 4294901760
        %v1588 = vsub.f32 %v563, %v1587
        %v1589 = vand.u32 %v1588, 4294901760
        %1590 = vmatpush1.msra.mxu0 %v1589
        %v1591 = vand.u32 %v560, 4294901760
        %v1592 = vsub.f32 %v560, %v1591
        %v1593 = vand.u32 %v1592, 4294901760
        %1594 = vmatprep.subr.mxu0 %v1593
        %v1595 = vand.u32 %v559, 4294901760
        %v1596 = vsub.f32 %v559, %v1595
        %v1597 = vand.u32 %v1596, 4294901760
        %1598 = vmatpush1.msra.mxu0 %v1597
        %v1599 = vand.u32 %v556, 4294901760
        %v1600 = vsub.f32 %v556, %v1599
        %v1601 = vand.u32 %v1600, 4294901760
        %1602 = vmatprep.subr.mxu0 %v1601
        %v1603 = vand.u32 %v555, 4294901760
        %v1604 = vsub.f32 %v555, %v1603
        %v1605 = vand.u32 %v1604, 4294901760
        %1606 = vmatpush1.msra.mxu0 %v1605
        %v1607 = vand.u32 %v552, 4294901760
        %v1608 = vsub.f32 %v552, %v1607
        %v1609 = vand.u32 %v1608, 4294901760
        %1610 = vmatprep.subr.mxu0 %v1609
        %v1611 = vand.u32 %v551, 4294901760
        %v1612 = vsub.f32 %v551, %v1611
        %v1613 = vand.u32 %v1612, 4294901760
        %1614 = vmatpush1.msra.mxu0 %v1613
        %v1615 = vand.u32 %v548, 4294901760
        %v1616 = vsub.f32 %v548, %v1615
        %v1617 = vand.u32 %v1616, 4294901760
        %1618 = vmatprep.subr.mxu0 %v1617
        %v1619 = vand.u32 %v547, 4294901760
        %v1620 = vsub.f32 %v547, %v1619
        %v1621 = vand.u32 %v1620, 4294901760
        %1622 = vmatpush1.msra.mxu0 %v1621
        %v1623 = vand.u32 %v544, 4294901760
        %v1624 = vsub.f32 %v544, %v1623
        %v1625 = vand.u32 %v1624, 4294901760
        %1626 = vmatprep.subr.mxu0 %v1625
        %v1627 = vand.u32 %v543, 4294901760
        %v1628 = vsub.f32 %v543, %v1627
        %v1629 = vand.u32 %v1628, 4294901760
        %1630 = vmatpush1.msra.mxu0 %v1629
        %v1631 = vand.u32 %v540, 4294901760
        %v1632 = vsub.f32 %v540, %v1631
        %v1633 = vand.u32 %v1632, 4294901760
        %1634 = vmatprep.subr.mxu0 %v1633
        %v1635 = vand.u32 %v539, 4294901760
        %v1636 = vsub.f32 %v539, %v1635
        %v1637 = vand.u32 %v1636, 4294901760
        %1638 = vmatpush1.msra.mxu0 %v1637
        %v1639 = vand.u32 %v536, 4294901760
        %v1640 = vsub.f32 %v536, %v1639
        %v1641 = vand.u32 %v1640, 4294901760
        %1642 = vmatprep.subr.mxu0 %v1641
        %v1643 = vand.u32 %v535, 4294901760
        %v1644 = vsub.f32 %v535, %v1643
        %v1645 = vand.u32 %v1644, 4294901760
        %1646 = vmatpush1.msra.mxu0 %v1645
        %v1647 = vand.u32 %v532, 4294901760
        %v1648 = vsub.f32 %v532, %v1647
        %v1649 = vand.u32 %v1648, 4294901760
        %1650 = vmatprep.subr.mxu0 %v1649
        %v1651 = vand.u32 %v531, 4294901760
        %v1652 = vsub.f32 %v531, %v1651
        %v1653 = vand.u32 %v1652, 4294901760
        %1654 = vmatpush1.msra.mxu0 %v1653
        %v1655 = vand.u32 %v528, 4294901760
        %v1656 = vsub.f32 %v528, %v1655
        %v1657 = vand.u32 %v1656, 4294901760
        %1658 = vmatprep.subr.mxu0 %v1657
        %v1659 = vand.u32 %v527, 4294901760
        %v1660 = vsub.f32 %v527, %v1659
        %v1661 = vand.u32 %v1660, 4294901760
        %1662 = vmatpush1.msra.mxu0 %v1661
        %v1663 = vand.u32 %v524, 4294901760
        %v1664 = vsub.f32 %v524, %v1663
        %v1665 = vand.u32 %v1664, 4294901760
        %1666 = vmatprep.subr.mxu0 %v1665
        %v1667 = vand.u32 %v523, 4294901760
        %v1668 = vsub.f32 %v523, %v1667
        %v1669 = vand.u32 %v1668, 4294901760
        %1670 = vmatpush1.msra.mxu0 %v1669
        %v1671 = vand.u32 %v520, 4294901760
        %v1672 = vsub.f32 %v520, %v1671
        %v1673 = vand.u32 %v1672, 4294901760
        %1674 = vmatprep.subr.mxu0 %v1673
        %v1675 = vand.u32 %v519, 4294901760
        %v1676 = vsub.f32 %v519, %v1675
        %v1677 = vand.u32 %v1676, 4294901760
        %1678 = vmatpush1.msra.mxu0 %v1677
        %v1679 = vand.u32 %v516, 4294901760
        %v1680 = vsub.f32 %v516, %v1679
        %v1681 = vand.u32 %v1680, 4294901760
        %1682 = vmatprep.subr.mxu0 %v1681
        %v1683 = vand.u32 %v515, 4294901760
        %v1684 = vsub.f32 %v515, %v1683
        %v1685 = vand.u32 %v1684, 4294901760
        %1686 = vmatpush1.msra.mxu0 %v1685
        %v1687 = vand.u32 %v512, 4294901760
        %v1688 = vsub.f32 %v512, %v1687
        %v1689 = vand.u32 %v1688, 4294901760
        %1690 = vmatprep.subr.mxu0 %v1689
        %v1691 = vand.u32 %v511, 4294901760
        %v1692 = vsub.f32 %v511, %v1691
        %v1693 = vand.u32 %v1692, 4294901760
        %1694 = vmatpush1.msra.mxu0 %v1693
        %v1695 = vand.u32 %v636, 4294901760
        %v1696 = vsub.f32 %v636, %v1695
        %v1697 = vand.u32 %v1696, 4294901760
        %1698 = vmatprep.subr.mxu0 %v1697
        %v1699 = vand.u32 %v635, 4294901760
        %v1700 = vsub.f32 %v635, %v1699
        %v1701 = vand.u32 %v1700, 4294901760
        %1702 = vmatpush2.msra.mxu0 %v1701
        %v1703 = vand.u32 %v632, 4294901760
        %v1704 = vsub.f32 %v632, %v1703
        %v1705 = vand.u32 %v1704, 4294901760
        %1706 = vmatprep.subr.mxu0 %v1705
        %v1707 = vand.u32 %v631, 4294901760
        %v1708 = vsub.f32 %v631, %v1707
        %v1709 = vand.u32 %v1708, 4294901760
        %1710 = vmatpush2.msra.mxu0 %v1709
        %v1711 = vand.u32 %v628, 4294901760
        %v1712 = vsub.f32 %v628, %v1711
        %v1713 = vand.u32 %v1712, 4294901760
        %1714 = vmatprep.subr.mxu0 %v1713
        %v1715 = vand.u32 %v627, 4294901760
        %v1716 = vsub.f32 %v627, %v1715
        %v1717 = vand.u32 %v1716, 4294901760
        %1718 = vmatpush2.msra.mxu0 %v1717
        %v1719 = vand.u32 %v624, 4294901760
        %v1720 = vsub.f32 %v624, %v1719
        %v1721 = vand.u32 %v1720, 4294901760
        %1722 = vmatprep.subr.mxu0 %v1721
        %v1723 = vand.u32 %v623, 4294901760
        %v1724 = vsub.f32 %v623, %v1723
        %v1725 = vand.u32 %v1724, 4294901760
        %1726 = vmatpush2.msra.mxu0 %v1725
        %v1727 = vand.u32 %v620, 4294901760
        %v1728 = vsub.f32 %v620, %v1727
        %v1729 = vand.u32 %v1728, 4294901760
        %1730 = vmatprep.subr.mxu0 %v1729
        %v1731 = vand.u32 %v619, 4294901760
        %v1732 = vsub.f32 %v619, %v1731
        %v1733 = vand.u32 %v1732, 4294901760
        %1734 = vmatpush2.msra.mxu0 %v1733
        %v1735 = vand.u32 %v616, 4294901760
        %v1736 = vsub.f32 %v616, %v1735
        %v1737 = vand.u32 %v1736, 4294901760
        %1738 = vmatprep.subr.mxu0 %v1737
        %v1739 = vand.u32 %v615, 4294901760
        %v1740 = vsub.f32 %v615, %v1739
        %v1741 = vand.u32 %v1740, 4294901760
        %1742 = vmatpush2.msra.mxu0 %v1741
        %v1743 = vand.u32 %v612, 4294901760
        %v1744 = vsub.f32 %v612, %v1743
        %v1745 = vand.u32 %v1744, 4294901760
        %1746 = vmatprep.subr.mxu0 %v1745
        %v1747 = vand.u32 %v611, 4294901760
        %v1748 = vsub.f32 %v611, %v1747
        %v1749 = vand.u32 %v1748, 4294901760
        %1750 = vmatpush2.msra.mxu0 %v1749
        %v1751 = vand.u32 %v608, 4294901760
        %v1752 = vsub.f32 %v608, %v1751
        %v1753 = vand.u32 %v1752, 4294901760
        %1754 = vmatprep.subr.mxu0 %v1753
        %v1755 = vand.u32 %v607, 4294901760
        %v1756 = vsub.f32 %v607, %v1755
        %v1757 = vand.u32 %v1756, 4294901760
        %1758 = vmatpush2.msra.mxu0 %v1757
        %v1759 = vand.u32 %v604, 4294901760
        %v1760 = vsub.f32 %v604, %v1759
        %v1761 = vand.u32 %v1760, 4294901760
        %1762 = vmatprep.subr.mxu0 %v1761
        %v1763 = vand.u32 %v603, 4294901760
        %v1764 = vsub.f32 %v603, %v1763
        %v1765 = vand.u32 %v1764, 4294901760
        %1766 = vmatpush2.msra.mxu0 %v1765
        %v1767 = vand.u32 %v600, 4294901760
        %v1768 = vsub.f32 %v600, %v1767
        %v1769 = vand.u32 %v1768, 4294901760
        %1770 = vmatprep.subr.mxu0 %v1769
        %v1771 = vand.u32 %v599, 4294901760
        %v1772 = vsub.f32 %v599, %v1771
        %v1773 = vand.u32 %v1772, 4294901760
        %1774 = vmatpush2.msra.mxu0 %v1773
        %v1775 = vand.u32 %v596, 4294901760
        %v1776 = vsub.f32 %v596, %v1775
        %v1777 = vand.u32 %v1776, 4294901760
        %1778 = vmatprep.subr.mxu0 %v1777
        %v1779 = vand.u32 %v595, 4294901760
        %v1780 = vsub.f32 %v595, %v1779
        %v1781 = vand.u32 %v1780, 4294901760
        %1782 = vmatpush2.msra.mxu0 %v1781
        %v1783 = vand.u32 %v592, 4294901760
        %v1784 = vsub.f32 %v592, %v1783
        %v1785 = vand.u32 %v1784, 4294901760
        %1786 = vmatprep.subr.mxu0 %v1785
        %v1787 = vand.u32 %v591, 4294901760
        %v1788 = vsub.f32 %v591, %v1787
        %v1789 = vand.u32 %v1788, 4294901760
        %1790 = vmatpush2.msra.mxu0 %v1789
        %v1791 = vand.u32 %v588, 4294901760
        %v1792 = vsub.f32 %v588, %v1791
        %v1793 = vand.u32 %v1792, 4294901760
        %1794 = vmatprep.subr.mxu0 %v1793
        %v1795 = vand.u32 %v587, 4294901760
        %v1796 = vsub.f32 %v587, %v1795
        %v1797 = vand.u32 %v1796, 4294901760
        %1798 = vmatpush2.msra.mxu0 %v1797
        %v1799 = vand.u32 %v584, 4294901760
        %v1800 = vsub.f32 %v584, %v1799
        %v1801 = vand.u32 %v1800, 4294901760
        %1802 = vmatprep.subr.mxu0 %v1801
        %v1803 = vand.u32 %v583, 4294901760
        %v1804 = vsub.f32 %v583, %v1803
        %v1805 = vand.u32 %v1804, 4294901760
        %1806 = vmatpush2.msra.mxu0 %v1805
        %v1807 = vand.u32 %v580, 4294901760
        %v1808 = vsub.f32 %v580, %v1807
        %v1809 = vand.u32 %v1808, 4294901760
        %1810 = vmatprep.subr.mxu0 %v1809
        %v1811 = vand.u32 %v579, 4294901760
        %v1812 = vsub.f32 %v579, %v1811
        %v1813 = vand.u32 %v1812, 4294901760
        %1814 = vmatpush2.msra.mxu0 %v1813
        %v1815 = vand.u32 %v576, 4294901760
        %v1816 = vsub.f32 %v576, %v1815
        %v1817 = vand.u32 %v1816, 4294901760
        %1818 = vmatprep.subr.mxu0 %v1817
        %v1819 = vand.u32 %v575, 4294901760
        %v1820 = vsub.f32 %v575, %v1819
        %v1821 = vand.u32 %v1820, 4294901760
        %1822 = vmatpush2.msra.mxu0 %v1821
        %v1823 = vand.u32 %v508, 4294901760
        %1824 = vmatprep.mubr.f32.mxu0 %v1823
        %v1825 = vand.u32 %v507, 4294901760
        %1826 = vmatmul.mubr.f32.gmra.mxu0 %v1825
        %v1827 = vpop.f32.mrf.mxu0
        %v1828 = vadd.f32 %v1551, %v1827
        %v1829 = vpop.f32.mrf.mxu0
        %v1830 = vadd.f32 %v1553, %v1829
        %v1831 = vand.u32 %v510, 4294901760
        %1832 = vmatprep.mubr.f32.mxu0 %v1831
        %v1833 = vand.u32 %v509, 4294901760
        %1834 = vmatmul.mubr.f32.gmra.mxu0 %v1833
        %v1835 = vpop.f32.mrf.mxu0
        %v1836 = vadd.f32 %v1563, %v1835
        %v1837 = vpop.f32.mrf.mxu0
        %v1838 = vadd.f32 %v1565, %v1837
        %1839 = vdwg.mxu0
        %v1840 = vand.u32 %v572, 4294901760
        %1841 = vmatprep.subr.mxu0 %v1840
        %v1842 = vand.u32 %v571, 4294901760
        %1843 = vmatpush1.msra.mxu0 %v1842
        %v1844 = vand.u32 %v568, 4294901760
        %1845 = vmatprep.subr.mxu0 %v1844
        %v1846 = vand.u32 %v567, 4294901760
        %1847 = vmatpush1.msra.mxu0 %v1846
        %v1848 = vand.u32 %v564, 4294901760
        %1849 = vmatprep.subr.mxu0 %v1848
        %v1850 = vand.u32 %v563, 4294901760
        %1851 = vmatpush1.msra.mxu0 %v1850
        %v1852 = vand.u32 %v560, 4294901760
        %1853 = vmatprep.subr.mxu0 %v1852
        %v1854 = vand.u32 %v559, 4294901760
        %1855 = vmatpush1.msra.mxu0 %v1854
        %v1856 = vand.u32 %v556, 4294901760
        %1857 = vmatprep.subr.mxu0 %v1856
        %v1858 = vand.u32 %v555, 4294901760
        %1859 = vmatpush1.msra.mxu0 %v1858
        %v1860 = vand.u32 %v552, 4294901760
        %1861 = vmatprep.subr.mxu0 %v1860
        %v1862 = vand.u32 %v551, 4294901760
        %1863 = vmatpush1.msra.mxu0 %v1862
        %v1864 = vand.u32 %v548, 4294901760
        %1865 = vmatprep.subr.mxu0 %v1864
        %v1866 = vand.u32 %v547, 4294901760
        %1867 = vmatpush1.msra.mxu0 %v1866
        %v1868 = vand.u32 %v544, 4294901760
        %1869 = vmatprep.subr.mxu0 %v1868
        %v1870 = vand.u32 %v543, 4294901760
        %1871 = vmatpush1.msra.mxu0 %v1870
        %v1872 = vand.u32 %v540, 4294901760
        %1873 = vmatprep.subr.mxu0 %v1872
        %v1874 = vand.u32 %v539, 4294901760
        %1875 = vmatpush1.msra.mxu0 %v1874
        %v1876 = vand.u32 %v536, 4294901760
        %1877 = vmatprep.subr.mxu0 %v1876
        %v1878 = vand.u32 %v535, 4294901760
        %1879 = vmatpush1.msra.mxu0 %v1878
        %v1880 = vand.u32 %v532, 4294901760
        %1881 = vmatprep.subr.mxu0 %v1880
        %v1882 = vand.u32 %v531, 4294901760
        %1883 = vmatpush1.msra.mxu0 %v1882
        %v1884 = vand.u32 %v528, 4294901760
        %1885 = vmatprep.subr.mxu0 %v1884
        %v1886 = vand.u32 %v527, 4294901760
        %1887 = vmatpush1.msra.mxu0 %v1886
        %v1888 = vand.u32 %v524, 4294901760
        %1889 = vmatprep.subr.mxu0 %v1888
        %v1890 = vand.u32 %v523, 4294901760
        %1891 = vmatpush1.msra.mxu0 %v1890
        %v1892 = vand.u32 %v520, 4294901760
        %1893 = vmatprep.subr.mxu0 %v1892
        %v1894 = vand.u32 %v519, 4294901760
        %1895 = vmatpush1.msra.mxu0 %v1894
        %v1896 = vand.u32 %v516, 4294901760
        %1897 = vmatprep.subr.mxu0 %v1896
        %v1898 = vand.u32 %v515, 4294901760
        %1899 = vmatpush1.msra.mxu0 %v1898
        %v1900 = vand.u32 %v512, 4294901760
        %1901 = vmatprep.subr.mxu0 %v1900
        %v1902 = vand.u32 %v511, 4294901760
        %1903 = vmatpush1.msra.mxu0 %v1902
        %v1904 = vand.u32 %v636, 4294901760
        %1905 = vmatprep.subr.mxu0 %v1904
        %v1906 = vand.u32 %v635, 4294901760
        %1907 = vmatpush2.msra.mxu0 %v1906
        %v1908 = vand.u32 %v632, 4294901760
        %1909 = vmatprep.subr.mxu0 %v1908
        %v1910 = vand.u32 %v631, 4294901760
        %1911 = vmatpush2.msra.mxu0 %v1910
        %v1912 = vand.u32 %v628, 4294901760
        %1913 = vmatprep.subr.mxu0 %v1912
        %v1914 = vand.u32 %v627, 4294901760
        %1915 = vmatpush2.msra.mxu0 %v1914
        %v1916 = vand.u32 %v624, 4294901760
        %1917 = vmatprep.subr.mxu0 %v1916
        %v1918 = vand.u32 %v623, 4294901760
        %1919 = vmatpush2.msra.mxu0 %v1918
        %v1920 = vand.u32 %v620, 4294901760
        %1921 = vmatprep.subr.mxu0 %v1920
        %v1922 = vand.u32 %v619, 4294901760
        %1923 = vmatpush2.msra.mxu0 %v1922
        %v1924 = vand.u32 %v616, 4294901760
        %1925 = vmatprep.subr.mxu0 %v1924
        %v1926 = vand.u32 %v615, 4294901760
        %1927 = vmatpush2.msra.mxu0 %v1926
        %v1928 = vand.u32 %v612, 4294901760
        %1929 = vmatprep.subr.mxu0 %v1928
        %v1930 = vand.u32 %v611, 4294901760
        %1931 = vmatpush2.msra.mxu0 %v1930
        %v1932 = vand.u32 %v608, 4294901760
        %1933 = vmatprep.subr.mxu0 %v1932
        %v1934 = vand.u32 %v607, 4294901760
        %1935 = vmatpush2.msra.mxu0 %v1934
        %v1936 = vand.u32 %v604, 4294901760
        %1937 = vmatprep.subr.mxu0 %v1936
        %v1938 = vand.u32 %v603, 4294901760
        %1939 = vmatpush2.msra.mxu0 %v1938
        %v1940 = vand.u32 %v600, 4294901760
        %1941 = vmatprep.subr.mxu0 %v1940
        %v1942 = vand.u32 %v599, 4294901760
        %1943 = vmatpush2.msra.mxu0 %v1942
        %v1944 = vand.u32 %v596, 4294901760
        %1945 = vmatprep.subr.mxu0 %v1944
        %v1946 = vand.u32 %v595, 4294901760
        %1947 = vmatpush2.msra.mxu0 %v1946
        %v1948 = vand.u32 %v592, 4294901760
        %1949 = vmatprep.subr.mxu0 %v1948
        %v1950 = vand.u32 %v591, 4294901760
        %1951 = vmatpush2.msra.mxu0 %v1950
        %v1952 = vand.u32 %v588, 4294901760
        %1953 = vmatprep.subr.mxu0 %v1952
        %v1954 = vand.u32 %v587, 4294901760
        %1955 = vmatpush2.msra.mxu0 %v1954
        %v1956 = vand.u32 %v584, 4294901760
        %1957 = vmatprep.subr.mxu0 %v1956
        %v1958 = vand.u32 %v583, 4294901760
        %1959 = vmatpush2.msra.mxu0 %v1958
        %v1960 = vand.u32 %v580, 4294901760
        %1961 = vmatprep.subr.mxu0 %v1960
        %v1962 = vand.u32 %v579, 4294901760
        %1963 = vmatpush2.msra.mxu0 %v1962
        %v1964 = vand.u32 %v576, 4294901760
        %1965 = vmatprep.subr.mxu0 %v1964
        %v1966 = vand.u32 %v575, 4294901760
        %1967 = vmatpush2.msra.mxu0 %v1966
        %v1968 = vand.u32 %v508, 4294901760
        %1969 = vmatprep.mubr.f32.mxu0 %v1968
        %v1970 = vand.u32 %v507, 4294901760
        %1971 = vmatmul.mubr.f32.gmra.mxu0 %v1970
        %v1972 = vpop.f32.mrf.mxu0
        %v1973 = vadd.f32 %v1828, %v1972
        %v1974 = vpop.f32.mrf.mxu0
        %v1975 = vadd.f32 %v1830, %v1974
        %v1976 = vand.u32 %v510, 4294901760
        %1977 = vmatprep.mubr.f32.mxu0 %v1976
        %v1978 = vand.u32 %v509, 4294901760
        %1979 = vmatmul.mubr.f32.gmra.mxu0 %v1978
        %v1980 = vpop.f32.mrf.mxu0
        %v1981 = vadd.f32 %v1836, %v1980
        %v1982 = vpop.f32.mrf.mxu0
        %v1983 = vadd.f32 %v1838, %v1982
        %1984 = vdwg.mxu0
        %v1985 = vand.u32 %v574, 4294901760
        %1986 = vmatprep.subr.mxu0 %v1985
        %v1987 = vand.u32 %v573, 4294901760
        %1988 = vmatpush1.msra.mxu0 %v1987
        %v1989 = vand.u32 %v570, 4294901760
        %1990 = vmatprep.subr.mxu0 %v1989
        %v1991 = vand.u32 %v569, 4294901760
        %1992 = vmatpush1.msra.mxu0 %v1991
        %v1993 = vand.u32 %v566, 4294901760
        %1994 = vmatprep.subr.mxu0 %v1993
        %v1995 = vand.u32 %v565, 4294901760
        %1996 = vmatpush1.msra.mxu0 %v1995
        %v1997 = vand.u32 %v562, 4294901760
        %1998 = vmatprep.subr.mxu0 %v1997
        %v1999 = vand.u32 %v561, 4294901760
        %2000 = vmatpush1.msra.mxu0 %v1999
        %v2001 = vand.u32 %v558, 4294901760
        %2002 = vmatprep.subr.mxu0 %v2001
        %v2003 = vand.u32 %v557, 4294901760
        %2004 = vmatpush1.msra.mxu0 %v2003
        %v2005 = vand.u32 %v554, 4294901760
        %2006 = vmatprep.subr.mxu0 %v2005
        %v2007 = vand.u32 %v553, 4294901760
        %2008 = vmatpush1.msra.mxu0 %v2007
        %v2009 = vand.u32 %v550, 4294901760
        %2010 = vmatprep.subr.mxu0 %v2009
        %v2011 = vand.u32 %v549, 4294901760
        %2012 = vmatpush1.msra.mxu0 %v2011
        %v2013 = vand.u32 %v546, 4294901760
        %2014 = vmatprep.subr.mxu0 %v2013
        %v2015 = vand.u32 %v545, 4294901760
        %2016 = vmatpush1.msra.mxu0 %v2015
        %v2017 = vand.u32 %v542, 4294901760
        %2018 = vmatprep.subr.mxu0 %v2017
        %v2019 = vand.u32 %v541, 4294901760
        %2020 = vmatpush1.msra.mxu0 %v2019
        %v2021 = vand.u32 %v538, 4294901760
        %2022 = vmatprep.subr.mxu0 %v2021
        %v2023 = vand.u32 %v537, 4294901760
        %2024 = vmatpush1.msra.mxu0 %v2023
        %v2025 = vand.u32 %v534, 4294901760
        %2026 = vmatprep.subr.mxu0 %v2025
        %v2027 = vand.u32 %v533, 4294901760
        %2028 = vmatpush1.msra.mxu0 %v2027
        %v2029 = vand.u32 %v530, 4294901760
        %2030 = vmatprep.subr.mxu0 %v2029
        %v2031 = vand.u32 %v529, 4294901760
        %2032 = vmatpush1.msra.mxu0 %v2031
        %v2033 = vand.u32 %v526, 4294901760
        %2034 = vmatprep.subr.mxu0 %v2033
        %v2035 = vand.u32 %v525, 4294901760
        %2036 = vmatpush1.msra.mxu0 %v2035
        %v2037 = vand.u32 %v522, 4294901760
        %2038 = vmatprep.subr.mxu0 %v2037
        %v2039 = vand.u32 %v521, 4294901760
        %2040 = vmatpush1.msra.mxu0 %v2039
        %v2041 = vand.u32 %v518, 4294901760
        %2042 = vmatprep.subr.mxu0 %v2041
        %v2043 = vand.u32 %v517, 4294901760
        %2044 = vmatpush1.msra.mxu0 %v2043
        %v2045 = vand.u32 %v514, 4294901760
        %2046 = vmatprep.subr.mxu0 %v2045
        %v2047 = vand.u32 %v513, 4294901760
        %2048 = vmatpush1.msra.mxu0 %v2047
        %v2049 = vand.u32 %v638, 4294901760
        %2050 = vmatprep.subr.mxu0 %v2049
        %v2051 = vand.u32 %v637, 4294901760
        %2052 = vmatpush2.msra.mxu0 %v2051
        %v2053 = vand.u32 %v634, 4294901760
        %2054 = vmatprep.subr.mxu0 %v2053
        %v2055 = vand.u32 %v633, 4294901760
        %2056 = vmatpush2.msra.mxu0 %v2055
        %v2057 = vand.u32 %v630, 4294901760
        %2058 = vmatprep.subr.mxu0 %v2057
        %v2059 = vand.u32 %v629, 4294901760
        %2060 = vmatpush2.msra.mxu0 %v2059
        %v2061 = vand.u32 %v626, 4294901760
        %2062 = vmatprep.subr.mxu0 %v2061
        %v2063 = vand.u32 %v625, 4294901760
        %2064 = vmatpush2.msra.mxu0 %v2063
        %v2065 = vand.u32 %v622, 4294901760
        %2066 = vmatprep.subr.mxu0 %v2065
        %v2067 = vand.u32 %v621, 4294901760
        %2068 = vmatpush2.msra.mxu0 %v2067
        %v2069 = vand.u32 %v618, 4294901760
        %2070 = vmatprep.subr.mxu0 %v2069
        %v2071 = vand.u32 %v617, 4294901760
        %2072 = vmatpush2.msra.mxu0 %v2071
        %v2073 = vand.u32 %v614, 4294901760
        %2074 = vmatprep.subr.mxu0 %v2073
        %v2075 = vand.u32 %v613, 4294901760
        %2076 = vmatpush2.msra.mxu0 %v2075
        %v2077 = vand.u32 %v610, 4294901760
        %2078 = vmatprep.subr.mxu0 %v2077
        %v2079 = vand.u32 %v609, 4294901760
        %2080 = vmatpush2.msra.mxu0 %v2079
        %v2081 = vand.u32 %v606, 4294901760
        %2082 = vmatprep.subr.mxu0 %v2081
        %v2083 = vand.u32 %v605, 4294901760
        %2084 = vmatpush2.msra.mxu0 %v2083
        %v2085 = vand.u32 %v602, 4294901760
        %2086 = vmatprep.subr.mxu0 %v2085
        %v2087 = vand.u32 %v601, 4294901760
        %2088 = vmatpush2.msra.mxu0 %v2087
        %v2089 = vand.u32 %v598, 4294901760
        %2090 = vmatprep.subr.mxu0 %v2089
        %v2091 = vand.u32 %v597, 4294901760
        %2092 = vmatpush2.msra.mxu0 %v2091
        %v2093 = vand.u32 %v594, 4294901760
        %2094 = vmatprep.subr.mxu0 %v2093
        %v2095 = vand.u32 %v593, 4294901760
        %2096 = vmatpush2.msra.mxu0 %v2095
        %v2097 = vand.u32 %v590, 4294901760
        %2098 = vmatprep.subr.mxu0 %v2097
        %v2099 = vand.u32 %v589, 4294901760
        %2100 = vmatpush2.msra.mxu0 %v2099
        %v2101 = vand.u32 %v586, 4294901760
        %2102 = vmatprep.subr.mxu0 %v2101
        %v2103 = vand.u32 %v585, 4294901760
        %2104 = vmatpush2.msra.mxu0 %v2103
        %v2105 = vand.u32 %v582, 4294901760
        %2106 = vmatprep.subr.mxu0 %v2105
        %v2107 = vand.u32 %v581, 4294901760
        %2108 = vmatpush2.msra.mxu0 %v2107
        %v2109 = vand.u32 %v578, 4294901760
        %2110 = vmatprep.subr.mxu0 %v2109
        %v2111 = vand.u32 %v577, 4294901760
        %2112 = vmatpush2.msra.mxu0 %v2111
        %v2113 = vand.u32 %v508, 4294901760
        %v2114 = vsub.f32 %v508, %v2113
        %v2115 = vand.u32 %v2114, 4294901760
        %v2116 = vsub.f32 %v2114, %v2115
        %v2117 = vand.u32 %v2116, 4294901760
        %2118 = vmatprep.mubr.f32.mxu0 %v2117
        %v2119 = vand.u32 %v507, 4294901760
        %v2120 = vsub.f32 %v507, %v2119
        %v2121 = vand.u32 %v2120, 4294901760
        %v2122 = vsub.f32 %v2120, %v2121
        %v2123 = vand.u32 %v2122, 4294901760
        %2124 = vmatmul.mubr.f32.gmra.mxu0 %v2123
        %v2125 = vpop.f32.mrf.mxu0
        %v2126 = vadd.f32 0.0, %v2125
        %v2127 = vpop.f32.mrf.mxu0
        %v2128 = vadd.f32 0.0, %v2127
        %v2129 = vand.u32 %v510, 4294901760
        %v2130 = vsub.f32 %v510, %v2129
        %v2131 = vand.u32 %v2130, 4294901760
        %v2132 = vsub.f32 %v2130, %v2131
        %v2133 = vand.u32 %v2132, 4294901760
        %2134 = vmatprep.mubr.f32.mxu0 %v2133
        %v2135 = vand.u32 %v509, 4294901760
        %v2136 = vsub.f32 %v509, %v2135
        %v2137 = vand.u32 %v2136, 4294901760
        %v2138 = vsub.f32 %v2136, %v2137
        %v2139 = vand.u32 %v2138, 4294901760
        %2140 = vmatmul.mubr.f32.gmra.mxu0 %v2139
        %v2141 = vpop.f32.mrf.mxu0
        %v2142 = vadd.f32 0.0, %v2141
        %v2143 = vpop.f32.mrf.mxu0
        %v2144 = vadd.f32 0.0, %v2143
        %2145 = vdwg.mxu0
        %v2146 = vand.u32 %v574, 4294901760
        %v2147 = vsub.f32 %v574, %v2146
        %v2148 = vand.u32 %v2147, 4294901760
        %v2149 = vsub.f32 %v2147, %v2148
        %v2150 = vand.u32 %v2149, 4294901760
        %2151 = vmatprep.subr.mxu0 %v2150
        %v2152 = vand.u32 %v573, 4294901760
        %v2153 = vsub.f32 %v573, %v2152
        %v2154 = vand.u32 %v2153, 4294901760
        %v2155 = vsub.f32 %v2153, %v2154
        %v2156 = vand.u32 %v2155, 4294901760
        %2157 = vmatpush1.msra.mxu0 %v2156
        %v2158 = vand.u32 %v570, 4294901760
        %v2159 = vsub.f32 %v570, %v2158
        %v2160 = vand.u32 %v2159, 4294901760
        %v2161 = vsub.f32 %v2159, %v2160
        %v2162 = vand.u32 %v2161, 4294901760
        %2163 = vmatprep.subr.mxu0 %v2162
        %v2164 = vand.u32 %v569, 4294901760
        %v2165 = vsub.f32 %v569, %v2164
        %v2166 = vand.u32 %v2165, 4294901760
        %v2167 = vsub.f32 %v2165, %v2166
        %v2168 = vand.u32 %v2167, 4294901760
        %2169 = vmatpush1.msra.mxu0 %v2168
        %v2170 = vand.u32 %v566, 4294901760
        %v2171 = vsub.f32 %v566, %v2170
        %v2172 = vand.u32 %v2171, 4294901760
        %v2173 = vsub.f32 %v2171, %v2172
        %v2174 = vand.u32 %v2173, 4294901760
        %2175 = vmatprep.subr.mxu0 %v2174
        %v2176 = vand.u32 %v565, 4294901760
        %v2177 = vsub.f32 %v565, %v2176
        %v2178 = vand.u32 %v2177, 4294901760
        %v2179 = vsub.f32 %v2177, %v2178
        %v2180 = vand.u32 %v2179, 4294901760
        %2181 = vmatpush1.msra.mxu0 %v2180
        %v2182 = vand.u32 %v562, 4294901760
        %v2183 = vsub.f32 %v562, %v2182
        %v2184 = vand.u32 %v2183, 4294901760
        %v2185 = vsub.f32 %v2183, %v2184
        %v2186 = vand.u32 %v2185, 4294901760
        %2187 = vmatprep.subr.mxu0 %v2186
        %v2188 = vand.u32 %v561, 4294901760
        %v2189 = vsub.f32 %v561, %v2188
        %v2190 = vand.u32 %v2189, 4294901760
        %v2191 = vsub.f32 %v2189, %v2190
        %v2192 = vand.u32 %v2191, 4294901760
        %2193 = vmatpush1.msra.mxu0 %v2192
        %v2194 = vand.u32 %v558, 4294901760
        %v2195 = vsub.f32 %v558, %v2194
        %v2196 = vand.u32 %v2195, 4294901760
        %v2197 = vsub.f32 %v2195, %v2196
        %v2198 = vand.u32 %v2197, 4294901760
        %2199 = vmatprep.subr.mxu0 %v2198
        %v2200 = vand.u32 %v557, 4294901760
        %v2201 = vsub.f32 %v557, %v2200
        %v2202 = vand.u32 %v2201, 4294901760
        %v2203 = vsub.f32 %v2201, %v2202
        %v2204 = vand.u32 %v2203, 4294901760
        %2205 = vmatpush1.msra.mxu0 %v2204
        %v2206 = vand.u32 %v554, 4294901760
        %v2207 = vsub.f32 %v554, %v2206
        %v2208 = vand.u32 %v2207, 4294901760
        %v2209 = vsub.f32 %v2207, %v2208
        %v2210 = vand.u32 %v2209, 4294901760
        %2211 = vmatprep.subr.mxu0 %v2210
        %v2212 = vand.u32 %v553, 4294901760
        %v2213 = vsub.f32 %v553, %v2212
        %v2214 = vand.u32 %v2213, 4294901760
        %v2215 = vsub.f32 %v2213, %v2214
        %v2216 = vand.u32 %v2215, 4294901760
        %2217 = vmatpush1.msra.mxu0 %v2216
        %v2218 = vand.u32 %v550, 4294901760
        %v2219 = vsub.f32 %v550, %v2218
        %v2220 = vand.u32 %v2219, 4294901760
        %v2221 = vsub.f32 %v2219, %v2220
        %v2222 = vand.u32 %v2221, 4294901760
        %2223 = vmatprep.subr.mxu0 %v2222
        %v2224 = vand.u32 %v549, 4294901760
        %v2225 = vsub.f32 %v549, %v2224
        %v2226 = vand.u32 %v2225, 4294901760
        %v2227 = vsub.f32 %v2225, %v2226
        %v2228 = vand.u32 %v2227, 4294901760
        %2229 = vmatpush1.msra.mxu0 %v2228
        %v2230 = vand.u32 %v546, 4294901760
        %v2231 = vsub.f32 %v546, %v2230
        %v2232 = vand.u32 %v2231, 4294901760
        %v2233 = vsub.f32 %v2231, %v2232
        %v2234 = vand.u32 %v2233, 4294901760
        %2235 = vmatprep.subr.mxu0 %v2234
        %v2236 = vand.u32 %v545, 4294901760
        %v2237 = vsub.f32 %v545, %v2236
        %v2238 = vand.u32 %v2237, 4294901760
        %v2239 = vsub.f32 %v2237, %v2238
        %v2240 = vand.u32 %v2239, 4294901760
        %2241 = vmatpush1.msra.mxu0 %v2240
        %v2242 = vand.u32 %v542, 4294901760
        %v2243 = vsub.f32 %v542, %v2242
        %v2244 = vand.u32 %v2243, 4294901760
        %v2245 = vsub.f32 %v2243, %v2244
        %v2246 = vand.u32 %v2245, 4294901760
        %2247 = vmatprep.subr.mxu0 %v2246
        %v2248 = vand.u32 %v541, 4294901760
        %v2249 = vsub.f32 %v541, %v2248
        %v2250 = vand.u32 %v2249, 4294901760
        %v2251 = vsub.f32 %v2249, %v2250
        %v2252 = vand.u32 %v2251, 4294901760
        %2253 = vmatpush1.msra.mxu0 %v2252
        %v2254 = vand.u32 %v538, 4294901760
        %v2255 = vsub.f32 %v538, %v2254
        %v2256 = vand.u32 %v2255, 4294901760
        %v2257 = vsub.f32 %v2255, %v2256
        %v2258 = vand.u32 %v2257, 4294901760
        %2259 = vmatprep.subr.mxu0 %v2258
        %v2260 = vand.u32 %v537, 4294901760
        %v2261 = vsub.f32 %v537, %v2260
        %v2262 = vand.u32 %v2261, 4294901760
        %v2263 = vsub.f32 %v2261, %v2262
        %v2264 = vand.u32 %v2263, 4294901760
        %2265 = vmatpush1.msra.mxu0 %v2264
        %v2266 = vand.u32 %v534, 4294901760
        %v2267 = vsub.f32 %v534, %v2266
        %v2268 = vand.u32 %v2267, 4294901760
        %v2269 = vsub.f32 %v2267, %v2268
        %v2270 = vand.u32 %v2269, 4294901760
        %2271 = vmatprep.subr.mxu0 %v2270
        %v2272 = vand.u32 %v533, 4294901760
        %v2273 = vsub.f32 %v533, %v2272
        %v2274 = vand.u32 %v2273, 4294901760
        %v2275 = vsub.f32 %v2273, %v2274
        %v2276 = vand.u32 %v2275, 4294901760
        %2277 = vmatpush1.msra.mxu0 %v2276
        %v2278 = vand.u32 %v530, 4294901760
        %v2279 = vsub.f32 %v530, %v2278
        %v2280 = vand.u32 %v2279, 4294901760
        %v2281 = vsub.f32 %v2279, %v2280
        %v2282 = vand.u32 %v2281, 4294901760
        %2283 = vmatprep.subr.mxu0 %v2282
        %v2284 = vand.u32 %v529, 4294901760
        %v2285 = vsub.f32 %v529, %v2284
        %v2286 = vand.u32 %v2285, 4294901760
        %v2287 = vsub.f32 %v2285, %v2286
        %v2288 = vand.u32 %v2287, 4294901760
        %2289 = vmatpush1.msra.mxu0 %v2288
        %v2290 = vand.u32 %v526, 4294901760
        %v2291 = vsub.f32 %v526, %v2290
        %v2292 = vand.u32 %v2291, 4294901760
        %v2293 = vsub.f32 %v2291, %v2292
        %v2294 = vand.u32 %v2293, 4294901760
        %2295 = vmatprep.subr.mxu0 %v2294
        %v2296 = vand.u32 %v525, 4294901760
        %v2297 = vsub.f32 %v525, %v2296
        %v2298 = vand.u32 %v2297, 4294901760
        %v2299 = vsub.f32 %v2297, %v2298
        %v2300 = vand.u32 %v2299, 4294901760
        %2301 = vmatpush1.msra.mxu0 %v2300
        %v2302 = vand.u32 %v522, 4294901760
        %v2303 = vsub.f32 %v522, %v2302
        %v2304 = vand.u32 %v2303, 4294901760
        %v2305 = vsub.f32 %v2303, %v2304
        %v2306 = vand.u32 %v2305, 4294901760
        %2307 = vmatprep.subr.mxu0 %v2306
        %v2308 = vand.u32 %v521, 4294901760
        %v2309 = vsub.f32 %v521, %v2308
        %v2310 = vand.u32 %v2309, 4294901760
        %v2311 = vsub.f32 %v2309, %v2310
        %v2312 = vand.u32 %v2311, 4294901760
        %2313 = vmatpush1.msra.mxu0 %v2312
        %v2314 = vand.u32 %v518, 4294901760
        %v2315 = vsub.f32 %v518, %v2314
        %v2316 = vand.u32 %v2315, 4294901760
        %v2317 = vsub.f32 %v2315, %v2316
        %v2318 = vand.u32 %v2317, 4294901760
        %2319 = vmatprep.subr.mxu0 %v2318
        %v2320 = vand.u32 %v517, 4294901760
        %v2321 = vsub.f32 %v517, %v2320
        %v2322 = vand.u32 %v2321, 4294901760
        %v2323 = vsub.f32 %v2321, %v2322
        %v2324 = vand.u32 %v2323, 4294901760
        %2325 = vmatpush1.msra.mxu0 %v2324
        %v2326 = vand.u32 %v514, 4294901760
        %v2327 = vsub.f32 %v514, %v2326
        %v2328 = vand.u32 %v2327, 4294901760
        %v2329 = vsub.f32 %v2327, %v2328
        %v2330 = vand.u32 %v2329, 4294901760
        %2331 = vmatprep.subr.mxu0 %v2330
        %v2332 = vand.u32 %v513, 4294901760
        %v2333 = vsub.f32 %v513, %v2332
        %v2334 = vand.u32 %v2333, 4294901760
        %v2335 = vsub.f32 %v2333, %v2334
        %v2336 = vand.u32 %v2335, 4294901760
        %2337 = vmatpush1.msra.mxu0 %v2336
        %v2338 = vand.u32 %v638, 4294901760
        %v2339 = vsub.f32 %v638, %v2338
        %v2340 = vand.u32 %v2339, 4294901760
        %v2341 = vsub.f32 %v2339, %v2340
        %v2342 = vand.u32 %v2341, 4294901760
        %2343 = vmatprep.subr.mxu0 %v2342
        %v2344 = vand.u32 %v637, 4294901760
        %v2345 = vsub.f32 %v637, %v2344
        %v2346 = vand.u32 %v2345, 4294901760
        %v2347 = vsub.f32 %v2345, %v2346
        %v2348 = vand.u32 %v2347, 4294901760
        %2349 = vmatpush2.msra.mxu0 %v2348
        %v2350 = vand.u32 %v634, 4294901760
        %v2351 = vsub.f32 %v634, %v2350
        %v2352 = vand.u32 %v2351, 4294901760
        %v2353 = vsub.f32 %v2351, %v2352
        %v2354 = vand.u32 %v2353, 4294901760
        %2355 = vmatprep.subr.mxu0 %v2354
        %v2356 = vand.u32 %v633, 4294901760
        %v2357 = vsub.f32 %v633, %v2356
        %v2358 = vand.u32 %v2357, 4294901760
        %v2359 = vsub.f32 %v2357, %v2358
        %v2360 = vand.u32 %v2359, 4294901760
        %2361 = vmatpush2.msra.mxu0 %v2360
        %v2362 = vand.u32 %v630, 4294901760
        %v2363 = vsub.f32 %v630, %v2362
        %v2364 = vand.u32 %v2363, 4294901760
        %v2365 = vsub.f32 %v2363, %v2364
        %v2366 = vand.u32 %v2365, 4294901760
        %2367 = vmatprep.subr.mxu0 %v2366
        %v2368 = vand.u32 %v629, 4294901760
        %v2369 = vsub.f32 %v629, %v2368
        %v2370 = vand.u32 %v2369, 4294901760
        %v2371 = vsub.f32 %v2369, %v2370
        %v2372 = vand.u32 %v2371, 4294901760
        %2373 = vmatpush2.msra.mxu0 %v2372
        %v2374 = vand.u32 %v626, 4294901760
        %v2375 = vsub.f32 %v626, %v2374
        %v2376 = vand.u32 %v2375, 4294901760
        %v2377 = vsub.f32 %v2375, %v2376
        %v2378 = vand.u32 %v2377, 4294901760
        %2379 = vmatprep.subr.mxu0 %v2378
        %v2380 = vand.u32 %v625, 4294901760
        %v2381 = vsub.f32 %v625, %v2380
        %v2382 = vand.u32 %v2381, 4294901760
        %v2383 = vsub.f32 %v2381, %v2382
        %v2384 = vand.u32 %v2383, 4294901760
        %2385 = vmatpush2.msra.mxu0 %v2384
        %v2386 = vand.u32 %v622, 4294901760
        %v2387 = vsub.f32 %v622, %v2386
        %v2388 = vand.u32 %v2387, 4294901760
        %v2389 = vsub.f32 %v2387, %v2388
        %v2390 = vand.u32 %v2389, 4294901760
        %2391 = vmatprep.subr.mxu0 %v2390
        %v2392 = vand.u32 %v621, 4294901760
        %v2393 = vsub.f32 %v621, %v2392
        %v2394 = vand.u32 %v2393, 4294901760
        %v2395 = vsub.f32 %v2393, %v2394
        %v2396 = vand.u32 %v2395, 4294901760
        %2397 = vmatpush2.msra.mxu0 %v2396
        %v2398 = vand.u32 %v618, 4294901760
        %v2399 = vsub.f32 %v618, %v2398
        %v2400 = vand.u32 %v2399, 4294901760
        %v2401 = vsub.f32 %v2399, %v2400
        %v2402 = vand.u32 %v2401, 4294901760
        %2403 = vmatprep.subr.mxu0 %v2402
        %v2404 = vand.u32 %v617, 4294901760
        %v2405 = vsub.f32 %v617, %v2404
        %v2406 = vand.u32 %v2405, 4294901760
        %v2407 = vsub.f32 %v2405, %v2406
        %v2408 = vand.u32 %v2407, 4294901760
        %2409 = vmatpush2.msra.mxu0 %v2408
        %v2410 = vand.u32 %v614, 4294901760
        %v2411 = vsub.f32 %v614, %v2410
        %v2412 = vand.u32 %v2411, 4294901760
        %v2413 = vsub.f32 %v2411, %v2412
        %v2414 = vand.u32 %v2413, 4294901760
        %2415 = vmatprep.subr.mxu0 %v2414
        %v2416 = vand.u32 %v613, 4294901760
        %v2417 = vsub.f32 %v613, %v2416
        %v2418 = vand.u32 %v2417, 4294901760
        %v2419 = vsub.f32 %v2417, %v2418
        %v2420 = vand.u32 %v2419, 4294901760
        %2421 = vmatpush2.msra.mxu0 %v2420
        %v2422 = vand.u32 %v610, 4294901760
        %v2423 = vsub.f32 %v610, %v2422
        %v2424 = vand.u32 %v2423, 4294901760
        %v2425 = vsub.f32 %v2423, %v2424
        %v2426 = vand.u32 %v2425, 4294901760
        %2427 = vmatprep.subr.mxu0 %v2426
        %v2428 = vand.u32 %v609, 4294901760
        %v2429 = vsub.f32 %v609, %v2428
        %v2430 = vand.u32 %v2429, 4294901760
        %v2431 = vsub.f32 %v2429, %v2430
        %v2432 = vand.u32 %v2431, 4294901760
        %2433 = vmatpush2.msra.mxu0 %v2432
        %v2434 = vand.u32 %v606, 4294901760
        %v2435 = vsub.f32 %v606, %v2434
        %v2436 = vand.u32 %v2435, 4294901760
        %v2437 = vsub.f32 %v2435, %v2436
        %v2438 = vand.u32 %v2437, 4294901760
        %2439 = vmatprep.subr.mxu0 %v2438
        %v2440 = vand.u32 %v605, 4294901760
        %v2441 = vsub.f32 %v605, %v2440
        %v2442 = vand.u32 %v2441, 4294901760
        %v2443 = vsub.f32 %v2441, %v2442
        %v2444 = vand.u32 %v2443, 4294901760
        %2445 = vmatpush2.msra.mxu0 %v2444
        %v2446 = vand.u32 %v602, 4294901760
        %v2447 = vsub.f32 %v602, %v2446
        %v2448 = vand.u32 %v2447, 4294901760
        %v2449 = vsub.f32 %v2447, %v2448
        %v2450 = vand.u32 %v2449, 4294901760
        %2451 = vmatprep.subr.mxu0 %v2450
        %v2452 = vand.u32 %v601, 4294901760
        %v2453 = vsub.f32 %v601, %v2452
        %v2454 = vand.u32 %v2453, 4294901760
        %v2455 = vsub.f32 %v2453, %v2454
        %v2456 = vand.u32 %v2455, 4294901760
        %2457 = vmatpush2.msra.mxu0 %v2456
        %v2458 = vand.u32 %v598, 4294901760
        %v2459 = vsub.f32 %v598, %v2458
        %v2460 = vand.u32 %v2459, 4294901760
        %v2461 = vsub.f32 %v2459, %v2460
        %v2462 = vand.u32 %v2461, 4294901760
        %2463 = vmatprep.subr.mxu0 %v2462
        %v2464 = vand.u32 %v597, 4294901760
        %v2465 = vsub.f32 %v597, %v2464
        %v2466 = vand.u32 %v2465, 4294901760
        %v2467 = vsub.f32 %v2465, %v2466
        %v2468 = vand.u32 %v2467, 4294901760
        %2469 = vmatpush2.msra.mxu0 %v2468
        %v2470 = vand.u32 %v594, 4294901760
        %v2471 = vsub.f32 %v594, %v2470
        %v2472 = vand.u32 %v2471, 4294901760
        %v2473 = vsub.f32 %v2471, %v2472
        %v2474 = vand.u32 %v2473, 4294901760
        %2475 = vmatprep.subr.mxu0 %v2474
        %v2476 = vand.u32 %v593, 4294901760
        %v2477 = vsub.f32 %v593, %v2476
        %v2478 = vand.u32 %v2477, 4294901760
        %v2479 = vsub.f32 %v2477, %v2478
        %v2480 = vand.u32 %v2479, 4294901760
        %2481 = vmatpush2.msra.mxu0 %v2480
        %v2482 = vand.u32 %v590, 4294901760
        %v2483 = vsub.f32 %v590, %v2482
        %v2484 = vand.u32 %v2483, 4294901760
        %v2485 = vsub.f32 %v2483, %v2484
        %v2486 = vand.u32 %v2485, 4294901760
        %2487 = vmatprep.subr.mxu0 %v2486
        %v2488 = vand.u32 %v589, 4294901760
        %v2489 = vsub.f32 %v589, %v2488
        %v2490 = vand.u32 %v2489, 4294901760
        %v2491 = vsub.f32 %v2489, %v2490
        %v2492 = vand.u32 %v2491, 4294901760
        %2493 = vmatpush2.msra.mxu0 %v2492
        %v2494 = vand.u32 %v586, 4294901760
        %v2495 = vsub.f32 %v586, %v2494
        %v2496 = vand.u32 %v2495, 4294901760
        %v2497 = vsub.f32 %v2495, %v2496
        %v2498 = vand.u32 %v2497, 4294901760
        %2499 = vmatprep.subr.mxu0 %v2498
        %v2500 = vand.u32 %v585, 4294901760
        %v2501 = vsub.f32 %v585, %v2500
        %v2502 = vand.u32 %v2501, 4294901760
        %v2503 = vsub.f32 %v2501, %v2502
        %v2504 = vand.u32 %v2503, 4294901760
        %2505 = vmatpush2.msra.mxu0 %v2504
        %v2506 = vand.u32 %v582, 4294901760
        %v2507 = vsub.f32 %v582, %v2506
        %v2508 = vand.u32 %v2507, 4294901760
        %v2509 = vsub.f32 %v2507, %v2508
        %v2510 = vand.u32 %v2509, 4294901760
        %2511 = vmatprep.subr.mxu0 %v2510
        %v2512 = vand.u32 %v581, 4294901760
        %v2513 = vsub.f32 %v581, %v2512
        %v2514 = vand.u32 %v2513, 4294901760
        %v2515 = vsub.f32 %v2513, %v2514
        %v2516 = vand.u32 %v2515, 4294901760
        %2517 = vmatpush2.msra.mxu0 %v2516
        %v2518 = vand.u32 %v578, 4294901760
        %v2519 = vsub.f32 %v578, %v2518
        %v2520 = vand.u32 %v2519, 4294901760
        %v2521 = vsub.f32 %v2519, %v2520
        %v2522 = vand.u32 %v2521, 4294901760
        %2523 = vmatprep.subr.mxu0 %v2522
        %v2524 = vand.u32 %v577, 4294901760
        %v2525 = vsub.f32 %v577, %v2524
        %v2526 = vand.u32 %v2525, 4294901760
        %v2527 = vsub.f32 %v2525, %v2526
        %v2528 = vand.u32 %v2527, 4294901760
        %2529 = vmatpush2.msra.mxu0 %v2528
        %v2530 = vand.u32 %v508, 4294901760
        %2531 = vmatprep.mubr.f32.mxu0 %v2530
        %v2532 = vand.u32 %v507, 4294901760
        %2533 = vmatmul.mubr.f32.gmra.mxu0 %v2532
        %v2534 = vpop.f32.mrf.mxu0
        %v2535 = vadd.f32 %v2126, %v2534
        %v2536 = vpop.f32.mrf.mxu0
        %v2537 = vadd.f32 %v2128, %v2536
        %v2538 = vand.u32 %v510, 4294901760
        %2539 = vmatprep.mubr.f32.mxu0 %v2538
        %v2540 = vand.u32 %v509, 4294901760
        %2541 = vmatmul.mubr.f32.gmra.mxu0 %v2540
        %v2542 = vpop.f32.mrf.mxu0
        %v2543 = vadd.f32 %v2142, %v2542
        %v2544 = vpop.f32.mrf.mxu0
        %v2545 = vadd.f32 %v2144, %v2544
        %2546 = vdwg.mxu0
        %v2547 = vand.u32 %v574, 4294901760
        %v2548 = vsub.f32 %v574, %v2547
        %2549 = vmatprep.subr.mxu0 %v2548
        %v2550 = vand.u32 %v573, 4294901760
        %v2551 = vsub.f32 %v573, %v2550
        %2552 = vmatpush1.msra.mxu0 %v2551
        %v2553 = vand.u32 %v570, 4294901760
        %v2554 = vsub.f32 %v570, %v2553
        %2555 = vmatprep.subr.mxu0 %v2554
        %v2556 = vand.u32 %v569, 4294901760
        %v2557 = vsub.f32 %v569, %v2556
        %2558 = vmatpush1.msra.mxu0 %v2557
        %v2559 = vand.u32 %v566, 4294901760
        %v2560 = vsub.f32 %v566, %v2559
        %2561 = vmatprep.subr.mxu0 %v2560
        %v2562 = vand.u32 %v565, 4294901760
        %v2563 = vsub.f32 %v565, %v2562
        %2564 = vmatpush1.msra.mxu0 %v2563
        %v2565 = vand.u32 %v562, 4294901760
        %v2566 = vsub.f32 %v562, %v2565
        %2567 = vmatprep.subr.mxu0 %v2566
        %v2568 = vand.u32 %v561, 4294901760
        %v2569 = vsub.f32 %v561, %v2568
        %2570 = vmatpush1.msra.mxu0 %v2569
        %v2571 = vand.u32 %v558, 4294901760
        %v2572 = vsub.f32 %v558, %v2571
        %2573 = vmatprep.subr.mxu0 %v2572
        %v2574 = vand.u32 %v557, 4294901760
        %v2575 = vsub.f32 %v557, %v2574
        %2576 = vmatpush1.msra.mxu0 %v2575
        %v2577 = vand.u32 %v554, 4294901760
        %v2578 = vsub.f32 %v554, %v2577
        %2579 = vmatprep.subr.mxu0 %v2578
        %v2580 = vand.u32 %v553, 4294901760
        %v2581 = vsub.f32 %v553, %v2580
        %2582 = vmatpush1.msra.mxu0 %v2581
        %v2583 = vand.u32 %v550, 4294901760
        %v2584 = vsub.f32 %v550, %v2583
        %2585 = vmatprep.subr.mxu0 %v2584
        %v2586 = vand.u32 %v549, 4294901760
        %v2587 = vsub.f32 %v549, %v2586
        %2588 = vmatpush1.msra.mxu0 %v2587
        %v2589 = vand.u32 %v546, 4294901760
        %v2590 = vsub.f32 %v546, %v2589
        %2591 = vmatprep.subr.mxu0 %v2590
        %v2592 = vand.u32 %v545, 4294901760
        %v2593 = vsub.f32 %v545, %v2592
        %2594 = vmatpush1.msra.mxu0 %v2593
        %v2595 = vand.u32 %v542, 4294901760
        %v2596 = vsub.f32 %v542, %v2595
        %2597 = vmatprep.subr.mxu0 %v2596
        %v2598 = vand.u32 %v541, 4294901760
        %v2599 = vsub.f32 %v541, %v2598
        %2600 = vmatpush1.msra.mxu0 %v2599
        %v2601 = vand.u32 %v538, 4294901760
        %v2602 = vsub.f32 %v538, %v2601
        %2603 = vmatprep.subr.mxu0 %v2602
        %v2604 = vand.u32 %v537, 4294901760
        %v2605 = vsub.f32 %v537, %v2604
        %2606 = vmatpush1.msra.mxu0 %v2605
        %v2607 = vand.u32 %v534, 4294901760
        %v2608 = vsub.f32 %v534, %v2607
        %2609 = vmatprep.subr.mxu0 %v2608
        %v2610 = vand.u32 %v533, 4294901760
        %v2611 = vsub.f32 %v533, %v2610
        %2612 = vmatpush1.msra.mxu0 %v2611
        %v2613 = vand.u32 %v530, 4294901760
        %v2614 = vsub.f32 %v530, %v2613
        %2615 = vmatprep.subr.mxu0 %v2614
        %v2616 = vand.u32 %v529, 4294901760
        %v2617 = vsub.f32 %v529, %v2616
        %2618 = vmatpush1.msra.mxu0 %v2617
        %v2619 = vand.u32 %v526, 4294901760
        %v2620 = vsub.f32 %v526, %v2619
        %2621 = vmatprep.subr.mxu0 %v2620
        %v2622 = vand.u32 %v525, 4294901760
        %v2623 = vsub.f32 %v525, %v2622
        %2624 = vmatpush1.msra.mxu0 %v2623
        %v2625 = vand.u32 %v522, 4294901760
        %v2626 = vsub.f32 %v522, %v2625
        %2627 = vmatprep.subr.mxu0 %v2626
        %v2628 = vand.u32 %v521, 4294901760
        %v2629 = vsub.f32 %v521, %v2628
        %2630 = vmatpush1.msra.mxu0 %v2629
        %v2631 = vand.u32 %v518, 4294901760
        %v2632 = vsub.f32 %v518, %v2631
        %2633 = vmatprep.subr.mxu0 %v2632
        %v2634 = vand.u32 %v517, 4294901760
        %v2635 = vsub.f32 %v517, %v2634
        %2636 = vmatpush1.msra.mxu0 %v2635
        %v2637 = vand.u32 %v514, 4294901760
        %v2638 = vsub.f32 %v514, %v2637
        %2639 = vmatprep.subr.mxu0 %v2638
        %v2640 = vand.u32 %v513, 4294901760
        %v2641 = vsub.f32 %v513, %v2640
        %2642 = vmatpush1.msra.mxu0 %v2641
        %v2643 = vand.u32 %v638, 4294901760
        %v2644 = vsub.f32 %v638, %v2643
        %2645 = vmatprep.subr.mxu0 %v2644
        %v2646 = vand.u32 %v637, 4294901760
        %v2647 = vsub.f32 %v637, %v2646
        %2648 = vmatpush2.msra.mxu0 %v2647
        %v2649 = vand.u32 %v634, 4294901760
        %v2650 = vsub.f32 %v634, %v2649
        %2651 = vmatprep.subr.mxu0 %v2650
        %v2652 = vand.u32 %v633, 4294901760
        %v2653 = vsub.f32 %v633, %v2652
        %2654 = vmatpush2.msra.mxu0 %v2653
        %v2655 = vand.u32 %v630, 4294901760
        %v2656 = vsub.f32 %v630, %v2655
        %2657 = vmatprep.subr.mxu0 %v2656
        %v2658 = vand.u32 %v629, 4294901760
        %v2659 = vsub.f32 %v629, %v2658
        %2660 = vmatpush2.msra.mxu0 %v2659
        %v2661 = vand.u32 %v626, 4294901760
        %v2662 = vsub.f32 %v626, %v2661
        %2663 = vmatprep.subr.mxu0 %v2662
        %v2664 = vand.u32 %v625, 4294901760
        %v2665 = vsub.f32 %v625, %v2664
        %2666 = vmatpush2.msra.mxu0 %v2665
        %v2667 = vand.u32 %v622, 4294901760
        %v2668 = vsub.f32 %v622, %v2667
        %2669 = vmatprep.subr.mxu0 %v2668
        %v2670 = vand.u32 %v621, 4294901760
        %v2671 = vsub.f32 %v621, %v2670
        %2672 = vmatpush2.msra.mxu0 %v2671
        %v2673 = vand.u32 %v618, 4294901760
        %v2674 = vsub.f32 %v618, %v2673
        %2675 = vmatprep.subr.mxu0 %v2674
        %v2676 = vand.u32 %v617, 4294901760
        %v2677 = vsub.f32 %v617, %v2676
        %2678 = vmatpush2.msra.mxu0 %v2677
        %v2679 = vand.u32 %v614, 4294901760
        %v2680 = vsub.f32 %v614, %v2679
        %2681 = vmatprep.subr.mxu0 %v2680
        %v2682 = vand.u32 %v613, 4294901760
        %v2683 = vsub.f32 %v613, %v2682
        %2684 = vmatpush2.msra.mxu0 %v2683
        %v2685 = vand.u32 %v610, 4294901760
        %v2686 = vsub.f32 %v610, %v2685
        %2687 = vmatprep.subr.mxu0 %v2686
        %v2688 = vand.u32 %v609, 4294901760
        %v2689 = vsub.f32 %v609, %v2688
        %2690 = vmatpush2.msra.mxu0 %v2689
        %v2691 = vand.u32 %v606, 4294901760
        %v2692 = vsub.f32 %v606, %v2691
        %2693 = vmatprep.subr.mxu0 %v2692
        %v2694 = vand.u32 %v605, 4294901760
        %v2695 = vsub.f32 %v605, %v2694
        %2696 = vmatpush2.msra.mxu0 %v2695
        %v2697 = vand.u32 %v602, 4294901760
        %v2698 = vsub.f32 %v602, %v2697
        %2699 = vmatprep.subr.mxu0 %v2698
        %v2700 = vand.u32 %v601, 4294901760
        %v2701 = vsub.f32 %v601, %v2700
        %2702 = vmatpush2.msra.mxu0 %v2701
        %v2703 = vand.u32 %v598, 4294901760
        %v2704 = vsub.f32 %v598, %v2703
        %2705 = vmatprep.subr.mxu0 %v2704
        %v2706 = vand.u32 %v597, 4294901760
        %v2707 = vsub.f32 %v597, %v2706
        %2708 = vmatpush2.msra.mxu0 %v2707
        %v2709 = vand.u32 %v594, 4294901760
        %v2710 = vsub.f32 %v594, %v2709
        %2711 = vmatprep.subr.mxu0 %v2710
        %v2712 = vand.u32 %v593, 4294901760
        %v2713 = vsub.f32 %v593, %v2712
        %2714 = vmatpush2.msra.mxu0 %v2713
        %v2715 = vand.u32 %v590, 4294901760
        %v2716 = vsub.f32 %v590, %v2715
        %2717 = vmatprep.subr.mxu0 %v2716
        %v2718 = vand.u32 %v589, 4294901760
        %v2719 = vsub.f32 %v589, %v2718
        %2720 = vmatpush2.msra.mxu0 %v2719
        %v2721 = vand.u32 %v586, 4294901760
        %v2722 = vsub.f32 %v586, %v2721
        %2723 = vmatprep.subr.mxu0 %v2722
        %v2724 = vand.u32 %v585, 4294901760
        %v2725 = vsub.f32 %v585, %v2724
        %2726 = vmatpush2.msra.mxu0 %v2725
        %v2727 = vand.u32 %v582, 4294901760
        %v2728 = vsub.f32 %v582, %v2727
        %2729 = vmatprep.subr.mxu0 %v2728
        %v2730 = vand.u32 %v581, 4294901760
        %v2731 = vsub.f32 %v581, %v2730
        %2732 = vmatpush2.msra.mxu0 %v2731
        %v2733 = vand.u32 %v578, 4294901760
        %v2734 = vsub.f32 %v578, %v2733
        %2735 = vmatprep.subr.mxu0 %v2734
        %v2736 = vand.u32 %v577, 4294901760
        %v2737 = vsub.f32 %v577, %v2736
        %2738 = vmatpush2.msra.mxu0 %v2737
        %v2739 = vand.u32 %v508, 4294901760
        %v2740 = vsub.f32 %v508, %v2739
        %2741 = vmatprep.mubr.f32.mxu0 %v2740
        %v2742 = vand.u32 %v507, 4294901760
        %v2743 = vsub.f32 %v507, %v2742
        %2744 = vmatmul.mubr.f32.gmra.mxu0 %v2743
        %v2745 = vpop.f32.mrf.mxu0
        %v2746 = vadd.f32 %v2535, %v2745
        %v2747 = vpop.f32.mrf.mxu0
        %v2748 = vadd.f32 %v2537, %v2747
        %v2749 = vand.u32 %v510, 4294901760
        %v2750 = vsub.f32 %v510, %v2749
        %2751 = vmatprep.mubr.f32.mxu0 %v2750
        %v2752 = vand.u32 %v509, 4294901760
        %v2753 = vsub.f32 %v509, %v2752
        %2754 = vmatmul.mubr.f32.gmra.mxu0 %v2753
        %v2755 = vpop.f32.mrf.mxu0
        %v2756 = vadd.f32 %v2543, %v2755
        %v2757 = vpop.f32.mrf.mxu0
        %v2758 = vadd.f32 %v2545, %v2757
        %2759 = vdwg.mxu0
        %v2760 = vand.u32 %v574, 4294901760
        %2761 = vmatprep.subr.mxu0 %v2760
        %v2762 = vand.u32 %v573, 4294901760
        %2763 = vmatpush1.msra.mxu0 %v2762
        %v2764 = vand.u32 %v570, 4294901760
        %2765 = vmatprep.subr.mxu0 %v2764
        %v2766 = vand.u32 %v569, 4294901760
        %2767 = vmatpush1.msra.mxu0 %v2766
        %v2768 = vand.u32 %v566, 4294901760
        %2769 = vmatprep.subr.mxu0 %v2768
        %v2770 = vand.u32 %v565, 4294901760
        %2771 = vmatpush1.msra.mxu0 %v2770
        %v2772 = vand.u32 %v562, 4294901760
        %2773 = vmatprep.subr.mxu0 %v2772
        %v2774 = vand.u32 %v561, 4294901760
        %2775 = vmatpush1.msra.mxu0 %v2774
        %v2776 = vand.u32 %v558, 4294901760
        %2777 = vmatprep.subr.mxu0 %v2776
        %v2778 = vand.u32 %v557, 4294901760
        %2779 = vmatpush1.msra.mxu0 %v2778
        %v2780 = vand.u32 %v554, 4294901760
        %2781 = vmatprep.subr.mxu0 %v2780
        %v2782 = vand.u32 %v553, 4294901760
        %2783 = vmatpush1.msra.mxu0 %v2782
        %v2784 = vand.u32 %v550, 4294901760
        %2785 = vmatprep.subr.mxu0 %v2784
        %v2786 = vand.u32 %v549, 4294901760
        %2787 = vmatpush1.msra.mxu0 %v2786
        %v2788 = vand.u32 %v546, 4294901760
        %2789 = vmatprep.subr.mxu0 %v2788
        %v2790 = vand.u32 %v545, 4294901760
        %2791 = vmatpush1.msra.mxu0 %v2790
        %v2792 = vand.u32 %v542, 4294901760
        %2793 = vmatprep.subr.mxu0 %v2792
        %v2794 = vand.u32 %v541, 4294901760
        %2795 = vmatpush1.msra.mxu0 %v2794
        %v2796 = vand.u32 %v538, 4294901760
        %2797 = vmatprep.subr.mxu0 %v2796
        %v2798 = vand.u32 %v537, 4294901760
        %2799 = vmatpush1.msra.mxu0 %v2798
        %v2800 = vand.u32 %v534, 4294901760
        %2801 = vmatprep.subr.mxu0 %v2800
        %v2802 = vand.u32 %v533, 4294901760
        %2803 = vmatpush1.msra.mxu0 %v2802
        %v2804 = vand.u32 %v530, 4294901760
        %2805 = vmatprep.subr.mxu0 %v2804
        %v2806 = vand.u32 %v529, 4294901760
        %2807 = vmatpush1.msra.mxu0 %v2806
        %v2808 = vand.u32 %v526, 4294901760
        %2809 = vmatprep.subr.mxu0 %v2808
        %v2810 = vand.u32 %v525, 4294901760
        %2811 = vmatpush1.msra.mxu0 %v2810
        %v2812 = vand.u32 %v522, 4294901760
        %2813 = vmatprep.subr.mxu0 %v2812
        %v2814 = vand.u32 %v521, 4294901760
        %2815 = vmatpush1.msra.mxu0 %v2814
        %v2816 = vand.u32 %v518, 4294901760
        %2817 = vmatprep.subr.mxu0 %v2816
        %v2818 = vand.u32 %v517, 4294901760
        %2819 = vmatpush1.msra.mxu0 %v2818
        %v2820 = vand.u32 %v514, 4294901760
        %2821 = vmatprep.subr.mxu0 %v2820
        %v2822 = vand.u32 %v513, 4294901760
        %2823 = vmatpush1.msra.mxu0 %v2822
        %v2824 = vand.u32 %v638, 4294901760
        %2825 = vmatprep.subr.mxu0 %v2824
        %v2826 = vand.u32 %v637, 4294901760
        %2827 = vmatpush2.msra.mxu0 %v2826
        %v2828 = vand.u32 %v634, 4294901760
        %2829 = vmatprep.subr.mxu0 %v2828
        %v2830 = vand.u32 %v633, 4294901760
        %2831 = vmatpush2.msra.mxu0 %v2830
        %v2832 = vand.u32 %v630, 4294901760
        %2833 = vmatprep.subr.mxu0 %v2832
        %v2834 = vand.u32 %v629, 4294901760
        %2835 = vmatpush2.msra.mxu0 %v2834
        %v2836 = vand.u32 %v626, 4294901760
        %2837 = vmatprep.subr.mxu0 %v2836
        %v2838 = vand.u32 %v625, 4294901760
        %2839 = vmatpush2.msra.mxu0 %v2838
        %v2840 = vand.u32 %v622, 4294901760
        %2841 = vmatprep.subr.mxu0 %v2840
        %v2842 = vand.u32 %v621, 4294901760
        %2843 = vmatpush2.msra.mxu0 %v2842
        %v2844 = vand.u32 %v618, 4294901760
        %2845 = vmatprep.subr.mxu0 %v2844
        %v2846 = vand.u32 %v617, 4294901760
        %2847 = vmatpush2.msra.mxu0 %v2846
        %v2848 = vand.u32 %v614, 4294901760
        %2849 = vmatprep.subr.mxu0 %v2848
        %v2850 = vand.u32 %v613, 4294901760
        %2851 = vmatpush2.msra.mxu0 %v2850
        %v2852 = vand.u32 %v610, 4294901760
        %2853 = vmatprep.subr.mxu0 %v2852
        %v2854 = vand.u32 %v609, 4294901760
        %2855 = vmatpush2.msra.mxu0 %v2854
        %v2856 = vand.u32 %v606, 4294901760
        %2857 = vmatprep.subr.mxu0 %v2856
        %v2858 = vand.u32 %v605, 4294901760
        %2859 = vmatpush2.msra.mxu0 %v2858
        %v2860 = vand.u32 %v602, 4294901760
        %2861 = vmatprep.subr.mxu0 %v2860
        %v2862 = vand.u32 %v601, 4294901760
        %2863 = vmatpush2.msra.mxu0 %v2862
        %v2864 = vand.u32 %v598, 4294901760
        %2865 = vmatprep.subr.mxu0 %v2864
        %v2866 = vand.u32 %v597, 4294901760
        %2867 = vmatpush2.msra.mxu0 %v2866
        %v2868 = vand.u32 %v594, 4294901760
        %2869 = vmatprep.subr.mxu0 %v2868
        %v2870 = vand.u32 %v593, 4294901760
        %2871 = vmatpush2.msra.mxu0 %v2870
        %v2872 = vand.u32 %v590, 4294901760
        %2873 = vmatprep.subr.mxu0 %v2872
        %v2874 = vand.u32 %v589, 4294901760
        %2875 = vmatpush2.msra.mxu0 %v2874
        %v2876 = vand.u32 %v586, 4294901760
        %2877 = vmatprep.subr.mxu0 %v2876
        %v2878 = vand.u32 %v585, 4294901760
        %2879 = vmatpush2.msra.mxu0 %v2878
        %v2880 = vand.u32 %v582, 4294901760
        %2881 = vmatprep.subr.mxu0 %v2880
        %v2882 = vand.u32 %v581, 4294901760
        %2883 = vmatpush2.msra.mxu0 %v2882
        %v2884 = vand.u32 %v578, 4294901760
        %2885 = vmatprep.subr.mxu0 %v2884
        %v2886 = vand.u32 %v577, 4294901760
        %2887 = vmatpush2.msra.mxu0 %v2886
        %v2888 = vand.u32 %v508, 4294901760
        %v2889 = vsub.f32 %v508, %v2888
        %v2890 = vand.u32 %v2889, 4294901760
        %2891 = vmatprep.mubr.f32.mxu0 %v2890
        %v2892 = vand.u32 %v507, 4294901760
        %v2893 = vsub.f32 %v507, %v2892
        %v2894 = vand.u32 %v2893, 4294901760
        %2895 = vmatmul.mubr.f32.gmra.mxu0 %v2894
        %v2896 = vpop.f32.mrf.mxu0
        %v2897 = vadd.f32 %v2746, %v2896
        %v2898 = vpop.f32.mrf.mxu0
        %v2899 = vadd.f32 %v2748, %v2898
        %v2900 = vand.u32 %v510, 4294901760
        %v2901 = vsub.f32 %v510, %v2900
        %v2902 = vand.u32 %v2901, 4294901760
        %2903 = vmatprep.mubr.f32.mxu0 %v2902
        %v2904 = vand.u32 %v509, 4294901760
        %v2905 = vsub.f32 %v509, %v2904
        %v2906 = vand.u32 %v2905, 4294901760
        %2907 = vmatmul.mubr.f32.gmra.mxu0 %v2906
        %v2908 = vpop.f32.mrf.mxu0
        %v2909 = vadd.f32 %v2756, %v2908
        %v2910 = vpop.f32.mrf.mxu0
        %v2911 = vadd.f32 %v2758, %v2910
        %2912 = vdwg.mxu0
        %v2913 = vand.u32 %v574, 4294901760
        %v2914 = vsub.f32 %v574, %v2913
        %v2915 = vand.u32 %v2914, 4294901760
        %2916 = vmatprep.subr.mxu0 %v2915
        %v2917 = vand.u32 %v573, 4294901760
        %v2918 = vsub.f32 %v573, %v2917
        %v2919 = vand.u32 %v2918, 4294901760
        %2920 = vmatpush1.msra.mxu0 %v2919
        %v2921 = vand.u32 %v570, 4294901760
        %v2922 = vsub.f32 %v570, %v2921
        %v2923 = vand.u32 %v2922, 4294901760
        %2924 = vmatprep.subr.mxu0 %v2923
        %v2925 = vand.u32 %v569, 4294901760
        %v2926 = vsub.f32 %v569, %v2925
        %v2927 = vand.u32 %v2926, 4294901760
        %2928 = vmatpush1.msra.mxu0 %v2927
        %v2929 = vand.u32 %v566, 4294901760
        %v2930 = vsub.f32 %v566, %v2929
        %v2931 = vand.u32 %v2930, 4294901760
        %2932 = vmatprep.subr.mxu0 %v2931
        %v2933 = vand.u32 %v565, 4294901760
        %v2934 = vsub.f32 %v565, %v2933
        %v2935 = vand.u32 %v2934, 4294901760
        %2936 = vmatpush1.msra.mxu0 %v2935
        %v2937 = vand.u32 %v562, 4294901760
        %v2938 = vsub.f32 %v562, %v2937
        %v2939 = vand.u32 %v2938, 4294901760
        %2940 = vmatprep.subr.mxu0 %v2939
        %v2941 = vand.u32 %v561, 4294901760
        %v2942 = vsub.f32 %v561, %v2941
        %v2943 = vand.u32 %v2942, 4294901760
        %2944 = vmatpush1.msra.mxu0 %v2943
        %v2945 = vand.u32 %v558, 4294901760
        %v2946 = vsub.f32 %v558, %v2945
        %v2947 = vand.u32 %v2946, 4294901760
        %2948 = vmatprep.subr.mxu0 %v2947
        %v2949 = vand.u32 %v557, 4294901760
        %v2950 = vsub.f32 %v557, %v2949
        %v2951 = vand.u32 %v2950, 4294901760
        %2952 = vmatpush1.msra.mxu0 %v2951
        %v2953 = vand.u32 %v554, 4294901760
        %v2954 = vsub.f32 %v554, %v2953
        %v2955 = vand.u32 %v2954, 4294901760
        %2956 = vmatprep.subr.mxu0 %v2955
        %v2957 = vand.u32 %v553, 4294901760
        %v2958 = vsub.f32 %v553, %v2957
        %v2959 = vand.u32 %v2958, 4294901760
        %2960 = vmatpush1.msra.mxu0 %v2959
        %v2961 = vand.u32 %v550, 4294901760
        %v2962 = vsub.f32 %v550, %v2961
        %v2963 = vand.u32 %v2962, 4294901760
        %2964 = vmatprep.subr.mxu0 %v2963
        %v2965 = vand.u32 %v549, 4294901760
        %v2966 = vsub.f32 %v549, %v2965
        %v2967 = vand.u32 %v2966, 4294901760
        %2968 = vmatpush1.msra.mxu0 %v2967
        %v2969 = vand.u32 %v546, 4294901760
        %v2970 = vsub.f32 %v546, %v2969
        %v2971 = vand.u32 %v2970, 4294901760
        %2972 = vmatprep.subr.mxu0 %v2971
        %v2973 = vand.u32 %v545, 4294901760
        %v2974 = vsub.f32 %v545, %v2973
        %v2975 = vand.u32 %v2974, 4294901760
        %2976 = vmatpush1.msra.mxu0 %v2975
        %v2977 = vand.u32 %v542, 4294901760
        %v2978 = vsub.f32 %v542, %v2977
        %v2979 = vand.u32 %v2978, 4294901760
        %2980 = vmatprep.subr.mxu0 %v2979
        %v2981 = vand.u32 %v541, 4294901760
        %v2982 = vsub.f32 %v541, %v2981
        %v2983 = vand.u32 %v2982, 4294901760
        %2984 = vmatpush1.msra.mxu0 %v2983
        %v2985 = vand.u32 %v538, 4294901760
        %v2986 = vsub.f32 %v538, %v2985
        %v2987 = vand.u32 %v2986, 4294901760
        %2988 = vmatprep.subr.mxu0 %v2987
        %v2989 = vand.u32 %v537, 4294901760
        %v2990 = vsub.f32 %v537, %v2989
        %v2991 = vand.u32 %v2990, 4294901760
        %2992 = vmatpush1.msra.mxu0 %v2991
        %v2993 = vand.u32 %v534, 4294901760
        %v2994 = vsub.f32 %v534, %v2993
        %v2995 = vand.u32 %v2994, 4294901760
        %2996 = vmatprep.subr.mxu0 %v2995
        %v2997 = vand.u32 %v533, 4294901760
        %v2998 = vsub.f32 %v533, %v2997
        %v2999 = vand.u32 %v2998, 4294901760
        %3000 = vmatpush1.msra.mxu0 %v2999
        %v3001 = vand.u32 %v530, 4294901760
        %v3002 = vsub.f32 %v530, %v3001
        %v3003 = vand.u32 %v3002, 4294901760
        %3004 = vmatprep.subr.mxu0 %v3003
        %v3005 = vand.u32 %v529, 4294901760
        %v3006 = vsub.f32 %v529, %v3005
        %v3007 = vand.u32 %v3006, 4294901760
        %3008 = vmatpush1.msra.mxu0 %v3007
        %v3009 = vand.u32 %v526, 4294901760
        %v3010 = vsub.f32 %v526, %v3009
        %v3011 = vand.u32 %v3010, 4294901760
        %3012 = vmatprep.subr.mxu0 %v3011
        %v3013 = vand.u32 %v525, 4294901760
        %v3014 = vsub.f32 %v525, %v3013
        %v3015 = vand.u32 %v3014, 4294901760
        %3016 = vmatpush1.msra.mxu0 %v3015
        %v3017 = vand.u32 %v522, 4294901760
        %v3018 = vsub.f32 %v522, %v3017
        %v3019 = vand.u32 %v3018, 4294901760
        %3020 = vmatprep.subr.mxu0 %v3019
        %v3021 = vand.u32 %v521, 4294901760
        %v3022 = vsub.f32 %v521, %v3021
        %v3023 = vand.u32 %v3022, 4294901760
        %3024 = vmatpush1.msra.mxu0 %v3023
        %v3025 = vand.u32 %v518, 4294901760
        %v3026 = vsub.f32 %v518, %v3025
        %v3027 = vand.u32 %v3026, 4294901760
        %3028 = vmatprep.subr.mxu0 %v3027
        %v3029 = vand.u32 %v517, 4294901760
        %v3030 = vsub.f32 %v517, %v3029
        %v3031 = vand.u32 %v3030, 4294901760
        %3032 = vmatpush1.msra.mxu0 %v3031
        %v3033 = vand.u32 %v514, 4294901760
        %v3034 = vsub.f32 %v514, %v3033
        %v3035 = vand.u32 %v3034, 4294901760
        %3036 = vmatprep.subr.mxu0 %v3035
        %v3037 = vand.u32 %v513, 4294901760
        %v3038 = vsub.f32 %v513, %v3037
        %v3039 = vand.u32 %v3038, 4294901760
        %3040 = vmatpush1.msra.mxu0 %v3039
        %v3041 = vand.u32 %v638, 4294901760
        %v3042 = vsub.f32 %v638, %v3041
        %v3043 = vand.u32 %v3042, 4294901760
        %3044 = vmatprep.subr.mxu0 %v3043
        %v3045 = vand.u32 %v637, 4294901760
        %v3046 = vsub.f32 %v637, %v3045
        %v3047 = vand.u32 %v3046, 4294901760
        %3048 = vmatpush2.msra.mxu0 %v3047
        %v3049 = vand.u32 %v634, 4294901760
        %v3050 = vsub.f32 %v634, %v3049
        %v3051 = vand.u32 %v3050, 4294901760
        %3052 = vmatprep.subr.mxu0 %v3051
        %v3053 = vand.u32 %v633, 4294901760
        %v3054 = vsub.f32 %v633, %v3053
        %v3055 = vand.u32 %v3054, 4294901760
        %3056 = vmatpush2.msra.mxu0 %v3055
        %v3057 = vand.u32 %v630, 4294901760
        %v3058 = vsub.f32 %v630, %v3057
        %v3059 = vand.u32 %v3058, 4294901760
        %3060 = vmatprep.subr.mxu0 %v3059
        %v3061 = vand.u32 %v629, 4294901760
        %v3062 = vsub.f32 %v629, %v3061
        %v3063 = vand.u32 %v3062, 4294901760
        %3064 = vmatpush2.msra.mxu0 %v3063
        %v3065 = vand.u32 %v626, 4294901760
        %v3066 = vsub.f32 %v626, %v3065
        %v3067 = vand.u32 %v3066, 4294901760
        %3068 = vmatprep.subr.mxu0 %v3067
        %v3069 = vand.u32 %v625, 4294901760
        %v3070 = vsub.f32 %v625, %v3069
        %v3071 = vand.u32 %v3070, 4294901760
        %3072 = vmatpush2.msra.mxu0 %v3071
        %v3073 = vand.u32 %v622, 4294901760
        %v3074 = vsub.f32 %v622, %v3073
        %v3075 = vand.u32 %v3074, 4294901760
        %3076 = vmatprep.subr.mxu0 %v3075
        %v3077 = vand.u32 %v621, 4294901760
        %v3078 = vsub.f32 %v621, %v3077
        %v3079 = vand.u32 %v3078, 4294901760
        %3080 = vmatpush2.msra.mxu0 %v3079
        %v3081 = vand.u32 %v618, 4294901760
        %v3082 = vsub.f32 %v618, %v3081
        %v3083 = vand.u32 %v3082, 4294901760
        %3084 = vmatprep.subr.mxu0 %v3083
        %v3085 = vand.u32 %v617, 4294901760
        %v3086 = vsub.f32 %v617, %v3085
        %v3087 = vand.u32 %v3086, 4294901760
        %3088 = vmatpush2.msra.mxu0 %v3087
        %v3089 = vand.u32 %v614, 4294901760
        %v3090 = vsub.f32 %v614, %v3089
        %v3091 = vand.u32 %v3090, 4294901760
        %3092 = vmatprep.subr.mxu0 %v3091
        %v3093 = vand.u32 %v613, 4294901760
        %v3094 = vsub.f32 %v613, %v3093
        %v3095 = vand.u32 %v3094, 4294901760
        %3096 = vmatpush2.msra.mxu0 %v3095
        %v3097 = vand.u32 %v610, 4294901760
        %v3098 = vsub.f32 %v610, %v3097
        %v3099 = vand.u32 %v3098, 4294901760
        %3100 = vmatprep.subr.mxu0 %v3099
        %v3101 = vand.u32 %v609, 4294901760
        %v3102 = vsub.f32 %v609, %v3101
        %v3103 = vand.u32 %v3102, 4294901760
        %3104 = vmatpush2.msra.mxu0 %v3103
        %v3105 = vand.u32 %v606, 4294901760
        %v3106 = vsub.f32 %v606, %v3105
        %v3107 = vand.u32 %v3106, 4294901760
        %3108 = vmatprep.subr.mxu0 %v3107
        %v3109 = vand.u32 %v605, 4294901760
        %v3110 = vsub.f32 %v605, %v3109
        %v3111 = vand.u32 %v3110, 4294901760
        %3112 = vmatpush2.msra.mxu0 %v3111
        %v3113 = vand.u32 %v602, 4294901760
        %v3114 = vsub.f32 %v602, %v3113
        %v3115 = vand.u32 %v3114, 4294901760
        %3116 = vmatprep.subr.mxu0 %v3115
        %v3117 = vand.u32 %v601, 4294901760
        %v3118 = vsub.f32 %v601, %v3117
        %v3119 = vand.u32 %v3118, 4294901760
        %3120 = vmatpush2.msra.mxu0 %v3119
        %v3121 = vand.u32 %v598, 4294901760
        %v3122 = vsub.f32 %v598, %v3121
        %v3123 = vand.u32 %v3122, 4294901760
        %3124 = vmatprep.subr.mxu0 %v3123
        %v3125 = vand.u32 %v597, 4294901760
        %v3126 = vsub.f32 %v597, %v3125
        %v3127 = vand.u32 %v3126, 4294901760
        %3128 = vmatpush2.msra.mxu0 %v3127
        %v3129 = vand.u32 %v594, 4294901760
        %v3130 = vsub.f32 %v594, %v3129
        %v3131 = vand.u32 %v3130, 4294901760
        %3132 = vmatprep.subr.mxu0 %v3131
        %v3133 = vand.u32 %v593, 4294901760
        %v3134 = vsub.f32 %v593, %v3133
        %v3135 = vand.u32 %v3134, 4294901760
        %3136 = vmatpush2.msra.mxu0 %v3135
        %v3137 = vand.u32 %v590, 4294901760
        %v3138 = vsub.f32 %v590, %v3137
        %v3139 = vand.u32 %v3138, 4294901760
        %3140 = vmatprep.subr.mxu0 %v3139
        %v3141 = vand.u32 %v589, 4294901760
        %v3142 = vsub.f32 %v589, %v3141
        %v3143 = vand.u32 %v3142, 4294901760
        %3144 = vmatpush2.msra.mxu0 %v3143
        %v3145 = vand.u32 %v586, 4294901760
        %v3146 = vsub.f32 %v586, %v3145
        %v3147 = vand.u32 %v3146, 4294901760
        %3148 = vmatprep.subr.mxu0 %v3147
        %v3149 = vand.u32 %v585, 4294901760
        %v3150 = vsub.f32 %v585, %v3149
        %v3151 = vand.u32 %v3150, 4294901760
        %3152 = vmatpush2.msra.mxu0 %v3151
        %v3153 = vand.u32 %v582, 4294901760
        %v3154 = vsub.f32 %v582, %v3153
        %v3155 = vand.u32 %v3154, 4294901760
        %3156 = vmatprep.subr.mxu0 %v3155
        %v3157 = vand.u32 %v581, 4294901760
        %v3158 = vsub.f32 %v581, %v3157
        %v3159 = vand.u32 %v3158, 4294901760
        %3160 = vmatpush2.msra.mxu0 %v3159
        %v3161 = vand.u32 %v578, 4294901760
        %v3162 = vsub.f32 %v578, %v3161
        %v3163 = vand.u32 %v3162, 4294901760
        %3164 = vmatprep.subr.mxu0 %v3163
        %v3165 = vand.u32 %v577, 4294901760
        %v3166 = vsub.f32 %v577, %v3165
        %v3167 = vand.u32 %v3166, 4294901760
        %3168 = vmatpush2.msra.mxu0 %v3167
        %v3169 = vand.u32 %v508, 4294901760
        %3170 = vmatprep.mubr.f32.mxu0 %v3169
        %v3171 = vand.u32 %v507, 4294901760
        %3172 = vmatmul.mubr.f32.gmra.mxu0 %v3171
        %v3173 = vpop.f32.mrf.mxu0
        %v3174 = vadd.f32 %v2897, %v3173
        %v3175 = vpop.f32.mrf.mxu0
        %v3176 = vadd.f32 %v2899, %v3175
        %v3177 = vand.u32 %v510, 4294901760
        %3178 = vmatprep.mubr.f32.mxu0 %v3177
        %v3179 = vand.u32 %v509, 4294901760
        %3180 = vmatmul.mubr.f32.gmra.mxu0 %v3179
        %v3181 = vpop.f32.mrf.mxu0
        %v3182 = vadd.f32 %v2909, %v3181
        %v3183 = vpop.f32.mrf.mxu0
        %v3184 = vadd.f32 %v2911, %v3183
        %3185 = vdwg.mxu0
        %v3186 = vand.u32 %v574, 4294901760
        %3187 = vmatprep.subr.mxu0 %v3186
        %v3188 = vand.u32 %v573, 4294901760
        %3189 = vmatpush1.msra.mxu0 %v3188
        %v3190 = vand.u32 %v570, 4294901760
        %3191 = vmatprep.subr.mxu0 %v3190
        %v3192 = vand.u32 %v569, 4294901760
        %3193 = vmatpush1.msra.mxu0 %v3192
        %v3194 = vand.u32 %v566, 4294901760
        %3195 = vmatprep.subr.mxu0 %v3194
        %v3196 = vand.u32 %v565, 4294901760
        %3197 = vmatpush1.msra.mxu0 %v3196
        %v3198 = vand.u32 %v562, 4294901760
        %3199 = vmatprep.subr.mxu0 %v3198
        %v3200 = vand.u32 %v561, 4294901760
        %3201 = vmatpush1.msra.mxu0 %v3200
        %v3202 = vand.u32 %v558, 4294901760
        %3203 = vmatprep.subr.mxu0 %v3202
        %v3204 = vand.u32 %v557, 4294901760
        %3205 = vmatpush1.msra.mxu0 %v3204
        %v3206 = vand.u32 %v554, 4294901760
        %3207 = vmatprep.subr.mxu0 %v3206
        %v3208 = vand.u32 %v553, 4294901760
        %3209 = vmatpush1.msra.mxu0 %v3208
        %v3210 = vand.u32 %v550, 4294901760
        %3211 = vmatprep.subr.mxu0 %v3210
        %v3212 = vand.u32 %v549, 4294901760
        %3213 = vmatpush1.msra.mxu0 %v3212
        %v3214 = vand.u32 %v546, 4294901760
        %3215 = vmatprep.subr.mxu0 %v3214
        %v3216 = vand.u32 %v545, 4294901760
        %3217 = vmatpush1.msra.mxu0 %v3216
        %v3218 = vand.u32 %v542, 4294901760
        %3219 = vmatprep.subr.mxu0 %v3218
        %v3220 = vand.u32 %v541, 4294901760
        %3221 = vmatpush1.msra.mxu0 %v3220
        %v3222 = vand.u32 %v538, 4294901760
        %3223 = vmatprep.subr.mxu0 %v3222
        %v3224 = vand.u32 %v537, 4294901760
        %3225 = vmatpush1.msra.mxu0 %v3224
        %v3226 = vand.u32 %v534, 4294901760
        %3227 = vmatprep.subr.mxu0 %v3226
        %v3228 = vand.u32 %v533, 4294901760
        %3229 = vmatpush1.msra.mxu0 %v3228
        %v3230 = vand.u32 %v530, 4294901760
        %3231 = vmatprep.subr.mxu0 %v3230
        %v3232 = vand.u32 %v529, 4294901760
        %3233 = vmatpush1.msra.mxu0 %v3232
        %v3234 = vand.u32 %v526, 4294901760
        %3235 = vmatprep.subr.mxu0 %v3234
        %v3236 = vand.u32 %v525, 4294901760
        %3237 = vmatpush1.msra.mxu0 %v3236
        %v3238 = vand.u32 %v522, 4294901760
        %3239 = vmatprep.subr.mxu0 %v3238
        %v3240 = vand.u32 %v521, 4294901760
        %3241 = vmatpush1.msra.mxu0 %v3240
        %v3242 = vand.u32 %v518, 4294901760
        %3243 = vmatprep.subr.mxu0 %v3242
        %v3244 = vand.u32 %v517, 4294901760
        %3245 = vmatpush1.msra.mxu0 %v3244
        %v3246 = vand.u32 %v514, 4294901760
        %3247 = vmatprep.subr.mxu0 %v3246
        %v3248 = vand.u32 %v513, 4294901760
        %3249 = vmatpush1.msra.mxu0 %v3248
        %v3250 = vand.u32 %v638, 4294901760
        %3251 = vmatprep.subr.mxu0 %v3250
        %v3252 = vand.u32 %v637, 4294901760
        %3253 = vmatpush2.msra.mxu0 %v3252
        %v3254 = vand.u32 %v634, 4294901760
        %3255 = vmatprep.subr.mxu0 %v3254
        %v3256 = vand.u32 %v633, 4294901760
        %3257 = vmatpush2.msra.mxu0 %v3256
        %v3258 = vand.u32 %v630, 4294901760
        %3259 = vmatprep.subr.mxu0 %v3258
        %v3260 = vand.u32 %v629, 4294901760
        %3261 = vmatpush2.msra.mxu0 %v3260
        %v3262 = vand.u32 %v626, 4294901760
        %3263 = vmatprep.subr.mxu0 %v3262
        %v3264 = vand.u32 %v625, 4294901760
        %3265 = vmatpush2.msra.mxu0 %v3264
        %v3266 = vand.u32 %v622, 4294901760
        %3267 = vmatprep.subr.mxu0 %v3266
        %v3268 = vand.u32 %v621, 4294901760
        %3269 = vmatpush2.msra.mxu0 %v3268
        %v3270 = vand.u32 %v618, 4294901760
        %3271 = vmatprep.subr.mxu0 %v3270
        %v3272 = vand.u32 %v617, 4294901760
        %3273 = vmatpush2.msra.mxu0 %v3272
        %v3274 = vand.u32 %v614, 4294901760
        %3275 = vmatprep.subr.mxu0 %v3274
        %v3276 = vand.u32 %v613, 4294901760
        %3277 = vmatpush2.msra.mxu0 %v3276
        %v3278 = vand.u32 %v610, 4294901760
        %3279 = vmatprep.subr.mxu0 %v3278
        %v3280 = vand.u32 %v609, 4294901760
        %3281 = vmatpush2.msra.mxu0 %v3280
        %v3282 = vand.u32 %v606, 4294901760
        %3283 = vmatprep.subr.mxu0 %v3282
        %v3284 = vand.u32 %v605, 4294901760
        %3285 = vmatpush2.msra.mxu0 %v3284
        %v3286 = vand.u32 %v602, 4294901760
        %3287 = vmatprep.subr.mxu0 %v3286
        %v3288 = vand.u32 %v601, 4294901760
        %3289 = vmatpush2.msra.mxu0 %v3288
        %v3290 = vand.u32 %v598, 4294901760
        %3291 = vmatprep.subr.mxu0 %v3290
        %v3292 = vand.u32 %v597, 4294901760
        %3293 = vmatpush2.msra.mxu0 %v3292
        %v3294 = vand.u32 %v594, 4294901760
        %3295 = vmatprep.subr.mxu0 %v3294
        %v3296 = vand.u32 %v593, 4294901760
        %3297 = vmatpush2.msra.mxu0 %v3296
        %v3298 = vand.u32 %v590, 4294901760
        %3299 = vmatprep.subr.mxu0 %v3298
        %v3300 = vand.u32 %v589, 4294901760
        %3301 = vmatpush2.msra.mxu0 %v3300
        %v3302 = vand.u32 %v586, 4294901760
        %3303 = vmatprep.subr.mxu0 %v3302
        %v3304 = vand.u32 %v585, 4294901760
        %3305 = vmatpush2.msra.mxu0 %v3304
        %v3306 = vand.u32 %v582, 4294901760
        %3307 = vmatprep.subr.mxu0 %v3306
        %v3308 = vand.u32 %v581, 4294901760
        %3309 = vmatpush2.msra.mxu0 %v3308
        %v3310 = vand.u32 %v578, 4294901760
        %3311 = vmatprep.subr.mxu0 %v3310
        %v3312 = vand.u32 %v577, 4294901760
        %3313 = vmatpush2.msra.mxu0 %v3312
        %v3314 = vand.u32 %v508, 4294901760
        %3315 = vmatprep.mubr.f32.mxu0 %v3314
        %v3316 = vand.u32 %v507, 4294901760
        %3317 = vmatmul.mubr.f32.gmra.mxu0 %v3316
        %v3318 = vpop.f32.mrf.mxu0
        %v3319 = vadd.f32 %v3174, %v3318
        %v3320 = vpop.f32.mrf.mxu0
        %v3321 = vadd.f32 %v3176, %v3320
        %v3322 = vand.u32 %v510, 4294901760
        %3323 = vmatprep.mubr.f32.mxu0 %v3322
        %v3324 = vand.u32 %v509, 4294901760
        %3325 = vmatmul.mubr.f32.gmra.mxu0 %v3324
        %v3326 = vpop.f32.mrf.mxu0
        %v3327 = vadd.f32 %v3182, %v3326
        %v3328 = vpop.f32.mrf.mxu0
        %v3329 = vadd.f32 %v3184, %v3328
        %3330 = vdwg.mxu0
        %v3331 = vmax.f32 %v1973, 0.0
        %v3332 = vmax.f32 %v1975, 0.0
        %v3333 = vmax.f32 %v3319, 0.0
        %v3334 = vmax.f32 %v3321, 0.0
        %v3335 = vmax.f32 %v1981, 0.0
        %v3336 = vmax.f32 %v1983, 0.0
        %v3337 = vmax.f32 %v3327, 0.0
        %v3338 = vmax.f32 %v3329, 0.0
        %v3339 = vmul.f32 %v3331, %v3331
        %v3340 = vmul.f32 %v3332, %v3332
        %v3341 = vmul.f32 %v3333, %v3333
        %v3342 = vmul.f32 %v3334, %v3334
        %v3343 = vmul.f32 %v3335, %v3335
        %v3344 = vmul.f32 %v3336, %v3336
        %v3345 = vmul.f32 %v3337, %v3337
        %v3346 = vmul.f32 %v3338, %v3338
        %v3347 = vld [vmem:[%s335] sm:$0xff]
        %v3348 = vld [vmem:[%s335 + $0x8] sm:$0xff]
        %v3349 = vld [vmem:[%s335 + $0x10] sm:$0xff]
        %v3350 = vld [vmem:[%s335 + $0x18] sm:$0xff]
        %v3351 = vld [vmem:[%s335 + $0x20] sm:$0xff]
        %v3352 = vld [vmem:[%s335 + $0x28] sm:$0xff]
        %v3353 = vld [vmem:[%s335 + $0x30] sm:$0xff]
        %v3354 = vld [vmem:[%s335 + $0x38] sm:$0xff]
        %v3355 = vld [vmem:[%s335 + $0x40] sm:$0xff]
        %v3356 = vld [vmem:[%s335 + $0x48] sm:$0xff]
        %v3357 = vld [vmem:[%s335 + $0x50] sm:$0xff]
        %v3358 = vld [vmem:[%s335 + $0x58] sm:$0xff]
        %v3359 = vld [vmem:[%s335 + $0x60] sm:$0xff]
        %v3360 = vld [vmem:[%s335 + $0x68] sm:$0xff]
        %v3361 = vld [vmem:[%s335 + $0x70] sm:$0xff]
        %v3362 = vld [vmem:[%s335 + $0x78] sm:$0xff]
        %v3363 = vld [vmem:[%s335 + $0x80] sm:$0xff]
        %v3364 = vld [vmem:[%s335 + $0x88] sm:$0xff]
        %v3365 = vld [vmem:[%s335 + $0x90] sm:$0xff]
        %v3366 = vld [vmem:[%s335 + $0x98] sm:$0xff]
        %v3367 = vld [vmem:[%s335 + $0xa0] sm:$0xff]
        %v3368 = vld [vmem:[%s335 + $0xa8] sm:$0xff]
        %v3369 = vld [vmem:[%s335 + $0xb0] sm:$0xff]
        %v3370 = vld [vmem:[%s335 + $0xb8] sm:$0xff]
        %v3371 = vld [vmem:[%s335 + $0xc0] sm:$0xff]
        %v3372 = vld [vmem:[%s335 + $0xc8] sm:$0xff]
        %v3373 = vld [vmem:[%s335 + $0xd0] sm:$0xff]
        %v3374 = vld [vmem:[%s335 + $0xd8] sm:$0xff]
        %v3375 = vld [vmem:[%s335 + $0xe0] sm:$0xff]
        %v3376 = vld [vmem:[%s335 + $0xe8] sm:$0xff]
        %v3377 = vld [vmem:[%s335 + $0xf0] sm:$0xff]
        %v3378 = vld [vmem:[%s335 + $0xf8] sm:$0xff]
        %v3379 = vld [vmem:[%s335 + $0x100] sm:$0xff]
        %v3380 = vld [vmem:[%s335 + $0x108] sm:$0xff]
        %v3381 = vld [vmem:[%s335 + $0x110] sm:$0xff]
        %v3382 = vld [vmem:[%s335 + $0x118] sm:$0xff]
        %v3383 = vld [vmem:[%s335 + $0x120] sm:$0xff]
        %v3384 = vld [vmem:[%s335 + $0x128] sm:$0xff]
        %v3385 = vld [vmem:[%s335 + $0x130] sm:$0xff]
        %v3386 = vld [vmem:[%s335 + $0x138] sm:$0xff]
        %v3387 = vld [vmem:[%s335 + $0x140] sm:$0xff]
        %v3388 = vld [vmem:[%s335 + $0x148] sm:$0xff]
        %v3389 = vld [vmem:[%s335 + $0x150] sm:$0xff]
        %v3390 = vld [vmem:[%s335 + $0x158] sm:$0xff]
        %v3391 = vld [vmem:[%s335 + $0x160] sm:$0xff]
        %v3392 = vld [vmem:[%s335 + $0x168] sm:$0xff]
        %v3393 = vld [vmem:[%s335 + $0x170] sm:$0xff]
        %v3394 = vld [vmem:[%s335 + $0x178] sm:$0xff]
        %v3395 = vld [vmem:[%s335 + $0x180] sm:$0xff]
        %v3396 = vld [vmem:[%s335 + $0x188] sm:$0xff]
        %v3397 = vld [vmem:[%s335 + $0x190] sm:$0xff]
        %v3398 = vld [vmem:[%s335 + $0x198] sm:$0xff]
        %v3399 = vld [vmem:[%s335 + $0x1a0] sm:$0xff]
        %v3400 = vld [vmem:[%s335 + $0x1a8] sm:$0xff]
        %v3401 = vld [vmem:[%s335 + $0x1b0] sm:$0xff]
        %v3402 = vld [vmem:[%s335 + $0x1b8] sm:$0xff]
        %v3403 = vld [vmem:[%s335 + $0x1c0] sm:$0xff]
        %v3404 = vld [vmem:[%s335 + $0x1c8] sm:$0xff]
        %v3405 = vld [vmem:[%s335 + $0x1d0] sm:$0xff]
        %v3406 = vld [vmem:[%s335 + $0x1d8] sm:$0xff]
        %v3407 = vld [vmem:[%s335 + $0x1e0] sm:$0xff]
        %v3408 = vld [vmem:[%s335 + $0x1e8] sm:$0xff]
        %v3409 = vld [vmem:[%s335 + $0x1f0] sm:$0xff]
        %v3410 = vld [vmem:[%s335 + $0x1f8] sm:$0xff]
        %v3411 = vld [vmem:[%s335 + $0x200] sm:$0xff]
        %v3412 = vld [vmem:[%s335 + $0x208] sm:$0xff]
        %v3413 = vld [vmem:[%s335 + $0x210] sm:$0xff]
        %v3414 = vld [vmem:[%s335 + $0x218] sm:$0xff]
        %v3415 = vld [vmem:[%s335 + $0x220] sm:$0xff]
        %v3416 = vld [vmem:[%s335 + $0x228] sm:$0xff]
        %v3417 = vld [vmem:[%s335 + $0x230] sm:$0xff]
        %v3418 = vld [vmem:[%s335 + $0x238] sm:$0xff]
        %v3419 = vld [vmem:[%s335 + $0x240] sm:$0xff]
        %v3420 = vld [vmem:[%s335 + $0x248] sm:$0xff]
        %v3421 = vld [vmem:[%s335 + $0x250] sm:$0xff]
        %v3422 = vld [vmem:[%s335 + $0x258] sm:$0xff]
        %v3423 = vld [vmem:[%s335 + $0x260] sm:$0xff]
        %v3424 = vld [vmem:[%s335 + $0x268] sm:$0xff]
        %v3425 = vld [vmem:[%s335 + $0x270] sm:$0xff]
        %v3426 = vld [vmem:[%s335 + $0x278] sm:$0xff]
        %v3427 = vld [vmem:[%s335 + $0x280] sm:$0xff]
        %v3428 = vld [vmem:[%s335 + $0x288] sm:$0xff]
        %v3429 = vld [vmem:[%s335 + $0x290] sm:$0xff]
        %v3430 = vld [vmem:[%s335 + $0x298] sm:$0xff]
        %v3431 = vld [vmem:[%s335 + $0x2a0] sm:$0xff]
        %v3432 = vld [vmem:[%s335 + $0x2a8] sm:$0xff]
        %v3433 = vld [vmem:[%s335 + $0x2b0] sm:$0xff]
        %v3434 = vld [vmem:[%s335 + $0x2b8] sm:$0xff]
        %v3435 = vld [vmem:[%s335 + $0x2c0] sm:$0xff]
        %v3436 = vld [vmem:[%s335 + $0x2c8] sm:$0xff]
        %v3437 = vld [vmem:[%s335 + $0x2d0] sm:$0xff]
        %v3438 = vld [vmem:[%s335 + $0x2d8] sm:$0xff]
        %v3439 = vld [vmem:[%s335 + $0x2e0] sm:$0xff]
        %v3440 = vld [vmem:[%s335 + $0x2e8] sm:$0xff]
        %v3441 = vld [vmem:[%s335 + $0x2f0] sm:$0xff]
        %v3442 = vld [vmem:[%s335 + $0x2f8] sm:$0xff]
        %v3443 = vld [vmem:[%s335 + $0x300] sm:$0xff]
        %v3444 = vld [vmem:[%s335 + $0x308] sm:$0xff]
        %v3445 = vld [vmem:[%s335 + $0x310] sm:$0xff]
        %v3446 = vld [vmem:[%s335 + $0x318] sm:$0xff]
        %v3447 = vld [vmem:[%s335 + $0x320] sm:$0xff]
        %v3448 = vld [vmem:[%s335 + $0x328] sm:$0xff]
        %v3449 = vld [vmem:[%s335 + $0x330] sm:$0xff]
        %v3450 = vld [vmem:[%s335 + $0x338] sm:$0xff]
        %v3451 = vld [vmem:[%s335 + $0x340] sm:$0xff]
        %v3452 = vld [vmem:[%s335 + $0x348] sm:$0xff]
        %v3453 = vld [vmem:[%s335 + $0x350] sm:$0xff]
        %v3454 = vld [vmem:[%s335 + $0x358] sm:$0xff]
        %v3455 = vld [vmem:[%s335 + $0x360] sm:$0xff]
        %v3456 = vld [vmem:[%s335 + $0x368] sm:$0xff]
        %v3457 = vld [vmem:[%s335 + $0x370] sm:$0xff]
        %v3458 = vld [vmem:[%s335 + $0x378] sm:$0xff]
        %v3459 = vld [vmem:[%s335 + $0x380] sm:$0xff]
        %v3460 = vld [vmem:[%s335 + $0x388] sm:$0xff]
        %v3461 = vld [vmem:[%s335 + $0x390] sm:$0xff]
        %v3462 = vld [vmem:[%s335 + $0x398] sm:$0xff]
        %v3463 = vld [vmem:[%s335 + $0x3a0] sm:$0xff]
        %v3464 = vld [vmem:[%s335 + $0x3a8] sm:$0xff]
        %v3465 = vld [vmem:[%s335 + $0x3b0] sm:$0xff]
        %v3466 = vld [vmem:[%s335 + $0x3b8] sm:$0xff]
        %v3467 = vld [vmem:[%s335 + $0x3c0] sm:$0xff]
        %v3468 = vld [vmem:[%s335 + $0x3c8] sm:$0xff]
        %v3469 = vld [vmem:[%s335 + $0x3d0] sm:$0xff]
        %v3470 = vld [vmem:[%s335 + $0x3d8] sm:$0xff]
        %v3471 = vld [vmem:[%s335 + $0x3e0] sm:$0xff]
        %v3472 = vld [vmem:[%s335 + $0x3e8] sm:$0xff]
        %v3473 = vld [vmem:[%s335 + $0x3f0] sm:$0xff]
        %v3474 = vld [vmem:[%s335 + $0x3f8] sm:$0xff]
        %v3475 = vand.u32 %v3378, 4294901760
        %3476 = vmatprep.subr.mxu0 %v3475
        %v3477 = vand.u32 %v3377, 4294901760
        %3478 = vmatpush1.msra.mxu0 %v3477
        %v3479 = vand.u32 %v3376, 4294901760
        %3480 = vmatprep.subr.mxu0 %v3479
        %v3481 = vand.u32 %v3375, 4294901760
        %3482 = vmatpush1.msra.mxu0 %v3481
        %v3483 = vand.u32 %v3374, 4294901760
        %3484 = vmatprep.subr.mxu0 %v3483
        %v3485 = vand.u32 %v3373, 4294901760
        %3486 = vmatpush1.msra.mxu0 %v3485
        %v3487 = vand.u32 %v3372, 4294901760
        %3488 = vmatprep.subr.mxu0 %v3487
        %v3489 = vand.u32 %v3371, 4294901760
        %3490 = vmatpush1.msra.mxu0 %v3489
        %v3491 = vand.u32 %v3370, 4294901760
        %3492 = vmatprep.subr.mxu0 %v3491
        %v3493 = vand.u32 %v3369, 4294901760
        %3494 = vmatpush1.msra.mxu0 %v3493
        %v3495 = vand.u32 %v3368, 4294901760
        %3496 = vmatprep.subr.mxu0 %v3495
        %v3497 = vand.u32 %v3367, 4294901760
        %3498 = vmatpush1.msra.mxu0 %v3497
        %v3499 = vand.u32 %v3366, 4294901760
        %3500 = vmatprep.subr.mxu0 %v3499
        %v3501 = vand.u32 %v3365, 4294901760
        %3502 = vmatpush1.msra.mxu0 %v3501
        %v3503 = vand.u32 %v3364, 4294901760
        %3504 = vmatprep.subr.mxu0 %v3503
        %v3505 = vand.u32 %v3363, 4294901760
        %3506 = vmatpush1.msra.mxu0 %v3505
        %v3507 = vand.u32 %v3362, 4294901760
        %3508 = vmatprep.subr.mxu0 %v3507
        %v3509 = vand.u32 %v3361, 4294901760
        %3510 = vmatpush1.msra.mxu0 %v3509
        %v3511 = vand.u32 %v3360, 4294901760
        %3512 = vmatprep.subr.mxu0 %v3511
        %v3513 = vand.u32 %v3359, 4294901760
        %3514 = vmatpush1.msra.mxu0 %v3513
        %v3515 = vand.u32 %v3358, 4294901760
        %3516 = vmatprep.subr.mxu0 %v3515
        %v3517 = vand.u32 %v3357, 4294901760
        %3518 = vmatpush1.msra.mxu0 %v3517
        %v3519 = vand.u32 %v3356, 4294901760
        %3520 = vmatprep.subr.mxu0 %v3519
        %v3521 = vand.u32 %v3355, 4294901760
        %3522 = vmatpush1.msra.mxu0 %v3521
        %v3523 = vand.u32 %v3354, 4294901760
        %3524 = vmatprep.subr.mxu0 %v3523
        %v3525 = vand.u32 %v3353, 4294901760
        %3526 = vmatpush1.msra.mxu0 %v3525
        %v3527 = vand.u32 %v3352, 4294901760
        %3528 = vmatprep.subr.mxu0 %v3527
        %v3529 = vand.u32 %v3351, 4294901760
        %3530 = vmatpush1.msra.mxu0 %v3529
        %v3531 = vand.u32 %v3350, 4294901760
        %3532 = vmatprep.subr.mxu0 %v3531
        %v3533 = vand.u32 %v3349, 4294901760
        %3534 = vmatpush1.msra.mxu0 %v3533
        %v3535 = vand.u32 %v3348, 4294901760
        %3536 = vmatprep.subr.mxu0 %v3535
        %v3537 = vand.u32 %v3347, 4294901760
        %3538 = vmatpush1.msra.mxu0 %v3537
        %v3539 = vand.u32 %v3410, 4294901760
        %3540 = vmatprep.subr.mxu0 %v3539
        %v3541 = vand.u32 %v3409, 4294901760
        %3542 = vmatpush2.msra.mxu0 %v3541
        %v3543 = vand.u32 %v3408, 4294901760
        %3544 = vmatprep.subr.mxu0 %v3543
        %v3545 = vand.u32 %v3407, 4294901760
        %3546 = vmatpush2.msra.mxu0 %v3545
        %v3547 = vand.u32 %v3406, 4294901760
        %3548 = vmatprep.subr.mxu0 %v3547
        %v3549 = vand.u32 %v3405, 4294901760
        %3550 = vmatpush2.msra.mxu0 %v3549
        %v3551 = vand.u32 %v3404, 4294901760
        %3552 = vmatprep.subr.mxu0 %v3551
        %v3553 = vand.u32 %v3403, 4294901760
        %3554 = vmatpush2.msra.mxu0 %v3553
        %v3555 = vand.u32 %v3402, 4294901760
        %3556 = vmatprep.subr.mxu0 %v3555
        %v3557 = vand.u32 %v3401, 4294901760
        %3558 = vmatpush2.msra.mxu0 %v3557
        %v3559 = vand.u32 %v3400, 4294901760
        %3560 = vmatprep.subr.mxu0 %v3559
        %v3561 = vand.u32 %v3399, 4294901760
        %3562 = vmatpush2.msra.mxu0 %v3561
        %v3563 = vand.u32 %v3398, 4294901760
        %3564 = vmatprep.subr.mxu0 %v3563
        %v3565 = vand.u32 %v3397, 4294901760
        %3566 = vmatpush2.msra.mxu0 %v3565
        %v3567 = vand.u32 %v3396, 4294901760
        %3568 = vmatprep.subr.mxu0 %v3567
        %v3569 = vand.u32 %v3395, 4294901760
        %3570 = vmatpush2.msra.mxu0 %v3569
        %v3571 = vand.u32 %v3394, 4294901760
        %3572 = vmatprep.subr.mxu0 %v3571
        %v3573 = vand.u32 %v3393, 4294901760
        %3574 = vmatpush2.msra.mxu0 %v3573
        %v3575 = vand.u32 %v3392, 4294901760
        %3576 = vmatprep.subr.mxu0 %v3575
        %v3577 = vand.u32 %v3391, 4294901760
        %3578 = vmatpush2.msra.mxu0 %v3577
        %v3579 = vand.u32 %v3390, 4294901760
        %3580 = vmatprep.subr.mxu0 %v3579
        %v3581 = vand.u32 %v3389, 4294901760
        %3582 = vmatpush2.msra.mxu0 %v3581
        %v3583 = vand.u32 %v3388, 4294901760
        %3584 = vmatprep.subr.mxu0 %v3583
        %v3585 = vand.u32 %v3387, 4294901760
        %3586 = vmatpush2.msra.mxu0 %v3585
        %v3587 = vand.u32 %v3386, 4294901760
        %3588 = vmatprep.subr.mxu0 %v3587
        %v3589 = vand.u32 %v3385, 4294901760
        %3590 = vmatpush2.msra.mxu0 %v3589
        %v3591 = vand.u32 %v3384, 4294901760
        %3592 = vmatprep.subr.mxu0 %v3591
        %v3593 = vand.u32 %v3383, 4294901760
        %3594 = vmatpush2.msra.mxu0 %v3593
        %v3595 = vand.u32 %v3382, 4294901760
        %3596 = vmatprep.subr.mxu0 %v3595
        %v3597 = vand.u32 %v3381, 4294901760
        %3598 = vmatpush2.msra.mxu0 %v3597
        %v3599 = vand.u32 %v3380, 4294901760
        %3600 = vmatprep.subr.mxu0 %v3599
        %v3601 = vand.u32 %v3379, 4294901760
        %3602 = vmatpush2.msra.mxu0 %v3601
        %v3603 = vand.u32 %v3340, 4294901760
        %v3604 = vsub.f32 %v3340, %v3603
        %v3605 = vand.u32 %v3604, 4294901760
        %v3606 = vsub.f32 %v3604, %v3605
        %v3607 = vand.u32 %v3606, 4294901760
        %3608 = vmatprep.mubr.f32.mxu0 %v3607
        %v3609 = vand.u32 %v3339, 4294901760
        %v3610 = vsub.f32 %v3339, %v3609
        %v3611 = vand.u32 %v3610, 4294901760
        %v3612 = vsub.f32 %v3610, %v3611
        %v3613 = vand.u32 %v3612, 4294901760
        %3614 = vmatmul.mubr.f32.gmra.mxu0 %v3613
        %v3615 = vpop.f32.mrf.mxu0
        %v3616 = vadd.f32 0.0, %v3615
        %v3617 = vpop.f32.mrf.mxu0
        %v3618 = vadd.f32 0.0, %v3617
        %v3619 = vand.u32 %v3344, 4294901760
        %v3620 = vsub.f32 %v3344, %v3619
        %v3621 = vand.u32 %v3620, 4294901760
        %v3622 = vsub.f32 %v3620, %v3621
        %v3623 = vand.u32 %v3622, 4294901760
        %3624 = vmatprep.mubr.f32.mxu0 %v3623
        %v3625 = vand.u32 %v3343, 4294901760
        %v3626 = vsub.f32 %v3343, %v3625
        %v3627 = vand.u32 %v3626, 4294901760
        %v3628 = vsub.f32 %v3626, %v3627
        %v3629 = vand.u32 %v3628, 4294901760
        %3630 = vmatmul.mubr.f32.gmra.mxu0 %v3629
        %v3631 = vpop.f32.mrf.mxu0
        %v3632 = vadd.f32 0.0, %v3631
        %v3633 = vpop.f32.mrf.mxu0
        %v3634 = vadd.f32 0.0, %v3633
        %3635 = vdwg.mxu0
        %v3636 = vand.u32 %v3378, 4294901760
        %v3637 = vsub.f32 %v3378, %v3636
        %v3638 = vand.u32 %v3637, 4294901760
        %v3639 = vsub.f32 %v3637, %v3638
        %v3640 = vand.u32 %v3639, 4294901760
        %3641 = vmatprep.subr.mxu0 %v3640
        %v3642 = vand.u32 %v3377, 4294901760
        %v3643 = vsub.f32 %v3377, %v3642
        %v3644 = vand.u32 %v3643, 4294901760
        %v3645 = vsub.f32 %v3643, %v3644
        %v3646 = vand.u32 %v3645, 4294901760
        %3647 = vmatpush1.msra.mxu0 %v3646
        %v3648 = vand.u32 %v3376, 4294901760
        %v3649 = vsub.f32 %v3376, %v3648
        %v3650 = vand.u32 %v3649, 4294901760
        %v3651 = vsub.f32 %v3649, %v3650
        %v3652 = vand.u32 %v3651, 4294901760
        %3653 = vmatprep.subr.mxu0 %v3652
        %v3654 = vand.u32 %v3375, 4294901760
        %v3655 = vsub.f32 %v3375, %v3654
        %v3656 = vand.u32 %v3655, 4294901760
        %v3657 = vsub.f32 %v3655, %v3656
        %v3658 = vand.u32 %v3657, 4294901760
        %3659 = vmatpush1.msra.mxu0 %v3658
        %v3660 = vand.u32 %v3374, 4294901760
        %v3661 = vsub.f32 %v3374, %v3660
        %v3662 = vand.u32 %v3661, 4294901760
        %v3663 = vsub.f32 %v3661, %v3662
        %v3664 = vand.u32 %v3663, 4294901760
        %3665 = vmatprep.subr.mxu0 %v3664
        %v3666 = vand.u32 %v3373, 4294901760
        %v3667 = vsub.f32 %v3373, %v3666
        %v3668 = vand.u32 %v3667, 4294901760
        %v3669 = vsub.f32 %v3667, %v3668
        %v3670 = vand.u32 %v3669, 4294901760
        %3671 = vmatpush1.msra.mxu0 %v3670
        %v3672 = vand.u32 %v3372, 4294901760
        %v3673 = vsub.f32 %v3372, %v3672
        %v3674 = vand.u32 %v3673, 4294901760
        %v3675 = vsub.f32 %v3673, %v3674
        %v3676 = vand.u32 %v3675, 4294901760
        %3677 = vmatprep.subr.mxu0 %v3676
        %v3678 = vand.u32 %v3371, 4294901760
        %v3679 = vsub.f32 %v3371, %v3678
        %v3680 = vand.u32 %v3679, 4294901760
        %v3681 = vsub.f32 %v3679, %v3680
        %v3682 = vand.u32 %v3681, 4294901760
        %3683 = vmatpush1.msra.mxu0 %v3682
        %v3684 = vand.u32 %v3370, 4294901760
        %v3685 = vsub.f32 %v3370, %v3684
        %v3686 = vand.u32 %v3685, 4294901760
        %v3687 = vsub.f32 %v3685, %v3686
        %v3688 = vand.u32 %v3687, 4294901760
        %3689 = vmatprep.subr.mxu0 %v3688
        %v3690 = vand.u32 %v3369, 4294901760
        %v3691 = vsub.f32 %v3369, %v3690
        %v3692 = vand.u32 %v3691, 4294901760
        %v3693 = vsub.f32 %v3691, %v3692
        %v3694 = vand.u32 %v3693, 4294901760
        %3695 = vmatpush1.msra.mxu0 %v3694
        %v3696 = vand.u32 %v3368, 4294901760
        %v3697 = vsub.f32 %v3368, %v3696
        %v3698 = vand.u32 %v3697, 4294901760
        %v3699 = vsub.f32 %v3697, %v3698
        %v3700 = vand.u32 %v3699, 4294901760
        %3701 = vmatprep.subr.mxu0 %v3700
        %v3702 = vand.u32 %v3367, 4294901760
        %v3703 = vsub.f32 %v3367, %v3702
        %v3704 = vand.u32 %v3703, 4294901760
        %v3705 = vsub.f32 %v3703, %v3704
        %v3706 = vand.u32 %v3705, 4294901760
        %3707 = vmatpush1.msra.mxu0 %v3706
        %v3708 = vand.u32 %v3366, 4294901760
        %v3709 = vsub.f32 %v3366, %v3708
        %v3710 = vand.u32 %v3709, 4294901760
        %v3711 = vsub.f32 %v3709, %v3710
        %v3712 = vand.u32 %v3711, 4294901760
        %3713 = vmatprep.subr.mxu0 %v3712
        %v3714 = vand.u32 %v3365, 4294901760
        %v3715 = vsub.f32 %v3365, %v3714
        %v3716 = vand.u32 %v3715, 4294901760
        %v3717 = vsub.f32 %v3715, %v3716
        %v3718 = vand.u32 %v3717, 4294901760
        %3719 = vmatpush1.msra.mxu0 %v3718
        %v3720 = vand.u32 %v3364, 4294901760
        %v3721 = vsub.f32 %v3364, %v3720
        %v3722 = vand.u32 %v3721, 4294901760
        %v3723 = vsub.f32 %v3721, %v3722
        %v3724 = vand.u32 %v3723, 4294901760
        %3725 = vmatprep.subr.mxu0 %v3724
        %v3726 = vand.u32 %v3363, 4294901760
        %v3727 = vsub.f32 %v3363, %v3726
        %v3728 = vand.u32 %v3727, 4294901760
        %v3729 = vsub.f32 %v3727, %v3728
        %v3730 = vand.u32 %v3729, 4294901760
        %3731 = vmatpush1.msra.mxu0 %v3730
        %v3732 = vand.u32 %v3362, 4294901760
        %v3733 = vsub.f32 %v3362, %v3732
        %v3734 = vand.u32 %v3733, 4294901760
        %v3735 = vsub.f32 %v3733, %v3734
        %v3736 = vand.u32 %v3735, 4294901760
        %3737 = vmatprep.subr.mxu0 %v3736
        %v3738 = vand.u32 %v3361, 4294901760
        %v3739 = vsub.f32 %v3361, %v3738
        %v3740 = vand.u32 %v3739, 4294901760
        %v3741 = vsub.f32 %v3739, %v3740
        %v3742 = vand.u32 %v3741, 4294901760
        %3743 = vmatpush1.msra.mxu0 %v3742
        %v3744 = vand.u32 %v3360, 4294901760
        %v3745 = vsub.f32 %v3360, %v3744
        %v3746 = vand.u32 %v3745, 4294901760
        %v3747 = vsub.f32 %v3745, %v3746
        %v3748 = vand.u32 %v3747, 4294901760
        %3749 = vmatprep.subr.mxu0 %v3748
        %v3750 = vand.u32 %v3359, 4294901760
        %v3751 = vsub.f32 %v3359, %v3750
        %v3752 = vand.u32 %v3751, 4294901760
        %v3753 = vsub.f32 %v3751, %v3752
        %v3754 = vand.u32 %v3753, 4294901760
        %3755 = vmatpush1.msra.mxu0 %v3754
        %v3756 = vand.u32 %v3358, 4294901760
        %v3757 = vsub.f32 %v3358, %v3756
        %v3758 = vand.u32 %v3757, 4294901760
        %v3759 = vsub.f32 %v3757, %v3758
        %v3760 = vand.u32 %v3759, 4294901760
        %3761 = vmatprep.subr.mxu0 %v3760
        %v3762 = vand.u32 %v3357, 4294901760
        %v3763 = vsub.f32 %v3357, %v3762
        %v3764 = vand.u32 %v3763, 4294901760
        %v3765 = vsub.f32 %v3763, %v3764
        %v3766 = vand.u32 %v3765, 4294901760
        %3767 = vmatpush1.msra.mxu0 %v3766
        %v3768 = vand.u32 %v3356, 4294901760
        %v3769 = vsub.f32 %v3356, %v3768
        %v3770 = vand.u32 %v3769, 4294901760
        %v3771 = vsub.f32 %v3769, %v3770
        %v3772 = vand.u32 %v3771, 4294901760
        %3773 = vmatprep.subr.mxu0 %v3772
        %v3774 = vand.u32 %v3355, 4294901760
        %v3775 = vsub.f32 %v3355, %v3774
        %v3776 = vand.u32 %v3775, 4294901760
        %v3777 = vsub.f32 %v3775, %v3776
        %v3778 = vand.u32 %v3777, 4294901760
        %3779 = vmatpush1.msra.mxu0 %v3778
        %v3780 = vand.u32 %v3354, 4294901760
        %v3781 = vsub.f32 %v3354, %v3780
        %v3782 = vand.u32 %v3781, 4294901760
        %v3783 = vsub.f32 %v3781, %v3782
        %v3784 = vand.u32 %v3783, 4294901760
        %3785 = vmatprep.subr.mxu0 %v3784
        %v3786 = vand.u32 %v3353, 4294901760
        %v3787 = vsub.f32 %v3353, %v3786
        %v3788 = vand.u32 %v3787, 4294901760
        %v3789 = vsub.f32 %v3787, %v3788
        %v3790 = vand.u32 %v3789, 4294901760
        %3791 = vmatpush1.msra.mxu0 %v3790
        %v3792 = vand.u32 %v3352, 4294901760
        %v3793 = vsub.f32 %v3352, %v3792
        %v3794 = vand.u32 %v3793, 4294901760
        %v3795 = vsub.f32 %v3793, %v3794
        %v3796 = vand.u32 %v3795, 4294901760
        %3797 = vmatprep.subr.mxu0 %v3796
        %v3798 = vand.u32 %v3351, 4294901760
        %v3799 = vsub.f32 %v3351, %v3798
        %v3800 = vand.u32 %v3799, 4294901760
        %v3801 = vsub.f32 %v3799, %v3800
        %v3802 = vand.u32 %v3801, 4294901760
        %3803 = vmatpush1.msra.mxu0 %v3802
        %v3804 = vand.u32 %v3350, 4294901760
        %v3805 = vsub.f32 %v3350, %v3804
        %v3806 = vand.u32 %v3805, 4294901760
        %v3807 = vsub.f32 %v3805, %v3806
        %v3808 = vand.u32 %v3807, 4294901760
        %3809 = vmatprep.subr.mxu0 %v3808
        %v3810 = vand.u32 %v3349, 4294901760
        %v3811 = vsub.f32 %v3349, %v3810
        %v3812 = vand.u32 %v3811, 4294901760
        %v3813 = vsub.f32 %v3811, %v3812
        %v3814 = vand.u32 %v3813, 4294901760
        %3815 = vmatpush1.msra.mxu0 %v3814
        %v3816 = vand.u32 %v3348, 4294901760
        %v3817 = vsub.f32 %v3348, %v3816
        %v3818 = vand.u32 %v3817, 4294901760
        %v3819 = vsub.f32 %v3817, %v3818
        %v3820 = vand.u32 %v3819, 4294901760
        %3821 = vmatprep.subr.mxu0 %v3820
        %v3822 = vand.u32 %v3347, 4294901760
        %v3823 = vsub.f32 %v3347, %v3822
        %v3824 = vand.u32 %v3823, 4294901760
        %v3825 = vsub.f32 %v3823, %v3824
        %v3826 = vand.u32 %v3825, 4294901760
        %3827 = vmatpush1.msra.mxu0 %v3826
        %v3828 = vand.u32 %v3410, 4294901760
        %v3829 = vsub.f32 %v3410, %v3828
        %v3830 = vand.u32 %v3829, 4294901760
        %v3831 = vsub.f32 %v3829, %v3830
        %v3832 = vand.u32 %v3831, 4294901760
        %3833 = vmatprep.subr.mxu0 %v3832
        %v3834 = vand.u32 %v3409, 4294901760
        %v3835 = vsub.f32 %v3409, %v3834
        %v3836 = vand.u32 %v3835, 4294901760
        %v3837 = vsub.f32 %v3835, %v3836
        %v3838 = vand.u32 %v3837, 4294901760
        %3839 = vmatpush2.msra.mxu0 %v3838
        %v3840 = vand.u32 %v3408, 4294901760
        %v3841 = vsub.f32 %v3408, %v3840
        %v3842 = vand.u32 %v3841, 4294901760
        %v3843 = vsub.f32 %v3841, %v3842
        %v3844 = vand.u32 %v3843, 4294901760
        %3845 = vmatprep.subr.mxu0 %v3844
        %v3846 = vand.u32 %v3407, 4294901760
        %v3847 = vsub.f32 %v3407, %v3846
        %v3848 = vand.u32 %v3847, 4294901760
        %v3849 = vsub.f32 %v3847, %v3848
        %v3850 = vand.u32 %v3849, 4294901760
        %3851 = vmatpush2.msra.mxu0 %v3850
        %v3852 = vand.u32 %v3406, 4294901760
        %v3853 = vsub.f32 %v3406, %v3852
        %v3854 = vand.u32 %v3853, 4294901760
        %v3855 = vsub.f32 %v3853, %v3854
        %v3856 = vand.u32 %v3855, 4294901760
        %3857 = vmatprep.subr.mxu0 %v3856
        %v3858 = vand.u32 %v3405, 4294901760
        %v3859 = vsub.f32 %v3405, %v3858
        %v3860 = vand.u32 %v3859, 4294901760
        %v3861 = vsub.f32 %v3859, %v3860
        %v3862 = vand.u32 %v3861, 4294901760
        %3863 = vmatpush2.msra.mxu0 %v3862
        %v3864 = vand.u32 %v3404, 4294901760
        %v3865 = vsub.f32 %v3404, %v3864
        %v3866 = vand.u32 %v3865, 4294901760
        %v3867 = vsub.f32 %v3865, %v3866
        %v3868 = vand.u32 %v3867, 4294901760
        %3869 = vmatprep.subr.mxu0 %v3868
        %v3870 = vand.u32 %v3403, 4294901760
        %v3871 = vsub.f32 %v3403, %v3870
        %v3872 = vand.u32 %v3871, 4294901760
        %v3873 = vsub.f32 %v3871, %v3872
        %v3874 = vand.u32 %v3873, 4294901760
        %3875 = vmatpush2.msra.mxu0 %v3874
        %v3876 = vand.u32 %v3402, 4294901760
        %v3877 = vsub.f32 %v3402, %v3876
        %v3878 = vand.u32 %v3877, 4294901760
        %v3879 = vsub.f32 %v3877, %v3878
        %v3880 = vand.u32 %v3879, 4294901760
        %3881 = vmatprep.subr.mxu0 %v3880
        %v3882 = vand.u32 %v3401, 4294901760
        %v3883 = vsub.f32 %v3401, %v3882
        %v3884 = vand.u32 %v3883, 4294901760
        %v3885 = vsub.f32 %v3883, %v3884
        %v3886 = vand.u32 %v3885, 4294901760
        %3887 = vmatpush2.msra.mxu0 %v3886
        %v3888 = vand.u32 %v3400, 4294901760
        %v3889 = vsub.f32 %v3400, %v3888
        %v3890 = vand.u32 %v3889, 4294901760
        %v3891 = vsub.f32 %v3889, %v3890
        %v3892 = vand.u32 %v3891, 4294901760
        %3893 = vmatprep.subr.mxu0 %v3892
        %v3894 = vand.u32 %v3399, 4294901760
        %v3895 = vsub.f32 %v3399, %v3894
        %v3896 = vand.u32 %v3895, 4294901760
        %v3897 = vsub.f32 %v3895, %v3896
        %v3898 = vand.u32 %v3897, 4294901760
        %3899 = vmatpush2.msra.mxu0 %v3898
        %v3900 = vand.u32 %v3398, 4294901760
        %v3901 = vsub.f32 %v3398, %v3900
        %v3902 = vand.u32 %v3901, 4294901760
        %v3903 = vsub.f32 %v3901, %v3902
        %v3904 = vand.u32 %v3903, 4294901760
        %3905 = vmatprep.subr.mxu0 %v3904
        %v3906 = vand.u32 %v3397, 4294901760
        %v3907 = vsub.f32 %v3397, %v3906
        %v3908 = vand.u32 %v3907, 4294901760
        %v3909 = vsub.f32 %v3907, %v3908
        %v3910 = vand.u32 %v3909, 4294901760
        %3911 = vmatpush2.msra.mxu0 %v3910
        %v3912 = vand.u32 %v3396, 4294901760
        %v3913 = vsub.f32 %v3396, %v3912
        %v3914 = vand.u32 %v3913, 4294901760
        %v3915 = vsub.f32 %v3913, %v3914
        %v3916 = vand.u32 %v3915, 4294901760
        %3917 = vmatprep.subr.mxu0 %v3916
        %v3918 = vand.u32 %v3395, 4294901760
        %v3919 = vsub.f32 %v3395, %v3918
        %v3920 = vand.u32 %v3919, 4294901760
        %v3921 = vsub.f32 %v3919, %v3920
        %v3922 = vand.u32 %v3921, 4294901760
        %3923 = vmatpush2.msra.mxu0 %v3922
        %v3924 = vand.u32 %v3394, 4294901760
        %v3925 = vsub.f32 %v3394, %v3924
        %v3926 = vand.u32 %v3925, 4294901760
        %v3927 = vsub.f32 %v3925, %v3926
        %v3928 = vand.u32 %v3927, 4294901760
        %3929 = vmatprep.subr.mxu0 %v3928
        %v3930 = vand.u32 %v3393, 4294901760
        %v3931 = vsub.f32 %v3393, %v3930
        %v3932 = vand.u32 %v3931, 4294901760
        %v3933 = vsub.f32 %v3931, %v3932
        %v3934 = vand.u32 %v3933, 4294901760
        %3935 = vmatpush2.msra.mxu0 %v3934
        %v3936 = vand.u32 %v3392, 4294901760
        %v3937 = vsub.f32 %v3392, %v3936
        %v3938 = vand.u32 %v3937, 4294901760
        %v3939 = vsub.f32 %v3937, %v3938
        %v3940 = vand.u32 %v3939, 4294901760
        %3941 = vmatprep.subr.mxu0 %v3940
        %v3942 = vand.u32 %v3391, 4294901760
        %v3943 = vsub.f32 %v3391, %v3942
        %v3944 = vand.u32 %v3943, 4294901760
        %v3945 = vsub.f32 %v3943, %v3944
        %v3946 = vand.u32 %v3945, 4294901760
        %3947 = vmatpush2.msra.mxu0 %v3946
        %v3948 = vand.u32 %v3390, 4294901760
        %v3949 = vsub.f32 %v3390, %v3948
        %v3950 = vand.u32 %v3949, 4294901760
        %v3951 = vsub.f32 %v3949, %v3950
        %v3952 = vand.u32 %v3951, 4294901760
        %3953 = vmatprep.subr.mxu0 %v3952
        %v3954 = vand.u32 %v3389, 4294901760
        %v3955 = vsub.f32 %v3389, %v3954
        %v3956 = vand.u32 %v3955, 4294901760
        %v3957 = vsub.f32 %v3955, %v3956
        %v3958 = vand.u32 %v3957, 4294901760
        %3959 = vmatpush2.msra.mxu0 %v3958
        %v3960 = vand.u32 %v3388, 4294901760
        %v3961 = vsub.f32 %v3388, %v3960
        %v3962 = vand.u32 %v3961, 4294901760
        %v3963 = vsub.f32 %v3961, %v3962
        %v3964 = vand.u32 %v3963, 4294901760
        %3965 = vmatprep.subr.mxu0 %v3964
        %v3966 = vand.u32 %v3387, 4294901760
        %v3967 = vsub.f32 %v3387, %v3966
        %v3968 = vand.u32 %v3967, 4294901760
        %v3969 = vsub.f32 %v3967, %v3968
        %v3970 = vand.u32 %v3969, 4294901760
        %3971 = vmatpush2.msra.mxu0 %v3970
        %v3972 = vand.u32 %v3386, 4294901760
        %v3973 = vsub.f32 %v3386, %v3972
        %v3974 = vand.u32 %v3973, 4294901760
        %v3975 = vsub.f32 %v3973, %v3974
        %v3976 = vand.u32 %v3975, 4294901760
        %3977 = vmatprep.subr.mxu0 %v3976
        %v3978 = vand.u32 %v3385, 4294901760
        %v3979 = vsub.f32 %v3385, %v3978
        %v3980 = vand.u32 %v3979, 4294901760
        %v3981 = vsub.f32 %v3979, %v3980
        %v3982 = vand.u32 %v3981, 4294901760
        %3983 = vmatpush2.msra.mxu0 %v3982
        %v3984 = vand.u32 %v3384, 4294901760
        %v3985 = vsub.f32 %v3384, %v3984
        %v3986 = vand.u32 %v3985, 4294901760
        %v3987 = vsub.f32 %v3985, %v3986
        %v3988 = vand.u32 %v3987, 4294901760
        %3989 = vmatprep.subr.mxu0 %v3988
        %v3990 = vand.u32 %v3383, 4294901760
        %v3991 = vsub.f32 %v3383, %v3990
        %v3992 = vand.u32 %v3991, 4294901760
        %v3993 = vsub.f32 %v3991, %v3992
        %v3994 = vand.u32 %v3993, 4294901760
        %3995 = vmatpush2.msra.mxu0 %v3994
        %v3996 = vand.u32 %v3382, 4294901760
        %v3997 = vsub.f32 %v3382, %v3996
        %v3998 = vand.u32 %v3997, 4294901760
        %v3999 = vsub.f32 %v3997, %v3998
        %v4000 = vand.u32 %v3999, 4294901760
        %4001 = vmatprep.subr.mxu0 %v4000
        %v4002 = vand.u32 %v3381, 4294901760
        %v4003 = vsub.f32 %v3381, %v4002
        %v4004 = vand.u32 %v4003, 4294901760
        %v4005 = vsub.f32 %v4003, %v4004
        %v4006 = vand.u32 %v4005, 4294901760
        %4007 = vmatpush2.msra.mxu0 %v4006
        %v4008 = vand.u32 %v3380, 4294901760
        %v4009 = vsub.f32 %v3380, %v4008
        %v4010 = vand.u32 %v4009, 4294901760
        %v4011 = vsub.f32 %v4009, %v4010
        %v4012 = vand.u32 %v4011, 4294901760
        %4013 = vmatprep.subr.mxu0 %v4012
        %v4014 = vand.u32 %v3379, 4294901760
        %v4015 = vsub.f32 %v3379, %v4014
        %v4016 = vand.u32 %v4015, 4294901760
        %v4017 = vsub.f32 %v4015, %v4016
        %v4018 = vand.u32 %v4017, 4294901760
        %4019 = vmatpush2.msra.mxu0 %v4018
        %v4020 = vand.u32 %v3340, 4294901760
        %4021 = vmatprep.mubr.f32.mxu0 %v4020
        %v4022 = vand.u32 %v3339, 4294901760
        %4023 = vmatmul.mubr.f32.gmra.mxu0 %v4022
        %v4024 = vpop.f32.mrf.mxu0
        %v4025 = vadd.f32 %v3616, %v4024
        %v4026 = vpop.f32.mrf.mxu0
        %v4027 = vadd.f32 %v3618, %v4026
        %v4028 = vand.u32 %v3344, 4294901760
        %4029 = vmatprep.mubr.f32.mxu0 %v4028
        %v4030 = vand.u32 %v3343, 4294901760
        %4031 = vmatmul.mubr.f32.gmra.mxu0 %v4030
        %v4032 = vpop.f32.mrf.mxu0
        %v4033 = vadd.f32 %v3632, %v4032
        %v4034 = vpop.f32.mrf.mxu0
        %v4035 = vadd.f32 %v3634, %v4034
        %4036 = vdwg.mxu0
        %v4037 = vand.u32 %v3378, 4294901760
        %v4038 = vsub.f32 %v3378, %v4037
        %4039 = vmatprep.subr.mxu0 %v4038
        %v4040 = vand.u32 %v3377, 4294901760
        %v4041 = vsub.f32 %v3377, %v4040
        %4042 = vmatpush1.msra.mxu0 %v4041
        %v4043 = vand.u32 %v3376, 4294901760
        %v4044 = vsub.f32 %v3376, %v4043
        %4045 = vmatprep.subr.mxu0 %v4044
        %v4046 = vand.u32 %v3375, 4294901760
        %v4047 = vsub.f32 %v3375, %v4046
        %4048 = vmatpush1.msra.mxu0 %v4047
        %v4049 = vand.u32 %v3374, 4294901760
        %v4050 = vsub.f32 %v3374, %v4049
        %4051 = vmatprep.subr.mxu0 %v4050
        %v4052 = vand.u32 %v3373, 4294901760
        %v4053 = vsub.f32 %v3373, %v4052
        %4054 = vmatpush1.msra.mxu0 %v4053
        %v4055 = vand.u32 %v3372, 4294901760
        %v4056 = vsub.f32 %v3372, %v4055
        %4057 = vmatprep.subr.mxu0 %v4056
        %v4058 = vand.u32 %v3371, 4294901760
        %v4059 = vsub.f32 %v3371, %v4058
        %4060 = vmatpush1.msra.mxu0 %v4059
        %v4061 = vand.u32 %v3370, 4294901760
        %v4062 = vsub.f32 %v3370, %v4061
        %4063 = vmatprep.subr.mxu0 %v4062
        %v4064 = vand.u32 %v3369, 4294901760
        %v4065 = vsub.f32 %v3369, %v4064
        %4066 = vmatpush1.msra.mxu0 %v4065
        %v4067 = vand.u32 %v3368, 4294901760
        %v4068 = vsub.f32 %v3368, %v4067
        %4069 = vmatprep.subr.mxu0 %v4068
        %v4070 = vand.u32 %v3367, 4294901760
        %v4071 = vsub.f32 %v3367, %v4070
        %4072 = vmatpush1.msra.mxu0 %v4071
        %v4073 = vand.u32 %v3366, 4294901760
        %v4074 = vsub.f32 %v3366, %v4073
        %4075 = vmatprep.subr.mxu0 %v4074
        %v4076 = vand.u32 %v3365, 4294901760
        %v4077 = vsub.f32 %v3365, %v4076
        %4078 = vmatpush1.msra.mxu0 %v4077
        %v4079 = vand.u32 %v3364, 4294901760
        %v4080 = vsub.f32 %v3364, %v4079
        %4081 = vmatprep.subr.mxu0 %v4080
        %v4082 = vand.u32 %v3363, 4294901760
        %v4083 = vsub.f32 %v3363, %v4082
        %4084 = vmatpush1.msra.mxu0 %v4083
        %v4085 = vand.u32 %v3362, 4294901760
        %v4086 = vsub.f32 %v3362, %v4085
        %4087 = vmatprep.subr.mxu0 %v4086
        %v4088 = vand.u32 %v3361, 4294901760
        %v4089 = vsub.f32 %v3361, %v4088
        %4090 = vmatpush1.msra.mxu0 %v4089
        %v4091 = vand.u32 %v3360, 4294901760
        %v4092 = vsub.f32 %v3360, %v4091
        %4093 = vmatprep.subr.mxu0 %v4092
        %v4094 = vand.u32 %v3359, 4294901760
        %v4095 = vsub.f32 %v3359, %v4094
        %4096 = vmatpush1.msra.mxu0 %v4095
        %v4097 = vand.u32 %v3358, 4294901760
        %v4098 = vsub.f32 %v3358, %v4097
        %4099 = vmatprep.subr.mxu0 %v4098
        %v4100 = vand.u32 %v3357, 4294901760
        %v4101 = vsub.f32 %v3357, %v4100
        %4102 = vmatpush1.msra.mxu0 %v4101
        %v4103 = vand.u32 %v3356, 4294901760
        %v4104 = vsub.f32 %v3356, %v4103
        %4105 = vmatprep.subr.mxu0 %v4104
        %v4106 = vand.u32 %v3355, 4294901760
        %v4107 = vsub.f32 %v3355, %v4106
        %4108 = vmatpush1.msra.mxu0 %v4107
        %v4109 = vand.u32 %v3354, 4294901760
        %v4110 = vsub.f32 %v3354, %v4109
        %4111 = vmatprep.subr.mxu0 %v4110
        %v4112 = vand.u32 %v3353, 4294901760
        %v4113 = vsub.f32 %v3353, %v4112
        %4114 = vmatpush1.msra.mxu0 %v4113
        %v4115 = vand.u32 %v3352, 4294901760
        %v4116 = vsub.f32 %v3352, %v4115
        %4117 = vmatprep.subr.mxu0 %v4116
        %v4118 = vand.u32 %v3351, 4294901760
        %v4119 = vsub.f32 %v3351, %v4118
        %4120 = vmatpush1.msra.mxu0 %v4119
        %v4121 = vand.u32 %v3350, 4294901760
        %v4122 = vsub.f32 %v3350, %v4121
        %4123 = vmatprep.subr.mxu0 %v4122
        %v4124 = vand.u32 %v3349, 4294901760
        %v4125 = vsub.f32 %v3349, %v4124
        %4126 = vmatpush1.msra.mxu0 %v4125
        %v4127 = vand.u32 %v3348, 4294901760
        %v4128 = vsub.f32 %v3348, %v4127
        %4129 = vmatprep.subr.mxu0 %v4128
        %v4130 = vand.u32 %v3347, 4294901760
        %v4131 = vsub.f32 %v3347, %v4130
        %4132 = vmatpush1.msra.mxu0 %v4131
        %v4133 = vand.u32 %v3410, 4294901760
        %v4134 = vsub.f32 %v3410, %v4133
        %4135 = vmatprep.subr.mxu0 %v4134
        %v4136 = vand.u32 %v3409, 4294901760
        %v4137 = vsub.f32 %v3409, %v4136
        %4138 = vmatpush2.msra.mxu0 %v4137
        %v4139 = vand.u32 %v3408, 4294901760
        %v4140 = vsub.f32 %v3408, %v4139
        %4141 = vmatprep.subr.mxu0 %v4140
        %v4142 = vand.u32 %v3407, 4294901760
        %v4143 = vsub.f32 %v3407, %v4142
        %4144 = vmatpush2.msra.mxu0 %v4143
        %v4145 = vand.u32 %v3406, 4294901760
        %v4146 = vsub.f32 %v3406, %v4145
        %4147 = vmatprep.subr.mxu0 %v4146
        %v4148 = vand.u32 %v3405, 4294901760
        %v4149 = vsub.f32 %v3405, %v4148
        %4150 = vmatpush2.msra.mxu0 %v4149
        %v4151 = vand.u32 %v3404, 4294901760
        %v4152 = vsub.f32 %v3404, %v4151
        %4153 = vmatprep.subr.mxu0 %v4152
        %v4154 = vand.u32 %v3403, 4294901760
        %v4155 = vsub.f32 %v3403, %v4154
        %4156 = vmatpush2.msra.mxu0 %v4155
        %v4157 = vand.u32 %v3402, 4294901760
        %v4158 = vsub.f32 %v3402, %v4157
        %4159 = vmatprep.subr.mxu0 %v4158
        %v4160 = vand.u32 %v3401, 4294901760
        %v4161 = vsub.f32 %v3401, %v4160
        %4162 = vmatpush2.msra.mxu0 %v4161
        %v4163 = vand.u32 %v3400, 4294901760
        %v4164 = vsub.f32 %v3400, %v4163
        %4165 = vmatprep.subr.mxu0 %v4164
        %v4166 = vand.u32 %v3399, 4294901760
        %v4167 = vsub.f32 %v3399, %v4166
        %4168 = vmatpush2.msra.mxu0 %v4167
        %v4169 = vand.u32 %v3398, 4294901760
        %v4170 = vsub.f32 %v3398, %v4169
        %4171 = vmatprep.subr.mxu0 %v4170
        %v4172 = vand.u32 %v3397, 4294901760
        %v4173 = vsub.f32 %v3397, %v4172
        %4174 = vmatpush2.msra.mxu0 %v4173
        %v4175 = vand.u32 %v3396, 4294901760
        %v4176 = vsub.f32 %v3396, %v4175
        %4177 = vmatprep.subr.mxu0 %v4176
        %v4178 = vand.u32 %v3395, 4294901760
        %v4179 = vsub.f32 %v3395, %v4178
        %4180 = vmatpush2.msra.mxu0 %v4179
        %v4181 = vand.u32 %v3394, 4294901760
        %v4182 = vsub.f32 %v3394, %v4181
        %4183 = vmatprep.subr.mxu0 %v4182
        %v4184 = vand.u32 %v3393, 4294901760
        %v4185 = vsub.f32 %v3393, %v4184
        %4186 = vmatpush2.msra.mxu0 %v4185
        %v4187 = vand.u32 %v3392, 4294901760
        %v4188 = vsub.f32 %v3392, %v4187
        %4189 = vmatprep.subr.mxu0 %v4188
        %v4190 = vand.u32 %v3391, 4294901760
        %v4191 = vsub.f32 %v3391, %v4190
        %4192 = vmatpush2.msra.mxu0 %v4191
        %v4193 = vand.u32 %v3390, 4294901760
        %v4194 = vsub.f32 %v3390, %v4193
        %4195 = vmatprep.subr.mxu0 %v4194
        %v4196 = vand.u32 %v3389, 4294901760
        %v4197 = vsub.f32 %v3389, %v4196
        %4198 = vmatpush2.msra.mxu0 %v4197
        %v4199 = vand.u32 %v3388, 4294901760
        %v4200 = vsub.f32 %v3388, %v4199
        %4201 = vmatprep.subr.mxu0 %v4200
        %v4202 = vand.u32 %v3387, 4294901760
        %v4203 = vsub.f32 %v3387, %v4202
        %4204 = vmatpush2.msra.mxu0 %v4203
        %v4205 = vand.u32 %v3386, 4294901760
        %v4206 = vsub.f32 %v3386, %v4205
        %4207 = vmatprep.subr.mxu0 %v4206
        %v4208 = vand.u32 %v3385, 4294901760
        %v4209 = vsub.f32 %v3385, %v4208
        %4210 = vmatpush2.msra.mxu0 %v4209
        %v4211 = vand.u32 %v3384, 4294901760
        %v4212 = vsub.f32 %v3384, %v4211
        %4213 = vmatprep.subr.mxu0 %v4212
        %v4214 = vand.u32 %v3383, 4294901760
        %v4215 = vsub.f32 %v3383, %v4214
        %4216 = vmatpush2.msra.mxu0 %v4215
        %v4217 = vand.u32 %v3382, 4294901760
        %v4218 = vsub.f32 %v3382, %v4217
        %4219 = vmatprep.subr.mxu0 %v4218
        %v4220 = vand.u32 %v3381, 4294901760
        %v4221 = vsub.f32 %v3381, %v4220
        %4222 = vmatpush2.msra.mxu0 %v4221
        %v4223 = vand.u32 %v3380, 4294901760
        %v4224 = vsub.f32 %v3380, %v4223
        %4225 = vmatprep.subr.mxu0 %v4224
        %v4226 = vand.u32 %v3379, 4294901760
        %v4227 = vsub.f32 %v3379, %v4226
        %4228 = vmatpush2.msra.mxu0 %v4227
        %v4229 = vand.u32 %v3340, 4294901760
        %v4230 = vsub.f32 %v3340, %v4229
        %4231 = vmatprep.mubr.f32.mxu0 %v4230
        %v4232 = vand.u32 %v3339, 4294901760
        %v4233 = vsub.f32 %v3339, %v4232
        %4234 = vmatmul.mubr.f32.gmra.mxu0 %v4233
        %v4235 = vpop.f32.mrf.mxu0
        %v4236 = vadd.f32 %v4025, %v4235
        %v4237 = vpop.f32.mrf.mxu0
        %v4238 = vadd.f32 %v4027, %v4237
        %v4239 = vand.u32 %v3344, 4294901760
        %v4240 = vsub.f32 %v3344, %v4239
        %4241 = vmatprep.mubr.f32.mxu0 %v4240
        %v4242 = vand.u32 %v3343, 4294901760
        %v4243 = vsub.f32 %v3343, %v4242
        %4244 = vmatmul.mubr.f32.gmra.mxu0 %v4243
        %v4245 = vpop.f32.mrf.mxu0
        %v4246 = vadd.f32 %v4033, %v4245
        %v4247 = vpop.f32.mrf.mxu0
        %v4248 = vadd.f32 %v4035, %v4247
        %4249 = vdwg.mxu0
        %v4250 = vand.u32 %v3378, 4294901760
        %4251 = vmatprep.subr.mxu0 %v4250
        %v4252 = vand.u32 %v3377, 4294901760
        %4253 = vmatpush1.msra.mxu0 %v4252
        %v4254 = vand.u32 %v3376, 4294901760
        %4255 = vmatprep.subr.mxu0 %v4254
        %v4256 = vand.u32 %v3375, 4294901760
        %4257 = vmatpush1.msra.mxu0 %v4256
        %v4258 = vand.u32 %v3374, 4294901760
        %4259 = vmatprep.subr.mxu0 %v4258
        %v4260 = vand.u32 %v3373, 4294901760
        %4261 = vmatpush1.msra.mxu0 %v4260
        %v4262 = vand.u32 %v3372, 4294901760
        %4263 = vmatprep.subr.mxu0 %v4262
        %v4264 = vand.u32 %v3371, 4294901760
        %4265 = vmatpush1.msra.mxu0 %v4264
        %v4266 = vand.u32 %v3370, 4294901760
        %4267 = vmatprep.subr.mxu0 %v4266
        %v4268 = vand.u32 %v3369, 4294901760
        %4269 = vmatpush1.msra.mxu0 %v4268
        %v4270 = vand.u32 %v3368, 4294901760
        %4271 = vmatprep.subr.mxu0 %v4270
        %v4272 = vand.u32 %v3367, 4294901760
        %4273 = vmatpush1.msra.mxu0 %v4272
        %v4274 = vand.u32 %v3366, 4294901760
        %4275 = vmatprep.subr.mxu0 %v4274
        %v4276 = vand.u32 %v3365, 4294901760
        %4277 = vmatpush1.msra.mxu0 %v4276
        %v4278 = vand.u32 %v3364, 4294901760
        %4279 = vmatprep.subr.mxu0 %v4278
        %v4280 = vand.u32 %v3363, 4294901760
        %4281 = vmatpush1.msra.mxu0 %v4280
        %v4282 = vand.u32 %v3362, 4294901760
        %4283 = vmatprep.subr.mxu0 %v4282
        %v4284 = vand.u32 %v3361, 4294901760
        %4285 = vmatpush1.msra.mxu0 %v4284
        %v4286 = vand.u32 %v3360, 4294901760
        %4287 = vmatprep.subr.mxu0 %v4286
        %v4288 = vand.u32 %v3359, 4294901760
        %4289 = vmatpush1.msra.mxu0 %v4288
        %v4290 = vand.u32 %v3358, 4294901760
        %4291 = vmatprep.subr.mxu0 %v4290
        %v4292 = vand.u32 %v3357, 4294901760
        %4293 = vmatpush1.msra.mxu0 %v4292
        %v4294 = vand.u32 %v3356, 4294901760
        %4295 = vmatprep.subr.mxu0 %v4294
        %v4296 = vand.u32 %v3355, 4294901760
        %4297 = vmatpush1.msra.mxu0 %v4296
        %v4298 = vand.u32 %v3354, 4294901760
        %4299 = vmatprep.subr.mxu0 %v4298
        %v4300 = vand.u32 %v3353, 4294901760
        %4301 = vmatpush1.msra.mxu0 %v4300
        %v4302 = vand.u32 %v3352, 4294901760
        %4303 = vmatprep.subr.mxu0 %v4302
        %v4304 = vand.u32 %v3351, 4294901760
        %4305 = vmatpush1.msra.mxu0 %v4304
        %v4306 = vand.u32 %v3350, 4294901760
        %4307 = vmatprep.subr.mxu0 %v4306
        %v4308 = vand.u32 %v3349, 4294901760
        %4309 = vmatpush1.msra.mxu0 %v4308
        %v4310 = vand.u32 %v3348, 4294901760
        %4311 = vmatprep.subr.mxu0 %v4310
        %v4312 = vand.u32 %v3347, 4294901760
        %4313 = vmatpush1.msra.mxu0 %v4312
        %v4314 = vand.u32 %v3410, 4294901760
        %4315 = vmatprep.subr.mxu0 %v4314
        %v4316 = vand.u32 %v3409, 4294901760
        %4317 = vmatpush2.msra.mxu0 %v4316
        %v4318 = vand.u32 %v3408, 4294901760
        %4319 = vmatprep.subr.mxu0 %v4318
        %v4320 = vand.u32 %v3407, 4294901760
        %4321 = vmatpush2.msra.mxu0 %v4320
        %v4322 = vand.u32 %v3406, 4294901760
        %4323 = vmatprep.subr.mxu0 %v4322
        %v4324 = vand.u32 %v3405, 4294901760
        %4325 = vmatpush2.msra.mxu0 %v4324
        %v4326 = vand.u32 %v3404, 4294901760
        %4327 = vmatprep.subr.mxu0 %v4326
        %v4328 = vand.u32 %v3403, 4294901760
        %4329 = vmatpush2.msra.mxu0 %v4328
        %v4330 = vand.u32 %v3402, 4294901760
        %4331 = vmatprep.subr.mxu0 %v4330
        %v4332 = vand.u32 %v3401, 4294901760
        %4333 = vmatpush2.msra.mxu0 %v4332
        %v4334 = vand.u32 %v3400, 4294901760
        %4335 = vmatprep.subr.mxu0 %v4334
        %v4336 = vand.u32 %v3399, 4294901760
        %4337 = vmatpush2.msra.mxu0 %v4336
        %v4338 = vand.u32 %v3398, 4294901760
        %4339 = vmatprep.subr.mxu0 %v4338
        %v4340 = vand.u32 %v3397, 4294901760
        %4341 = vmatpush2.msra.mxu0 %v4340
        %v4342 = vand.u32 %v3396, 4294901760
        %4343 = vmatprep.subr.mxu0 %v4342
        %v4344 = vand.u32 %v3395, 4294901760
        %4345 = vmatpush2.msra.mxu0 %v4344
        %v4346 = vand.u32 %v3394, 4294901760
        %4347 = vmatprep.subr.mxu0 %v4346
        %v4348 = vand.u32 %v3393, 4294901760
        %4349 = vmatpush2.msra.mxu0 %v4348
        %v4350 = vand.u32 %v3392, 4294901760
        %4351 = vmatprep.subr.mxu0 %v4350
        %v4352 = vand.u32 %v3391, 4294901760
        %4353 = vmatpush2.msra.mxu0 %v4352
        %v4354 = vand.u32 %v3390, 4294901760
        %4355 = vmatprep.subr.mxu0 %v4354
        %v4356 = vand.u32 %v3389, 4294901760
        %4357 = vmatpush2.msra.mxu0 %v4356
        %v4358 = vand.u32 %v3388, 4294901760
        %4359 = vmatprep.subr.mxu0 %v4358
        %v4360 = vand.u32 %v3387, 4294901760
        %4361 = vmatpush2.msra.mxu0 %v4360
        %v4362 = vand.u32 %v3386, 4294901760
        %4363 = vmatprep.subr.mxu0 %v4362
        %v4364 = vand.u32 %v3385, 4294901760
        %4365 = vmatpush2.msra.mxu0 %v4364
        %v4366 = vand.u32 %v3384, 4294901760
        %4367 = vmatprep.subr.mxu0 %v4366
        %v4368 = vand.u32 %v3383, 4294901760
        %4369 = vmatpush2.msra.mxu0 %v4368
        %v4370 = vand.u32 %v3382, 4294901760
        %4371 = vmatprep.subr.mxu0 %v4370
        %v4372 = vand.u32 %v3381, 4294901760
        %4373 = vmatpush2.msra.mxu0 %v4372
        %v4374 = vand.u32 %v3380, 4294901760
        %4375 = vmatprep.subr.mxu0 %v4374
        %v4376 = vand.u32 %v3379, 4294901760
        %4377 = vmatpush2.msra.mxu0 %v4376
        %v4378 = vand.u32 %v3340, 4294901760
        %v4379 = vsub.f32 %v3340, %v4378
        %v4380 = vand.u32 %v4379, 4294901760
        %4381 = vmatprep.mubr.f32.mxu0 %v4380
        %v4382 = vand.u32 %v3339, 4294901760
        %v4383 = vsub.f32 %v3339, %v4382
        %v4384 = vand.u32 %v4383, 4294901760
        %4385 = vmatmul.mubr.f32.gmra.mxu0 %v4384
        %v4386 = vpop.f32.mrf.mxu0
        %v4387 = vadd.f32 %v4236, %v4386
        %v4388 = vpop.f32.mrf.mxu0
        %v4389 = vadd.f32 %v4238, %v4388
        %v4390 = vand.u32 %v3344, 4294901760
        %v4391 = vsub.f32 %v3344, %v4390
        %v4392 = vand.u32 %v4391, 4294901760
        %4393 = vmatprep.mubr.f32.mxu0 %v4392
        %v4394 = vand.u32 %v3343, 4294901760
        %v4395 = vsub.f32 %v3343, %v4394
        %v4396 = vand.u32 %v4395, 4294901760
        %4397 = vmatmul.mubr.f32.gmra.mxu0 %v4396
        %v4398 = vpop.f32.mrf.mxu0
        %v4399 = vadd.f32 %v4246, %v4398
        %v4400 = vpop.f32.mrf.mxu0
        %v4401 = vadd.f32 %v4248, %v4400
        %4402 = vdwg.mxu0
        %v4403 = vand.u32 %v3378, 4294901760
        %v4404 = vsub.f32 %v3378, %v4403
        %v4405 = vand.u32 %v4404, 4294901760
        %4406 = vmatprep.subr.mxu0 %v4405
        %v4407 = vand.u32 %v3377, 4294901760
        %v4408 = vsub.f32 %v3377, %v4407
        %v4409 = vand.u32 %v4408, 4294901760
        %4410 = vmatpush1.msra.mxu0 %v4409
        %v4411 = vand.u32 %v3376, 4294901760
        %v4412 = vsub.f32 %v3376, %v4411
        %v4413 = vand.u32 %v4412, 4294901760
        %4414 = vmatprep.subr.mxu0 %v4413
        %v4415 = vand.u32 %v3375, 4294901760
        %v4416 = vsub.f32 %v3375, %v4415
        %v4417 = vand.u32 %v4416, 4294901760
        %4418 = vmatpush1.msra.mxu0 %v4417
        %v4419 = vand.u32 %v3374, 4294901760
        %v4420 = vsub.f32 %v3374, %v4419
        %v4421 = vand.u32 %v4420, 4294901760
        %4422 = vmatprep.subr.mxu0 %v4421
        %v4423 = vand.u32 %v3373, 4294901760
        %v4424 = vsub.f32 %v3373, %v4423
        %v4425 = vand.u32 %v4424, 4294901760
        %4426 = vmatpush1.msra.mxu0 %v4425
        %v4427 = vand.u32 %v3372, 4294901760
        %v4428 = vsub.f32 %v3372, %v4427
        %v4429 = vand.u32 %v4428, 4294901760
        %4430 = vmatprep.subr.mxu0 %v4429
        %v4431 = vand.u32 %v3371, 4294901760
        %v4432 = vsub.f32 %v3371, %v4431
        %v4433 = vand.u32 %v4432, 4294901760
        %4434 = vmatpush1.msra.mxu0 %v4433
        %v4435 = vand.u32 %v3370, 4294901760
        %v4436 = vsub.f32 %v3370, %v4435
        %v4437 = vand.u32 %v4436, 4294901760
        %4438 = vmatprep.subr.mxu0 %v4437
        %v4439 = vand.u32 %v3369, 4294901760
        %v4440 = vsub.f32 %v3369, %v4439
        %v4441 = vand.u32 %v4440, 4294901760
        %4442 = vmatpush1.msra.mxu0 %v4441
        %v4443 = vand.u32 %v3368, 4294901760
        %v4444 = vsub.f32 %v3368, %v4443
        %v4445 = vand.u32 %v4444, 4294901760
        %4446 = vmatprep.subr.mxu0 %v4445
        %v4447 = vand.u32 %v3367, 4294901760
        %v4448 = vsub.f32 %v3367, %v4447
        %v4449 = vand.u32 %v4448, 4294901760
        %4450 = vmatpush1.msra.mxu0 %v4449
        %v4451 = vand.u32 %v3366, 4294901760
        %v4452 = vsub.f32 %v3366, %v4451
        %v4453 = vand.u32 %v4452, 4294901760
        %4454 = vmatprep.subr.mxu0 %v4453
        %v4455 = vand.u32 %v3365, 4294901760
        %v4456 = vsub.f32 %v3365, %v4455
        %v4457 = vand.u32 %v4456, 4294901760
        %4458 = vmatpush1.msra.mxu0 %v4457
        %v4459 = vand.u32 %v3364, 4294901760
        %v4460 = vsub.f32 %v3364, %v4459
        %v4461 = vand.u32 %v4460, 4294901760
        %4462 = vmatprep.subr.mxu0 %v4461
        %v4463 = vand.u32 %v3363, 4294901760
        %v4464 = vsub.f32 %v3363, %v4463
        %v4465 = vand.u32 %v4464, 4294901760
        %4466 = vmatpush1.msra.mxu0 %v4465
        %v4467 = vand.u32 %v3362, 4294901760
        %v4468 = vsub.f32 %v3362, %v4467
        %v4469 = vand.u32 %v4468, 4294901760
        %4470 = vmatprep.subr.mxu0 %v4469
        %v4471 = vand.u32 %v3361, 4294901760
        %v4472 = vsub.f32 %v3361, %v4471
        %v4473 = vand.u32 %v4472, 4294901760
        %4474 = vmatpush1.msra.mxu0 %v4473
        %v4475 = vand.u32 %v3360, 4294901760
        %v4476 = vsub.f32 %v3360, %v4475
        %v4477 = vand.u32 %v4476, 4294901760
        %4478 = vmatprep.subr.mxu0 %v4477
        %v4479 = vand.u32 %v3359, 4294901760
        %v4480 = vsub.f32 %v3359, %v4479
        %v4481 = vand.u32 %v4480, 4294901760
        %4482 = vmatpush1.msra.mxu0 %v4481
        %v4483 = vand.u32 %v3358, 4294901760
        %v4484 = vsub.f32 %v3358, %v4483
        %v4485 = vand.u32 %v4484, 4294901760
        %4486 = vmatprep.subr.mxu0 %v4485
        %v4487 = vand.u32 %v3357, 4294901760
        %v4488 = vsub.f32 %v3357, %v4487
        %v4489 = vand.u32 %v4488, 4294901760
        %4490 = vmatpush1.msra.mxu0 %v4489
        %v4491 = vand.u32 %v3356, 4294901760
        %v4492 = vsub.f32 %v3356, %v4491
        %v4493 = vand.u32 %v4492, 4294901760
        %4494 = vmatprep.subr.mxu0 %v4493
        %v4495 = vand.u32 %v3355, 4294901760
        %v4496 = vsub.f32 %v3355, %v4495
        %v4497 = vand.u32 %v4496, 4294901760
        %4498 = vmatpush1.msra.mxu0 %v4497
        %v4499 = vand.u32 %v3354, 4294901760
        %v4500 = vsub.f32 %v3354, %v4499
        %v4501 = vand.u32 %v4500, 4294901760
        %4502 = vmatprep.subr.mxu0 %v4501
        %v4503 = vand.u32 %v3353, 4294901760
        %v4504 = vsub.f32 %v3353, %v4503
        %v4505 = vand.u32 %v4504, 4294901760
        %4506 = vmatpush1.msra.mxu0 %v4505
        %v4507 = vand.u32 %v3352, 4294901760
        %v4508 = vsub.f32 %v3352, %v4507
        %v4509 = vand.u32 %v4508, 4294901760
        %4510 = vmatprep.subr.mxu0 %v4509
        %v4511 = vand.u32 %v3351, 4294901760
        %v4512 = vsub.f32 %v3351, %v4511
        %v4513 = vand.u32 %v4512, 4294901760
        %4514 = vmatpush1.msra.mxu0 %v4513
        %v4515 = vand.u32 %v3350, 4294901760
        %v4516 = vsub.f32 %v3350, %v4515
        %v4517 = vand.u32 %v4516, 4294901760
        %4518 = vmatprep.subr.mxu0 %v4517
        %v4519 = vand.u32 %v3349, 4294901760
        %v4520 = vsub.f32 %v3349, %v4519
        %v4521 = vand.u32 %v4520, 4294901760
        %4522 = vmatpush1.msra.mxu0 %v4521
        %v4523 = vand.u32 %v3348, 4294901760
        %v4524 = vsub.f32 %v3348, %v4523
        %v4525 = vand.u32 %v4524, 4294901760
        %4526 = vmatprep.subr.mxu0 %v4525
        %v4527 = vand.u32 %v3347, 4294901760
        %v4528 = vsub.f32 %v3347, %v4527
        %v4529 = vand.u32 %v4528, 4294901760
        %4530 = vmatpush1.msra.mxu0 %v4529
        %v4531 = vand.u32 %v3410, 4294901760
        %v4532 = vsub.f32 %v3410, %v4531
        %v4533 = vand.u32 %v4532, 4294901760
        %4534 = vmatprep.subr.mxu0 %v4533
        %v4535 = vand.u32 %v3409, 4294901760
        %v4536 = vsub.f32 %v3409, %v4535
        %v4537 = vand.u32 %v4536, 4294901760
        %4538 = vmatpush2.msra.mxu0 %v4537
        %v4539 = vand.u32 %v3408, 4294901760
        %v4540 = vsub.f32 %v3408, %v4539
        %v4541 = vand.u32 %v4540, 4294901760
        %4542 = vmatprep.subr.mxu0 %v4541
        %v4543 = vand.u32 %v3407, 4294901760
        %v4544 = vsub.f32 %v3407, %v4543
        %v4545 = vand.u32 %v4544, 4294901760
        %4546 = vmatpush2.msra.mxu0 %v4545
        %v4547 = vand.u32 %v3406, 4294901760
        %v4548 = vsub.f32 %v3406, %v4547
        %v4549 = vand.u32 %v4548, 4294901760
        %4550 = vmatprep.subr.mxu0 %v4549
        %v4551 = vand.u32 %v3405, 4294901760
        %v4552 = vsub.f32 %v3405, %v4551
        %v4553 = vand.u32 %v4552, 4294901760
        %4554 = vmatpush2.msra.mxu0 %v4553
        %v4555 = vand.u32 %v3404, 4294901760
        %v4556 = vsub.f32 %v3404, %v4555
        %v4557 = vand.u32 %v4556, 4294901760
        %4558 = vmatprep.subr.mxu0 %v4557
        %v4559 = vand.u32 %v3403, 4294901760
        %v4560 = vsub.f32 %v3403, %v4559
        %v4561 = vand.u32 %v4560, 4294901760
        %4562 = vmatpush2.msra.mxu0 %v4561
        %v4563 = vand.u32 %v3402, 4294901760
        %v4564 = vsub.f32 %v3402, %v4563
        %v4565 = vand.u32 %v4564, 4294901760
        %4566 = vmatprep.subr.mxu0 %v4565
        %v4567 = vand.u32 %v3401, 4294901760
        %v4568 = vsub.f32 %v3401, %v4567
        %v4569 = vand.u32 %v4568, 4294901760
        %4570 = vmatpush2.msra.mxu0 %v4569
        %v4571 = vand.u32 %v3400, 4294901760
        %v4572 = vsub.f32 %v3400, %v4571
        %v4573 = vand.u32 %v4572, 4294901760
        %4574 = vmatprep.subr.mxu0 %v4573
        %v4575 = vand.u32 %v3399, 4294901760
        %v4576 = vsub.f32 %v3399, %v4575
        %v4577 = vand.u32 %v4576, 4294901760
        %4578 = vmatpush2.msra.mxu0 %v4577
        %v4579 = vand.u32 %v3398, 4294901760
        %v4580 = vsub.f32 %v3398, %v4579
        %v4581 = vand.u32 %v4580, 4294901760
        %4582 = vmatprep.subr.mxu0 %v4581
        %v4583 = vand.u32 %v3397, 4294901760
        %v4584 = vsub.f32 %v3397, %v4583
        %v4585 = vand.u32 %v4584, 4294901760
        %4586 = vmatpush2.msra.mxu0 %v4585
        %v4587 = vand.u32 %v3396, 4294901760
        %v4588 = vsub.f32 %v3396, %v4587
        %v4589 = vand.u32 %v4588, 4294901760
        %4590 = vmatprep.subr.mxu0 %v4589
        %v4591 = vand.u32 %v3395, 4294901760
        %v4592 = vsub.f32 %v3395, %v4591
        %v4593 = vand.u32 %v4592, 4294901760
        %4594 = vmatpush2.msra.mxu0 %v4593
        %v4595 = vand.u32 %v3394, 4294901760
        %v4596 = vsub.f32 %v3394, %v4595
        %v4597 = vand.u32 %v4596, 4294901760
        %4598 = vmatprep.subr.mxu0 %v4597
        %v4599 = vand.u32 %v3393, 4294901760
        %v4600 = vsub.f32 %v3393, %v4599
        %v4601 = vand.u32 %v4600, 4294901760
        %4602 = vmatpush2.msra.mxu0 %v4601
        %v4603 = vand.u32 %v3392, 4294901760
        %v4604 = vsub.f32 %v3392, %v4603
        %v4605 = vand.u32 %v4604, 4294901760
        %4606 = vmatprep.subr.mxu0 %v4605
        %v4607 = vand.u32 %v3391, 4294901760
        %v4608 = vsub.f32 %v3391, %v4607
        %v4609 = vand.u32 %v4608, 4294901760
        %4610 = vmatpush2.msra.mxu0 %v4609
        %v4611 = vand.u32 %v3390, 4294901760
        %v4612 = vsub.f32 %v3390, %v4611
        %v4613 = vand.u32 %v4612, 4294901760
        %4614 = vmatprep.subr.mxu0 %v4613
        %v4615 = vand.u32 %v3389, 4294901760
        %v4616 = vsub.f32 %v3389, %v4615
        %v4617 = vand.u32 %v4616, 4294901760
        %4618 = vmatpush2.msra.mxu0 %v4617
        %v4619 = vand.u32 %v3388, 4294901760
        %v4620 = vsub.f32 %v3388, %v4619
        %v4621 = vand.u32 %v4620, 4294901760
        %4622 = vmatprep.subr.mxu0 %v4621
        %v4623 = vand.u32 %v3387, 4294901760
        %v4624 = vsub.f32 %v3387, %v4623
        %v4625 = vand.u32 %v4624, 4294901760
        %4626 = vmatpush2.msra.mxu0 %v4625
        %v4627 = vand.u32 %v3386, 4294901760
        %v4628 = vsub.f32 %v3386, %v4627
        %v4629 = vand.u32 %v4628, 4294901760
        %4630 = vmatprep.subr.mxu0 %v4629
        %v4631 = vand.u32 %v3385, 4294901760
        %v4632 = vsub.f32 %v3385, %v4631
        %v4633 = vand.u32 %v4632, 4294901760
        %4634 = vmatpush2.msra.mxu0 %v4633
        %v4635 = vand.u32 %v3384, 4294901760
        %v4636 = vsub.f32 %v3384, %v4635
        %v4637 = vand.u32 %v4636, 4294901760
        %4638 = vmatprep.subr.mxu0 %v4637
        %v4639 = vand.u32 %v3383, 4294901760
        %v4640 = vsub.f32 %v3383, %v4639
        %v4641 = vand.u32 %v4640, 4294901760
        %4642 = vmatpush2.msra.mxu0 %v4641
        %v4643 = vand.u32 %v3382, 4294901760
        %v4644 = vsub.f32 %v3382, %v4643
        %v4645 = vand.u32 %v4644, 4294901760
        %4646 = vmatprep.subr.mxu0 %v4645
        %v4647 = vand.u32 %v3381, 4294901760
        %v4648 = vsub.f32 %v3381, %v4647
        %v4649 = vand.u32 %v4648, 4294901760
        %4650 = vmatpush2.msra.mxu0 %v4649
        %v4651 = vand.u32 %v3380, 4294901760
        %v4652 = vsub.f32 %v3380, %v4651
        %v4653 = vand.u32 %v4652, 4294901760
        %4654 = vmatprep.subr.mxu0 %v4653
        %v4655 = vand.u32 %v3379, 4294901760
        %v4656 = vsub.f32 %v3379, %v4655
        %v4657 = vand.u32 %v4656, 4294901760
        %4658 = vmatpush2.msra.mxu0 %v4657
        %v4659 = vand.u32 %v3340, 4294901760
        %4660 = vmatprep.mubr.f32.mxu0 %v4659
        %v4661 = vand.u32 %v3339, 4294901760
        %4662 = vmatmul.mubr.f32.gmra.mxu0 %v4661
        %v4663 = vpop.f32.mrf.mxu0
        %v4664 = vadd.f32 %v4387, %v4663
        %v4665 = vpop.f32.mrf.mxu0
        %v4666 = vadd.f32 %v4389, %v4665
        %v4667 = vand.u32 %v3344, 4294901760
        %4668 = vmatprep.mubr.f32.mxu0 %v4667
        %v4669 = vand.u32 %v3343, 4294901760
        %4670 = vmatmul.mubr.f32.gmra.mxu0 %v4669
        %v4671 = vpop.f32.mrf.mxu0
        %v4672 = vadd.f32 %v4399, %v4671
        %v4673 = vpop.f32.mrf.mxu0
        %v4674 = vadd.f32 %v4401, %v4673
        %4675 = vdwg.mxu0
        %v4676 = vand.u32 %v3378, 4294901760
        %4677 = vmatprep.subr.mxu0 %v4676
        %v4678 = vand.u32 %v3377, 4294901760
        %4679 = vmatpush1.msra.mxu0 %v4678
        %v4680 = vand.u32 %v3376, 4294901760
        %4681 = vmatprep.subr.mxu0 %v4680
        %v4682 = vand.u32 %v3375, 4294901760
        %4683 = vmatpush1.msra.mxu0 %v4682
        %v4684 = vand.u32 %v3374, 4294901760
        %4685 = vmatprep.subr.mxu0 %v4684
        %v4686 = vand.u32 %v3373, 4294901760
        %4687 = vmatpush1.msra.mxu0 %v4686
        %v4688 = vand.u32 %v3372, 4294901760
        %4689 = vmatprep.subr.mxu0 %v4688
        %v4690 = vand.u32 %v3371, 4294901760
        %4691 = vmatpush1.msra.mxu0 %v4690
        %v4692 = vand.u32 %v3370, 4294901760
        %4693 = vmatprep.subr.mxu0 %v4692
        %v4694 = vand.u32 %v3369, 4294901760
        %4695 = vmatpush1.msra.mxu0 %v4694
        %v4696 = vand.u32 %v3368, 4294901760
        %4697 = vmatprep.subr.mxu0 %v4696
        %v4698 = vand.u32 %v3367, 4294901760
        %4699 = vmatpush1.msra.mxu0 %v4698
        %v4700 = vand.u32 %v3366, 4294901760
        %4701 = vmatprep.subr.mxu0 %v4700
        %v4702 = vand.u32 %v3365, 4294901760
        %4703 = vmatpush1.msra.mxu0 %v4702
        %v4704 = vand.u32 %v3364, 4294901760
        %4705 = vmatprep.subr.mxu0 %v4704
        %v4706 = vand.u32 %v3363, 4294901760
        %4707 = vmatpush1.msra.mxu0 %v4706
        %v4708 = vand.u32 %v3362, 4294901760
        %4709 = vmatprep.subr.mxu0 %v4708
        %v4710 = vand.u32 %v3361, 4294901760
        %4711 = vmatpush1.msra.mxu0 %v4710
        %v4712 = vand.u32 %v3360, 4294901760
        %4713 = vmatprep.subr.mxu0 %v4712
        %v4714 = vand.u32 %v3359, 4294901760
        %4715 = vmatpush1.msra.mxu0 %v4714
        %v4716 = vand.u32 %v3358, 4294901760
        %4717 = vmatprep.subr.mxu0 %v4716
        %v4718 = vand.u32 %v3357, 4294901760
        %4719 = vmatpush1.msra.mxu0 %v4718
        %v4720 = vand.u32 %v3356, 4294901760
        %4721 = vmatprep.subr.mxu0 %v4720
        %v4722 = vand.u32 %v3355, 4294901760
        %4723 = vmatpush1.msra.mxu0 %v4722
        %v4724 = vand.u32 %v3354, 4294901760
        %4725 = vmatprep.subr.mxu0 %v4724
        %v4726 = vand.u32 %v3353, 4294901760
        %4727 = vmatpush1.msra.mxu0 %v4726
        %v4728 = vand.u32 %v3352, 4294901760
        %4729 = vmatprep.subr.mxu0 %v4728
        %v4730 = vand.u32 %v3351, 4294901760
        %4731 = vmatpush1.msra.mxu0 %v4730
        %v4732 = vand.u32 %v3350, 4294901760
        %4733 = vmatprep.subr.mxu0 %v4732
        %v4734 = vand.u32 %v3349, 4294901760
        %4735 = vmatpush1.msra.mxu0 %v4734
        %v4736 = vand.u32 %v3348, 4294901760
        %4737 = vmatprep.subr.mxu0 %v4736
        %v4738 = vand.u32 %v3347, 4294901760
        %4739 = vmatpush1.msra.mxu0 %v4738
        %v4740 = vand.u32 %v3410, 4294901760
        %4741 = vmatprep.subr.mxu0 %v4740
        %v4742 = vand.u32 %v3409, 4294901760
        %4743 = vmatpush2.msra.mxu0 %v4742
        %v4744 = vand.u32 %v3408, 4294901760
        %4745 = vmatprep.subr.mxu0 %v4744
        %v4746 = vand.u32 %v3407, 4294901760
        %4747 = vmatpush2.msra.mxu0 %v4746
        %v4748 = vand.u32 %v3406, 4294901760
        %4749 = vmatprep.subr.mxu0 %v4748
        %v4750 = vand.u32 %v3405, 4294901760
        %4751 = vmatpush2.msra.mxu0 %v4750
        %v4752 = vand.u32 %v3404, 4294901760
        %4753 = vmatprep.subr.mxu0 %v4752
        %v4754 = vand.u32 %v3403, 4294901760
        %4755 = vmatpush2.msra.mxu0 %v4754
        %v4756 = vand.u32 %v3402, 4294901760
        %4757 = vmatprep.subr.mxu0 %v4756
        %v4758 = vand.u32 %v3401, 4294901760
        %4759 = vmatpush2.msra.mxu0 %v4758
        %v4760 = vand.u32 %v3400, 4294901760
        %4761 = vmatprep.subr.mxu0 %v4760
        %v4762 = vand.u32 %v3399, 4294901760
        %4763 = vmatpush2.msra.mxu0 %v4762
        %v4764 = vand.u32 %v3398, 4294901760
        %4765 = vmatprep.subr.mxu0 %v4764
        %v4766 = vand.u32 %v3397, 4294901760
        %4767 = vmatpush2.msra.mxu0 %v4766
        %v4768 = vand.u32 %v3396, 4294901760
        %4769 = vmatprep.subr.mxu0 %v4768
        %v4770 = vand.u32 %v3395, 4294901760
        %4771 = vmatpush2.msra.mxu0 %v4770
        %v4772 = vand.u32 %v3394, 4294901760
        %4773 = vmatprep.subr.mxu0 %v4772
        %v4774 = vand.u32 %v3393, 4294901760
        %4775 = vmatpush2.msra.mxu0 %v4774
        %v4776 = vand.u32 %v3392, 4294901760
        %4777 = vmatprep.subr.mxu0 %v4776
        %v4778 = vand.u32 %v3391, 4294901760
        %4779 = vmatpush2.msra.mxu0 %v4778
        %v4780 = vand.u32 %v3390, 4294901760
        %4781 = vmatprep.subr.mxu0 %v4780
        %v4782 = vand.u32 %v3389, 4294901760
        %4783 = vmatpush2.msra.mxu0 %v4782
        %v4784 = vand.u32 %v3388, 4294901760
        %4785 = vmatprep.subr.mxu0 %v4784
        %v4786 = vand.u32 %v3387, 4294901760
        %4787 = vmatpush2.msra.mxu0 %v4786
        %v4788 = vand.u32 %v3386, 4294901760
        %4789 = vmatprep.subr.mxu0 %v4788
        %v4790 = vand.u32 %v3385, 4294901760
        %4791 = vmatpush2.msra.mxu0 %v4790
        %v4792 = vand.u32 %v3384, 4294901760
        %4793 = vmatprep.subr.mxu0 %v4792
        %v4794 = vand.u32 %v3383, 4294901760
        %4795 = vmatpush2.msra.mxu0 %v4794
        %v4796 = vand.u32 %v3382, 4294901760
        %4797 = vmatprep.subr.mxu0 %v4796
        %v4798 = vand.u32 %v3381, 4294901760
        %4799 = vmatpush2.msra.mxu0 %v4798
        %v4800 = vand.u32 %v3380, 4294901760
        %4801 = vmatprep.subr.mxu0 %v4800
        %v4802 = vand.u32 %v3379, 4294901760
        %4803 = vmatpush2.msra.mxu0 %v4802
        %v4804 = vand.u32 %v3340, 4294901760
        %4805 = vmatprep.mubr.f32.mxu0 %v4804
        %v4806 = vand.u32 %v3339, 4294901760
        %4807 = vmatmul.mubr.f32.gmra.mxu0 %v4806
        %v4808 = vpop.f32.mrf.mxu0
        %v4809 = vadd.f32 %v4664, %v4808
        %v4810 = vpop.f32.mrf.mxu0
        %v4811 = vadd.f32 %v4666, %v4810
        %v4812 = vand.u32 %v3344, 4294901760
        %4813 = vmatprep.mubr.f32.mxu0 %v4812
        %v4814 = vand.u32 %v3343, 4294901760
        %4815 = vmatmul.mubr.f32.gmra.mxu0 %v4814
        %v4816 = vpop.f32.mrf.mxu0
        %v4817 = vadd.f32 %v4672, %v4816
        %v4818 = vpop.f32.mrf.mxu0
        %v4819 = vadd.f32 %v4674, %v4818
        %4820 = vdwg.mxu0
        %v4821 = vand.u32 %v3442, 4294901760
        %4822 = vmatprep.subr.mxu0 %v4821
        %v4823 = vand.u32 %v3441, 4294901760
        %4824 = vmatpush1.msra.mxu0 %v4823
        %v4825 = vand.u32 %v3440, 4294901760
        %4826 = vmatprep.subr.mxu0 %v4825
        %v4827 = vand.u32 %v3439, 4294901760
        %4828 = vmatpush1.msra.mxu0 %v4827
        %v4829 = vand.u32 %v3438, 4294901760
        %4830 = vmatprep.subr.mxu0 %v4829
        %v4831 = vand.u32 %v3437, 4294901760
        %4832 = vmatpush1.msra.mxu0 %v4831
        %v4833 = vand.u32 %v3436, 4294901760
        %4834 = vmatprep.subr.mxu0 %v4833
        %v4835 = vand.u32 %v3435, 4294901760
        %4836 = vmatpush1.msra.mxu0 %v4835
        %v4837 = vand.u32 %v3434, 4294901760
        %4838 = vmatprep.subr.mxu0 %v4837
        %v4839 = vand.u32 %v3433, 4294901760
        %4840 = vmatpush1.msra.mxu0 %v4839
        %v4841 = vand.u32 %v3432, 4294901760
        %4842 = vmatprep.subr.mxu0 %v4841
        %v4843 = vand.u32 %v3431, 4294901760
        %4844 = vmatpush1.msra.mxu0 %v4843
        %v4845 = vand.u32 %v3430, 4294901760
        %4846 = vmatprep.subr.mxu0 %v4845
        %v4847 = vand.u32 %v3429, 4294901760
        %4848 = vmatpush1.msra.mxu0 %v4847
        %v4849 = vand.u32 %v3428, 4294901760
        %4850 = vmatprep.subr.mxu0 %v4849
        %v4851 = vand.u32 %v3427, 4294901760
        %4852 = vmatpush1.msra.mxu0 %v4851
        %v4853 = vand.u32 %v3426, 4294901760
        %4854 = vmatprep.subr.mxu0 %v4853
        %v4855 = vand.u32 %v3425, 4294901760
        %4856 = vmatpush1.msra.mxu0 %v4855
        %v4857 = vand.u32 %v3424, 4294901760
        %4858 = vmatprep.subr.mxu0 %v4857
        %v4859 = vand.u32 %v3423, 4294901760
        %4860 = vmatpush1.msra.mxu0 %v4859
        %v4861 = vand.u32 %v3422, 4294901760
        %4862 = vmatprep.subr.mxu0 %v4861
        %v4863 = vand.u32 %v3421, 4294901760
        %4864 = vmatpush1.msra.mxu0 %v4863
        %v4865 = vand.u32 %v3420, 4294901760
        %4866 = vmatprep.subr.mxu0 %v4865
        %v4867 = vand.u32 %v3419, 4294901760
        %4868 = vmatpush1.msra.mxu0 %v4867
        %v4869 = vand.u32 %v3418, 4294901760
        %4870 = vmatprep.subr.mxu0 %v4869
        %v4871 = vand.u32 %v3417, 4294901760
        %4872 = vmatpush1.msra.mxu0 %v4871
        %v4873 = vand.u32 %v3416, 4294901760
        %4874 = vmatprep.subr.mxu0 %v4873
        %v4875 = vand.u32 %v3415, 4294901760
        %4876 = vmatpush1.msra.mxu0 %v4875
        %v4877 = vand.u32 %v3414, 4294901760
        %4878 = vmatprep.subr.mxu0 %v4877
        %v4879 = vand.u32 %v3413, 4294901760
        %4880 = vmatpush1.msra.mxu0 %v4879
        %v4881 = vand.u32 %v3412, 4294901760
        %4882 = vmatprep.subr.mxu0 %v4881
        %v4883 = vand.u32 %v3411, 4294901760
        %4884 = vmatpush1.msra.mxu0 %v4883
        %v4885 = vand.u32 %v3474, 4294901760
        %4886 = vmatprep.subr.mxu0 %v4885
        %v4887 = vand.u32 %v3473, 4294901760
        %4888 = vmatpush2.msra.mxu0 %v4887
        %v4889 = vand.u32 %v3472, 4294901760
        %4890 = vmatprep.subr.mxu0 %v4889
        %v4891 = vand.u32 %v3471, 4294901760
        %4892 = vmatpush2.msra.mxu0 %v4891
        %v4893 = vand.u32 %v3470, 4294901760
        %4894 = vmatprep.subr.mxu0 %v4893
        %v4895 = vand.u32 %v3469, 4294901760
        %4896 = vmatpush2.msra.mxu0 %v4895
        %v4897 = vand.u32 %v3468, 4294901760
        %4898 = vmatprep.subr.mxu0 %v4897
        %v4899 = vand.u32 %v3467, 4294901760
        %4900 = vmatpush2.msra.mxu0 %v4899
        %v4901 = vand.u32 %v3466, 4294901760
        %4902 = vmatprep.subr.mxu0 %v4901
        %v4903 = vand.u32 %v3465, 4294901760
        %4904 = vmatpush2.msra.mxu0 %v4903
        %v4905 = vand.u32 %v3464, 4294901760
        %4906 = vmatprep.subr.mxu0 %v4905
        %v4907 = vand.u32 %v3463, 4294901760
        %4908 = vmatpush2.msra.mxu0 %v4907
        %v4909 = vand.u32 %v3462, 4294901760
        %4910 = vmatprep.subr.mxu0 %v4909
        %v4911 = vand.u32 %v3461, 4294901760
        %4912 = vmatpush2.msra.mxu0 %v4911
        %v4913 = vand.u32 %v3460, 4294901760
        %4914 = vmatprep.subr.mxu0 %v4913
        %v4915 = vand.u32 %v3459, 4294901760
        %4916 = vmatpush2.msra.mxu0 %v4915
        %v4917 = vand.u32 %v3458, 4294901760
        %4918 = vmatprep.subr.mxu0 %v4917
        %v4919 = vand.u32 %v3457, 4294901760
        %4920 = vmatpush2.msra.mxu0 %v4919
        %v4921 = vand.u32 %v3456, 4294901760
        %4922 = vmatprep.subr.mxu0 %v4921
        %v4923 = vand.u32 %v3455, 4294901760
        %4924 = vmatpush2.msra.mxu0 %v4923
        %v4925 = vand.u32 %v3454, 4294901760
        %4926 = vmatprep.subr.mxu0 %v4925
        %v4927 = vand.u32 %v3453, 4294901760
        %4928 = vmatpush2.msra.mxu0 %v4927
        %v4929 = vand.u32 %v3452, 4294901760
        %4930 = vmatprep.subr.mxu0 %v4929
        %v4931 = vand.u32 %v3451, 4294901760
        %4932 = vmatpush2.msra.mxu0 %v4931
        %v4933 = vand.u32 %v3450, 4294901760
        %4934 = vmatprep.subr.mxu0 %v4933
        %v4935 = vand.u32 %v3449, 4294901760
        %4936 = vmatpush2.msra.mxu0 %v4935
        %v4937 = vand.u32 %v3448, 4294901760
        %4938 = vmatprep.subr.mxu0 %v4937
        %v4939 = vand.u32 %v3447, 4294901760
        %4940 = vmatpush2.msra.mxu0 %v4939
        %v4941 = vand.u32 %v3446, 4294901760
        %4942 = vmatprep.subr.mxu0 %v4941
        %v4943 = vand.u32 %v3445, 4294901760
        %4944 = vmatpush2.msra.mxu0 %v4943
        %v4945 = vand.u32 %v3444, 4294901760
        %4946 = vmatprep.subr.mxu0 %v4945
        %v4947 = vand.u32 %v3443, 4294901760
        %4948 = vmatpush2.msra.mxu0 %v4947
        %v4949 = vand.u32 %v3342, 4294901760
        %v4950 = vsub.f32 %v3342, %v4949
        %v4951 = vand.u32 %v4950, 4294901760
        %v4952 = vsub.f32 %v4950, %v4951
        %v4953 = vand.u32 %v4952, 4294901760
        %4954 = vmatprep.mubr.f32.mxu0 %v4953
        %v4955 = vand.u32 %v3341, 4294901760
        %v4956 = vsub.f32 %v3341, %v4955
        %v4957 = vand.u32 %v4956, 4294901760
        %v4958 = vsub.f32 %v4956, %v4957
        %v4959 = vand.u32 %v4958, 4294901760
        %4960 = vmatmul.mubr.f32.gmra.mxu0 %v4959
        %v4961 = vpop.f32.mrf.mxu0
        %v4962 = vadd.f32 %v4809, %v4961
        %v4963 = vpop.f32.mrf.mxu0
        %v4964 = vadd.f32 %v4811, %v4963
        %v4965 = vand.u32 %v3346, 4294901760
        %v4966 = vsub.f32 %v3346, %v4965
        %v4967 = vand.u32 %v4966, 4294901760
        %v4968 = vsub.f32 %v4966, %v4967
        %v4969 = vand.u32 %v4968, 4294901760
        %4970 = vmatprep.mubr.f32.mxu0 %v4969
        %v4971 = vand.u32 %v3345, 4294901760
        %v4972 = vsub.f32 %v3345, %v4971
        %v4973 = vand.u32 %v4972, 4294901760
        %v4974 = vsub.f32 %v4972, %v4973
        %v4975 = vand.u32 %v4974, 4294901760
        %4976 = vmatmul.mubr.f32.gmra.mxu0 %v4975
        %v4977 = vpop.f32.mrf.mxu0
        %v4978 = vadd.f32 %v4817, %v4977
        %v4979 = vpop.f32.mrf.mxu0
        %v4980 = vadd.f32 %v4819, %v4979
        %4981 = vdwg.mxu0
        %v4982 = vand.u32 %v3442, 4294901760
        %v4983 = vsub.f32 %v3442, %v4982
        %v4984 = vand.u32 %v4983, 4294901760
        %v4985 = vsub.f32 %v4983, %v4984
        %v4986 = vand.u32 %v4985, 4294901760
        %4987 = vmatprep.subr.mxu0 %v4986
        %v4988 = vand.u32 %v3441, 4294901760
        %v4989 = vsub.f32 %v3441, %v4988
        %v4990 = vand.u32 %v4989, 4294901760
        %v4991 = vsub.f32 %v4989, %v4990
        %v4992 = vand.u32 %v4991, 4294901760
        %4993 = vmatpush1.msra.mxu0 %v4992
        %v4994 = vand.u32 %v3440, 4294901760
        %v4995 = vsub.f32 %v3440, %v4994
        %v4996 = vand.u32 %v4995, 4294901760
        %v4997 = vsub.f32 %v4995, %v4996
        %v4998 = vand.u32 %v4997, 4294901760
        %4999 = vmatprep.subr.mxu0 %v4998
        %v5000 = vand.u32 %v3439, 4294901760
        %v5001 = vsub.f32 %v3439, %v5000
        %v5002 = vand.u32 %v5001, 4294901760
        %v5003 = vsub.f32 %v5001, %v5002
        %v5004 = vand.u32 %v5003, 4294901760
        %5005 = vmatpush1.msra.mxu0 %v5004
        %v5006 = vand.u32 %v3438, 4294901760
        %v5007 = vsub.f32 %v3438, %v5006
        %v5008 = vand.u32 %v5007, 4294901760
        %v5009 = vsub.f32 %v5007, %v5008
        %v5010 = vand.u32 %v5009, 4294901760
        %5011 = vmatprep.subr.mxu0 %v5010
        %v5012 = vand.u32 %v3437, 4294901760
        %v5013 = vsub.f32 %v3437, %v5012
        %v5014 = vand.u32 %v5013, 4294901760
        %v5015 = vsub.f32 %v5013, %v5014
        %v5016 = vand.u32 %v5015, 4294901760
        %5017 = vmatpush1.msra.mxu0 %v5016
        %v5018 = vand.u32 %v3436, 4294901760
        %v5019 = vsub.f32 %v3436, %v5018
        %v5020 = vand.u32 %v5019, 4294901760
        %v5021 = vsub.f32 %v5019, %v5020
        %v5022 = vand.u32 %v5021, 4294901760
        %5023 = vmatprep.subr.mxu0 %v5022
        %v5024 = vand.u32 %v3435, 4294901760
        %v5025 = vsub.f32 %v3435, %v5024
        %v5026 = vand.u32 %v5025, 4294901760
        %v5027 = vsub.f32 %v5025, %v5026
        %v5028 = vand.u32 %v5027, 4294901760
        %5029 = vmatpush1.msra.mxu0 %v5028
        %v5030 = vand.u32 %v3434, 4294901760
        %v5031 = vsub.f32 %v3434, %v5030
        %v5032 = vand.u32 %v5031, 4294901760
        %v5033 = vsub.f32 %v5031, %v5032
        %v5034 = vand.u32 %v5033, 4294901760
        %5035 = vmatprep.subr.mxu0 %v5034
        %v5036 = vand.u32 %v3433, 4294901760
        %v5037 = vsub.f32 %v3433, %v5036
        %v5038 = vand.u32 %v5037, 4294901760
        %v5039 = vsub.f32 %v5037, %v5038
        %v5040 = vand.u32 %v5039, 4294901760
        %5041 = vmatpush1.msra.mxu0 %v5040
        %v5042 = vand.u32 %v3432, 4294901760
        %v5043 = vsub.f32 %v3432, %v5042
        %v5044 = vand.u32 %v5043, 4294901760
        %v5045 = vsub.f32 %v5043, %v5044
        %v5046 = vand.u32 %v5045, 4294901760
        %5047 = vmatprep.subr.mxu0 %v5046
        %v5048 = vand.u32 %v3431, 4294901760
        %v5049 = vsub.f32 %v3431, %v5048
        %v5050 = vand.u32 %v5049, 4294901760
        %v5051 = vsub.f32 %v5049, %v5050
        %v5052 = vand.u32 %v5051, 4294901760
        %5053 = vmatpush1.msra.mxu0 %v5052
        %v5054 = vand.u32 %v3430, 4294901760
        %v5055 = vsub.f32 %v3430, %v5054
        %v5056 = vand.u32 %v5055, 4294901760
        %v5057 = vsub.f32 %v5055, %v5056
        %v5058 = vand.u32 %v5057, 4294901760
        %5059 = vmatprep.subr.mxu0 %v5058
        %v5060 = vand.u32 %v3429, 4294901760
        %v5061 = vsub.f32 %v3429, %v5060
        %v5062 = vand.u32 %v5061, 4294901760
        %v5063 = vsub.f32 %v5061, %v5062
        %v5064 = vand.u32 %v5063, 4294901760
        %5065 = vmatpush1.msra.mxu0 %v5064
        %v5066 = vand.u32 %v3428, 4294901760
        %v5067 = vsub.f32 %v3428, %v5066
        %v5068 = vand.u32 %v5067, 4294901760
        %v5069 = vsub.f32 %v5067, %v5068
        %v5070 = vand.u32 %v5069, 4294901760
        %5071 = vmatprep.subr.mxu0 %v5070
        %v5072 = vand.u32 %v3427, 4294901760
        %v5073 = vsub.f32 %v3427, %v5072
        %v5074 = vand.u32 %v5073, 4294901760
        %v5075 = vsub.f32 %v5073, %v5074
        %v5076 = vand.u32 %v5075, 4294901760
        %5077 = vmatpush1.msra.mxu0 %v5076
        %v5078 = vand.u32 %v3426, 4294901760
        %v5079 = vsub.f32 %v3426, %v5078
        %v5080 = vand.u32 %v5079, 4294901760
        %v5081 = vsub.f32 %v5079, %v5080
        %v5082 = vand.u32 %v5081, 4294901760
        %5083 = vmatprep.subr.mxu0 %v5082
        %v5084 = vand.u32 %v3425, 4294901760
        %v5085 = vsub.f32 %v3425, %v5084
        %v5086 = vand.u32 %v5085, 4294901760
        %v5087 = vsub.f32 %v5085, %v5086
        %v5088 = vand.u32 %v5087, 4294901760
        %5089 = vmatpush1.msra.mxu0 %v5088
        %v5090 = vand.u32 %v3424, 4294901760
        %v5091 = vsub.f32 %v3424, %v5090
        %v5092 = vand.u32 %v5091, 4294901760
        %v5093 = vsub.f32 %v5091, %v5092
        %v5094 = vand.u32 %v5093, 4294901760
        %5095 = vmatprep.subr.mxu0 %v5094
        %v5096 = vand.u32 %v3423, 4294901760
        %v5097 = vsub.f32 %v3423, %v5096
        %v5098 = vand.u32 %v5097, 4294901760
        %v5099 = vsub.f32 %v5097, %v5098
        %v5100 = vand.u32 %v5099, 4294901760
        %5101 = vmatpush1.msra.mxu0 %v5100
        %v5102 = vand.u32 %v3422, 4294901760
        %v5103 = vsub.f32 %v3422, %v5102
        %v5104 = vand.u32 %v5103, 4294901760
        %v5105 = vsub.f32 %v5103, %v5104
        %v5106 = vand.u32 %v5105, 4294901760
        %5107 = vmatprep.subr.mxu0 %v5106
        %v5108 = vand.u32 %v3421, 4294901760
        %v5109 = vsub.f32 %v3421, %v5108
        %v5110 = vand.u32 %v5109, 4294901760
        %v5111 = vsub.f32 %v5109, %v5110
        %v5112 = vand.u32 %v5111, 4294901760
        %5113 = vmatpush1.msra.mxu0 %v5112
        %v5114 = vand.u32 %v3420, 4294901760
        %v5115 = vsub.f32 %v3420, %v5114
        %v5116 = vand.u32 %v5115, 4294901760
        %v5117 = vsub.f32 %v5115, %v5116
        %v5118 = vand.u32 %v5117, 4294901760
        %5119 = vmatprep.subr.mxu0 %v5118
        %v5120 = vand.u32 %v3419, 4294901760
        %v5121 = vsub.f32 %v3419, %v5120
        %v5122 = vand.u32 %v5121, 4294901760
        %v5123 = vsub.f32 %v5121, %v5122
        %v5124 = vand.u32 %v5123, 4294901760
        %5125 = vmatpush1.msra.mxu0 %v5124
        %v5126 = vand.u32 %v3418, 4294901760
        %v5127 = vsub.f32 %v3418, %v5126
        %v5128 = vand.u32 %v5127, 4294901760
        %v5129 = vsub.f32 %v5127, %v5128
        %v5130 = vand.u32 %v5129, 4294901760
        %5131 = vmatprep.subr.mxu0 %v5130
        %v5132 = vand.u32 %v3417, 4294901760
        %v5133 = vsub.f32 %v3417, %v5132
        %v5134 = vand.u32 %v5133, 4294901760
        %v5135 = vsub.f32 %v5133, %v5134
        %v5136 = vand.u32 %v5135, 4294901760
        %5137 = vmatpush1.msra.mxu0 %v5136
        %v5138 = vand.u32 %v3416, 4294901760
        %v5139 = vsub.f32 %v3416, %v5138
        %v5140 = vand.u32 %v5139, 4294901760
        %v5141 = vsub.f32 %v5139, %v5140
        %v5142 = vand.u32 %v5141, 4294901760
        %5143 = vmatprep.subr.mxu0 %v5142
        %v5144 = vand.u32 %v3415, 4294901760
        %v5145 = vsub.f32 %v3415, %v5144
        %v5146 = vand.u32 %v5145, 4294901760
        %v5147 = vsub.f32 %v5145, %v5146
        %v5148 = vand.u32 %v5147, 4294901760
        %5149 = vmatpush1.msra.mxu0 %v5148
        %v5150 = vand.u32 %v3414, 4294901760
        %v5151 = vsub.f32 %v3414, %v5150
        %v5152 = vand.u32 %v5151, 4294901760
        %v5153 = vsub.f32 %v5151, %v5152
        %v5154 = vand.u32 %v5153, 4294901760
        %5155 = vmatprep.subr.mxu0 %v5154
        %v5156 = vand.u32 %v3413, 4294901760
        %v5157 = vsub.f32 %v3413, %v5156
        %v5158 = vand.u32 %v5157, 4294901760
        %v5159 = vsub.f32 %v5157, %v5158
        %v5160 = vand.u32 %v5159, 4294901760
        %5161 = vmatpush1.msra.mxu0 %v5160
        %v5162 = vand.u32 %v3412, 4294901760
        %v5163 = vsub.f32 %v3412, %v5162
        %v5164 = vand.u32 %v5163, 4294901760
        %v5165 = vsub.f32 %v5163, %v5164
        %v5166 = vand.u32 %v5165, 4294901760
        %5167 = vmatprep.subr.mxu0 %v5166
        %v5168 = vand.u32 %v3411, 4294901760
        %v5169 = vsub.f32 %v3411, %v5168
        %v5170 = vand.u32 %v5169, 4294901760
        %v5171 = vsub.f32 %v5169, %v5170
        %v5172 = vand.u32 %v5171, 4294901760
        %5173 = vmatpush1.msra.mxu0 %v5172
        %v5174 = vand.u32 %v3474, 4294901760
        %v5175 = vsub.f32 %v3474, %v5174
        %v5176 = vand.u32 %v5175, 4294901760
        %v5177 = vsub.f32 %v5175, %v5176
        %v5178 = vand.u32 %v5177, 4294901760
        %5179 = vmatprep.subr.mxu0 %v5178
        %v5180 = vand.u32 %v3473, 4294901760
        %v5181 = vsub.f32 %v3473, %v5180
        %v5182 = vand.u32 %v5181, 4294901760
        %v5183 = vsub.f32 %v5181, %v5182
        %v5184 = vand.u32 %v5183, 4294901760
        %5185 = vmatpush2.msra.mxu0 %v5184
        %v5186 = vand.u32 %v3472, 4294901760
        %v5187 = vsub.f32 %v3472, %v5186
        %v5188 = vand.u32 %v5187, 4294901760
        %v5189 = vsub.f32 %v5187, %v5188
        %v5190 = vand.u32 %v5189, 4294901760
        %5191 = vmatprep.subr.mxu0 %v5190
        %v5192 = vand.u32 %v3471, 4294901760
        %v5193 = vsub.f32 %v3471, %v5192
        %v5194 = vand.u32 %v5193, 4294901760
        %v5195 = vsub.f32 %v5193, %v5194
        %v5196 = vand.u32 %v5195, 4294901760
        %5197 = vmatpush2.msra.mxu0 %v5196
        %v5198 = vand.u32 %v3470, 4294901760
        %v5199 = vsub.f32 %v3470, %v5198
        %v5200 = vand.u32 %v5199, 4294901760
        %v5201 = vsub.f32 %v5199, %v5200
        %v5202 = vand.u32 %v5201, 4294901760
        %5203 = vmatprep.subr.mxu0 %v5202
        %v5204 = vand.u32 %v3469, 4294901760
        %v5205 = vsub.f32 %v3469, %v5204
        %v5206 = vand.u32 %v5205, 4294901760
        %v5207 = vsub.f32 %v5205, %v5206
        %v5208 = vand.u32 %v5207, 4294901760
        %5209 = vmatpush2.msra.mxu0 %v5208
        %v5210 = vand.u32 %v3468, 4294901760
        %v5211 = vsub.f32 %v3468, %v5210
        %v5212 = vand.u32 %v5211, 4294901760
        %v5213 = vsub.f32 %v5211, %v5212
        %v5214 = vand.u32 %v5213, 4294901760
        %5215 = vmatprep.subr.mxu0 %v5214
        %v5216 = vand.u32 %v3467, 4294901760
        %v5217 = vsub.f32 %v3467, %v5216
        %v5218 = vand.u32 %v5217, 4294901760
        %v5219 = vsub.f32 %v5217, %v5218
        %v5220 = vand.u32 %v5219, 4294901760
        %5221 = vmatpush2.msra.mxu0 %v5220
        %v5222 = vand.u32 %v3466, 4294901760
        %v5223 = vsub.f32 %v3466, %v5222
        %v5224 = vand.u32 %v5223, 4294901760
        %v5225 = vsub.f32 %v5223, %v5224
        %v5226 = vand.u32 %v5225, 4294901760
        %5227 = vmatprep.subr.mxu0 %v5226
        %v5228 = vand.u32 %v3465, 4294901760
        %v5229 = vsub.f32 %v3465, %v5228
        %v5230 = vand.u32 %v5229, 4294901760
        %v5231 = vsub.f32 %v5229, %v5230
        %v5232 = vand.u32 %v5231, 4294901760
        %5233 = vmatpush2.msra.mxu0 %v5232
        %v5234 = vand.u32 %v3464, 4294901760
        %v5235 = vsub.f32 %v3464, %v5234
        %v5236 = vand.u32 %v5235, 4294901760
        %v5237 = vsub.f32 %v5235, %v5236
        %v5238 = vand.u32 %v5237, 4294901760
        %5239 = vmatprep.subr.mxu0 %v5238
        %v5240 = vand.u32 %v3463, 4294901760
        %v5241 = vsub.f32 %v3463, %v5240
        %v5242 = vand.u32 %v5241, 4294901760
        %v5243 = vsub.f32 %v5241, %v5242
        %v5244 = vand.u32 %v5243, 4294901760
        %5245 = vmatpush2.msra.mxu0 %v5244
        %v5246 = vand.u32 %v3462, 4294901760
        %v5247 = vsub.f32 %v3462, %v5246
        %v5248 = vand.u32 %v5247, 4294901760
        %v5249 = vsub.f32 %v5247, %v5248
        %v5250 = vand.u32 %v5249, 4294901760
        %5251 = vmatprep.subr.mxu0 %v5250
        %v5252 = vand.u32 %v3461, 4294901760
        %v5253 = vsub.f32 %v3461, %v5252
        %v5254 = vand.u32 %v5253, 4294901760
        %v5255 = vsub.f32 %v5253, %v5254
        %v5256 = vand.u32 %v5255, 4294901760
        %5257 = vmatpush2.msra.mxu0 %v5256
        %v5258 = vand.u32 %v3460, 4294901760
        %v5259 = vsub.f32 %v3460, %v5258
        %v5260 = vand.u32 %v5259, 4294901760
        %v5261 = vsub.f32 %v5259, %v5260
        %v5262 = vand.u32 %v5261, 4294901760
        %5263 = vmatprep.subr.mxu0 %v5262
        %v5264 = vand.u32 %v3459, 4294901760
        %v5265 = vsub.f32 %v3459, %v5264
        %v5266 = vand.u32 %v5265, 4294901760
        %v5267 = vsub.f32 %v5265, %v5266
        %v5268 = vand.u32 %v5267, 4294901760
        %5269 = vmatpush2.msra.mxu0 %v5268
        %v5270 = vand.u32 %v3458, 4294901760
        %v5271 = vsub.f32 %v3458, %v5270
        %v5272 = vand.u32 %v5271, 4294901760
        %v5273 = vsub.f32 %v5271, %v5272
        %v5274 = vand.u32 %v5273, 4294901760
        %5275 = vmatprep.subr.mxu0 %v5274
        %v5276 = vand.u32 %v3457, 4294901760
        %v5277 = vsub.f32 %v3457, %v5276
        %v5278 = vand.u32 %v5277, 4294901760
        %v5279 = vsub.f32 %v5277, %v5278
        %v5280 = vand.u32 %v5279, 4294901760
        %5281 = vmatpush2.msra.mxu0 %v5280
        %v5282 = vand.u32 %v3456, 4294901760
        %v5283 = vsub.f32 %v3456, %v5282
        %v5284 = vand.u32 %v5283, 4294901760
        %v5285 = vsub.f32 %v5283, %v5284
        %v5286 = vand.u32 %v5285, 4294901760
        %5287 = vmatprep.subr.mxu0 %v5286
        %v5288 = vand.u32 %v3455, 4294901760
        %v5289 = vsub.f32 %v3455, %v5288
        %v5290 = vand.u32 %v5289, 4294901760
        %v5291 = vsub.f32 %v5289, %v5290
        %v5292 = vand.u32 %v5291, 4294901760
        %5293 = vmatpush2.msra.mxu0 %v5292
        %v5294 = vand.u32 %v3454, 4294901760
        %v5295 = vsub.f32 %v3454, %v5294
        %v5296 = vand.u32 %v5295, 4294901760
        %v5297 = vsub.f32 %v5295, %v5296
        %v5298 = vand.u32 %v5297, 4294901760
        %5299 = vmatprep.subr.mxu0 %v5298
        %v5300 = vand.u32 %v3453, 4294901760
        %v5301 = vsub.f32 %v3453, %v5300
        %v5302 = vand.u32 %v5301, 4294901760
        %v5303 = vsub.f32 %v5301, %v5302
        %v5304 = vand.u32 %v5303, 4294901760
        %5305 = vmatpush2.msra.mxu0 %v5304
        %v5306 = vand.u32 %v3452, 4294901760
        %v5307 = vsub.f32 %v3452, %v5306
        %v5308 = vand.u32 %v5307, 4294901760
        %v5309 = vsub.f32 %v5307, %v5308
        %v5310 = vand.u32 %v5309, 4294901760
        %5311 = vmatprep.subr.mxu0 %v5310
        %v5312 = vand.u32 %v3451, 4294901760
        %v5313 = vsub.f32 %v3451, %v5312
        %v5314 = vand.u32 %v5313, 4294901760
        %v5315 = vsub.f32 %v5313, %v5314
        %v5316 = vand.u32 %v5315, 4294901760
        %5317 = vmatpush2.msra.mxu0 %v5316
        %v5318 = vand.u32 %v3450, 4294901760
        %v5319 = vsub.f32 %v3450, %v5318
        %v5320 = vand.u32 %v5319, 4294901760
        %v5321 = vsub.f32 %v5319, %v5320
        %v5322 = vand.u32 %v5321, 4294901760
        %5323 = vmatprep.subr.mxu0 %v5322
        %v5324 = vand.u32 %v3449, 4294901760
        %v5325 = vsub.f32 %v3449, %v5324
        %v5326 = vand.u32 %v5325, 4294901760
        %v5327 = vsub.f32 %v5325, %v5326
        %v5328 = vand.u32 %v5327, 4294901760
        %5329 = vmatpush2.msra.mxu0 %v5328
        %v5330 = vand.u32 %v3448, 4294901760
        %v5331 = vsub.f32 %v3448, %v5330
        %v5332 = vand.u32 %v5331, 4294901760
        %v5333 = vsub.f32 %v5331, %v5332
        %v5334 = vand.u32 %v5333, 4294901760
        %5335 = vmatprep.subr.mxu0 %v5334
        %v5336 = vand.u32 %v3447, 4294901760
        %v5337 = vsub.f32 %v3447, %v5336
        %v5338 = vand.u32 %v5337, 4294901760
        %v5339 = vsub.f32 %v5337, %v5338
        %v5340 = vand.u32 %v5339, 4294901760
        %5341 = vmatpush2.msra.mxu0 %v5340
        %v5342 = vand.u32 %v3446, 4294901760
        %v5343 = vsub.f32 %v3446, %v5342
        %v5344 = vand.u32 %v5343, 4294901760
        %v5345 = vsub.f32 %v5343, %v5344
        %v5346 = vand.u32 %v5345, 4294901760
        %5347 = vmatprep.subr.mxu0 %v5346
        %v5348 = vand.u32 %v3445, 4294901760
        %v5349 = vsub.f32 %v3445, %v5348
        %v5350 = vand.u32 %v5349, 4294901760
        %v5351 = vsub.f32 %v5349, %v5350
        %v5352 = vand.u32 %v5351, 4294901760
        %5353 = vmatpush2.msra.mxu0 %v5352
        %v5354 = vand.u32 %v3444, 4294901760
        %v5355 = vsub.f32 %v3444, %v5354
        %v5356 = vand.u32 %v5355, 4294901760
        %v5357 = vsub.f32 %v5355, %v5356
        %v5358 = vand.u32 %v5357, 4294901760
        %5359 = vmatprep.subr.mxu0 %v5358
        %v5360 = vand.u32 %v3443, 4294901760
        %v5361 = vsub.f32 %v3443, %v5360
        %v5362 = vand.u32 %v5361, 4294901760
        %v5363 = vsub.f32 %v5361, %v5362
        %v5364 = vand.u32 %v5363, 4294901760
        %5365 = vmatpush2.msra.mxu0 %v5364
        %v5366 = vand.u32 %v3342, 4294901760
        %5367 = vmatprep.mubr.f32.mxu0 %v5366
        %v5368 = vand.u32 %v3341, 4294901760
        %5369 = vmatmul.mubr.f32.gmra.mxu0 %v5368
        %v5370 = vpop.f32.mrf.mxu0
        %v5371 = vadd.f32 %v4962, %v5370
        %v5372 = vpop.f32.mrf.mxu0
        %v5373 = vadd.f32 %v4964, %v5372
        %v5374 = vand.u32 %v3346, 4294901760
        %5375 = vmatprep.mubr.f32.mxu0 %v5374
        %v5376 = vand.u32 %v3345, 4294901760
        %5377 = vmatmul.mubr.f32.gmra.mxu0 %v5376
        %v5378 = vpop.f32.mrf.mxu0
        %v5379 = vadd.f32 %v4978, %v5378
        %v5380 = vpop.f32.mrf.mxu0
        %v5381 = vadd.f32 %v4980, %v5380
        %5382 = vdwg.mxu0
        %v5383 = vand.u32 %v3442, 4294901760
        %v5384 = vsub.f32 %v3442, %v5383
        %5385 = vmatprep.subr.mxu0 %v5384
        %v5386 = vand.u32 %v3441, 4294901760
        %v5387 = vsub.f32 %v3441, %v5386
        %5388 = vmatpush1.msra.mxu0 %v5387
        %v5389 = vand.u32 %v3440, 4294901760
        %v5390 = vsub.f32 %v3440, %v5389
        %5391 = vmatprep.subr.mxu0 %v5390
        %v5392 = vand.u32 %v3439, 4294901760
        %v5393 = vsub.f32 %v3439, %v5392
        %5394 = vmatpush1.msra.mxu0 %v5393
        %v5395 = vand.u32 %v3438, 4294901760
        %v5396 = vsub.f32 %v3438, %v5395
        %5397 = vmatprep.subr.mxu0 %v5396
        %v5398 = vand.u32 %v3437, 4294901760
        %v5399 = vsub.f32 %v3437, %v5398
        %5400 = vmatpush1.msra.mxu0 %v5399
        %v5401 = vand.u32 %v3436, 4294901760
        %v5402 = vsub.f32 %v3436, %v5401
        %5403 = vmatprep.subr.mxu0 %v5402
        %v5404 = vand.u32 %v3435, 4294901760
        %v5405 = vsub.f32 %v3435, %v5404
        %5406 = vmatpush1.msra.mxu0 %v5405
        %v5407 = vand.u32 %v3434, 4294901760
        %v5408 = vsub.f32 %v3434, %v5407
        %5409 = vmatprep.subr.mxu0 %v5408
        %v5410 = vand.u32 %v3433, 4294901760
        %v5411 = vsub.f32 %v3433, %v5410
        %5412 = vmatpush1.msra.mxu0 %v5411
        %v5413 = vand.u32 %v3432, 4294901760
        %v5414 = vsub.f32 %v3432, %v5413
        %5415 = vmatprep.subr.mxu0 %v5414
        %v5416 = vand.u32 %v3431, 4294901760
        %v5417 = vsub.f32 %v3431, %v5416
        %5418 = vmatpush1.msra.mxu0 %v5417
        %v5419 = vand.u32 %v3430, 4294901760
        %v5420 = vsub.f32 %v3430, %v5419
        %5421 = vmatprep.subr.mxu0 %v5420
        %v5422 = vand.u32 %v3429, 4294901760
        %v5423 = vsub.f32 %v3429, %v5422
        %5424 = vmatpush1.msra.mxu0 %v5423
        %v5425 = vand.u32 %v3428, 4294901760
        %v5426 = vsub.f32 %v3428, %v5425
        %5427 = vmatprep.subr.mxu0 %v5426
        %v5428 = vand.u32 %v3427, 4294901760
        %v5429 = vsub.f32 %v3427, %v5428
        %5430 = vmatpush1.msra.mxu0 %v5429
        %v5431 = vand.u32 %v3426, 4294901760
        %v5432 = vsub.f32 %v3426, %v5431
        %5433 = vmatprep.subr.mxu0 %v5432
        %v5434 = vand.u32 %v3425, 4294901760
        %v5435 = vsub.f32 %v3425, %v5434
        %5436 = vmatpush1.msra.mxu0 %v5435
        %v5437 = vand.u32 %v3424, 4294901760
        %v5438 = vsub.f32 %v3424, %v5437
        %5439 = vmatprep.subr.mxu0 %v5438
        %v5440 = vand.u32 %v3423, 4294901760
        %v5441 = vsub.f32 %v3423, %v5440
        %5442 = vmatpush1.msra.mxu0 %v5441
        %v5443 = vand.u32 %v3422, 4294901760
        %v5444 = vsub.f32 %v3422, %v5443
        %5445 = vmatprep.subr.mxu0 %v5444
        %v5446 = vand.u32 %v3421, 4294901760
        %v5447 = vsub.f32 %v3421, %v5446
        %5448 = vmatpush1.msra.mxu0 %v5447
        %v5449 = vand.u32 %v3420, 4294901760
        %v5450 = vsub.f32 %v3420, %v5449
        %5451 = vmatprep.subr.mxu0 %v5450
        %v5452 = vand.u32 %v3419, 4294901760
        %v5453 = vsub.f32 %v3419, %v5452
        %5454 = vmatpush1.msra.mxu0 %v5453
        %v5455 = vand.u32 %v3418, 4294901760
        %v5456 = vsub.f32 %v3418, %v5455
        %5457 = vmatprep.subr.mxu0 %v5456
        %v5458 = vand.u32 %v3417, 4294901760
        %v5459 = vsub.f32 %v3417, %v5458
        %5460 = vmatpush1.msra.mxu0 %v5459
        %v5461 = vand.u32 %v3416, 4294901760
        %v5462 = vsub.f32 %v3416, %v5461
        %5463 = vmatprep.subr.mxu0 %v5462
        %v5464 = vand.u32 %v3415, 4294901760
        %v5465 = vsub.f32 %v3415, %v5464
        %5466 = vmatpush1.msra.mxu0 %v5465
        %v5467 = vand.u32 %v3414, 4294901760
        %v5468 = vsub.f32 %v3414, %v5467
        %5469 = vmatprep.subr.mxu0 %v5468
        %v5470 = vand.u32 %v3413, 4294901760
        %v5471 = vsub.f32 %v3413, %v5470
        %5472 = vmatpush1.msra.mxu0 %v5471
        %v5473 = vand.u32 %v3412, 4294901760
        %v5474 = vsub.f32 %v3412, %v5473
        %5475 = vmatprep.subr.mxu0 %v5474
        %v5476 = vand.u32 %v3411, 4294901760
        %v5477 = vsub.f32 %v3411, %v5476
        %5478 = vmatpush1.msra.mxu0 %v5477
        %v5479 = vand.u32 %v3474, 4294901760
        %v5480 = vsub.f32 %v3474, %v5479
        %5481 = vmatprep.subr.mxu0 %v5480
        %v5482 = vand.u32 %v3473, 4294901760
        %v5483 = vsub.f32 %v3473, %v5482
        %5484 = vmatpush2.msra.mxu0 %v5483
        %v5485 = vand.u32 %v3472, 4294901760
        %v5486 = vsub.f32 %v3472, %v5485
        %5487 = vmatprep.subr.mxu0 %v5486
        %v5488 = vand.u32 %v3471, 4294901760
        %v5489 = vsub.f32 %v3471, %v5488
        %5490 = vmatpush2.msra.mxu0 %v5489
        %v5491 = vand.u32 %v3470, 4294901760
        %v5492 = vsub.f32 %v3470, %v5491
        %5493 = vmatprep.subr.mxu0 %v5492
        %v5494 = vand.u32 %v3469, 4294901760
        %v5495 = vsub.f32 %v3469, %v5494
        %5496 = vmatpush2.msra.mxu0 %v5495
        %v5497 = vand.u32 %v3468, 4294901760
        %v5498 = vsub.f32 %v3468, %v5497
        %5499 = vmatprep.subr.mxu0 %v5498
        %v5500 = vand.u32 %v3467, 4294901760
        %v5501 = vsub.f32 %v3467, %v5500
        %5502 = vmatpush2.msra.mxu0 %v5501
        %v5503 = vand.u32 %v3466, 4294901760
        %v5504 = vsub.f32 %v3466, %v5503
        %5505 = vmatprep.subr.mxu0 %v5504
        %v5506 = vand.u32 %v3465, 4294901760
        %v5507 = vsub.f32 %v3465, %v5506
        %5508 = vmatpush2.msra.mxu0 %v5507
        %v5509 = vand.u32 %v3464, 4294901760
        %v5510 = vsub.f32 %v3464, %v5509
        %5511 = vmatprep.subr.mxu0 %v5510
        %v5512 = vand.u32 %v3463, 4294901760
        %v5513 = vsub.f32 %v3463, %v5512
        %5514 = vmatpush2.msra.mxu0 %v5513
        %v5515 = vand.u32 %v3462, 4294901760
        %v5516 = vsub.f32 %v3462, %v5515
        %5517 = vmatprep.subr.mxu0 %v5516
        %v5518 = vand.u32 %v3461, 4294901760
        %v5519 = vsub.f32 %v3461, %v5518
        %5520 = vmatpush2.msra.mxu0 %v5519
        %v5521 = vand.u32 %v3460, 4294901760
        %v5522 = vsub.f32 %v3460, %v5521
        %5523 = vmatprep.subr.mxu0 %v5522
        %v5524 = vand.u32 %v3459, 4294901760
        %v5525 = vsub.f32 %v3459, %v5524
        %5526 = vmatpush2.msra.mxu0 %v5525
        %v5527 = vand.u32 %v3458, 4294901760
        %v5528 = vsub.f32 %v3458, %v5527
        %5529 = vmatprep.subr.mxu0 %v5528
        %v5530 = vand.u32 %v3457, 4294901760
        %v5531 = vsub.f32 %v3457, %v5530
        %5532 = vmatpush2.msra.mxu0 %v5531
        %v5533 = vand.u32 %v3456, 4294901760
        %v5534 = vsub.f32 %v3456, %v5533
        %5535 = vmatprep.subr.mxu0 %v5534
        %v5536 = vand.u32 %v3455, 4294901760
        %v5537 = vsub.f32 %v3455, %v5536
        %5538 = vmatpush2.msra.mxu0 %v5537
        %v5539 = vand.u32 %v3454, 4294901760
        %v5540 = vsub.f32 %v3454, %v5539
        %5541 = vmatprep.subr.mxu0 %v5540
        %v5542 = vand.u32 %v3453, 4294901760
        %v5543 = vsub.f32 %v3453, %v5542
        %5544 = vmatpush2.msra.mxu0 %v5543
        %v5545 = vand.u32 %v3452, 4294901760
        %v5546 = vsub.f32 %v3452, %v5545
        %5547 = vmatprep.subr.mxu0 %v5546
        %v5548 = vand.u32 %v3451, 4294901760
        %v5549 = vsub.f32 %v3451, %v5548
        %5550 = vmatpush2.msra.mxu0 %v5549
        %v5551 = vand.u32 %v3450, 4294901760
        %v5552 = vsub.f32 %v3450, %v5551
        %5553 = vmatprep.subr.mxu0 %v5552
        %v5554 = vand.u32 %v3449, 4294901760
        %v5555 = vsub.f32 %v3449, %v5554
        %5556 = vmatpush2.msra.mxu0 %v5555
        %v5557 = vand.u32 %v3448, 4294901760
        %v5558 = vsub.f32 %v3448, %v5557
        %5559 = vmatprep.subr.mxu0 %v5558
        %v5560 = vand.u32 %v3447, 4294901760
        %v5561 = vsub.f32 %v3447, %v5560
        %5562 = vmatpush2.msra.mxu0 %v5561
        %v5563 = vand.u32 %v3446, 4294901760
        %v5564 = vsub.f32 %v3446, %v5563
        %5565 = vmatprep.subr.mxu0 %v5564
        %v5566 = vand.u32 %v3445, 4294901760
        %v5567 = vsub.f32 %v3445, %v5566
        %5568 = vmatpush2.msra.mxu0 %v5567
        %v5569 = vand.u32 %v3444, 4294901760
        %v5570 = vsub.f32 %v3444, %v5569
        %5571 = vmatprep.subr.mxu0 %v5570
        %v5572 = vand.u32 %v3443, 4294901760
        %v5573 = vsub.f32 %v3443, %v5572
        %5574 = vmatpush2.msra.mxu0 %v5573
        %v5575 = vand.u32 %v3342, 4294901760
        %v5576 = vsub.f32 %v3342, %v5575
        %5577 = vmatprep.mubr.f32.mxu0 %v5576
        %v5578 = vand.u32 %v3341, 4294901760
        %v5579 = vsub.f32 %v3341, %v5578
        %5580 = vmatmul.mubr.f32.gmra.mxu0 %v5579
        %v5581 = vpop.f32.mrf.mxu0
        %v5582 = vadd.f32 %v5371, %v5581
        %v5583 = vpop.f32.mrf.mxu0
        %v5584 = vadd.f32 %v5373, %v5583
        %v5585 = vand.u32 %v3346, 4294901760
        %v5586 = vsub.f32 %v3346, %v5585
        %5587 = vmatprep.mubr.f32.mxu0 %v5586
        %v5588 = vand.u32 %v3345, 4294901760
        %v5589 = vsub.f32 %v3345, %v5588
        %5590 = vmatmul.mubr.f32.gmra.mxu0 %v5589
        %v5591 = vpop.f32.mrf.mxu0
        %v5592 = vadd.f32 %v5379, %v5591
        %v5593 = vpop.f32.mrf.mxu0
        %v5594 = vadd.f32 %v5381, %v5593
        %5595 = vdwg.mxu0
        %v5596 = vand.u32 %v3442, 4294901760
        %5597 = vmatprep.subr.mxu0 %v5596
        %v5598 = vand.u32 %v3441, 4294901760
        %5599 = vmatpush1.msra.mxu0 %v5598
        %v5600 = vand.u32 %v3440, 4294901760
        %5601 = vmatprep.subr.mxu0 %v5600
        %v5602 = vand.u32 %v3439, 4294901760
        %5603 = vmatpush1.msra.mxu0 %v5602
        %v5604 = vand.u32 %v3438, 4294901760
        %5605 = vmatprep.subr.mxu0 %v5604
        %v5606 = vand.u32 %v3437, 4294901760
        %5607 = vmatpush1.msra.mxu0 %v5606
        %v5608 = vand.u32 %v3436, 4294901760
        %5609 = vmatprep.subr.mxu0 %v5608
        %v5610 = vand.u32 %v3435, 4294901760
        %5611 = vmatpush1.msra.mxu0 %v5610
        %v5612 = vand.u32 %v3434, 4294901760
        %5613 = vmatprep.subr.mxu0 %v5612
        %v5614 = vand.u32 %v3433, 4294901760
        %5615 = vmatpush1.msra.mxu0 %v5614
        %v5616 = vand.u32 %v3432, 4294901760
        %5617 = vmatprep.subr.mxu0 %v5616
        %v5618 = vand.u32 %v3431, 4294901760
        %5619 = vmatpush1.msra.mxu0 %v5618
        %v5620 = vand.u32 %v3430, 4294901760
        %5621 = vmatprep.subr.mxu0 %v5620
        %v5622 = vand.u32 %v3429, 4294901760
        %5623 = vmatpush1.msra.mxu0 %v5622
        %v5624 = vand.u32 %v3428, 4294901760
        %5625 = vmatprep.subr.mxu0 %v5624
        %v5626 = vand.u32 %v3427, 4294901760
        %5627 = vmatpush1.msra.mxu0 %v5626
        %v5628 = vand.u32 %v3426, 4294901760
        %5629 = vmatprep.subr.mxu0 %v5628
        %v5630 = vand.u32 %v3425, 4294901760
        %5631 = vmatpush1.msra.mxu0 %v5630
        %v5632 = vand.u32 %v3424, 4294901760
        %5633 = vmatprep.subr.mxu0 %v5632
        %v5634 = vand.u32 %v3423, 4294901760
        %5635 = vmatpush1.msra.mxu0 %v5634
        %v5636 = vand.u32 %v3422, 4294901760
        %5637 = vmatprep.subr.mxu0 %v5636
        %v5638 = vand.u32 %v3421, 4294901760
        %5639 = vmatpush1.msra.mxu0 %v5638
        %v5640 = vand.u32 %v3420, 4294901760
        %5641 = vmatprep.subr.mxu0 %v5640
        %v5642 = vand.u32 %v3419, 4294901760
        %5643 = vmatpush1.msra.mxu0 %v5642
        %v5644 = vand.u32 %v3418, 4294901760
        %5645 = vmatprep.subr.mxu0 %v5644
        %v5646 = vand.u32 %v3417, 4294901760
        %5647 = vmatpush1.msra.mxu0 %v5646
        %v5648 = vand.u32 %v3416, 4294901760
        %5649 = vmatprep.subr.mxu0 %v5648
        %v5650 = vand.u32 %v3415, 4294901760
        %5651 = vmatpush1.msra.mxu0 %v5650
        %v5652 = vand.u32 %v3414, 4294901760
        %5653 = vmatprep.subr.mxu0 %v5652
        %v5654 = vand.u32 %v3413, 4294901760
        %5655 = vmatpush1.msra.mxu0 %v5654
        %v5656 = vand.u32 %v3412, 4294901760
        %5657 = vmatprep.subr.mxu0 %v5656
        %v5658 = vand.u32 %v3411, 4294901760
        %5659 = vmatpush1.msra.mxu0 %v5658
        %v5660 = vand.u32 %v3474, 4294901760
        %5661 = vmatprep.subr.mxu0 %v5660
        %v5662 = vand.u32 %v3473, 4294901760
        %5663 = vmatpush2.msra.mxu0 %v5662
        %v5664 = vand.u32 %v3472, 4294901760
        %5665 = vmatprep.subr.mxu0 %v5664
        %v5666 = vand.u32 %v3471, 4294901760
        %5667 = vmatpush2.msra.mxu0 %v5666
        %v5668 = vand.u32 %v3470, 4294901760
        %5669 = vmatprep.subr.mxu0 %v5668
        %v5670 = vand.u32 %v3469, 4294901760
        %5671 = vmatpush2.msra.mxu0 %v5670
        %v5672 = vand.u32 %v3468, 4294901760
        %5673 = vmatprep.subr.mxu0 %v5672
        %v5674 = vand.u32 %v3467, 4294901760
        %5675 = vmatpush2.msra.mxu0 %v5674
        %v5676 = vand.u32 %v3466, 4294901760
        %5677 = vmatprep.subr.mxu0 %v5676
        %v5678 = vand.u32 %v3465, 4294901760
        %5679 = vmatpush2.msra.mxu0 %v5678
        %v5680 = vand.u32 %v3464, 4294901760
        %5681 = vmatprep.subr.mxu0 %v5680
        %v5682 = vand.u32 %v3463, 4294901760
        %5683 = vmatpush2.msra.mxu0 %v5682
        %v5684 = vand.u32 %v3462, 4294901760
        %5685 = vmatprep.subr.mxu0 %v5684
        %v5686 = vand.u32 %v3461, 4294901760
        %5687 = vmatpush2.msra.mxu0 %v5686
        %v5688 = vand.u32 %v3460, 4294901760
        %5689 = vmatprep.subr.mxu0 %v5688
        %v5690 = vand.u32 %v3459, 4294901760
        %5691 = vmatpush2.msra.mxu0 %v5690
        %v5692 = vand.u32 %v3458, 4294901760
        %5693 = vmatprep.subr.mxu0 %v5692
        %v5694 = vand.u32 %v3457, 4294901760
        %5695 = vmatpush2.msra.mxu0 %v5694
        %v5696 = vand.u32 %v3456, 4294901760
        %5697 = vmatprep.subr.mxu0 %v5696
        %v5698 = vand.u32 %v3455, 4294901760
        %5699 = vmatpush2.msra.mxu0 %v5698
        %v5700 = vand.u32 %v3454, 4294901760
        %5701 = vmatprep.subr.mxu0 %v5700
        %v5702 = vand.u32 %v3453, 4294901760
        %5703 = vmatpush2.msra.mxu0 %v5702
        %v5704 = vand.u32 %v3452, 4294901760
        %5705 = vmatprep.subr.mxu0 %v5704
        %v5706 = vand.u32 %v3451, 4294901760
        %5707 = vmatpush2.msra.mxu0 %v5706
        %v5708 = vand.u32 %v3450, 4294901760
        %5709 = vmatprep.subr.mxu0 %v5708
        %v5710 = vand.u32 %v3449, 4294901760
        %5711 = vmatpush2.msra.mxu0 %v5710
        %v5712 = vand.u32 %v3448, 4294901760
        %5713 = vmatprep.subr.mxu0 %v5712
        %v5714 = vand.u32 %v3447, 4294901760
        %5715 = vmatpush2.msra.mxu0 %v5714
        %v5716 = vand.u32 %v3446, 4294901760
        %5717 = vmatprep.subr.mxu0 %v5716
        %v5718 = vand.u32 %v3445, 4294901760
        %5719 = vmatpush2.msra.mxu0 %v5718
        %v5720 = vand.u32 %v3444, 4294901760
        %5721 = vmatprep.subr.mxu0 %v5720
        %v5722 = vand.u32 %v3443, 4294901760
        %5723 = vmatpush2.msra.mxu0 %v5722
        %v5724 = vand.u32 %v3342, 4294901760
        %v5725 = vsub.f32 %v3342, %v5724
        %v5726 = vand.u32 %v5725, 4294901760
        %5727 = vmatprep.mubr.f32.mxu0 %v5726
        %v5728 = vand.u32 %v3341, 4294901760
        %v5729 = vsub.f32 %v3341, %v5728
        %v5730 = vand.u32 %v5729, 4294901760
        %5731 = vmatmul.mubr.f32.gmra.mxu0 %v5730
        %v5732 = vpop.f32.mrf.mxu0
        %v5733 = vadd.f32 %v5582, %v5732
        %v5734 = vpop.f32.mrf.mxu0
        %v5735 = vadd.f32 %v5584, %v5734
        %v5736 = vand.u32 %v3346, 4294901760
        %v5737 = vsub.f32 %v3346, %v5736
        %v5738 = vand.u32 %v5737, 4294901760
        %5739 = vmatprep.mubr.f32.mxu0 %v5738
        %v5740 = vand.u32 %v3345, 4294901760
        %v5741 = vsub.f32 %v3345, %v5740
        %v5742 = vand.u32 %v5741, 4294901760
        %5743 = vmatmul.mubr.f32.gmra.mxu0 %v5742
        %v5744 = vpop.f32.mrf.mxu0
        %v5745 = vadd.f32 %v5592, %v5744
        %v5746 = vpop.f32.mrf.mxu0
        %v5747 = vadd.f32 %v5594, %v5746
        %5748 = vdwg.mxu0
        %v5749 = vand.u32 %v3442, 4294901760
        %v5750 = vsub.f32 %v3442, %v5749
        %v5751 = vand.u32 %v5750, 4294901760
        %5752 = vmatprep.subr.mxu0 %v5751
        %v5753 = vand.u32 %v3441, 4294901760
        %v5754 = vsub.f32 %v3441, %v5753
        %v5755 = vand.u32 %v5754, 4294901760
        %5756 = vmatpush1.msra.mxu0 %v5755
        %v5757 = vand.u32 %v3440, 4294901760
        %v5758 = vsub.f32 %v3440, %v5757
        %v5759 = vand.u32 %v5758, 4294901760
        %5760 = vmatprep.subr.mxu0 %v5759
        %v5761 = vand.u32 %v3439, 4294901760
        %v5762 = vsub.f32 %v3439, %v5761
        %v5763 = vand.u32 %v5762, 4294901760
        %5764 = vmatpush1.msra.mxu0 %v5763
        %v5765 = vand.u32 %v3438, 4294901760
        %v5766 = vsub.f32 %v3438, %v5765
        %v5767 = vand.u32 %v5766, 4294901760
        %5768 = vmatprep.subr.mxu0 %v5767
        %v5769 = vand.u32 %v3437, 4294901760
        %v5770 = vsub.f32 %v3437, %v5769
        %v5771 = vand.u32 %v5770, 4294901760
        %5772 = vmatpush1.msra.mxu0 %v5771
        %v5773 = vand.u32 %v3436, 4294901760
        %v5774 = vsub.f32 %v3436, %v5773
        %v5775 = vand.u32 %v5774, 4294901760
        %5776 = vmatprep.subr.mxu0 %v5775
        %v5777 = vand.u32 %v3435, 4294901760
        %v5778 = vsub.f32 %v3435, %v5777
        %v5779 = vand.u32 %v5778, 4294901760
        %5780 = vmatpush1.msra.mxu0 %v5779
        %v5781 = vand.u32 %v3434, 4294901760
        %v5782 = vsub.f32 %v3434, %v5781
        %v5783 = vand.u32 %v5782, 4294901760
        %5784 = vmatprep.subr.mxu0 %v5783
        %v5785 = vand.u32 %v3433, 4294901760
        %v5786 = vsub.f32 %v3433, %v5785
        %v5787 = vand.u32 %v5786, 4294901760
        %5788 = vmatpush1.msra.mxu0 %v5787
        %v5789 = vand.u32 %v3432, 4294901760
        %v5790 = vsub.f32 %v3432, %v5789
        %v5791 = vand.u32 %v5790, 4294901760
        %5792 = vmatprep.subr.mxu0 %v5791
        %v5793 = vand.u32 %v3431, 4294901760
        %v5794 = vsub.f32 %v3431, %v5793
        %v5795 = vand.u32 %v5794, 4294901760
        %5796 = vmatpush1.msra.mxu0 %v5795
        %v5797 = vand.u32 %v3430, 4294901760
        %v5798 = vsub.f32 %v3430, %v5797
        %v5799 = vand.u32 %v5798, 4294901760
        %5800 = vmatprep.subr.mxu0 %v5799
        %v5801 = vand.u32 %v3429, 4294901760
        %v5802 = vsub.f32 %v3429, %v5801
        %v5803 = vand.u32 %v5802, 4294901760
        %5804 = vmatpush1.msra.mxu0 %v5803
        %v5805 = vand.u32 %v3428, 4294901760
        %v5806 = vsub.f32 %v3428, %v5805
        %v5807 = vand.u32 %v5806, 4294901760
        %5808 = vmatprep.subr.mxu0 %v5807
        %v5809 = vand.u32 %v3427, 4294901760
        %v5810 = vsub.f32 %v3427, %v5809
        %v5811 = vand.u32 %v5810, 4294901760
        %5812 = vmatpush1.msra.mxu0 %v5811
        %v5813 = vand.u32 %v3426, 4294901760
        %v5814 = vsub.f32 %v3426, %v5813
        %v5815 = vand.u32 %v5814, 4294901760
        %5816 = vmatprep.subr.mxu0 %v5815
        %v5817 = vand.u32 %v3425, 4294901760
        %v5818 = vsub.f32 %v3425, %v5817
        %v5819 = vand.u32 %v5818, 4294901760
        %5820 = vmatpush1.msra.mxu0 %v5819
        %v5821 = vand.u32 %v3424, 4294901760
        %v5822 = vsub.f32 %v3424, %v5821
        %v5823 = vand.u32 %v5822, 4294901760
        %5824 = vmatprep.subr.mxu0 %v5823
        %v5825 = vand.u32 %v3423, 4294901760
        %v5826 = vsub.f32 %v3423, %v5825
        %v5827 = vand.u32 %v5826, 4294901760
        %5828 = vmatpush1.msra.mxu0 %v5827
        %v5829 = vand.u32 %v3422, 4294901760
        %v5830 = vsub.f32 %v3422, %v5829
        %v5831 = vand.u32 %v5830, 4294901760
        %5832 = vmatprep.subr.mxu0 %v5831
        %v5833 = vand.u32 %v3421, 4294901760
        %v5834 = vsub.f32 %v3421, %v5833
        %v5835 = vand.u32 %v5834, 4294901760
        %5836 = vmatpush1.msra.mxu0 %v5835
        %v5837 = vand.u32 %v3420, 4294901760
        %v5838 = vsub.f32 %v3420, %v5837
        %v5839 = vand.u32 %v5838, 4294901760
        %5840 = vmatprep.subr.mxu0 %v5839
        %v5841 = vand.u32 %v3419, 4294901760
        %v5842 = vsub.f32 %v3419, %v5841
        %v5843 = vand.u32 %v5842, 4294901760
        %5844 = vmatpush1.msra.mxu0 %v5843
        %v5845 = vand.u32 %v3418, 4294901760
        %v5846 = vsub.f32 %v3418, %v5845
        %v5847 = vand.u32 %v5846, 4294901760
        %5848 = vmatprep.subr.mxu0 %v5847
        %v5849 = vand.u32 %v3417, 4294901760
        %v5850 = vsub.f32 %v3417, %v5849
        %v5851 = vand.u32 %v5850, 4294901760
        %5852 = vmatpush1.msra.mxu0 %v5851
        %v5853 = vand.u32 %v3416, 4294901760
        %v5854 = vsub.f32 %v3416, %v5853
        %v5855 = vand.u32 %v5854, 4294901760
        %5856 = vmatprep.subr.mxu0 %v5855
        %v5857 = vand.u32 %v3415, 4294901760
        %v5858 = vsub.f32 %v3415, %v5857
        %v5859 = vand.u32 %v5858, 4294901760
        %5860 = vmatpush1.msra.mxu0 %v5859
        %v5861 = vand.u32 %v3414, 4294901760
        %v5862 = vsub.f32 %v3414, %v5861
        %v5863 = vand.u32 %v5862, 4294901760
        %5864 = vmatprep.subr.mxu0 %v5863
        %v5865 = vand.u32 %v3413, 4294901760
        %v5866 = vsub.f32 %v3413, %v5865
        %v5867 = vand.u32 %v5866, 4294901760
        %5868 = vmatpush1.msra.mxu0 %v5867
        %v5869 = vand.u32 %v3412, 4294901760
        %v5870 = vsub.f32 %v3412, %v5869
        %v5871 = vand.u32 %v5870, 4294901760
        %5872 = vmatprep.subr.mxu0 %v5871
        %v5873 = vand.u32 %v3411, 4294901760
        %v5874 = vsub.f32 %v3411, %v5873
        %v5875 = vand.u32 %v5874, 4294901760
        %5876 = vmatpush1.msra.mxu0 %v5875
        %v5877 = vand.u32 %v3474, 4294901760
        %v5878 = vsub.f32 %v3474, %v5877
        %v5879 = vand.u32 %v5878, 4294901760
        %5880 = vmatprep.subr.mxu0 %v5879
        %v5881 = vand.u32 %v3473, 4294901760
        %v5882 = vsub.f32 %v3473, %v5881
        %v5883 = vand.u32 %v5882, 4294901760
        %5884 = vmatpush2.msra.mxu0 %v5883
        %v5885 = vand.u32 %v3472, 4294901760
        %v5886 = vsub.f32 %v3472, %v5885
        %v5887 = vand.u32 %v5886, 4294901760
        %5888 = vmatprep.subr.mxu0 %v5887
        %v5889 = vand.u32 %v3471, 4294901760
        %v5890 = vsub.f32 %v3471, %v5889
        %v5891 = vand.u32 %v5890, 4294901760
        %5892 = vmatpush2.msra.mxu0 %v5891
        %v5893 = vand.u32 %v3470, 4294901760
        %v5894 = vsub.f32 %v3470, %v5893
        %v5895 = vand.u32 %v5894, 4294901760
        %5896 = vmatprep.subr.mxu0 %v5895
        %v5897 = vand.u32 %v3469, 4294901760
        %v5898 = vsub.f32 %v3469, %v5897
        %v5899 = vand.u32 %v5898, 4294901760
        %5900 = vmatpush2.msra.mxu0 %v5899
        %v5901 = vand.u32 %v3468, 4294901760
        %v5902 = vsub.f32 %v3468, %v5901
        %v5903 = vand.u32 %v5902, 4294901760
        %5904 = vmatprep.subr.mxu0 %v5903
        %v5905 = vand.u32 %v3467, 4294901760
        %v5906 = vsub.f32 %v3467, %v5905
        %v5907 = vand.u32 %v5906, 4294901760
        %5908 = vmatpush2.msra.mxu0 %v5907
        %v5909 = vand.u32 %v3466, 4294901760
        %v5910 = vsub.f32 %v3466, %v5909
        %v5911 = vand.u32 %v5910, 4294901760
        %5912 = vmatprep.subr.mxu0 %v5911
        %v5913 = vand.u32 %v3465, 4294901760
        %v5914 = vsub.f32 %v3465, %v5913
        %v5915 = vand.u32 %v5914, 4294901760
        %5916 = vmatpush2.msra.mxu0 %v5915
        %v5917 = vand.u32 %v3464, 4294901760
        %v5918 = vsub.f32 %v3464, %v5917
        %v5919 = vand.u32 %v5918, 4294901760
        %5920 = vmatprep.subr.mxu0 %v5919
        %v5921 = vand.u32 %v3463, 4294901760
        %v5922 = vsub.f32 %v3463, %v5921
        %v5923 = vand.u32 %v5922, 4294901760
        %5924 = vmatpush2.msra.mxu0 %v5923
        %v5925 = vand.u32 %v3462, 4294901760
        %v5926 = vsub.f32 %v3462, %v5925
        %v5927 = vand.u32 %v5926, 4294901760
        %5928 = vmatprep.subr.mxu0 %v5927
        %v5929 = vand.u32 %v3461, 4294901760
        %v5930 = vsub.f32 %v3461, %v5929
        %v5931 = vand.u32 %v5930, 4294901760
        %5932 = vmatpush2.msra.mxu0 %v5931
        %v5933 = vand.u32 %v3460, 4294901760
        %v5934 = vsub.f32 %v3460, %v5933
        %v5935 = vand.u32 %v5934, 4294901760
        %5936 = vmatprep.subr.mxu0 %v5935
        %v5937 = vand.u32 %v3459, 4294901760
        %v5938 = vsub.f32 %v3459, %v5937
        %v5939 = vand.u32 %v5938, 4294901760
        %5940 = vmatpush2.msra.mxu0 %v5939
        %v5941 = vand.u32 %v3458, 4294901760
        %v5942 = vsub.f32 %v3458, %v5941
        %v5943 = vand.u32 %v5942, 4294901760
        %5944 = vmatprep.subr.mxu0 %v5943
        %v5945 = vand.u32 %v3457, 4294901760
        %v5946 = vsub.f32 %v3457, %v5945
        %v5947 = vand.u32 %v5946, 4294901760
        %5948 = vmatpush2.msra.mxu0 %v5947
        %v5949 = vand.u32 %v3456, 4294901760
        %v5950 = vsub.f32 %v3456, %v5949
        %v5951 = vand.u32 %v5950, 4294901760
        %5952 = vmatprep.subr.mxu0 %v5951
        %v5953 = vand.u32 %v3455, 4294901760
        %v5954 = vsub.f32 %v3455, %v5953
        %v5955 = vand.u32 %v5954, 4294901760
        %5956 = vmatpush2.msra.mxu0 %v5955
        %v5957 = vand.u32 %v3454, 4294901760
        %v5958 = vsub.f32 %v3454, %v5957
        %v5959 = vand.u32 %v5958, 4294901760
        %5960 = vmatprep.subr.mxu0 %v5959
        %v5961 = vand.u32 %v3453, 4294901760
        %v5962 = vsub.f32 %v3453, %v5961
        %v5963 = vand.u32 %v5962, 4294901760
        %5964 = vmatpush2.msra.mxu0 %v5963
        %v5965 = vand.u32 %v3452, 4294901760
        %v5966 = vsub.f32 %v3452, %v5965
        %v5967 = vand.u32 %v5966, 4294901760
        %5968 = vmatprep.subr.mxu0 %v5967
        %v5969 = vand.u32 %v3451, 4294901760
        %v5970 = vsub.f32 %v3451, %v5969
        %v5971 = vand.u32 %v5970, 4294901760
        %5972 = vmatpush2.msra.mxu0 %v5971
        %v5973 = vand.u32 %v3450, 4294901760
        %v5974 = vsub.f32 %v3450, %v5973
        %v5975 = vand.u32 %v5974, 4294901760
        %5976 = vmatprep.subr.mxu0 %v5975
        %v5977 = vand.u32 %v3449, 4294901760
        %v5978 = vsub.f32 %v3449, %v5977
        %v5979 = vand.u32 %v5978, 4294901760
        %5980 = vmatpush2.msra.mxu0 %v5979
        %v5981 = vand.u32 %v3448, 4294901760
        %v5982 = vsub.f32 %v3448, %v5981
        %v5983 = vand.u32 %v5982, 4294901760
        %5984 = vmatprep.subr.mxu0 %v5983
        %v5985 = vand.u32 %v3447, 4294901760
        %v5986 = vsub.f32 %v3447, %v5985
        %v5987 = vand.u32 %v5986, 4294901760
        %5988 = vmatpush2.msra.mxu0 %v5987
        %v5989 = vand.u32 %v3446, 4294901760
        %v5990 = vsub.f32 %v3446, %v5989
        %v5991 = vand.u32 %v5990, 4294901760
        %5992 = vmatprep.subr.mxu0 %v5991
        %v5993 = vand.u32 %v3445, 4294901760
        %v5994 = vsub.f32 %v3445, %v5993
        %v5995 = vand.u32 %v5994, 4294901760
        %5996 = vmatpush2.msra.mxu0 %v5995
        %v5997 = vand.u32 %v3444, 4294901760
        %v5998 = vsub.f32 %v3444, %v5997
        %v5999 = vand.u32 %v5998, 4294901760
        %6000 = vmatprep.subr.mxu0 %v5999
        %v6001 = vand.u32 %v3443, 4294901760
        %v6002 = vsub.f32 %v3443, %v6001
        %v6003 = vand.u32 %v6002, 4294901760
        %6004 = vmatpush2.msra.mxu0 %v6003
        %v6005 = vand.u32 %v3342, 4294901760
        %6006 = vmatprep.mubr.f32.mxu0 %v6005
        %v6007 = vand.u32 %v3341, 4294901760
        %6008 = vmatmul.mubr.f32.gmra.mxu0 %v6007
        %v6009 = vpop.f32.mrf.mxu0
        %v6010 = vadd.f32 %v5733, %v6009
        %v6011 = vpop.f32.mrf.mxu0
        %v6012 = vadd.f32 %v5735, %v6011
        %v6013 = vand.u32 %v3346, 4294901760
        %6014 = vmatprep.mubr.f32.mxu0 %v6013
        %v6015 = vand.u32 %v3345, 4294901760
        %6016 = vmatmul.mubr.f32.gmra.mxu0 %v6015
        %v6017 = vpop.f32.mrf.mxu0
        %v6018 = vadd.f32 %v5745, %v6017
        %v6019 = vpop.f32.mrf.mxu0
        %v6020 = vadd.f32 %v5747, %v6019
        %6021 = vdwg.mxu0
        %v6022 = vand.u32 %v3442, 4294901760
        %6023 = vmatprep.subr.mxu0 %v6022
        %v6024 = vand.u32 %v3441, 4294901760
        %6025 = vmatpush1.msra.mxu0 %v6024
        %v6026 = vand.u32 %v3440, 4294901760
        %6027 = vmatprep.subr.mxu0 %v6026
        %v6028 = vand.u32 %v3439, 4294901760
        %6029 = vmatpush1.msra.mxu0 %v6028
        %v6030 = vand.u32 %v3438, 4294901760
        %6031 = vmatprep.subr.mxu0 %v6030
        %v6032 = vand.u32 %v3437, 4294901760
        %6033 = vmatpush1.msra.mxu0 %v6032
        %v6034 = vand.u32 %v3436, 4294901760
        %6035 = vmatprep.subr.mxu0 %v6034
        %v6036 = vand.u32 %v3435, 4294901760
        %6037 = vmatpush1.msra.mxu0 %v6036
        %v6038 = vand.u32 %v3434, 4294901760
        %6039 = vmatprep.subr.mxu0 %v6038
        %v6040 = vand.u32 %v3433, 4294901760
        %6041 = vmatpush1.msra.mxu0 %v6040
        %v6042 = vand.u32 %v3432, 4294901760
        %6043 = vmatprep.subr.mxu0 %v6042
        %v6044 = vand.u32 %v3431, 4294901760
        %6045 = vmatpush1.msra.mxu0 %v6044
        %v6046 = vand.u32 %v3430, 4294901760
        %6047 = vmatprep.subr.mxu0 %v6046
        %v6048 = vand.u32 %v3429, 4294901760
        %6049 = vmatpush1.msra.mxu0 %v6048
        %v6050 = vand.u32 %v3428, 4294901760
        %6051 = vmatprep.subr.mxu0 %v6050
        %v6052 = vand.u32 %v3427, 4294901760
        %6053 = vmatpush1.msra.mxu0 %v6052
        %v6054 = vand.u32 %v3426, 4294901760
        %6055 = vmatprep.subr.mxu0 %v6054
        %v6056 = vand.u32 %v3425, 4294901760
        %6057 = vmatpush1.msra.mxu0 %v6056
        %v6058 = vand.u32 %v3424, 4294901760
        %6059 = vmatprep.subr.mxu0 %v6058
        %v6060 = vand.u32 %v3423, 4294901760
        %6061 = vmatpush1.msra.mxu0 %v6060
        %v6062 = vand.u32 %v3422, 4294901760
        %6063 = vmatprep.subr.mxu0 %v6062
        %v6064 = vand.u32 %v3421, 4294901760
        %6065 = vmatpush1.msra.mxu0 %v6064
        %v6066 = vand.u32 %v3420, 4294901760
        %6067 = vmatprep.subr.mxu0 %v6066
        %v6068 = vand.u32 %v3419, 4294901760
        %6069 = vmatpush1.msra.mxu0 %v6068
        %v6070 = vand.u32 %v3418, 4294901760
        %6071 = vmatprep.subr.mxu0 %v6070
        %v6072 = vand.u32 %v3417, 4294901760
        %6073 = vmatpush1.msra.mxu0 %v6072
        %v6074 = vand.u32 %v3416, 4294901760
        %6075 = vmatprep.subr.mxu0 %v6074
        %v6076 = vand.u32 %v3415, 4294901760
        %6077 = vmatpush1.msra.mxu0 %v6076
        %v6078 = vand.u32 %v3414, 4294901760
        %6079 = vmatprep.subr.mxu0 %v6078
        %v6080 = vand.u32 %v3413, 4294901760
        %6081 = vmatpush1.msra.mxu0 %v6080
        %v6082 = vand.u32 %v3412, 4294901760
        %6083 = vmatprep.subr.mxu0 %v6082
        %v6084 = vand.u32 %v3411, 4294901760
        %6085 = vmatpush1.msra.mxu0 %v6084
        %v6086 = vand.u32 %v3474, 4294901760
        %6087 = vmatprep.subr.mxu0 %v6086
        %v6088 = vand.u32 %v3473, 4294901760
        %6089 = vmatpush2.msra.mxu0 %v6088
        %v6090 = vand.u32 %v3472, 4294901760
        %6091 = vmatprep.subr.mxu0 %v6090
        %v6092 = vand.u32 %v3471, 4294901760
        %6093 = vmatpush2.msra.mxu0 %v6092
        %v6094 = vand.u32 %v3470, 4294901760
        %6095 = vmatprep.subr.mxu0 %v6094
        %v6096 = vand.u32 %v3469, 4294901760
        %6097 = vmatpush2.msra.mxu0 %v6096
        %v6098 = vand.u32 %v3468, 4294901760
        %6099 = vmatprep.subr.mxu0 %v6098
        %v6100 = vand.u32 %v3467, 4294901760
        %6101 = vmatpush2.msra.mxu0 %v6100
        %v6102 = vand.u32 %v3466, 4294901760
        %6103 = vmatprep.subr.mxu0 %v6102
        %v6104 = vand.u32 %v3465, 4294901760
        %6105 = vmatpush2.msra.mxu0 %v6104
        %v6106 = vand.u32 %v3464, 4294901760
        %6107 = vmatprep.subr.mxu0 %v6106
        %v6108 = vand.u32 %v3463, 4294901760
        %6109 = vmatpush2.msra.mxu0 %v6108
        %v6110 = vand.u32 %v3462, 4294901760
        %6111 = vmatprep.subr.mxu0 %v6110
        %v6112 = vand.u32 %v3461, 4294901760
        %6113 = vmatpush2.msra.mxu0 %v6112
        %v6114 = vand.u32 %v3460, 4294901760
        %6115 = vmatprep.subr.mxu0 %v6114
        %v6116 = vand.u32 %v3459, 4294901760
        %6117 = vmatpush2.msra.mxu0 %v6116
        %v6118 = vand.u32 %v3458, 4294901760
        %6119 = vmatprep.subr.mxu0 %v6118
        %v6120 = vand.u32 %v3457, 4294901760
        %6121 = vmatpush2.msra.mxu0 %v6120
        %v6122 = vand.u32 %v3456, 4294901760
        %6123 = vmatprep.subr.mxu0 %v6122
        %v6124 = vand.u32 %v3455, 4294901760
        %6125 = vmatpush2.msra.mxu0 %v6124
        %v6126 = vand.u32 %v3454, 4294901760
        %6127 = vmatprep.subr.mxu0 %v6126
        %v6128 = vand.u32 %v3453, 4294901760
        %6129 = vmatpush2.msra.mxu0 %v6128
        %v6130 = vand.u32 %v3452, 4294901760
        %6131 = vmatprep.subr.mxu0 %v6130
        %v6132 = vand.u32 %v3451, 4294901760
        %6133 = vmatpush2.msra.mxu0 %v6132
        %v6134 = vand.u32 %v3450, 4294901760
        %6135 = vmatprep.subr.mxu0 %v6134
        %v6136 = vand.u32 %v3449, 4294901760
        %6137 = vmatpush2.msra.mxu0 %v6136
        %v6138 = vand.u32 %v3448, 4294901760
        %6139 = vmatprep.subr.mxu0 %v6138
        %v6140 = vand.u32 %v3447, 4294901760
        %6141 = vmatpush2.msra.mxu0 %v6140
        %v6142 = vand.u32 %v3446, 4294901760
        %6143 = vmatprep.subr.mxu0 %v6142
        %v6144 = vand.u32 %v3445, 4294901760
        %6145 = vmatpush2.msra.mxu0 %v6144
        %v6146 = vand.u32 %v3444, 4294901760
        %6147 = vmatprep.subr.mxu0 %v6146
        %v6148 = vand.u32 %v3443, 4294901760
        %6149 = vmatpush2.msra.mxu0 %v6148
        %v6150 = vand.u32 %v3342, 4294901760
        %6151 = vmatprep.mubr.f32.mxu0 %v6150
        %v6152 = vand.u32 %v3341, 4294901760
        %6153 = vmatmul.mubr.f32.gmra.mxu0 %v6152
        %v6154 = vpop.f32.mrf.mxu0
        %v6155 = vadd.f32 %v6010, %v6154
        %v6156 = vpop.f32.mrf.mxu0
        %v6157 = vadd.f32 %v6012, %v6156
        %v6158 = vand.u32 %v3346, 4294901760
        %6159 = vmatprep.mubr.f32.mxu0 %v6158
        %v6160 = vand.u32 %v3345, 4294901760
        %6161 = vmatmul.mubr.f32.gmra.mxu0 %v6160
        %v6162 = vpop.f32.mrf.mxu0
        %v6163 = vadd.f32 %v6018, %v6162
        %v6164 = vpop.f32.mrf.mxu0
        %v6165 = vadd.f32 %v6020, %v6164
        %6166 = vdwg.mxu0
        // Predicated region
        $region61: #{rwkv_channel_mix.1} parent=43 // pred_check
          %p6167 = pneg %p412
        $region62: #{rwkv_channel_mix.1} parent=43 // pred_check_branch
          %6169 = sbr.rel (%p6167) target = $region64
        $region63: #{rwkv_channel_mix.1} parent=43 // pred_region
          %6170 = vst [vmem:[#allocation2] sm:$0xff] %v6155
          %6171 = vst [vmem:[#allocation2 + $0x8] sm:$0xff] %v6157
          %6172 = vst [vmem:[#allocation2 + $0x10] sm:$0xff] %v6163
          %6173 = vst [vmem:[#allocation2 + $0x18] sm:$0xff] %v6165
        $region64: #{rwkv_channel_mix.1} parent=43 // pred_fallthru
          _
        %p6174 = scmp.gt.s32.totalorder %s31, 0
        // Predicated region
        $region65: #{rwkv_channel_mix.1} parent=43 // pred_check
          %p6175 = pneg %p6174
        $region66: #{rwkv_channel_mix.1} parent=43 // pred_check_branch
          %6177 = sbr.rel (%p6175) target = $region68
        $region67: #{rwkv_channel_mix.1} parent=43 // pred_region
          %v6178 = vld [vmem:[#allocation2] sm:$0xff]
          %v6179 = vld [vmem:[#allocation2 + $0x8] sm:$0xff]
          %v6180 = vld [vmem:[#allocation2 + $0x10] sm:$0xff]
          %v6181 = vld [vmem:[#allocation2 + $0x18] sm:$0xff]
          %v6182 = vadd.f32 %v6178, %v6155
          %v6183 = vadd.f32 %v6179, %v6157
          %v6184 = vadd.f32 %v6180, %v6163
          %v6185 = vadd.f32 %v6181, %v6165
          %6186 = vst [vmem:[#allocation2] sm:$0xff] %v6182
          %6187 = vst [vmem:[#allocation2 + $0x8] sm:$0xff] %v6183
          %6188 = vst [vmem:[#allocation2 + $0x10] sm:$0xff] %v6184
          %6189 = vst [vmem:[#allocation2 + $0x18] sm:$0xff] %v6185
        $region68: #{rwkv_channel_mix.1} parent=43 // pred_fallthru
          _
        %v6190 = vld [vmem:[#allocation5] sm:$0xff]
        %v6191 = vld [vmem:[#allocation5 + $0x8] sm:$0xff]
        %v6192 = vld [vmem:[#allocation5 + $0x10] sm:$0xff]
        %v6193 = vld [vmem:[#allocation5 + $0x18] sm:$0xff]
        %v6194 = vld [vmem:[%s344] sm:$0xff]
        %v6195 = vld [vmem:[%s344 + $0x8] sm:$0xff]
        %v6196 = vld [vmem:[%s344 + $0x10] sm:$0xff]
        %v6197 = vld [vmem:[%s344 + $0x18] sm:$0xff]
        %v6198 = vld [vmem:[%s344 + $0x20] sm:$0xff]
        %v6199 = vld [vmem:[%s344 + $0x28] sm:$0xff]
        %v6200 = vld [vmem:[%s344 + $0x30] sm:$0xff]
        %v6201 = vld [vmem:[%s344 + $0x38] sm:$0xff]
        %v6202 = vld [vmem:[%s344 + $0x40] sm:$0xff]
        %v6203 = vld [vmem:[%s344 + $0x48] sm:$0xff]
        %v6204 = vld [vmem:[%s344 + $0x50] sm:$0xff]
        %v6205 = vld [vmem:[%s344 + $0x58] sm:$0xff]
        %v6206 = vld [vmem:[%s344 + $0x60] sm:$0xff]
        %v6207 = vld [vmem:[%s344 + $0x68] sm:$0xff]
        %v6208 = vld [vmem:[%s344 + $0x70] sm:$0xff]
        %v6209 = vld [vmem:[%s344 + $0x78] sm:$0xff]
        %v6210 = vld [vmem:[%s344 + $0x80] sm:$0xff]
        %v6211 = vld [vmem:[%s344 + $0x88] sm:$0xff]
        %v6212 = vld [vmem:[%s344 + $0x90] sm:$0xff]
        %v6213 = vld [vmem:[%s344 + $0x98] sm:$0xff]
        %v6214 = vld [vmem:[%s344 + $0xa0] sm:$0xff]
        %v6215 = vld [vmem:[%s344 + $0xa8] sm:$0xff]
        %v6216 = vld [vmem:[%s344 + $0xb0] sm:$0xff]
        %v6217 = vld [vmem:[%s344 + $0xb8] sm:$0xff]
        %v6218 = vld [vmem:[%s344 + $0xc0] sm:$0xff]
        %v6219 = vld [vmem:[%s344 + $0xc8] sm:$0xff]
        %v6220 = vld [vmem:[%s344 + $0xd0] sm:$0xff]
        %v6221 = vld [vmem:[%s344 + $0xd8] sm:$0xff]
        %v6222 = vld [vmem:[%s344 + $0xe0] sm:$0xff]
        %v6223 = vld [vmem:[%s344 + $0xe8] sm:$0xff]
        %v6224 = vld [vmem:[%s344 + $0xf0] sm:$0xff]
        %v6225 = vld [vmem:[%s344 + $0xf8] sm:$0xff]
        %6226 = vmatprep.subr.mxu0 0.0
        %v6227 = vand.u32 %v6209, 4294901760
        %6228 = vmatpush1.msra.mxu0 %v6227
        %6229 = vmatprep.subr.mxu0 0.0
        %v6230 = vand.u32 %v6208, 4294901760
        %6231 = vmatpush1.msra.mxu0 %v6230
        %6232 = vmatprep.subr.mxu0 0.0
        %v6233 = vand.u32 %v6207, 4294901760
        %6234 = vmatpush1.msra.mxu0 %v6233
        %6235 = vmatprep.subr.mxu0 0.0
        %v6236 = vand.u32 %v6206, 4294901760
        %6237 = vmatpush1.msra.mxu0 %v6236
        %6238 = vmatprep.subr.mxu0 0.0
        %v6239 = vand.u32 %v6205, 4294901760
        %6240 = vmatpush1.msra.mxu0 %v6239
        %6241 = vmatprep.subr.mxu0 0.0
        %v6242 = vand.u32 %v6204, 4294901760
        %6243 = vmatpush1.msra.mxu0 %v6242
        %6244 = vmatprep.subr.mxu0 0.0
        %v6245 = vand.u32 %v6203, 4294901760
        %6246 = vmatpush1.msra.mxu0 %v6245
        %6247 = vmatprep.subr.mxu0 0.0
        %v6248 = vand.u32 %v6202, 4294901760
        %6249 = vmatpush1.msra.mxu0 %v6248
        %6250 = vmatprep.subr.mxu0 0.0
        %v6251 = vand.u32 %v6201, 4294901760
        %6252 = vmatpush1.msra.mxu0 %v6251
        %6253 = vmatprep.subr.mxu0 0.0
        %v6254 = vand.u32 %v6200, 4294901760
        %6255 = vmatpush1.msra.mxu0 %v6254
        %6256 = vmatprep.subr.mxu0 0.0
        %v6257 = vand.u32 %v6199, 4294901760
        %6258 = vmatpush1.msra.mxu0 %v6257
        %6259 = vmatprep.subr.mxu0 0.0
        %v6260 = vand.u32 %v6198, 4294901760
        %6261 = vmatpush1.msra.mxu0 %v6260
        %6262 = vmatprep.subr.mxu0 0.0
        %v6263 = vand.u32 %v6197, 4294901760
        %6264 = vmatpush1.msra.mxu0 %v6263
        %6265 = vmatprep.subr.mxu0 0.0
        %v6266 = vand.u32 %v6196, 4294901760
        %6267 = vmatpush1.msra.mxu0 %v6266
        %6268 = vmatprep.subr.mxu0 0.0
        %v6269 = vand.u32 %v6195, 4294901760
        %6270 = vmatpush1.msra.mxu0 %v6269
        %6271 = vmatprep.subr.mxu0 0.0
        %v6272 = vand.u32 %v6194, 4294901760
        %6273 = vmatpush1.msra.mxu0 %v6272
        %6274 = vmatprep.subr.mxu0 0.0
        %v6275 = vand.u32 %v6225, 4294901760
        %6276 = vmatpush2.msra.mxu0 %v6275
        %6277 = vmatprep.subr.mxu0 0.0
        %v6278 = vand.u32 %v6224, 4294901760
        %6279 = vmatpush2.msra.mxu0 %v6278
        %6280 = vmatprep.subr.mxu0 0.0
        %v6281 = vand.u32 %v6223, 4294901760
        %6282 = vmatpush2.msra.mxu0 %v6281
        %6283 = vmatprep.subr.mxu0 0.0
        %v6284 = vand.u32 %v6222, 4294901760
        %6285 = vmatpush2.msra.mxu0 %v6284
        %6286 = vmatprep.subr.mxu0 0.0
        %v6287 = vand.u32 %v6221, 4294901760
        %6288 = vmatpush2.msra.mxu0 %v6287
        %6289 = vmatprep.subr.mxu0 0.0
        %v6290 = vand.u32 %v6220, 4294901760
        %6291 = vmatpush2.msra.mxu0 %v6290
        %6292 = vmatprep.subr.mxu0 0.0
        %v6293 = vand.u32 %v6219, 4294901760
        %6294 = vmatpush2.msra.mxu0 %v6293
        %6295 = vmatprep.subr.mxu0 0.0
        %v6296 = vand.u32 %v6218, 4294901760
        %6297 = vmatpush2.msra.mxu0 %v6296
        %6298 = vmatprep.subr.mxu0 0.0
        %v6299 = vand.u32 %v6217, 4294901760
        %6300 = vmatpush2.msra.mxu0 %v6299
        %6301 = vmatprep.subr.mxu0 0.0
        %v6302 = vand.u32 %v6216, 4294901760
        %6303 = vmatpush2.msra.mxu0 %v6302
        %6304 = vmatprep.subr.mxu0 0.0
        %v6305 = vand.u32 %v6215, 4294901760
        %6306 = vmatpush2.msra.mxu0 %v6305
        %6307 = vmatprep.subr.mxu0 0.0
        %v6308 = vand.u32 %v6214, 4294901760
        %6309 = vmatpush2.msra.mxu0 %v6308
        %6310 = vmatprep.subr.mxu0 0.0
        %v6311 = vand.u32 %v6213, 4294901760
        %6312 = vmatpush2.msra.mxu0 %v6311
        %6313 = vmatprep.subr.mxu0 0.0
        %v6314 = vand.u32 %v6212, 4294901760
        %6315 = vmatpush2.msra.mxu0 %v6314
        %6316 = vmatprep.subr.mxu0 0.0
        %v6317 = vand.u32 %v6211, 4294901760
        %6318 = vmatpush2.msra.mxu0 %v6317
        %6319 = vmatprep.subr.mxu0 0.0
        %v6320 = vand.u32 %v6210, 4294901760
        %6321 = vmatpush2.msra.mxu0 %v6320
        %v6322 = vand.u32 %v6191, 4294901760
        %v6323 = vsub.f32 %v6191, %v6322
        %v6324 = vand.u32 %v6323, 4294901760
        %v6325 = vsub.f32 %v6323, %v6324
        %v6326 = vand.u32 %v6325, 4294901760
        %6327 = vmatprep.mubr.f32.mxu0 %v6326
        %v6328 = vand.u32 %v6190, 4294901760
        %v6329 = vsub.f32 %v6190, %v6328
        %v6330 = vand.u32 %v6329, 4294901760
        %v6331 = vsub.f32 %v6329, %v6330
        %v6332 = vand.u32 %v6331, 4294901760
        %6333 = vmatmul.mubr.f32.gmra.mxu0 %v6332
        %v6334 = vpop.f32.mrf.mxu0
        %v6335 = vadd.f32 0.0, %v6334
        %v6336 = vpop.f32.mrf.mxu0
        %v6337 = vand.u32 %v6193, 4294901760
        %v6338 = vsub.f32 %v6193, %v6337
        %v6339 = vand.u32 %v6338, 4294901760
        %v6340 = vsub.f32 %v6338, %v6339
        %v6341 = vand.u32 %v6340, 4294901760
        %6342 = vmatprep.mubr.f32.mxu0 %v6341
        %v6343 = vand.u32 %v6192, 4294901760
        %v6344 = vsub.f32 %v6192, %v6343
        %v6345 = vand.u32 %v6344, 4294901760
        %v6346 = vsub.f32 %v6344, %v6345
        %v6347 = vand.u32 %v6346, 4294901760
        %6348 = vmatmul.mubr.f32.gmra.mxu0 %v6347
        %v6349 = vpop.f32.mrf.mxu0
        %v6350 = vadd.f32 0.0, %v6349
        %v6351 = vpop.f32.mrf.mxu0
        %6352 = vdwg.mxu0
        %6353 = vmatprep.subr.mxu0 0.0
        %v6354 = vand.u32 %v6209, 4294901760
        %v6355 = vsub.f32 %v6209, %v6354
        %v6356 = vand.u32 %v6355, 4294901760
        %v6357 = vsub.f32 %v6355, %v6356
        %v6358 = vand.u32 %v6357, 4294901760
        %6359 = vmatpush1.msra.mxu0 %v6358
        %6360 = vmatprep.subr.mxu0 0.0
        %v6361 = vand.u32 %v6208, 4294901760
        %v6362 = vsub.f32 %v6208, %v6361
        %v6363 = vand.u32 %v6362, 4294901760
        %v6364 = vsub.f32 %v6362, %v6363
        %v6365 = vand.u32 %v6364, 4294901760
        %6366 = vmatpush1.msra.mxu0 %v6365
        %6367 = vmatprep.subr.mxu0 0.0
        %v6368 = vand.u32 %v6207, 4294901760
        %v6369 = vsub.f32 %v6207, %v6368
        %v6370 = vand.u32 %v6369, 4294901760
        %v6371 = vsub.f32 %v6369, %v6370
        %v6372 = vand.u32 %v6371, 4294901760
        %6373 = vmatpush1.msra.mxu0 %v6372
        %6374 = vmatprep.subr.mxu0 0.0
        %v6375 = vand.u32 %v6206, 4294901760
        %v6376 = vsub.f32 %v6206, %v6375
        %v6377 = vand.u32 %v6376, 4294901760
        %v6378 = vsub.f32 %v6376, %v6377
        %v6379 = vand.u32 %v6378, 4294901760
        %6380 = vmatpush1.msra.mxu0 %v6379
        %6381 = vmatprep.subr.mxu0 0.0
        %v6382 = vand.u32 %v6205, 4294901760
        %v6383 = vsub.f32 %v6205, %v6382
        %v6384 = vand.u32 %v6383, 4294901760
        %v6385 = vsub.f32 %v6383, %v6384
        %v6386 = vand.u32 %v6385, 4294901760
        %6387 = vmatpush1.msra.mxu0 %v6386
        %6388 = vmatprep.subr.mxu0 0.0
        %v6389 = vand.u32 %v6204, 4294901760
        %v6390 = vsub.f32 %v6204, %v6389
        %v6391 = vand.u32 %v6390, 4294901760
        %v6392 = vsub.f32 %v6390, %v6391
        %v6393 = vand.u32 %v6392, 4294901760
        %6394 = vmatpush1.msra.mxu0 %v6393
        %6395 = vmatprep.subr.mxu0 0.0
        %v6396 = vand.u32 %v6203, 4294901760
        %v6397 = vsub.f32 %v6203, %v6396
        %v6398 = vand.u32 %v6397, 4294901760
        %v6399 = vsub.f32 %v6397, %v6398
        %v6400 = vand.u32 %v6399, 4294901760
        %6401 = vmatpush1.msra.mxu0 %v6400
        %6402 = vmatprep.subr.mxu0 0.0
        %v6403 = vand.u32 %v6202, 4294901760
        %v6404 = vsub.f32 %v6202, %v6403
        %v6405 = vand.u32 %v6404, 4294901760
        %v6406 = vsub.f32 %v6404, %v6405
        %v6407 = vand.u32 %v6406, 4294901760
        %6408 = vmatpush1.msra.mxu0 %v6407
        %6409 = vmatprep.subr.mxu0 0.0
        %v6410 = vand.u32 %v6201, 4294901760
        %v6411 = vsub.f32 %v6201, %v6410
        %v6412 = vand.u32 %v6411, 4294901760
        %v6413 = vsub.f32 %v6411, %v6412
        %v6414 = vand.u32 %v6413, 4294901760
        %6415 = vmatpush1.msra.mxu0 %v6414
        %6416 = vmatprep.subr.mxu0 0.0
        %v6417 = vand.u32 %v6200, 4294901760
        %v6418 = vsub.f32 %v6200, %v6417
        %v6419 = vand.u32 %v6418, 4294901760
        %v6420 = vsub.f32 %v6418, %v6419
        %v6421 = vand.u32 %v6420, 4294901760
        %6422 = vmatpush1.msra.mxu0 %v6421
        %6423 = vmatprep.subr.mxu0 0.0
        %v6424 = vand.u32 %v6199, 4294901760
        %v6425 = vsub.f32 %v6199, %v6424
        %v6426 = vand.u32 %v6425, 4294901760
        %v6427 = vsub.f32 %v6425, %v6426
        %v6428 = vand.u32 %v6427, 4294901760
        %6429 = vmatpush1.msra.mxu0 %v6428
        %6430 = vmatprep.subr.mxu0 0.0
        %v6431 = vand.u32 %v6198, 4294901760
        %v6432 = vsub.f32 %v6198, %v6431
        %v6433 = vand.u32 %v6432, 4294901760
        %v6434 = vsub.f32 %v6432, %v6433
        %v6435 = vand.u32 %v6434, 4294901760
        %6436 = vmatpush1.msra.mxu0 %v6435
        %6437 = vmatprep.subr.mxu0 0.0
        %v6438 = vand.u32 %v6197, 4294901760
        %v6439 = vsub.f32 %v6197, %v6438
        %v6440 = vand.u32 %v6439, 4294901760
        %v6441 = vsub.f32 %v6439, %v6440
        %v6442 = vand.u32 %v6441, 4294901760
        %6443 = vmatpush1.msra.mxu0 %v6442
        %6444 = vmatprep.subr.mxu0 0.0
        %v6445 = vand.u32 %v6196, 4294901760
        %v6446 = vsub.f32 %v6196, %v6445
        %v6447 = vand.u32 %v6446, 4294901760
        %v6448 = vsub.f32 %v6446, %v6447
        %v6449 = vand.u32 %v6448, 4294901760
        %6450 = vmatpush1.msra.mxu0 %v6449
        %6451 = vmatprep.subr.mxu0 0.0
        %v6452 = vand.u32 %v6195, 4294901760
        %v6453 = vsub.f32 %v6195, %v6452
        %v6454 = vand.u32 %v6453, 4294901760
        %v6455 = vsub.f32 %v6453, %v6454
        %v6456 = vand.u32 %v6455, 4294901760
        %6457 = vmatpush1.msra.mxu0 %v6456
        %6458 = vmatprep.subr.mxu0 0.0
        %v6459 = vand.u32 %v6194, 4294901760
        %v6460 = vsub.f32 %v6194, %v6459
        %v6461 = vand.u32 %v6460, 4294901760
        %v6462 = vsub.f32 %v6460, %v6461
        %v6463 = vand.u32 %v6462, 4294901760
        %6464 = vmatpush1.msra.mxu0 %v6463
        %6465 = vmatprep.subr.mxu0 0.0
        %v6466 = vand.u32 %v6225, 4294901760
        %v6467 = vsub.f32 %v6225, %v6466
        %v6468 = vand.u32 %v6467, 4294901760
        %v6469 = vsub.f32 %v6467, %v6468
        %v6470 = vand.u32 %v6469, 4294901760
        %6471 = vmatpush2.msra.mxu0 %v6470
        %6472 = vmatprep.subr.mxu0 0.0
        %v6473 = vand.u32 %v6224, 4294901760
        %v6474 = vsub.f32 %v6224, %v6473
        %v6475 = vand.u32 %v6474, 4294901760
        %v6476 = vsub.f32 %v6474, %v6475
        %v6477 = vand.u32 %v6476, 4294901760
        %6478 = vmatpush2.msra.mxu0 %v6477
        %6479 = vmatprep.subr.mxu0 0.0
        %v6480 = vand.u32 %v6223, 4294901760
        %v6481 = vsub.f32 %v6223, %v6480
        %v6482 = vand.u32 %v6481, 4294901760
        %v6483 = vsub.f32 %v6481, %v6482
        %v6484 = vand.u32 %v6483, 4294901760
        %6485 = vmatpush2.msra.mxu0 %v6484
        %6486 = vmatprep.subr.mxu0 0.0
        %v6487 = vand.u32 %v6222, 4294901760
        %v6488 = vsub.f32 %v6222, %v6487
        %v6489 = vand.u32 %v6488, 4294901760
        %v6490 = vsub.f32 %v6488, %v6489
        %v6491 = vand.u32 %v6490, 4294901760
        %6492 = vmatpush2.msra.mxu0 %v6491
        %6493 = vmatprep.subr.mxu0 0.0
        %v6494 = vand.u32 %v6221, 4294901760
        %v6495 = vsub.f32 %v6221, %v6494
        %v6496 = vand.u32 %v6495, 4294901760
        %v6497 = vsub.f32 %v6495, %v6496
        %v6498 = vand.u32 %v6497, 4294901760
        %6499 = vmatpush2.msra.mxu0 %v6498
        %6500 = vmatprep.subr.mxu0 0.0
        %v6501 = vand.u32 %v6220, 4294901760
        %v6502 = vsub.f32 %v6220, %v6501
        %v6503 = vand.u32 %v6502, 4294901760
        %v6504 = vsub.f32 %v6502, %v6503
        %v6505 = vand.u32 %v6504, 4294901760
        %6506 = vmatpush2.msra.mxu0 %v6505
        %6507 = vmatprep.subr.mxu0 0.0
        %v6508 = vand.u32 %v6219, 4294901760
        %v6509 = vsub.f32 %v6219, %v6508
        %v6510 = vand.u32 %v6509, 4294901760
        %v6511 = vsub.f32 %v6509, %v6510
        %v6512 = vand.u32 %v6511, 4294901760
        %6513 = vmatpush2.msra.mxu0 %v6512
        %6514 = vmatprep.subr.mxu0 0.0
        %v6515 = vand.u32 %v6218, 4294901760
        %v6516 = vsub.f32 %v6218, %v6515
        %v6517 = vand.u32 %v6516, 4294901760
        %v6518 = vsub.f32 %v6516, %v6517
        %v6519 = vand.u32 %v6518, 4294901760
        %6520 = vmatpush2.msra.mxu0 %v6519
        %6521 = vmatprep.subr.mxu0 0.0
        %v6522 = vand.u32 %v6217, 4294901760
        %v6523 = vsub.f32 %v6217, %v6522
        %v6524 = vand.u32 %v6523, 4294901760
        %v6525 = vsub.f32 %v6523, %v6524
        %v6526 = vand.u32 %v6525, 4294901760
        %6527 = vmatpush2.msra.mxu0 %v6526
        %6528 = vmatprep.subr.mxu0 0.0
        %v6529 = vand.u32 %v6216, 4294901760
        %v6530 = vsub.f32 %v6216, %v6529
        %v6531 = vand.u32 %v6530, 4294901760
        %v6532 = vsub.f32 %v6530, %v6531
        %v6533 = vand.u32 %v6532, 4294901760
        %6534 = vmatpush2.msra.mxu0 %v6533
        %6535 = vmatprep.subr.mxu0 0.0
        %v6536 = vand.u32 %v6215, 4294901760
        %v6537 = vsub.f32 %v6215, %v6536
        %v6538 = vand.u32 %v6537, 4294901760
        %v6539 = vsub.f32 %v6537, %v6538
        %v6540 = vand.u32 %v6539, 4294901760
        %6541 = vmatpush2.msra.mxu0 %v6540
        %6542 = vmatprep.subr.mxu0 0.0
        %v6543 = vand.u32 %v6214, 4294901760
        %v6544 = vsub.f32 %v6214, %v6543
        %v6545 = vand.u32 %v6544, 4294901760
        %v6546 = vsub.f32 %v6544, %v6545
        %v6547 = vand.u32 %v6546, 4294901760
        %6548 = vmatpush2.msra.mxu0 %v6547
        %6549 = vmatprep.subr.mxu0 0.0
        %v6550 = vand.u32 %v6213, 4294901760
        %v6551 = vsub.f32 %v6213, %v6550
        %v6552 = vand.u32 %v6551, 4294901760
        %v6553 = vsub.f32 %v6551, %v6552
        %v6554 = vand.u32 %v6553, 4294901760
        %6555 = vmatpush2.msra.mxu0 %v6554
        %6556 = vmatprep.subr.mxu0 0.0
        %v6557 = vand.u32 %v6212, 4294901760
        %v6558 = vsub.f32 %v6212, %v6557
        %v6559 = vand.u32 %v6558, 4294901760
        %v6560 = vsub.f32 %v6558, %v6559
        %v6561 = vand.u32 %v6560, 4294901760
        %6562 = vmatpush2.msra.mxu0 %v6561
        %6563 = vmatprep.subr.mxu0 0.0
        %v6564 = vand.u32 %v6211, 4294901760
        %v6565 = vsub.f32 %v6211, %v6564
        %v6566 = vand.u32 %v6565, 4294901760
        %v6567 = vsub.f32 %v6565, %v6566
        %v6568 = vand.u32 %v6567, 4294901760
        %6569 = vmatpush2.msra.mxu0 %v6568
        %6570 = vmatprep.subr.mxu0 0.0
        %v6571 = vand.u32 %v6210, 4294901760
        %v6572 = vsub.f32 %v6210, %v6571
        %v6573 = vand.u32 %v6572, 4294901760
        %v6574 = vsub.f32 %v6572, %v6573
        %v6575 = vand.u32 %v6574, 4294901760
        %6576 = vmatpush2.msra.mxu0 %v6575
        %v6577 = vand.u32 %v6191, 4294901760
        %6578 = vmatprep.mubr.f32.mxu0 %v6577
        %v6579 = vand.u32 %v6190, 4294901760
        %6580 = vmatmul.mubr.f32.gmra.mxu0 %v6579
        %v6581 = vpop.f32.mrf.mxu0
        %v6582 = vadd.f32 %v6335, %v6581
        %v6583 = vpop.f32.mrf.mxu0
        %v6584 = vand.u32 %v6193, 4294901760
        %6585 = vmatprep.mubr.f32.mxu0 %v6584
        %v6586 = vand.u32 %v6192, 4294901760
        %6587 = vmatmul.mubr.f32.gmra.mxu0 %v6586
        %v6588 = vpop.f32.mrf.mxu0
        %v6589 = vadd.f32 %v6350, %v6588
        %v6590 = vpop.f32.mrf.mxu0
        %6591 = vdwg.mxu0
        %6592 = vmatprep.subr.mxu0 0.0
        %v6593 = vand.u32 %v6209, 4294901760
        %v6594 = vsub.f32 %v6209, %v6593
        %6595 = vmatpush1.msra.mxu0 %v6594
        %6596 = vmatprep.subr.mxu0 0.0
        %v6597 = vand.u32 %v6208, 4294901760
        %v6598 = vsub.f32 %v6208, %v6597
        %6599 = vmatpush1.msra.mxu0 %v6598
        %6600 = vmatprep.subr.mxu0 0.0
        %v6601 = vand.u32 %v6207, 4294901760
        %v6602 = vsub.f32 %v6207, %v6601
        %6603 = vmatpush1.msra.mxu0 %v6602
        %6604 = vmatprep.subr.mxu0 0.0
        %v6605 = vand.u32 %v6206, 4294901760
        %v6606 = vsub.f32 %v6206, %v6605
        %6607 = vmatpush1.msra.mxu0 %v6606
        %6608 = vmatprep.subr.mxu0 0.0
        %v6609 = vand.u32 %v6205, 4294901760
        %v6610 = vsub.f32 %v6205, %v6609
        %6611 = vmatpush1.msra.mxu0 %v6610
        %6612 = vmatprep.subr.mxu0 0.0
        %v6613 = vand.u32 %v6204, 4294901760
        %v6614 = vsub.f32 %v6204, %v6613
        %6615 = vmatpush1.msra.mxu0 %v6614
        %6616 = vmatprep.subr.mxu0 0.0
        %v6617 = vand.u32 %v6203, 4294901760
        %v6618 = vsub.f32 %v6203, %v6617
        %6619 = vmatpush1.msra.mxu0 %v6618
        %6620 = vmatprep.subr.mxu0 0.0
        %v6621 = vand.u32 %v6202, 4294901760
        %v6622 = vsub.f32 %v6202, %v6621
        %6623 = vmatpush1.msra.mxu0 %v6622
        %6624 = vmatprep.subr.mxu0 0.0
        %v6625 = vand.u32 %v6201, 4294901760
        %v6626 = vsub.f32 %v6201, %v6625
        %6627 = vmatpush1.msra.mxu0 %v6626
        %6628 = vmatprep.subr.mxu0 0.0
        %v6629 = vand.u32 %v6200, 4294901760
        %v6630 = vsub.f32 %v6200, %v6629
        %6631 = vmatpush1.msra.mxu0 %v6630
        %6632 = vmatprep.subr.mxu0 0.0
        %v6633 = vand.u32 %v6199, 4294901760
        %v6634 = vsub.f32 %v6199, %v6633
        %6635 = vmatpush1.msra.mxu0 %v6634
        %6636 = vmatprep.subr.mxu0 0.0
        %v6637 = vand.u32 %v6198, 4294901760
        %v6638 = vsub.f32 %v6198, %v6637
        %6639 = vmatpush1.msra.mxu0 %v6638
        %6640 = vmatprep.subr.mxu0 0.0
        %v6641 = vand.u32 %v6197, 4294901760
        %v6642 = vsub.f32 %v6197, %v6641
        %6643 = vmatpush1.msra.mxu0 %v6642
        %6644 = vmatprep.subr.mxu0 0.0
        %v6645 = vand.u32 %v6196, 4294901760
        %v6646 = vsub.f32 %v6196, %v6645
        %6647 = vmatpush1.msra.mxu0 %v6646
        %6648 = vmatprep.subr.mxu0 0.0
        %v6649 = vand.u32 %v6195, 4294901760
        %v6650 = vsub.f32 %v6195, %v6649
        %6651 = vmatpush1.msra.mxu0 %v6650
        %6652 = vmatprep.subr.mxu0 0.0
        %v6653 = vand.u32 %v6194, 4294901760
        %v6654 = vsub.f32 %v6194, %v6653
        %6655 = vmatpush1.msra.mxu0 %v6654
        %6656 = vmatprep.subr.mxu0 0.0
        %v6657 = vand.u32 %v6225, 4294901760
        %v6658 = vsub.f32 %v6225, %v6657
        %6659 = vmatpush2.msra.mxu0 %v6658
        %6660 = vmatprep.subr.mxu0 0.0
        %v6661 = vand.u32 %v6224, 4294901760
        %v6662 = vsub.f32 %v6224, %v6661
        %6663 = vmatpush2.msra.mxu0 %v6662
        %6664 = vmatprep.subr.mxu0 0.0
        %v6665 = vand.u32 %v6223, 4294901760
        %v6666 = vsub.f32 %v6223, %v6665
        %6667 = vmatpush2.msra.mxu0 %v6666
        %6668 = vmatprep.subr.mxu0 0.0
        %v6669 = vand.u32 %v6222, 4294901760
        %v6670 = vsub.f32 %v6222, %v6669
        %6671 = vmatpush2.msra.mxu0 %v6670
        %6672 = vmatprep.subr.mxu0 0.0
        %v6673 = vand.u32 %v6221, 4294901760
        %v6674 = vsub.f32 %v6221, %v6673
        %6675 = vmatpush2.msra.mxu0 %v6674
        %6676 = vmatprep.subr.mxu0 0.0
        %v6677 = vand.u32 %v6220, 4294901760
        %v6678 = vsub.f32 %v6220, %v6677
        %6679 = vmatpush2.msra.mxu0 %v6678
        %6680 = vmatprep.subr.mxu0 0.0
        %v6681 = vand.u32 %v6219, 4294901760
        %v6682 = vsub.f32 %v6219, %v6681
        %6683 = vmatpush2.msra.mxu0 %v6682
        %6684 = vmatprep.subr.mxu0 0.0
        %v6685 = vand.u32 %v6218, 4294901760
        %v6686 = vsub.f32 %v6218, %v6685
        %6687 = vmatpush2.msra.mxu0 %v6686
        %6688 = vmatprep.subr.mxu0 0.0
        %v6689 = vand.u32 %v6217, 4294901760
        %v6690 = vsub.f32 %v6217, %v6689
        %6691 = vmatpush2.msra.mxu0 %v6690
        %6692 = vmatprep.subr.mxu0 0.0
        %v6693 = vand.u32 %v6216, 4294901760
        %v6694 = vsub.f32 %v6216, %v6693
        %6695 = vmatpush2.msra.mxu0 %v6694
        %6696 = vmatprep.subr.mxu0 0.0
        %v6697 = vand.u32 %v6215, 4294901760
        %v6698 = vsub.f32 %v6215, %v6697
        %6699 = vmatpush2.msra.mxu0 %v6698
        %6700 = vmatprep.subr.mxu0 0.0
        %v6701 = vand.u32 %v6214, 4294901760
        %v6702 = vsub.f32 %v6214, %v6701
        %6703 = vmatpush2.msra.mxu0 %v6702
        %6704 = vmatprep.subr.mxu0 0.0
        %v6705 = vand.u32 %v6213, 4294901760
        %v6706 = vsub.f32 %v6213, %v6705
        %6707 = vmatpush2.msra.mxu0 %v6706
        %6708 = vmatprep.subr.mxu0 0.0
        %v6709 = vand.u32 %v6212, 4294901760
        %v6710 = vsub.f32 %v6212, %v6709
        %6711 = vmatpush2.msra.mxu0 %v6710
        %6712 = vmatprep.subr.mxu0 0.0
        %v6713 = vand.u32 %v6211, 4294901760
        %v6714 = vsub.f32 %v6211, %v6713
        %6715 = vmatpush2.msra.mxu0 %v6714
        %6716 = vmatprep.subr.mxu0 0.0
        %v6717 = vand.u32 %v6210, 4294901760
        %v6718 = vsub.f32 %v6210, %v6717
        %6719 = vmatpush2.msra.mxu0 %v6718
        %v6720 = vand.u32 %v6191, 4294901760
        %v6721 = vsub.f32 %v6191, %v6720
        %6722 = vmatprep.mubr.f32.mxu0 %v6721
        %v6723 = vand.u32 %v6190, 4294901760
        %v6724 = vsub.f32 %v6190, %v6723
        %6725 = vmatmul.mubr.f32.gmra.mxu0 %v6724
        %v6726 = vpop.f32.mrf.mxu0
        %v6727 = vadd.f32 %v6582, %v6726
        %v6728 = vpop.f32.mrf.mxu0
        %v6729 = vand.u32 %v6193, 4294901760
        %v6730 = vsub.f32 %v6193, %v6729
        %6731 = vmatprep.mubr.f32.mxu0 %v6730
        %v6732 = vand.u32 %v6192, 4294901760
        %v6733 = vsub.f32 %v6192, %v6732
        %6734 = vmatmul.mubr.f32.gmra.mxu0 %v6733
        %v6735 = vpop.f32.mrf.mxu0
        %v6736 = vadd.f32 %v6589, %v6735
        %v6737 = vpop.f32.mrf.mxu0
        %6738 = vdwg.mxu0
        %6739 = vmatprep.subr.mxu0 0.0
        %v6740 = vand.u32 %v6209, 4294901760
        %6741 = vmatpush1.msra.mxu0 %v6740
        %6742 = vmatprep.subr.mxu0 0.0
        %v6743 = vand.u32 %v6208, 4294901760
        %6744 = vmatpush1.msra.mxu0 %v6743
        %6745 = vmatprep.subr.mxu0 0.0
        %v6746 = vand.u32 %v6207, 4294901760
        %6747 = vmatpush1.msra.mxu0 %v6746
        %6748 = vmatprep.subr.mxu0 0.0
        %v6749 = vand.u32 %v6206, 4294901760
        %6750 = vmatpush1.msra.mxu0 %v6749
        %6751 = vmatprep.subr.mxu0 0.0
        %v6752 = vand.u32 %v6205, 4294901760
        %6753 = vmatpush1.msra.mxu0 %v6752
        %6754 = vmatprep.subr.mxu0 0.0
        %v6755 = vand.u32 %v6204, 4294901760
        %6756 = vmatpush1.msra.mxu0 %v6755
        %6757 = vmatprep.subr.mxu0 0.0
        %v6758 = vand.u32 %v6203, 4294901760
        %6759 = vmatpush1.msra.mxu0 %v6758
        %6760 = vmatprep.subr.mxu0 0.0
        %v6761 = vand.u32 %v6202, 4294901760
        %6762 = vmatpush1.msra.mxu0 %v6761
        %6763 = vmatprep.subr.mxu0 0.0
        %v6764 = vand.u32 %v6201, 4294901760
        %6765 = vmatpush1.msra.mxu0 %v6764
        %6766 = vmatprep.subr.mxu0 0.0
        %v6767 = vand.u32 %v6200, 4294901760
        %6768 = vmatpush1.msra.mxu0 %v6767
        %6769 = vmatprep.subr.mxu0 0.0
        %v6770 = vand.u32 %v6199, 4294901760
        %6771 = vmatpush1.msra.mxu0 %v6770
        %6772 = vmatprep.subr.mxu0 0.0
        %v6773 = vand.u32 %v6198, 4294901760
        %6774 = vmatpush1.msra.mxu0 %v6773
        %6775 = vmatprep.subr.mxu0 0.0
        %v6776 = vand.u32 %v6197, 4294901760
        %6777 = vmatpush1.msra.mxu0 %v6776
        %6778 = vmatprep.subr.mxu0 0.0
        %v6779 = vand.u32 %v6196, 4294901760
        %6780 = vmatpush1.msra.mxu0 %v6779
        %6781 = vmatprep.subr.mxu0 0.0
        %v6782 = vand.u32 %v6195, 4294901760
        %6783 = vmatpush1.msra.mxu0 %v6782
        %6784 = vmatprep.subr.mxu0 0.0
        %v6785 = vand.u32 %v6194, 4294901760
        %6786 = vmatpush1.msra.mxu0 %v6785
        %6787 = vmatprep.subr.mxu0 0.0
        %v6788 = vand.u32 %v6225, 4294901760
        %6789 = vmatpush2.msra.mxu0 %v6788
        %6790 = vmatprep.subr.mxu0 0.0
        %v6791 = vand.u32 %v6224, 4294901760
        %6792 = vmatpush2.msra.mxu0 %v6791
        %6793 = vmatprep.subr.mxu0 0.0
        %v6794 = vand.u32 %v6223, 4294901760
        %6795 = vmatpush2.msra.mxu0 %v6794
        %6796 = vmatprep.subr.mxu0 0.0
        %v6797 = vand.u32 %v6222, 4294901760
        %6798 = vmatpush2.msra.mxu0 %v6797
        %6799 = vmatprep.subr.mxu0 0.0
        %v6800 = vand.u32 %v6221, 4294901760
        %6801 = vmatpush2.msra.mxu0 %v6800
        %6802 = vmatprep.subr.mxu0 0.0
        %v6803 = vand.u32 %v6220, 4294901760
        %6804 = vmatpush2.msra.mxu0 %v6803
        %6805 = vmatprep.subr.mxu0 0.0
        %v6806 = vand.u32 %v6219, 4294901760
        %6807 = vmatpush2.msra.mxu0 %v6806
        %6808 = vmatprep.subr.mxu0 0.0
        %v6809 = vand.u32 %v6218, 4294901760
        %6810 = vmatpush2.msra.mxu0 %v6809
        %6811 = vmatprep.subr.mxu0 0.0
        %v6812 = vand.u32 %v6217, 4294901760
        %6813 = vmatpush2.msra.mxu0 %v6812
        %6814 = vmatprep.subr.mxu0 0.0
        %v6815 = vand.u32 %v6216, 4294901760
        %6816 = vmatpush2.msra.mxu0 %v6815
        %6817 = vmatprep.subr.mxu0 0.0
        %v6818 = vand.u32 %v6215, 4294901760
        %6819 = vmatpush2.msra.mxu0 %v6818
        %6820 = vmatprep.subr.mxu0 0.0
        %v6821 = vand.u32 %v6214, 4294901760
        %6822 = vmatpush2.msra.mxu0 %v6821
        %6823 = vmatprep.subr.mxu0 0.0
        %v6824 = vand.u32 %v6213, 4294901760
        %6825 = vmatpush2.msra.mxu0 %v6824
        %6826 = vmatprep.subr.mxu0 0.0
        %v6827 = vand.u32 %v6212, 4294901760
        %6828 = vmatpush2.msra.mxu0 %v6827
        %6829 = vmatprep.subr.mxu0 0.0
        %v6830 = vand.u32 %v6211, 4294901760
        %6831 = vmatpush2.msra.mxu0 %v6830
        %6832 = vmatprep.subr.mxu0 0.0
        %v6833 = vand.u32 %v6210, 4294901760
        %6834 = vmatpush2.msra.mxu0 %v6833
        %v6835 = vand.u32 %v6191, 4294901760
        %v6836 = vsub.f32 %v6191, %v6835
        %v6837 = vand.u32 %v6836, 4294901760
        %6838 = vmatprep.mubr.f32.mxu0 %v6837
        %v6839 = vand.u32 %v6190, 4294901760
        %v6840 = vsub.f32 %v6190, %v6839
        %v6841 = vand.u32 %v6840, 4294901760
        %6842 = vmatmul.mubr.f32.gmra.mxu0 %v6841
        %v6843 = vpop.f32.mrf.mxu0
        %v6844 = vadd.f32 %v6727, %v6843
        %v6845 = vpop.f32.mrf.mxu0
        %v6846 = vand.u32 %v6193, 4294901760
        %v6847 = vsub.f32 %v6193, %v6846
        %v6848 = vand.u32 %v6847, 4294901760
        %6849 = vmatprep.mubr.f32.mxu0 %v6848
        %v6850 = vand.u32 %v6192, 4294901760
        %v6851 = vsub.f32 %v6192, %v6850
        %v6852 = vand.u32 %v6851, 4294901760
        %6853 = vmatmul.mubr.f32.gmra.mxu0 %v6852
        %v6854 = vpop.f32.mrf.mxu0
        %v6855 = vadd.f32 %v6736, %v6854
        %v6856 = vpop.f32.mrf.mxu0
        %6857 = vdwg.mxu0
        %6858 = vmatprep.subr.mxu0 0.0
        %v6859 = vand.u32 %v6209, 4294901760
        %v6860 = vsub.f32 %v6209, %v6859
        %v6861 = vand.u32 %v6860, 4294901760
        %6862 = vmatpush1.msra.mxu0 %v6861
        %6863 = vmatprep.subr.mxu0 0.0
        %v6864 = vand.u32 %v6208, 4294901760
        %v6865 = vsub.f32 %v6208, %v6864
        %v6866 = vand.u32 %v6865, 4294901760
        %6867 = vmatpush1.msra.mxu0 %v6866
        %6868 = vmatprep.subr.mxu0 0.0
        %v6869 = vand.u32 %v6207, 4294901760
        %v6870 = vsub.f32 %v6207, %v6869
        %v6871 = vand.u32 %v6870, 4294901760
        %6872 = vmatpush1.msra.mxu0 %v6871
        %6873 = vmatprep.subr.mxu0 0.0
        %v6874 = vand.u32 %v6206, 4294901760
        %v6875 = vsub.f32 %v6206, %v6874
        %v6876 = vand.u32 %v6875, 4294901760
        %6877 = vmatpush1.msra.mxu0 %v6876
        %6878 = vmatprep.subr.mxu0 0.0
        %v6879 = vand.u32 %v6205, 4294901760
        %v6880 = vsub.f32 %v6205, %v6879
        %v6881 = vand.u32 %v6880, 4294901760
        %6882 = vmatpush1.msra.mxu0 %v6881
        %6883 = vmatprep.subr.mxu0 0.0
        %v6884 = vand.u32 %v6204, 4294901760
        %v6885 = vsub.f32 %v6204, %v6884
        %v6886 = vand.u32 %v6885, 4294901760
        %6887 = vmatpush1.msra.mxu0 %v6886
        %6888 = vmatprep.subr.mxu0 0.0
        %v6889 = vand.u32 %v6203, 4294901760
        %v6890 = vsub.f32 %v6203, %v6889
        %v6891 = vand.u32 %v6890, 4294901760
        %6892 = vmatpush1.msra.mxu0 %v6891
        %6893 = vmatprep.subr.mxu0 0.0
        %v6894 = vand.u32 %v6202, 4294901760
        %v6895 = vsub.f32 %v6202, %v6894
        %v6896 = vand.u32 %v6895, 4294901760
        %6897 = vmatpush1.msra.mxu0 %v6896
        %6898 = vmatprep.subr.mxu0 0.0
        %v6899 = vand.u32 %v6201, 4294901760
        %v6900 = vsub.f32 %v6201, %v6899
        %v6901 = vand.u32 %v6900, 4294901760
        %6902 = vmatpush1.msra.mxu0 %v6901
        %6903 = vmatprep.subr.mxu0 0.0
        %v6904 = vand.u32 %v6200, 4294901760
        %v6905 = vsub.f32 %v6200, %v6904
        %v6906 = vand.u32 %v6905, 4294901760
        %6907 = vmatpush1.msra.mxu0 %v6906
        %6908 = vmatprep.subr.mxu0 0.0
        %v6909 = vand.u32 %v6199, 4294901760
        %v6910 = vsub.f32 %v6199, %v6909
        %v6911 = vand.u32 %v6910, 4294901760
        %6912 = vmatpush1.msra.mxu0 %v6911
        %6913 = vmatprep.subr.mxu0 0.0
        %v6914 = vand.u32 %v6198, 4294901760
        %v6915 = vsub.f32 %v6198, %v6914
        %v6916 = vand.u32 %v6915, 4294901760
        %6917 = vmatpush1.msra.mxu0 %v6916
        %6918 = vmatprep.subr.mxu0 0.0
        %v6919 = vand.u32 %v6197, 4294901760
        %v6920 = vsub.f32 %v6197, %v6919
        %v6921 = vand.u32 %v6920, 4294901760
        %6922 = vmatpush1.msra.mxu0 %v6921
        %6923 = vmatprep.subr.mxu0 0.0
        %v6924 = vand.u32 %v6196, 4294901760
        %v6925 = vsub.f32 %v6196, %v6924
        %v6926 = vand.u32 %v6925, 4294901760
        %6927 = vmatpush1.msra.mxu0 %v6926
        %6928 = vmatprep.subr.mxu0 0.0
        %v6929 = vand.u32 %v6195, 4294901760
        %v6930 = vsub.f32 %v6195, %v6929
        %v6931 = vand.u32 %v6930, 4294901760
        %6932 = vmatpush1.msra.mxu0 %v6931
        %6933 = vmatprep.subr.mxu0 0.0
        %v6934 = vand.u32 %v6194, 4294901760
        %v6935 = vsub.f32 %v6194, %v6934
        %v6936 = vand.u32 %v6935, 4294901760
        %6937 = vmatpush1.msra.mxu0 %v6936
        %6938 = vmatprep.subr.mxu0 0.0
        %v6939 = vand.u32 %v6225, 4294901760
        %v6940 = vsub.f32 %v6225, %v6939
        %v6941 = vand.u32 %v6940, 4294901760
        %6942 = vmatpush2.msra.mxu0 %v6941
        %6943 = vmatprep.subr.mxu0 0.0
        %v6944 = vand.u32 %v6224, 4294901760
        %v6945 = vsub.f32 %v6224, %v6944
        %v6946 = vand.u32 %v6945, 4294901760
        %6947 = vmatpush2.msra.mxu0 %v6946
        %6948 = vmatprep.subr.mxu0 0.0
        %v6949 = vand.u32 %v6223, 4294901760
        %v6950 = vsub.f32 %v6223, %v6949
        %v6951 = vand.u32 %v6950, 4294901760
        %6952 = vmatpush2.msra.mxu0 %v6951
        %6953 = vmatprep.subr.mxu0 0.0
        %v6954 = vand.u32 %v6222, 4294901760
        %v6955 = vsub.f32 %v6222, %v6954
        %v6956 = vand.u32 %v6955, 4294901760
        %6957 = vmatpush2.msra.mxu0 %v6956
        %6958 = vmatprep.subr.mxu0 0.0
        %v6959 = vand.u32 %v6221, 4294901760
        %v6960 = vsub.f32 %v6221, %v6959
        %v6961 = vand.u32 %v6960, 4294901760
        %6962 = vmatpush2.msra.mxu0 %v6961
        %6963 = vmatprep.subr.mxu0 0.0
        %v6964 = vand.u32 %v6220, 4294901760
        %v6965 = vsub.f32 %v6220, %v6964
        %v6966 = vand.u32 %v6965, 4294901760
        %6967 = vmatpush2.msra.mxu0 %v6966
        %6968 = vmatprep.subr.mxu0 0.0
        %v6969 = vand.u32 %v6219, 4294901760
        %v6970 = vsub.f32 %v6219, %v6969
        %v6971 = vand.u32 %v6970, 4294901760
        %6972 = vmatpush2.msra.mxu0 %v6971
        %6973 = vmatprep.subr.mxu0 0.0
        %v6974 = vand.u32 %v6218, 4294901760
        %v6975 = vsub.f32 %v6218, %v6974
        %v6976 = vand.u32 %v6975, 4294901760
        %6977 = vmatpush2.msra.mxu0 %v6976
        %6978 = vmatprep.subr.mxu0 0.0
        %v6979 = vand.u32 %v6217, 4294901760
        %v6980 = vsub.f32 %v6217, %v6979
        %v6981 = vand.u32 %v6980, 4294901760
        %6982 = vmatpush2.msra.mxu0 %v6981
        %6983 = vmatprep.subr.mxu0 0.0
        %v6984 = vand.u32 %v6216, 4294901760
        %v6985 = vsub.f32 %v6216, %v6984
        %v6986 = vand.u32 %v6985, 4294901760
        %6987 = vmatpush2.msra.mxu0 %v6986
        %6988 = vmatprep.subr.mxu0 0.0
        %v6989 = vand.u32 %v6215, 4294901760
        %v6990 = vsub.f32 %v6215, %v6989
        %v6991 = vand.u32 %v6990, 4294901760
        %6992 = vmatpush2.msra.mxu0 %v6991
        %6993 = vmatprep.subr.mxu0 0.0
        %v6994 = vand.u32 %v6214, 4294901760
        %v6995 = vsub.f32 %v6214, %v6994
        %v6996 = vand.u32 %v6995, 4294901760
        %6997 = vmatpush2.msra.mxu0 %v6996
        %6998 = vmatprep.subr.mxu0 0.0
        %v6999 = vand.u32 %v6213, 4294901760
        %v7000 = vsub.f32 %v6213, %v6999
        %v7001 = vand.u32 %v7000, 4294901760
        %7002 = vmatpush2.msra.mxu0 %v7001
        %7003 = vmatprep.subr.mxu0 0.0
        %v7004 = vand.u32 %v6212, 4294901760
        %v7005 = vsub.f32 %v6212, %v7004
        %v7006 = vand.u32 %v7005, 4294901760
        %7007 = vmatpush2.msra.mxu0 %v7006
        %7008 = vmatprep.subr.mxu0 0.0
        %v7009 = vand.u32 %v6211, 4294901760
        %v7010 = vsub.f32 %v6211, %v7009
        %v7011 = vand.u32 %v7010, 4294901760
        %7012 = vmatpush2.msra.mxu0 %v7011
        %7013 = vmatprep.subr.mxu0 0.0
        %v7014 = vand.u32 %v6210, 4294901760
        %v7015 = vsub.f32 %v6210, %v7014
        %v7016 = vand.u32 %v7015, 4294901760
        %7017 = vmatpush2.msra.mxu0 %v7016
        %v7018 = vand.u32 %v6191, 4294901760
        %7019 = vmatprep.mubr.f32.mxu0 %v7018
        %v7020 = vand.u32 %v6190, 4294901760
        %7021 = vmatmul.mubr.f32.gmra.mxu0 %v7020
        %v7022 = vpop.f32.mrf.mxu0
        %v7023 = vadd.f32 %v6844, %v7022
        %v7024 = vpop.f32.mrf.mxu0
        %v7025 = vand.u32 %v6193, 4294901760
        %7026 = vmatprep.mubr.f32.mxu0 %v7025
        %v7027 = vand.u32 %v6192, 4294901760
        %7028 = vmatmul.mubr.f32.gmra.mxu0 %v7027
        %v7029 = vpop.f32.mrf.mxu0
        %v7030 = vadd.f32 %v6855, %v7029
        %v7031 = vpop.f32.mrf.mxu0
        %7032 = vdwg.mxu0
        %7033 = vmatprep.subr.mxu0 0.0
        %v7034 = vand.u32 %v6209, 4294901760
        %7035 = vmatpush1.msra.mxu0 %v7034
        %7036 = vmatprep.subr.mxu0 0.0
        %v7037 = vand.u32 %v6208, 4294901760
        %7038 = vmatpush1.msra.mxu0 %v7037
        %7039 = vmatprep.subr.mxu0 0.0
        %v7040 = vand.u32 %v6207, 4294901760
        %7041 = vmatpush1.msra.mxu0 %v7040
        %7042 = vmatprep.subr.mxu0 0.0
        %v7043 = vand.u32 %v6206, 4294901760
        %7044 = vmatpush1.msra.mxu0 %v7043
        %7045 = vmatprep.subr.mxu0 0.0
        %v7046 = vand.u32 %v6205, 4294901760
        %7047 = vmatpush1.msra.mxu0 %v7046
        %7048 = vmatprep.subr.mxu0 0.0
        %v7049 = vand.u32 %v6204, 4294901760
        %7050 = vmatpush1.msra.mxu0 %v7049
        %7051 = vmatprep.subr.mxu0 0.0
        %v7052 = vand.u32 %v6203, 4294901760
        %7053 = vmatpush1.msra.mxu0 %v7052
        %7054 = vmatprep.subr.mxu0 0.0
        %v7055 = vand.u32 %v6202, 4294901760
        %7056 = vmatpush1.msra.mxu0 %v7055
        %7057 = vmatprep.subr.mxu0 0.0
        %v7058 = vand.u32 %v6201, 4294901760
        %7059 = vmatpush1.msra.mxu0 %v7058
        %7060 = vmatprep.subr.mxu0 0.0
        %v7061 = vand.u32 %v6200, 4294901760
        %7062 = vmatpush1.msra.mxu0 %v7061
        %7063 = vmatprep.subr.mxu0 0.0
        %v7064 = vand.u32 %v6199, 4294901760
        %7065 = vmatpush1.msra.mxu0 %v7064
        %7066 = vmatprep.subr.mxu0 0.0
        %v7067 = vand.u32 %v6198, 4294901760
        %7068 = vmatpush1.msra.mxu0 %v7067
        %7069 = vmatprep.subr.mxu0 0.0
        %v7070 = vand.u32 %v6197, 4294901760
        %7071 = vmatpush1.msra.mxu0 %v7070
        %7072 = vmatprep.subr.mxu0 0.0
        %v7073 = vand.u32 %v6196, 4294901760
        %7074 = vmatpush1.msra.mxu0 %v7073
        %7075 = vmatprep.subr.mxu0 0.0
        %v7076 = vand.u32 %v6195, 4294901760
        %7077 = vmatpush1.msra.mxu0 %v7076
        %7078 = vmatprep.subr.mxu0 0.0
        %v7079 = vand.u32 %v6194, 4294901760
        %7080 = vmatpush1.msra.mxu0 %v7079
        %7081 = vmatprep.subr.mxu0 0.0
        %v7082 = vand.u32 %v6225, 4294901760
        %7083 = vmatpush2.msra.mxu0 %v7082
        %7084 = vmatprep.subr.mxu0 0.0
        %v7085 = vand.u32 %v6224, 4294901760
        %7086 = vmatpush2.msra.mxu0 %v7085
        %7087 = vmatprep.subr.mxu0 0.0
        %v7088 = vand.u32 %v6223, 4294901760
        %7089 = vmatpush2.msra.mxu0 %v7088
        %7090 = vmatprep.subr.mxu0 0.0
        %v7091 = vand.u32 %v6222, 4294901760
        %7092 = vmatpush2.msra.mxu0 %v7091
        %7093 = vmatprep.subr.mxu0 0.0
        %v7094 = vand.u32 %v6221, 4294901760
        %7095 = vmatpush2.msra.mxu0 %v7094
        %7096 = vmatprep.subr.mxu0 0.0
        %v7097 = vand.u32 %v6220, 4294901760
        %7098 = vmatpush2.msra.mxu0 %v7097
        %7099 = vmatprep.subr.mxu0 0.0
        %v7100 = vand.u32 %v6219, 4294901760
        %7101 = vmatpush2.msra.mxu0 %v7100
        %7102 = vmatprep.subr.mxu0 0.0
        %v7103 = vand.u32 %v6218, 4294901760
        %7104 = vmatpush2.msra.mxu0 %v7103
        %7105 = vmatprep.subr.mxu0 0.0
        %v7106 = vand.u32 %v6217, 4294901760
        %7107 = vmatpush2.msra.mxu0 %v7106
        %7108 = vmatprep.subr.mxu0 0.0
        %v7109 = vand.u32 %v6216, 4294901760
        %7110 = vmatpush2.msra.mxu0 %v7109
        %7111 = vmatprep.subr.mxu0 0.0
        %v7112 = vand.u32 %v6215, 4294901760
        %7113 = vmatpush2.msra.mxu0 %v7112
        %7114 = vmatprep.subr.mxu0 0.0
        %v7115 = vand.u32 %v6214, 4294901760
        %7116 = vmatpush2.msra.mxu0 %v7115
        %7117 = vmatprep.subr.mxu0 0.0
        %v7118 = vand.u32 %v6213, 4294901760
        %7119 = vmatpush2.msra.mxu0 %v7118
        %7120 = vmatprep.subr.mxu0 0.0
        %v7121 = vand.u32 %v6212, 4294901760
        %7122 = vmatpush2.msra.mxu0 %v7121
        %7123 = vmatprep.subr.mxu0 0.0
        %v7124 = vand.u32 %v6211, 4294901760
        %7125 = vmatpush2.msra.mxu0 %v7124
        %7126 = vmatprep.subr.mxu0 0.0
        %v7127 = vand.u32 %v6210, 4294901760
        %7128 = vmatpush2.msra.mxu0 %v7127
        %v7129 = vand.u32 %v6191, 4294901760
        %7130 = vmatprep.mubr.f32.mxu0 %v7129
        %v7131 = vand.u32 %v6190, 4294901760
        %7132 = vmatmul.mubr.f32.gmra.mxu0 %v7131
        %v7133 = vpop.f32.mrf.mxu0
        %v7134 = vadd.f32 %v7023, %v7133
        %v7135 = vpop.f32.mrf.mxu0
        %v7136 = vand.u32 %v6193, 4294901760
        %7137 = vmatprep.mubr.f32.mxu0 %v7136
        %v7138 = vand.u32 %v6192, 4294901760
        %7139 = vmatmul.mubr.f32.gmra.mxu0 %v7138
        %v7140 = vpop.f32.mrf.mxu0
        %v7141 = vadd.f32 %v7030, %v7140
        %v7142 = vpop.f32.mrf.mxu0
        %7143 = vdwg.mxu0
        %v7144 = vxor.u32 %v7134, 2147483648
        %v7145 = vxor.u32 %v7141, 2147483648
        %v7146 = vmul.f32 %v7144, 1.442695
        %v7147 = vpow.pop %v7146
        %v7148 = vmul.f32 %v7145, 1.442695
        %v7149 = vpow.pop %v7148
        %v7150 = vadd.f32 %v7147, 1.0
        %v7151 = vadd.f32 %v7149, 1.0
        %v7152 = vrcp.pop %v7150
        %v7153 = vmul.f32 1.0, %v7152
        %v7154 = vrcp.pop %v7151
        %v7155 = vmul.f32 1.0, %v7154
        %s7156 = smul.u32 %s31, 16
        %s7157 = scalar_lea.vmem [#allocation3], %s7156
        %7158 = vst [vmem:[%s7157] sm:$0xff] %v7153
        %7159 = vst [vmem:[%s7157 + $0x8] sm:$0xff] %v7155
        %p7160 = scmp.eq.s32.totalorder %s31, 1
        // Predicated region
        $region69: #{rwkv_channel_mix.1} parent=43 // pred_check
          %p7161 = pneg %p7160
        $region70: #{rwkv_channel_mix.1} parent=43 // pred_check_branch
          %7163 = sbr.rel (%p7161) target = $region72
        $region71: #{rwkv_channel_mix.1} parent=43 // pred_region
          %v7164 = vld [vmem:[#allocation3] sm:$0xff]
          %v7165 = vld [vmem:[#allocation3 + $0x8] sm:$0xff]
          %v7166 = vld [vmem:[#allocation2] sm:$0xff]
          %v7167 = vld [vmem:[#allocation2 + $0x10] sm:$0xff]
          %v7168 = vmul.f32 %v7164, %v7166
          %v7169 = vmul.f32 %v7165, %v7167
          %7170 = vst [vmem:[%s394] sm:$0xff] %v7168
          %7171 = vst [vmem:[%s394 + $0x10] sm:$0xff] %v7169
          %s7172 = scalar_lea.vmem [#allocation3], 16
          %v7173 = vld [vmem:[%s7172] sm:$0xff]
          %v7174 = vld [vmem:[%s7172 + $0x8] sm:$0xff]
          %v7175 = vld [vmem:[#allocation2 + $0x8] sm:$0xff]
          %v7176 = vld [vmem:[#allocation2 + $0x18] sm:$0xff]
          %v7177 = vmul.f32 %v7173, %v7175
          %v7178 = vmul.f32 %v7174, %v7176
          %7179 = vst [vmem:[%s394 + $0x8] sm:$0xff] %v7177
          %7180 = vst [vmem:[%s394 + $0x18] sm:$0xff] %v7178
        $region72: #{rwkv_channel_mix.1} parent=43 // pred_fallthru
          _
        %s7181 = sand.u32 %s197, 1
        %s7182 = scalar_lea.sflag [#allocation8], %s7181
        %s7183 = sand.u32 %s197, 1
        %s7184 = smul.addr %s7183, 32
        %s7185 = scalar_lea.vmem [#allocation12], %s7184
        // Predicated region
        $region73: #{rwkv_channel_mix.1} parent=43 // pred_check
          %p7186 = pneg %p207
        $region74: #{rwkv_channel_mix.1} parent=43 // pred_check_branch
          %7188 = sbr.rel (%p7186) target = $region76
        $region75: #{rwkv_channel_mix.1} parent=43 // pred_region
          %s7189 = smul.u32 2, %s30
          %s7191 = ssub.s32 512, 512
          %7192 = vsyncadd %s7182, %s7191
          %s7193 = smul.addr %s7189, 2
          %s7194 = smul.addr %s7193, 128
          %s7195 = scalar_lea.hbm %s6, %s7194
          %s7196 = sshll.u32 %s7185, 4
          %s7197 = int_to_ptr.vmem [resolvable:$true] %s7196
          %7202 = dma.vmem_to_hbm [thread:$0]  %s7197, 512, %s7195, %s7182, 256, 256, 16
        $region76: #{rwkv_channel_mix.1} parent=43 // pred_fallthru
          _
      $region44: #{rwkv_channel_mix.1} parent=5 // pred_fallthru
        _
      %p7203 = scmp.le.s32.totalorder 2, %s21
      // Predicated region
      $region77: #{rwkv_channel_mix.1} parent=5 // pred_check
        %p7204 = pneg %p7203
      $region78: #{rwkv_channel_mix.1} parent=5 // pred_check_branch
        %7206 = sbr.rel (%p7204) target = $region80
      $region79: #{rwkv_channel_mix.1} parent=5 // pred_region
        %s7207 = ssub.s32 %s21, 2
        // Predicated region
        $region81: #{rwkv_channel_mix.1} parent=79 // pred_check
          %p7208 = pneg %p213
        $region82: #{rwkv_channel_mix.1} parent=79 // pred_check_branch
          %7210 = sbr.rel (%p7208) target = $region84
        $region83: #{rwkv_channel_mix.1} parent=79 // pred_region
          %s7211 = sand.u32 %s198, 1
          %s7212 = scalar_lea.sflag [#allocation8], %s7211
          %s7213 = sand.u32 %s198, 1
          %s7214 = smul.addr %s7213, 32
          %s7215 = scalar_lea.vmem [#allocation12], %s7214
          %7216 = dma.done %s7212, 512
        $region84: #{rwkv_channel_mix.1} parent=79 // pred_fallthru
          _
      $region80: #{rwkv_channel_mix.1} parent=5 // pred_fallthru
        _
    $region6: #{rwkv_channel_mix.1} parent=1 // loop_footer
      %s25 = sadd.s32 1, %s21
    $region7: #{rwkv_channel_mix.1} parent=1 // loop_footer_branch
      %20 = sbr.rel target = $region3
    $region8: #{rwkv_channel_mix.1} parent=1 // loop_exit
      _
    %7217 = vsyncpa [#allocation7], 1
    %s7218 = scalar_lea.sflag [#allocation7], 1
    %7219 = vsyncpa %s7218, 1
    %7220 = vsyncpa [#allocation10], 1
    %s7221 = scalar_lea.sflag [#allocation10], 1
    %7222 = vsyncpa %s7221, 1
    %7223 = vsyncpa [#allocation8], 1
    %s7224 = scalar_lea.sflag [#allocation8], 1
    %7225 = vsyncpa %s7224, 1

</llo_original>
